<compile_context>
chip_gen: v5e
topology: v5e:2x2
jax: 0.10.0
libtpu: 0.0.40
codegen_flags: <defaults>
</compile_context>

<pallas_src>
import numpy as np
import jax
import jax.numpy as jnp
from jax import lax
from jax.experimental import pallas as pl
from jax.experimental.pallas import tpu as pltpu

EMBED_DIM = 128
HIDDEN1 = 128
HIDDEN2 = 64
RATIO = 0.8
NUM_LAYERS = 3


def _outer(a, b):
    """[M,1] x [N,1] -> [M,N] outer product as a K=1 MXU matmul (O(M*N), not O(N^3))."""
    return lax.dot_general(a, b, (((1,), (1,)), ((), ())),
                           preferred_element_type=jnp.float32)


# ----------------------------------------------------------------------------
# The single fused Pallas kernel (entire forward pass for one mini-batch slab)
# ----------------------------------------------------------------------------
def gnn_fused_kernel(x_ref, adj_ref, member_ref, conv_w_ref, conv_aux_ref,
                     head_w_ref, head_aux_ref, out_ref):
    n = adj_ref.shape[0]
    g = member_ref.shape[0]
    h1 = HIDDEN1

    x = x_ref[...]            # [N, D]   item embeddings
    adj = adj_ref[...]        # [N, N]   adjacency adj[dst, src], pre-masked to valid nodes
    member = member_ref[...]  # [G, N]   graph membership of initially-valid nodes

    # Same-graph candidate mask & initial validity derived from membership
    # (saves two per-slab HBM inputs). Entries are exact 0/1 in f32.
    mem_t = jnp.transpose(member)                                         # [N, G]
    cand = jnp.dot(mem_t, member, preferred_element_type=jnp.float32)     # [N, N]
    valid = jnp.sum(mem_t, axis=1, keepdims=True)                         # [N, 1]

    ones_col = jnp.ones((n, 1), jnp.float32)
    row_i = lax.broadcasted_iota(jnp.int32, (n, n), 0)
    col_i = lax.broadcasted_iota(jnp.int32, (n, n), 1)
    tie_lower = col_i < row_i                       # tie-break: lower node index wins

    pooled = jnp.zeros((g, h1), jnp.float32)        # x1 + x2 + x3 accumulator

    for l in range(NUM_LAYERS):                     # unrolled; weights differ per layer
        wcat = conv_w_ref[l]                        # [2D, H] rows 0..D-1 lin_l, D..2D-1 lin_r
        aux = conv_aux_ref[l]                       # [2, H]  row 0 bias, row 1 w/||w||
        bl = aux[0:1, :]
        pw = aux[1:2, :]

        # --- SAGEConv (mean aggregation) + ReLU: one fused K=2D matmul --------------
        deg = jnp.sum(adj, axis=1, keepdims=True)                         # [N, 1]
        inv_deg = jnp.where(deg > 0.0, 1.0 / jnp.maximum(deg, 1.0), 0.0)  # exact divide
        agg = jnp.dot(adj, x, preferred_element_type=jnp.float32) * inv_deg
        feat = jnp.concatenate([agg, x], axis=1)                          # [N, 2D]
        h = jnp.dot(feat, wcat, preferred_element_type=jnp.float32) + bl
        h = jnp.maximum(h, 0.0)                                           # [N, H]

        # --- TopKPooling: score = tanh(h.w/||w||), keep top ceil(0.8*n_g) per graph --
        score = jnp.tanh(jnp.sum(h * pw, axis=1, keepdims=True))          # [N, 1]
        s = jnp.where(valid > 0.5, score, -1e30)    # padded/dropped nodes never win
        # Both comparison operands go through the identical K=1 MXU path so the
        # rank/tie logic is self-consistent under any matmul rounding (f32 path).
        s_row = _outer(ones_col, s)                 # s_row[i, j] = R(s[j])
        s_col = _outer(s, ones_col)                 # s_col[i, j] = R(s[i])
        better = jnp.where((s_row > s_col) | ((s_row == s_col) & tie_lower), 1.0, 0.0)
        rank = jnp.sum(cand * better, axis=1, keepdims=True)              # [N, 1]
        n_g = jnp.sum(cand, axis=1, keepdims=True)                        # [N, 1]
        keep = ((valid > 0.5) & (rank < jnp.ceil(RATIO * n_g))).astype(jnp.float32)

        # --- gate x <- x*score*keep; filter adjacency & candidates via keep ⊗ keep ---
        x = h * (score * keep)
        ko = _outer(keep, keep)                     # [N, N] keep[i]*keep[j]
        adj = adj * ko
        cand = cand * ko
        valid = keep

        # --- global_mean_pool over kept nodes (dropped/pad rows of x are zero) -------
        cnt = jnp.dot(member, keep, preferred_element_type=jnp.float32)   # [G, 1]
        inv_cnt = jnp.where(cnt > 0.0, 1.0 / jnp.maximum(cnt, 1.0), 0.0)
        pooled = pooled + jnp.dot(member, x,
                                  preferred_element_type=jnp.float32) * inv_cnt

    # --- MLP head: lin1 -> relu -> lin2 -> relu -> (dropout) -> lin3 -> sigmoid ------
    w1 = head_w_ref[:, 0:h1]                         # [128, 128]
    w2 = head_w_ref[:, h1:2 * h1]                    # [128, 128] (cols >= 64 zero-padded)
    b1 = head_aux_ref[0:1, 0:h1]                     # [1, 128]
    b2 = head_aux_ref[0:1, h1:2 * h1]                # [1, 128] (zero-padded)
    w3r = head_aux_ref[1:2, 0:h1]                    # [1, 128] lin3 weight^T, zero-padded
    b3 = head_aux_ref[2:3, 0:1]                      # [1, 1]

    z1 = jnp.maximum(jnp.dot(pooled, w1, preferred_element_type=jnp.float32) + b1, 0.0)
    z2 = jnp.maximum(jnp.dot(z1, w2, preferred_element_type=jnp.float32) + b2, 0.0)
    # TODO(synk): F.dropout(p=0.5) is identity at inference; training mode would draw an
    # in-kernel mask via pltpu.prng_seed + pltpu.prng_random_bits.
    # Lane-dense logits: a [1, G] row (dense vst) instead of a [G, 1] masked-store column.
    logits = jnp.dot(w3r, z2.T, preferred_element_type=jnp.float32) + b3   # [1, G]
    out_ref[...] = jax.nn.sigmoid(logits)


# ----------------------------------------------------------------------------
# XLA wrapper: static structure + packed weights + one pallas_call over B slabs
# ----------------------------------------------------------------------------
def _normalize_row(w):
    return w / jnp.sqrt(jnp.sum(w * w))


def gnn_forward(params, item_idx, adj, batch_ids, node_mask, *, g_pad):
    """item_idx/adj/batch_ids/node_mask carry a leading mini-batch (slab) dimension B."""
    bsz, n_pad = item_idx.shape
    d, h1 = EMBED_DIM, HIDDEN1

    # item_embedding(x).squeeze(1): data-dependent gather stays in XLA (one-off).
    # TODO(synk): at larger N_pad, gather embedding rows in-kernel via scalar prefetch
    # (PrefetchScalarGridSpec + pl.Element-indexed BlockSpec) to skip one HBM round trip.
    x0 = jnp.take(params['emb'], item_idx, axis=0).astype(jnp.float32)    # [B, N, D]

    valid = node_mask.astype(jnp.float32)                                 # [B, N]
    adj0 = adj * valid[:, :, None] * valid[:, None, :]                    # [B, N, N]
    member = ((batch_ids[:, None, :] == jnp.arange(g_pad)[None, :, None])
              .astype(jnp.float32) * valid[:, None, :])                   # [B, G, N]

    # ---- pack weights: 15 inputs -> 7 (fewer launch-time DMA descriptors) ----------
    conv_w = jnp.stack([
        jnp.concatenate([params['conv1'][0], params['conv1'][2]], axis=0),
        jnp.concatenate([params['conv2'][0], params['conv2'][2]], axis=0),
        jnp.concatenate([params['conv3'][0], params['conv3'][2]], axis=0)])   # [3, 2D, H]
    conv_aux = jnp.stack([
        jnp.concatenate([params['conv1'][1], _normalize_row(params['pool1_w'])], axis=0),
        jnp.concatenate([params['conv2'][1], _normalize_row(params['pool2_w'])], axis=0),
        jnp.concatenate([params['conv3'][1], _normalize_row(params['pool3_w'])], axis=0)])  # [3,2,H]

    w1, b1 = params['lin1']
    w2, b2 = params['lin2']
    w3, b3 = params['lin3']
    w2p = jnp.pad(w2, ((0, 0), (0, h1 - HIDDEN2)))                        # [128, 128]
    head_w = jnp.concatenate([w1, w2p], axis=1)                           # [128, 256]
    head_aux = jnp.zeros((8, 2 * h1), jnp.float32)
    head_aux = head_aux.at[0:1, 0:h1].set(b1)
    head_aux = head_aux.at[0:1, h1:h1 + HIDDEN2].set(b2)
    head_aux = head_aux.at[1:2, 0:HIDDEN2].set(jnp.transpose(w3))
    head_aux = head_aux.at[2, 0].set(b3[0, 0])

    out = pl.pallas_call(
        gnn_fused_kernel,
        out_shape=jax.ShapeDtypeStruct((bsz, 1, g_pad), jnp.float32),
        grid=(bsz,),
        in_specs=[
            pl.BlockSpec((None, n_pad, d), lambda b: (b, 0, 0)),          # x
            pl.BlockSpec((None, n_pad, n_pad), lambda b: (b, 0, 0)),      # adj
            pl.BlockSpec((None, g_pad, n_pad), lambda b: (b, 0, 0)),      # member
            pl.BlockSpec((NUM_LAYERS, 2 * d, h1), lambda b: (0, 0, 0)),   # conv_w
            pl.BlockSpec((NUM_LAYERS, 2, h1), lambda b: (0, 0, 0)),       # conv_aux
            pl.BlockSpec((h1, 2 * h1), lambda b: (0, 0)),                 # head_w
            pl.BlockSpec((8, 2 * h1), lambda b: (0, 0)),                  # head_aux
        ],
        out_specs=pl.BlockSpec((None, 1, g_pad), lambda b: (b, 0, 0)),
        compiler_params=pltpu.CompilerParams(
            dimension_semantics=("parallel",),       # v7x: shard slabs across 2 TCs
            vmem_limit_bytes=32 * 1024 * 1024),      # raise v5e's 16 MiB default
    )(x0, adj0, member, conv_w, conv_aux, head_w, head_aux)
    return out[:, 0, :]                              # [B, G_pad] sigmoid predictions


gnn_forward_jit = jax.jit(gnn_forward, static_argnames=("g_pad",))


# ----------------------------------------------------------------------------
# Deterministic parameter init + example inputs
# ----------------------------------------------------------------------------
def init_params(key, num_items):
    ks = jax.random.split(key, 20)

    def w(k, shape, scale=0.05):
        return (scale * jax.random.normal(k, shape)).astype(jnp.float32)

    return {
        'emb': w(ks[0], (num_items + 10, EMBED_DIM), 0.1),
        'conv1': (w(ks[1], (EMBED_DIM, HIDDEN1)), w(ks[2], (1, HIDDEN1)),
                  w(ks[3], (EMBED_DIM, HIDDEN1))),
        'pool1_w': w(ks[4], (1, HIDDEN1)),
        'conv2': (w(ks[5], (HIDDEN1, HIDDEN1)), w(ks[6], (1, HIDDEN1)),
                  w(ks[7], (HIDDEN1, HIDDEN1))),
        'pool2_w': w(ks[8], (1, HIDDEN1)),
        'conv3': (w(ks[9], (HIDDEN1, HIDDEN1)), w(ks[10], (1, HIDDEN1)),
                  w(ks[11], (HIDDEN1, HIDDEN1))),
        'pool3_w': w(ks[12], (1, HIDDEN1)),
        'lin1': (w(ks[13], (HIDDEN1, HIDDEN1)), w(ks[14], (1, HIDDEN1))),
        'lin2': (w(ks[15], (HIDDEN1, HIDDEN2)), w(ks[16], (1, HIDDEN2))),
        'lin3': (w(ks[17], (HIDDEN2, 1)), w(ks[18], (1, 1))),
    }


if __name__ == "__main__":
    key = jax.random.PRNGKey(0)
    num_items = 50

    # Two independent mini-batch "slabs" of session graphs (chains), padded to
    # N_PAD nodes / G_PAD graphs each so the MXU M/K dimensions are full.
    B, N_PAD, G_PAD = 2, 128, 128
    sessions = [[9, 5, 7, 12, 6], [6, 4, 10, 8]]     # nodes per session graph, per slab

    adj_np = np.zeros((B, N_PAD, N_PAD), dtype=np.float32)   # adj[dst, src]
    batch_np = np.zeros((B, N_PAD), dtype=np.int32)
    mask_np = np.zeros((B, N_PAD), dtype=np.float32)
    for b, graphs in enumerate(sessions):
        off = 0
        for gidx, n_nodes in enumerate(graphs):
            for i in range(n_nodes - 1):
                u, v = off + i, off + i + 1
                adj_np[b, v, u] = 1.0
                adj_np[b, u, v] = 1.0
            batch_np[b, off:off + n_nodes] = gidx
            mask_np[b, off:off + n_nodes] = 1.0
            off += n_nodes

    k_param, k_items = jax.random.split(key)
    params = init_params(k_param, num_items)
    item_idx = jax.random.randint(k_items, (B, N_PAD), 0, num_items, dtype=jnp.int32)

    out = gnn_forward_jit(params, item_idx, jnp.asarray(adj_np),
                          jnp.asarray(batch_np), jnp.asarray(mask_np), g_pad=G_PAD)
    out = jax.block_until_ready(out)
    res = np.asarray(out)
    assert res.shape == (B, G_PAD)
    for b, graphs in enumerate(sessions):
        r = res[b, :len(graphs)]                      # real per-graph predictions
        assert np.all(np.isfinite(r)) and np.all(r > 0.0) and np.all(r < 1.0)
    print("KERNEL_OK")
</pallas_src>

<mosaic_0001>
module attributes {stable_mosaic.version = 11 : i64} {
  func.func @gnn_fused_kernel(%arg0: i32, %arg1: memref<1x128x128xf32, #tpu.memory_space<vmem>>, %arg2: memref<1x128x128xf32, #tpu.memory_space<vmem>>, %arg3: memref<1x128x128xf32, #tpu.memory_space<vmem>>, %arg4: memref<3x256x128xf32, #tpu.memory_space<vmem>>, %arg5: memref<3x2x128xf32, #tpu.memory_space<vmem>>, %arg6: memref<128x256xf32, #tpu.memory_space<vmem>>, %arg7: memref<8x256xf32, #tpu.memory_space<vmem>>, %arg8: memref<1x1x128xf32, #tpu.memory_space<vmem>>) attributes {dimension_semantics = [#tpu.dimension_semantics<parallel>], iteration_bounds = array<i64: 2>, scalar_prefetch = 0 : i64, scratch_operands = 0 : i64, tpu.core_type = #tpu.core_type<tc>, window_params = [{transform_indices = @transform_0, window_bounds = array<i64: 1, 128, 128>}, {transform_indices = @transform_1, window_bounds = array<i64: 1, 128, 128>}, {transform_indices = @transform_2, window_bounds = array<i64: 1, 128, 128>}, {pipeline_mode = #tpu.pipeline_mode<synchronous>, transform_indices = @transform_3, window_bounds = array<i64: 3, 256, 128>}, {pipeline_mode = #tpu.pipeline_mode<synchronous>, transform_indices = @transform_4, window_bounds = array<i64: 3, 2, 128>}, {pipeline_mode = #tpu.pipeline_mode<synchronous>, transform_indices = @transform_5, window_bounds = array<i64: 128, 256>}, {pipeline_mode = #tpu.pipeline_mode<synchronous>, transform_indices = @transform_6, window_bounds = array<i64: 8, 256>}, {transform_indices = @transform_7, window_bounds = array<i64: 1, 1, 128>}]} {
    %c0 = arith.constant 0 : index
    %c0_0 = arith.constant 0 : index
    %c0_1 = arith.constant 0 : index
    %0 = vector.load %arg1[%c0, %c0_0, %c0_1] : memref<1x128x128xf32, #tpu.memory_space<vmem>>, vector<1x128x128xf32>
    %1 = vector.shape_cast %0 : vector<1x128x128xf32> to vector<128x128xf32>
    %c0_2 = arith.constant 0 : index
    %c0_3 = arith.constant 0 : index
    %c0_4 = arith.constant 0 : index
    %2 = vector.load %arg2[%c0_2, %c0_3, %c0_4] : memref<1x128x128xf32, #tpu.memory_space<vmem>>, vector<1x128x128xf32>
    %3 = vector.shape_cast %2 : vector<1x128x128xf32> to vector<128x128xf32>
    %c0_5 = arith.constant 0 : index
    %c0_6 = arith.constant 0 : index
    %c0_7 = arith.constant 0 : index
    %4 = vector.load %arg3[%c0_5, %c0_6, %c0_7] : memref<1x128x128xf32, #tpu.memory_space<vmem>>, vector<1x128x128xf32>
    %5 = vector.shape_cast %4 : vector<1x128x128xf32> to vector<128x128xf32>
    %6 = tpu.transpose %5, [1, 0] : vector<128x128xf32> -> vector<128x128xf32>
    %cst = arith.constant dense<0.000000e+00> : vector<128x128xf32>
    %7 = tpu.matmul %6, %5, %cst {dimension_numbers = #tpu.dot_dimension_numbers<[1], [0], [0], [1], [0, 0, 1, 1], [], []>} : vector<128x128xf32>, vector<128x128xf32>, vector<128x128xf32> -> vector<128x128xf32>
    %cst_8 = arith.constant dense<0.000000e+00> : vector<128xf32>
    %8 = vector.multi_reduction <add>, %6, %cst_8 [1] : vector<128x128xf32> to vector<128xf32>
    %9 = vector.shape_cast %8 : vector<128xf32> to vector<128x1xf32>
    %cst_9 = arith.constant 1.000000e+00 : f32
    %10 = vector.broadcast %cst_9 : f32 to vector<128x1xf32>
    %11 = tpu.iota {dimensions = array<i32: 0>} : vector<128x128xi32>
    %12 = tpu.iota {dimensions = array<i32: 1>} : vector<128x128xi32>
    %13 = arith.cmpi slt, %12, %11 : vector<128x128xi32>
    %cst_10 = arith.constant 0.000000e+00 : f32
    %14 = vector.broadcast %cst_10 : f32 to vector<128x128xf32>
    %c0_11 = arith.constant 0 : index
    %c0_12 = arith.constant 0 : index
    %c0_13 = arith.constant 0 : index
    %15 = vector.load %arg4[%c0_11, %c0_12, %c0_13] : memref<3x256x128xf32, #tpu.memory_space<vmem>>, vector<1x256x128xf32>
    %16 = vector.shape_cast %15 : vector<1x256x128xf32> to vector<256x128xf32>
    %c0_14 = arith.constant 0 : index
    %c0_15 = arith.constant 0 : index
    %c0_16 = arith.constant 0 : index
    %17 = vector.load %arg5[%c0_14, %c0_15, %c0_16] : memref<3x2x128xf32, #tpu.memory_space<vmem>>, vector<1x2x128xf32>
    %18 = vector.shape_cast %17 : vector<1x2x128xf32> to vector<2x128xf32>
    %19 = vector.extract_strided_slice %18 {offsets = [0, 0], sizes = [1, 128], strides = [1, 1]} : vector<2x128xf32> to vector<1x128xf32>
    %20 = vector.extract_strided_slice %18 {offsets = [1, 0], sizes = [1, 128], strides = [1, 1]} : vector<2x128xf32> to vector<1x128xf32>
    %cst_17 = arith.constant dense<0.000000e+00> : vector<128xf32>
    %21 = vector.multi_reduction <add>, %3, %cst_17 [1] : vector<128x128xf32> to vector<128xf32>
    %22 = vector.shape_cast %21 : vector<128xf32> to vector<128x1xf32>
    %cst_18 = arith.constant 0.000000e+00 : f32
    %23 = vector.broadcast %cst_18 : f32 to vector<128x1xf32>
    %24 = arith.cmpf ogt, %22, %23 : vector<128x1xf32>
    %cst_19 = arith.constant 1.000000e+00 : f32
    %25 = vector.broadcast %cst_19 : f32 to vector<128x1xf32>
    %26 = arith.maximumf %22, %25 : vector<128x1xf32>
    %cst_20 = arith.constant 1.000000e+00 : f32
    %27 = vector.broadcast %cst_20 : f32 to vector<128x1xf32>
    %28 = arith.divf %27, %26 : vector<128x1xf32>
    %cst_21 = arith.constant 0.000000e+00 : f32
    %29 = vector.broadcast %cst_21 : f32 to vector<128x1xf32>
    %30 = arith.select %24, %28, %29 : vector<128x1xi1>, vector<128x1xf32>
    %cst_22 = arith.constant dense<0.000000e+00> : vector<128x128xf32>
    %31 = tpu.matmul %3, %1, %cst_22 {dimension_numbers = #tpu.dot_dimension_numbers<[1], [0], [0], [1], [0, 0, 1, 1], [], []>} : vector<128x128xf32>, vector<128x128xf32>, vector<128x128xf32> -> vector<128x128xf32>
    %32 = vector.broadcast %30 : vector<128x1xf32> to vector<128x128xf32>
    %33 = arith.mulf %31, %32 : vector<128x128xf32>
    %34 = tpu.concatenate %33, %1 in 1 : vector<128x128xf32>, vector<128x128xf32> -> vector<128x256xf32>
    %cst_23 = arith.constant dense<0.000000e+00> : vector<128x128xf32>
    %35 = tpu.matmul %34, %16, %cst_23 {dimension_numbers = #tpu.dot_dimension_numbers<[1], [0], [0], [1], [0, 0, 1, 1], [], []>} : vector<128x256xf32>, vector<256x128xf32>, vector<128x128xf32> -> vector<128x128xf32>
    %36 = vector.broadcast %19 : vector<1x128xf32> to vector<128x128xf32>
    %37 = arith.addf %35, %36 : vector<128x128xf32>
    %cst_24 = arith.constant 0.000000e+00 : f32
    %38 = vector.broadcast %cst_24 : f32 to vector<128x128xf32>
    %39 = arith.maximumf %37, %38 : vector<128x128xf32>
    %40 = vector.broadcast %20 : vector<1x128xf32> to vector<128x128xf32>
    %41 = arith.mulf %39, %40 : vector<128x128xf32>
    %cst_25 = arith.constant dense<0.000000e+00> : vector<128xf32>
    %42 = vector.multi_reduction <add>, %41, %cst_25 [1] : vector<128x128xf32> to vector<128xf32>
    %43 = vector.shape_cast %42 : vector<128xf32> to vector<128x1xf32>
    %44 = math.tanh %43 : vector<128x1xf32>
    %cst_26 = arith.constant 5.000000e-01 : f32
    %45 = vector.broadcast %cst_26 : f32 to vector<128x1xf32>
    %46 = arith.cmpf ogt, %9, %45 : vector<128x1xf32>
    %cst_27 = arith.constant -1.000000e+30 : f32
    %47 = vector.broadcast %cst_27 : f32 to vector<128x1xf32>
    %48 = arith.select %46, %44, %47 : vector<128x1xi1>, vector<128x1xf32>
    %cst_28 = arith.constant dense<0.000000e+00> : vector<128x128xf32>
    %49 = tpu.matmul %10, %48, %cst_28 {dimension_numbers = #tpu.dot_dimension_numbers<[1], [1], [0], [0], [0, 0, 1, 0], [], []>} : vector<128x1xf32>, vector<128x1xf32>, vector<128x128xf32> -> vector<128x128xf32>
    %cst_29 = arith.constant dense<0.000000e+00> : vector<128x128xf32>
    %50 = tpu.matmul %48, %10, %cst_29 {dimension_numbers = #tpu.dot_dimension_numbers<[1], [1], [0], [0], [0, 0, 1, 0], [], []>} : vector<128x1xf32>, vector<128x1xf32>, vector<128x128xf32> -> vector<128x128xf32>
    %51 = arith.cmpf ogt, %49, %50 : vector<128x128xf32>
    %52 = arith.cmpf oeq, %49, %50 : vector<128x128xf32>
    %53 = arith.andi %52, %13 : vector<128x128xi1>
    %54 = arith.ori %51, %53 : vector<128x128xi1>
    %cst_30 = arith.constant 1.000000e+00 : f32
    %cst_31 = arith.constant 0.000000e+00 : f32
    %55 = vector.broadcast %cst_30 : f32 to vector<128x128xf32>
    %56 = vector.broadcast %cst_31 : f32 to vector<128x128xf32>
    %57 = arith.select %54, %55, %56 : vector<128x128xi1>, vector<128x128xf32>
    %58 = arith.mulf %7, %57 : vector<128x128xf32>
    %cst_32 = arith.constant dense<0.000000e+00> : vector<128xf32>
    %59 = vector.multi_reduction <add>, %58, %cst_32 [1] : vector<128x128xf32> to vector<128xf32>
    %60 = vector.shape_cast %59 : vector<128xf32> to vector<128x1xf32>
    %cst_33 = arith.constant dense<0.000000e+00> : vector<128xf32>
    %61 = vector.multi_reduction <add>, %7, %cst_33 [1] : vector<128x128xf32> to vector<128xf32>
    %62 = vector.shape_cast %61 : vector<128xf32> to vector<128x1xf32>
    %cst_34 = arith.constant 5.000000e-01 : f32
    %63 = vector.broadcast %cst_34 : f32 to vector<128x1xf32>
    %64 = arith.cmpf ogt, %9, %63 : vector<128x1xf32>
    %cst_35 = arith.constant 8.000000e-01 : f32
    %65 = vector.broadcast %cst_35 : f32 to vector<128x1xf32>
    %66 = arith.mulf %65, %62 : vector<128x1xf32>
    %67 = math.ceil %66 : vector<128x1xf32>
    %68 = arith.cmpf olt, %60, %67 : vector<128x1xf32>
    %69 = arith.andi %64, %68 : vector<128x1xi1>
    %70 = arith.extui %69 : vector<128x1xi1> to vector<128x1xi32>
    %71 = arith.sitofp %70 : vector<128x1xi32> to vector<128x1xf32>
    %72 = arith.mulf %44, %71 : vector<128x1xf32>
    %73 = vector.broadcast %72 : vector<128x1xf32> to vector<128x128xf32>
    %74 = arith.mulf %39, %73 : vector<128x128xf32>
    %cst_36 = arith.constant dense<0.000000e+00> : vector<128x128xf32>
    %75 = tpu.matmul %71, %71, %cst_36 {dimension_numbers = #tpu.dot_dimension_numbers<[1], [1], [0], [0], [0, 0, 1, 0], [], []>} : vector<128x1xf32>, vector<128x1xf32>, vector<128x128xf32> -> vector<128x128xf32>
    %76 = arith.mulf %3, %75 : vector<128x128xf32>
    %77 = arith.mulf %7, %75 : vector<128x128xf32>
    %cst_37 = arith.constant dense<0.000000e+00> : vector<128x1xf32>
    %78 = tpu.matmul %5, %71, %cst_37 {dimension_numbers = #tpu.dot_dimension_numbers<[1], [0], [0], [1], [0, 0, 1, 1], [], []>} : vector<128x128xf32>, vector<128x1xf32>, vector<128x1xf32> -> vector<128x1xf32>
    %cst_38 = arith.constant 0.000000e+00 : f32
    %79 = vector.broadcast %cst_38 : f32 to vector<128x1xf32>
    %80 = arith.cmpf ogt, %78, %79 : vector<128x1xf32>
    %cst_39 = arith.constant 1.000000e+00 : f32
    %81 = vector.broadcast %cst_39 : f32 to vector<128x1xf32>
    %82 = arith.maximumf %78, %81 : vector<128x1xf32>
    %cst_40 = arith.constant 1.000000e+00 : f32
    %83 = vector.broadcast %cst_40 : f32 to vector<128x1xf32>
    %84 = arith.divf %83, %82 : vector<128x1xf32>
    %cst_41 = arith.constant 0.000000e+00 : f32
    %85 = vector.broadcast %cst_41 : f32 to vector<128x1xf32>
    %86 = arith.select %80, %84, %85 : vector<128x1xi1>, vector<128x1xf32>
    %cst_42 = arith.constant dense<0.000000e+00> : vector<128x128xf32>
    %87 = tpu.matmul %5, %74, %cst_42 {dimension_numbers = #tpu.dot_dimension_numbers<[1], [0], [0], [1], [0, 0, 1, 1], [], []>} : vector<128x128xf32>, vector<128x128xf32>, vector<128x128xf32> -> vector<128x128xf32>
    %88 = vector.broadcast %86 : vector<128x1xf32> to vector<128x128xf32>
    %89 = arith.mulf %87, %88 : vector<128x128xf32>
    %90 = arith.addf %14, %89 : vector<128x128xf32>
    %c1 = arith.constant 1 : index
    %c0_43 = arith.constant 0 : index
    %c0_44 = arith.constant 0 : index
    %91 = vector.load %arg4[%c1, %c0_43, %c0_44] : memref<3x256x128xf32, #tpu.memory_space<vmem>>, vector<1x256x128xf32>
    %92 = vector.shape_cast %91 : vector<1x256x128xf32> to vector<256x128xf32>
    %c1_45 = arith.constant 1 : index
    %c0_46 = arith.constant 0 : index
    %c0_47 = arith.constant 0 : index
    %93 = vector.load %arg5[%c1_45, %c0_46, %c0_47] : memref<3x2x128xf32, #tpu.memory_space<vmem>>, vector<1x2x128xf32>
    %94 = vector.shape_cast %93 : vector<1x2x128xf32> to vector<2x128xf32>
    %95 = vector.extract_strided_slice %94 {offsets = [0, 0], sizes = [1, 128], strides = [1, 1]} : vector<2x128xf32> to vector<1x128xf32>
    %96 = vector.extract_strided_slice %94 {offsets = [1, 0], sizes = [1, 128], strides = [1, 1]} : vector<2x128xf32> to vector<1x128xf32>
    %cst_48 = arith.constant dense<0.000000e+00> : vector<128xf32>
    %97 = vector.multi_reduction <add>, %76, %cst_48 [1] : vector<128x128xf32> to vector<128xf32>
    %98 = vector.shape_cast %97 : vector<128xf32> to vector<128x1xf32>
    %cst_49 = arith.constant 0.000000e+00 : f32
    %99 = vector.broadcast %cst_49 : f32 to vector<128x1xf32>
    %100 = arith.cmpf ogt, %98, %99 : vector<128x1xf32>
    %cst_50 = arith.constant 1.000000e+00 : f32
    %101 = vector.broadcast %cst_50 : f32 to vector<128x1xf32>
    %102 = arith.maximumf %98, %101 : vector<128x1xf32>
    %cst_51 = arith.constant 1.000000e+00 : f32
    %103 = vector.broadcast %cst_51 : f32 to vector<128x1xf32>
    %104 = arith.divf %103, %102 : vector<128x1xf32>
    %cst_52 = arith.constant 0.000000e+00 : f32
    %105 = vector.broadcast %cst_52 : f32 to vector<128x1xf32>
    %106 = arith.select %100, %104, %105 : vector<128x1xi1>, vector<128x1xf32>
    %cst_53 = arith.constant dense<0.000000e+00> : vector<128x128xf32>
    %107 = tpu.matmul %76, %74, %cst_53 {dimension_numbers = #tpu.dot_dimension_numbers<[1], [0], [0], [1], [0, 0, 1, 1], [], []>} : vector<128x128xf32>, vector<128x128xf32>, vector<128x128xf32> -> vector<128x128xf32>
    %108 = vector.broadcast %106 : vector<128x1xf32> to vector<128x128xf32>
    %109 = arith.mulf %107, %108 : vector<128x128xf32>
    %110 = tpu.concatenate %109, %74 in 1 : vector<128x128xf32>, vector<128x128xf32> -> vector<128x256xf32>
    %cst_54 = arith.constant dense<0.000000e+00> : vector<128x128xf32>
    %111 = tpu.matmul %110, %92, %cst_54 {dimension_numbers = #tpu.dot_dimension_numbers<[1], [0], [0], [1], [0, 0, 1, 1], [], []>} : vector<128x256xf32>, vector<256x128xf32>, vector<128x128xf32> -> vector<128x128xf32>
    %112 = vector.broadcast %95 : vector<1x128xf32> to vector<128x128xf32>
    %113 = arith.addf %111, %112 : vector<128x128xf32>
    %cst_55 = arith.constant 0.000000e+00 : f32
    %114 = vector.broadcast %cst_55 : f32 to vector<128x128xf32>
    %115 = arith.maximumf %113, %114 : vector<128x128xf32>
    %116 = vector.broadcast %96 : vector<1x128xf32> to vector<128x128xf32>
    %117 = arith.mulf %115, %116 : vector<128x128xf32>
    %cst_56 = arith.constant dense<0.000000e+00> : vector<128xf32>
    %118 = vector.multi_reduction <add>, %117, %cst_56 [1] : vector<128x128xf32> to vector<128xf32>
    %119 = vector.shape_cast %118 : vector<128xf32> to vector<128x1xf32>
    %120 = math.tanh %119 : vector<128x1xf32>
    %cst_57 = arith.constant 5.000000e-01 : f32
    %121 = vector.broadcast %cst_57 : f32 to vector<128x1xf32>
    %122 = arith.cmpf ogt, %71, %121 : vector<128x1xf32>
    %cst_58 = arith.constant -1.000000e+30 : f32
    %123 = vector.broadcast %cst_58 : f32 to vector<128x1xf32>
    %124 = arith.select %122, %120, %123 : vector<128x1xi1>, vector<128x1xf32>
    %cst_59 = arith.constant dense<0.000000e+00> : vector<128x128xf32>
    %125 = tpu.matmul %10, %124, %cst_59 {dimension_numbers = #tpu.dot_dimension_numbers<[1], [1], [0], [0], [0, 0, 1, 0], [], []>} : vector<128x1xf32>, vector<128x1xf32>, vector<128x128xf32> -> vector<128x128xf32>
    %cst_60 = arith.constant dense<0.000000e+00> : vector<128x128xf32>
    %126 = tpu.matmul %124, %10, %cst_60 {dimension_numbers = #tpu.dot_dimension_numbers<[1], [1], [0], [0], [0, 0, 1, 0], [], []>} : vector<128x1xf32>, vector<128x1xf32>, vector<128x128xf32> -> vector<128x128xf32>
    %127 = arith.cmpf ogt, %125, %126 : vector<128x128xf32>
    %128 = arith.cmpf oeq, %125, %126 : vector<128x128xf32>
    %129 = arith.andi %128, %13 : vector<128x128xi1>
    %130 = arith.ori %127, %129 : vector<128x128xi1>
    %cst_61 = arith.constant 1.000000e+00 : f32
    %cst_62 = arith.constant 0.000000e+00 : f32
    %131 = vector.broadcast %cst_61 : f32 to vector<128x128xf32>
    %132 = vector.broadcast %cst_62 : f32 to vector<128x128xf32>
    %133 = arith.select %130, %131, %132 : vector<128x128xi1>, vector<128x128xf32>
    %134 = arith.mulf %77, %133 : vector<128x128xf32>
    %cst_63 = arith.constant dense<0.000000e+00> : vector<128xf32>
    %135 = vector.multi_reduction <add>, %134, %cst_63 [1] : vector<128x128xf32> to vector<128xf32>
    %136 = vector.shape_cast %135 : vector<128xf32> to vector<128x1xf32>
    %cst_64 = arith.constant dense<0.000000e+00> : vector<128xf32>
    %137 = vector.multi_reduction <add>, %77, %cst_64 [1] : vector<128x128xf32> to vector<128xf32>
    %138 = vector.shape_cast %137 : vector<128xf32> to vector<128x1xf32>
    %cst_65 = arith.constant 5.000000e-01 : f32
    %139 = vector.broadcast %cst_65 : f32 to vector<128x1xf32>
    %140 = arith.cmpf ogt, %71, %139 : vector<128x1xf32>
    %cst_66 = arith.constant 8.000000e-01 : f32
    %141 = vector.broadcast %cst_66 : f32 to vector<128x1xf32>
    %142 = arith.mulf %141, %138 : vector<128x1xf32>
    %143 = math.ceil %142 : vector<128x1xf32>
    %144 = arith.cmpf olt, %136, %143 : vector<128x1xf32>
    %145 = arith.andi %140, %144 : vector<128x1xi1>
    %146 = arith.extui %145 : vector<128x1xi1> to vector<128x1xi32>
    %147 = arith.sitofp %146 : vector<128x1xi32> to vector<128x1xf32>
    %148 = arith.mulf %120, %147 : vector<128x1xf32>
    %149 = vector.broadcast %148 : vector<128x1xf32> to vector<128x128xf32>
    %150 = arith.mulf %115, %149 : vector<128x128xf32>
    %cst_67 = arith.constant dense<0.000000e+00> : vector<128x128xf32>
    %151 = tpu.matmul %147, %147, %cst_67 {dimension_numbers = #tpu.dot_dimension_numbers<[1], [1], [0], [0], [0, 0, 1, 0], [], []>} : vector<128x1xf32>, vector<128x1xf32>, vector<128x128xf32> -> vector<128x128xf32>
    %152 = arith.mulf %76, %151 : vector<128x128xf32>
    %153 = arith.mulf %77, %151 : vector<128x128xf32>
    %cst_68 = arith.constant dense<0.000000e+00> : vector<128x1xf32>
    %154 = tpu.matmul %5, %147, %cst_68 {dimension_numbers = #tpu.dot_dimension_numbers<[1], [0], [0], [1], [0, 0, 1, 1], [], []>} : vector<128x128xf32>, vector<128x1xf32>, vector<128x1xf32> -> vector<128x1xf32>
    %cst_69 = arith.constant 0.000000e+00 : f32
    %155 = vector.broadcast %cst_69 : f32 to vector<128x1xf32>
    %156 = arith.cmpf ogt, %154, %155 : vector<128x1xf32>
    %cst_70 = arith.constant 1.000000e+00 : f32
    %157 = vector.broadcast %cst_70 : f32 to vector<128x1xf32>
    %158 = arith.maximumf %154, %157 : vector<128x1xf32>
    %cst_71 = arith.constant 1.000000e+00 : f32
    %159 = vector.broadcast %cst_71 : f32 to vector<128x1xf32>
    %160 = arith.divf %159, %158 : vector<128x1xf32>
    %cst_72 = arith.constant 0.000000e+00 : f32
    %161 = vector.broadcast %cst_72 : f32 to vector<128x1xf32>
    %162 = arith.select %156, %160, %161 : vector<128x1xi1>, vector<128x1xf32>
    %cst_73 = arith.constant dense<0.000000e+00> : vector<128x128xf32>
    %163 = tpu.matmul %5, %150, %cst_73 {dimension_numbers = #tpu.dot_dimension_numbers<[1], [0], [0], [1], [0, 0, 1, 1], [], []>} : vector<128x128xf32>, vector<128x128xf32>, vector<128x128xf32> -> vector<128x128xf32>
    %164 = vector.broadcast %162 : vector<128x1xf32> to vector<128x128xf32>
    %165 = arith.mulf %163, %164 : vector<128x128xf32>
    %166 = arith.addf %90, %165 : vector<128x128xf32>
    %c2 = arith.constant 2 : index
    %c0_74 = arith.constant 0 : index
    %c0_75 = arith.constant 0 : index
    %167 = vector.load %arg4[%c2, %c0_74, %c0_75] : memref<3x256x128xf32, #tpu.memory_space<vmem>>, vector<1x256x128xf32>
    %168 = vector.shape_cast %167 : vector<1x256x128xf32> to vector<256x128xf32>
    %c2_76 = arith.constant 2 : index
    %c0_77 = arith.constant 0 : index
    %c0_78 = arith.constant 0 : index
    %169 = vector.load %arg5[%c2_76, %c0_77, %c0_78] : memref<3x2x128xf32, #tpu.memory_space<vmem>>, vector<1x2x128xf32>
    %170 = vector.shape_cast %169 : vector<1x2x128xf32> to vector<2x128xf32>
    %171 = vector.extract_strided_slice %170 {offsets = [0, 0], sizes = [1, 128], strides = [1, 1]} : vector<2x128xf32> to vector<1x128xf32>
    %172 = vector.extract_strided_slice %170 {offsets = [1, 0], sizes = [1, 128], strides = [1, 1]} : vector<2x128xf32> to vector<1x128xf32>
    %cst_79 = arith.constant dense<0.000000e+00> : vector<128xf32>
    %173 = vector.multi_reduction <add>, %152, %cst_79 [1] : vector<128x128xf32> to vector<128xf32>
    %174 = vector.shape_cast %173 : vector<128xf32> to vector<128x1xf32>
    %cst_80 = arith.constant 0.000000e+00 : f32
    %175 = vector.broadcast %cst_80 : f32 to vector<128x1xf32>
    %176 = arith.cmpf ogt, %174, %175 : vector<128x1xf32>
    %cst_81 = arith.constant 1.000000e+00 : f32
    %177 = vector.broadcast %cst_81 : f32 to vector<128x1xf32>
    %178 = arith.maximumf %174, %177 : vector<128x1xf32>
    %cst_82 = arith.constant 1.000000e+00 : f32
    %179 = vector.broadcast %cst_82 : f32 to vector<128x1xf32>
    %180 = arith.divf %179, %178 : vector<128x1xf32>
    %cst_83 = arith.constant 0.000000e+00 : f32
    %181 = vector.broadcast %cst_83 : f32 to vector<128x1xf32>
    %182 = arith.select %176, %180, %181 : vector<128x1xi1>, vector<128x1xf32>
    %cst_84 = arith.constant dense<0.000000e+00> : vector<128x128xf32>
    %183 = tpu.matmul %152, %150, %cst_84 {dimension_numbers = #tpu.dot_dimension_numbers<[1], [0], [0], [1], [0, 0, 1, 1], [], []>} : vector<128x128xf32>, vector<128x128xf32>, vector<128x128xf32> -> vector<128x128xf32>
    %184 = vector.broadcast %182 : vector<128x1xf32> to vector<128x128xf32>
    %185 = arith.mulf %183, %184 : vector<128x128xf32>
    %186 = tpu.concatenate %185, %150 in 1 : vector<128x128xf32>, vector<128x128xf32> -> vector<128x256xf32>
    %cst_85 = arith.constant dense<0.000000e+00> : vector<128x128xf32>
    %187 = tpu.matmul %186, %168, %cst_85 {dimension_numbers = #tpu.dot_dimension_numbers<[1], [0], [0], [1], [0, 0, 1, 1], [], []>} : vector<128x256xf32>, vector<256x128xf32>, vector<128x128xf32> -> vector<128x128xf32>
    %188 = vector.broadcast %171 : vector<1x128xf32> to vector<128x128xf32>
    %189 = arith.addf %187, %188 : vector<128x128xf32>
    %cst_86 = arith.constant 0.000000e+00 : f32
    %190 = vector.broadcast %cst_86 : f32 to vector<128x128xf32>
    %191 = arith.maximumf %189, %190 : vector<128x128xf32>
    %192 = vector.broadcast %172 : vector<1x128xf32> to vector<128x128xf32>
    %193 = arith.mulf %191, %192 : vector<128x128xf32>
    %cst_87 = arith.constant dense<0.000000e+00> : vector<128xf32>
    %194 = vector.multi_reduction <add>, %193, %cst_87 [1] : vector<128x128xf32> to vector<128xf32>
    %195 = vector.shape_cast %194 : vector<128xf32> to vector<128x1xf32>
    %196 = math.tanh %195 : vector<128x1xf32>
    %cst_88 = arith.constant 5.000000e-01 : f32
    %197 = vector.broadcast %cst_88 : f32 to vector<128x1xf32>
    %198 = arith.cmpf ogt, %147, %197 : vector<128x1xf32>
    %cst_89 = arith.constant -1.000000e+30 : f32
    %199 = vector.broadcast %cst_89 : f32 to vector<128x1xf32>
    %200 = arith.select %198, %196, %199 : vector<128x1xi1>, vector<128x1xf32>
    %cst_90 = arith.constant dense<0.000000e+00> : vector<128x128xf32>
    %201 = tpu.matmul %10, %200, %cst_90 {dimension_numbers = #tpu.dot_dimension_numbers<[1], [1], [0], [0], [0, 0, 1, 0], [], []>} : vector<128x1xf32>, vector<128x1xf32>, vector<128x128xf32> -> vector<128x128xf32>
    %cst_91 = arith.constant dense<0.000000e+00> : vector<128x128xf32>
    %202 = tpu.matmul %200, %10, %cst_91 {dimension_numbers = #tpu.dot_dimension_numbers<[1], [1], [0], [0], [0, 0, 1, 0], [], []>} : vector<128x1xf32>, vector<128x1xf32>, vector<128x128xf32> -> vector<128x128xf32>
    %203 = arith.cmpf ogt, %201, %202 : vector<128x128xf32>
    %204 = arith.cmpf oeq, %201, %202 : vector<128x128xf32>
    %205 = arith.andi %204, %13 : vector<128x128xi1>
    %206 = arith.ori %203, %205 : vector<128x128xi1>
    %cst_92 = arith.constant 1.000000e+00 : f32
    %cst_93 = arith.constant 0.000000e+00 : f32
    %207 = vector.broadcast %cst_92 : f32 to vector<128x128xf32>
    %208 = vector.broadcast %cst_93 : f32 to vector<128x128xf32>
    %209 = arith.select %206, %207, %208 : vector<128x128xi1>, vector<128x128xf32>
    %210 = arith.mulf %153, %209 : vector<128x128xf32>
    %cst_94 = arith.constant dense<0.000000e+00> : vector<128xf32>
    %211 = vector.multi_reduction <add>, %210, %cst_94 [1] : vector<128x128xf32> to vector<128xf32>
    %212 = vector.shape_cast %211 : vector<128xf32> to vector<128x1xf32>
    %cst_95 = arith.constant dense<0.000000e+00> : vector<128xf32>
    %213 = vector.multi_reduction <add>, %153, %cst_95 [1] : vector<128x128xf32> to vector<128xf32>
    %214 = vector.shape_cast %213 : vector<128xf32> to vector<128x1xf32>
    %cst_96 = arith.constant 5.000000e-01 : f32
    %215 = vector.broadcast %cst_96 : f32 to vector<128x1xf32>
    %216 = arith.cmpf ogt, %147, %215 : vector<128x1xf32>
    %cst_97 = arith.constant 8.000000e-01 : f32
    %217 = vector.broadcast %cst_97 : f32 to vector<128x1xf32>
    %218 = arith.mulf %217, %214 : vector<128x1xf32>
    %219 = math.ceil %218 : vector<128x1xf32>
    %220 = arith.cmpf olt, %212, %219 : vector<128x1xf32>
    %221 = arith.andi %216, %220 : vector<128x1xi1>
    %222 = arith.extui %221 : vector<128x1xi1> to vector<128x1xi32>
    %223 = arith.sitofp %222 : vector<128x1xi32> to vector<128x1xf32>
    %224 = arith.mulf %196, %223 : vector<128x1xf32>
    %225 = vector.broadcast %224 : vector<128x1xf32> to vector<128x128xf32>
    %226 = arith.mulf %191, %225 : vector<128x128xf32>
    %cst_98 = arith.constant dense<0.000000e+00> : vector<128x1xf32>
    %227 = tpu.matmul %5, %223, %cst_98 {dimension_numbers = #tpu.dot_dimension_numbers<[1], [0], [0], [1], [0, 0, 1, 1], [], []>} : vector<128x128xf32>, vector<128x1xf32>, vector<128x1xf32> -> vector<128x1xf32>
    %cst_99 = arith.constant 0.000000e+00 : f32
    %228 = vector.broadcast %cst_99 : f32 to vector<128x1xf32>
    %229 = arith.cmpf ogt, %227, %228 : vector<128x1xf32>
    %cst_100 = arith.constant 1.000000e+00 : f32
    %230 = vector.broadcast %cst_100 : f32 to vector<128x1xf32>
    %231 = arith.maximumf %227, %230 : vector<128x1xf32>
    %cst_101 = arith.constant 1.000000e+00 : f32
    %232 = vector.broadcast %cst_101 : f32 to vector<128x1xf32>
    %233 = arith.divf %232, %231 : vector<128x1xf32>
    %cst_102 = arith.constant 0.000000e+00 : f32
    %234 = vector.broadcast %cst_102 : f32 to vector<128x1xf32>
    %235 = arith.select %229, %233, %234 : vector<128x1xi1>, vector<128x1xf32>
    %cst_103 = arith.constant dense<0.000000e+00> : vector<128x128xf32>
    %236 = tpu.matmul %5, %226, %cst_103 {dimension_numbers = #tpu.dot_dimension_numbers<[1], [0], [0], [1], [0, 0, 1, 1], [], []>} : vector<128x128xf32>, vector<128x128xf32>, vector<128x128xf32> -> vector<128x128xf32>
    %237 = vector.broadcast %235 : vector<128x1xf32> to vector<128x128xf32>
    %238 = arith.mulf %236, %237 : vector<128x128xf32>
    %239 = arith.addf %166, %238 : vector<128x128xf32>
    %c0_104 = arith.constant 0 : index
    %c0_105 = arith.constant 0 : index
    %240 = vector.load %arg6[%c0_104, %c0_105] : memref<128x256xf32, #tpu.memory_space<vmem>>, vector<128x128xf32>
    %c0_106 = arith.constant 0 : index
    %c128 = arith.constant 128 : index
    %241 = vector.load %arg6[%c0_106, %c128] : memref<128x256xf32, #tpu.memory_space<vmem>>, vector<128x128xf32>
    %c0_107 = arith.constant 0 : index
    %c0_108 = arith.constant 0 : index
    %242 = vector.load %arg7[%c0_107, %c0_108] : memref<8x256xf32, #tpu.memory_space<vmem>>, vector<1x128xf32>
    %c0_109 = arith.constant 0 : index
    %c128_110 = arith.constant 128 : index
    %243 = vector.load %arg7[%c0_109, %c128_110] : memref<8x256xf32, #tpu.memory_space<vmem>>, vector<1x128xf32>
    %c1_111 = arith.constant 1 : index
    %c0_112 = arith.constant 0 : index
    %244 = vector.load %arg7[%c1_111, %c0_112] : memref<8x256xf32, #tpu.memory_space<vmem>>, vector<1x128xf32>
    %c2_113 = arith.constant 2 : index
    %c0_114 = arith.constant 0 : index
    %245 = vector.load %arg7[%c2_113, %c0_114] : memref<8x256xf32, #tpu.memory_space<vmem>>, vector<1x1xf32>
    %cst_115 = arith.constant dense<0.000000e+00> : vector<128x128xf32>
    %246 = tpu.matmul %239, %240, %cst_115 {dimension_numbers = #tpu.dot_dimension_numbers<[1], [0], [0], [1], [0, 0, 1, 1], [], []>} : vector<128x128xf32>, vector<128x128xf32>, vector<128x128xf32> -> vector<128x128xf32>
    %247 = vector.broadcast %242 : vector<1x128xf32> to vector<128x128xf32>
    %248 = arith.addf %246, %247 : vector<128x128xf32>
    %cst_116 = arith.constant 0.000000e+00 : f32
    %249 = vector.broadcast %cst_116 : f32 to vector<128x128xf32>
    %250 = arith.maximumf %248, %249 : vector<128x128xf32>
    %cst_117 = arith.constant dense<0.000000e+00> : vector<128x128xf32>
    %251 = tpu.matmul %250, %241, %cst_117 {dimension_numbers = #tpu.dot_dimension_numbers<[1], [0], [0], [1], [0, 0, 1, 1], [], []>} : vector<128x128xf32>, vector<128x128xf32>, vector<128x128xf32> -> vector<128x128xf32>
    %252 = vector.broadcast %243 : vector<1x128xf32> to vector<128x128xf32>
    %253 = arith.addf %251, %252 : vector<128x128xf32>
    %cst_118 = arith.constant 0.000000e+00 : f32
    %254 = vector.broadcast %cst_118 : f32 to vector<128x128xf32>
    %255 = arith.maximumf %253, %254 : vector<128x128xf32>
    %256 = tpu.transpose %255, [1, 0] : vector<128x128xf32> -> vector<128x128xf32>
    %cst_119 = arith.constant dense<0.000000e+00> : vector<1x128xf32>
    %257 = tpu.matmul %244, %256, %cst_119 {dimension_numbers = #tpu.dot_dimension_numbers<[1], [0], [0], [1], [0, 0, 1, 1], [], []>} : vector<1x128xf32>, vector<128x128xf32>, vector<1x128xf32> -> vector<1x128xf32>
    %258 = vector.broadcast %245 : vector<1x1xf32> to vector<1x128xf32>
    %259 = arith.addf %257, %258 : vector<1x128xf32>
    %260 = arith.negf %259 : vector<1x128xf32>
    %261 = math.exp %260 : vector<1x128xf32>
    %cst_120 = arith.constant 1.000000e+00 : f32
    %262 = vector.broadcast %cst_120 : f32 to vector<1x128xf32>
    %263 = arith.addf %262, %261 : vector<1x128xf32>
    %264 = arith.divf %262, %263 : vector<1x128xf32>
    %c0_121 = arith.constant 0 : index
    %c0_122 = arith.constant 0 : index
    %c0_123 = arith.constant 0 : index
    %265 = vector.load %arg8[%c0_121, %c0_122, %c0_123] : memref<1x1x128xf32, #tpu.memory_space<vmem>>, vector<1x1x128xf32>
    %266 = vector.shape_cast %265 : vector<1x1x128xf32> to vector<1x128xf32>
    %267 = vector.shape_cast %264 : vector<1x128xf32> to vector<1x1x128xf32>
    tpu.vector_store %arg8[%c0_121, %c0_122, %c0_123], %267 {strides = array<i32>} : memref<1x1x128xf32, #tpu.memory_space<vmem>>, vector<1x1x128xf32>,
    return
  }
  func.func @transform_0(%arg0: i32) -> (i32, i32, i32) {
    %c0_i32 = arith.constant 0 : i32
    %c0_i32_0 = arith.constant 0 : i32
    %c0_i32_1 = arith.constant 0 : i32
    return %arg0, %c0_i32, %c0_i32_0 : i32, i32, i32
  }
  func.func @transform_1(%arg0: i32) -> (i32, i32, i32) {
    %c0_i32 = arith.constant 0 : i32
    %c0_i32_0 = arith.constant 0 : i32
    %c0_i32_1 = arith.constant 0 : i32
    return %arg0, %c0_i32, %c0_i32_0 : i32, i32, i32
  }
  func.func @transform_2(%arg0: i32) -> (i32, i32, i32) {
    %c0_i32 = arith.constant 0 : i32
    %c0_i32_0 = arith.constant 0 : i32
    %c0_i32_1 = arith.constant 0 : i32
    return %arg0, %c0_i32, %c0_i32_0 : i32, i32, i32
  }
  func.func @transform_3(%arg0: i32) -> (i32, i32, i32) {
    %c0_i32 = arith.constant 0 : i32
    %c0_i32_0 = arith.constant 0 : i32
    %c0_i32_1 = arith.constant 0 : i32
    %c0_i32_2 = arith.constant 0 : i32
    return %c0_i32, %c0_i32_0, %c0_i32_1 : i32, i32, i32
  }
  func.func @transform_4(%arg0: i32) -> (i32, i32, i32) {
    %c0_i32 = arith.constant 0 : i32
    %c0_i32_0 = arith.constant 0 : i32
    %c0_i32_1 = arith.constant 0 : i32
    %c0_i32_2 = arith.constant 0 : i32
    return %c0_i32, %c0_i32_0, %c0_i32_1 : i32, i32, i32
  }
  func.func @transform_5(%arg0: i32) -> (i32, i32) {
    %c0_i32 = arith.constant 0 : i32
    %c0_i32_0 = arith.constant 0 : i32
    %c0_i32_1 = arith.constant 0 : i32
    return %c0_i32, %c0_i32_0 : i32, i32
  }
  func.func @transform_6(%arg0: i32) -> (i32, i32) {
    %c0_i32 = arith.constant 0 : i32
    %c0_i32_0 = arith.constant 0 : i32
    %c0_i32_1 = arith.constant 0 : i32
    return %c0_i32, %c0_i32_0 : i32, i32
  }
  func.func @transform_7(%arg0: i32) -> (i32, i32, i32) {
    %c0_i32 = arith.constant 0 : i32
    %c0_i32_0 = arith.constant 0 : i32
    %c0_i32_1 = arith.constant 0 : i32
    return %arg0, %c0_i32, %c0_i32_0 : i32, i32, i32
  }
}

</mosaic_0001>

<llo_original>
// kernel: gnn_forward.1
$region0: #{gnn_forward.1}
  #allocation0 [shape = 'u32[]', space=smem, size = 0x4, offset = 0x4, fixed_abs, tag = 'smem constant byte address 0x4 - core index']
  #allocation1 [shape = 'u32[72,128]{1,0:T(1,128)}', space=vmem, size = 0x9000, scoped, tag = 'internal scratch']
  %s0 = inlined_call_operand.vmem [shape: f32[2,128,128], index: 0, kind: input, shape index: {}]
  %s1 = inlined_call_operand.vmem [shape: f32[2,128,128], index: 1, kind: input, shape index: {}]
  %s2 = inlined_call_operand.vmem [shape: f32[2,128,128], index: 2, kind: input, shape index: {}]
  %s3 = inlined_call_operand.vmem [shape: f32[3,256,128], index: 3, kind: input, shape index: {}]
  %s4 = inlined_call_operand.vmem [shape: f32[3,2,128], index: 4, kind: input, shape index: {}]
  %s5 = inlined_call_operand.vmem [shape: f32[128,256], index: 5, kind: input, shape index: {}]
  %s6 = inlined_call_operand.vmem [shape: f32[8,256], index: 6, kind: input, shape index: {}]
  %s7 = inlined_call_operand.hbm [shape: f32[2,1,128], index: 7, kind: output, shape index: {}]
  %s8 = sld [smem:[#allocation0]]
  $region61: #{gnn_forward.1} parent=0
    _
  %s10 = ssub.s32 1, %s8
  %s11 = scalar_select 0, %s10, %s8
  $region1: #{gnn_forward.1} parent=0
    #allocation2 [shape = 'u8[1024]{0}', space=vmem, size = 0x400, scoped, tag = 'output window, operand 0']
    #allocation3 [shape = 's32[2]{0}', space=sflag, size = 0x8, scoped, tag = 'scoped memory for gnn_forward.1']
    %12 = vsyncpa [#allocation3], 0
    %s13 = scalar_lea.sflag [#allocation3], 1
    %14 = vsyncpa %s13, 0
    loop: start=0, step=1, limit=4
    $region2: #{gnn_forward.1} parent=1 // loop_pre_header
      _
    $region3: #{gnn_forward.1} parent=1 // loop_header
      %s16 = sphi 0, %s20
      %p17 = scmp.ge.s32.totalorder %s16, 4
      %s26 = sphi 0, %s28
      %s29 = sphi 0, %s26
      %s30 = sphi 0, %s29
      %s46 = sphi 0, %s30
      %s52 = sphi 0, %s54
      %s55 = sphi 0, %s52
      %s56 = sphi 0, %s55
      %s72 = sphi 0, %s56
      %s78 = sphi 0, %s80
      %s81 = sphi 0, %s78
      %s82 = sphi 0, %s81
      %s98 = sphi 0, %s82
      %s102 = sphi 0, %s102
      %s104 = sphi 0, %s102
      %s105 = sphi 0, %s104
      %s119 = sphi 0, %s105
      %s123 = sphi 0, %s123
      %s125 = sphi 0, %s123
      %s126 = sphi 0, %s125
      %s140 = sphi 0, %s126
      %s144 = sphi 0, %s144
      %s146 = sphi 0, %s144
      %s147 = sphi 0, %s146
      %s161 = sphi 0, %s147
      %s165 = sphi 0, %s165
      %s167 = sphi 0, %s165
      %s168 = sphi 0, %s167
      %s182 = sphi 0, %s168
      %s188 = sphi 0, %s190
      %s191 = sphi 0, %s188
      %s192 = sphi 0, %s191
      %s208 = sphi 0, %s192
    $region4: #{gnn_forward.1} parent=1 // loop_header_branch
      %19 = sbr.rel (%p17) target = $region8
    $region5: #{gnn_forward.1} parent=1 // loop_body
      %s21 = ssub.s32 %s16, 1
      %s22 = ssub.s32 %s16, 2
      %s23 = sadd.s32 %s16, 1
      %s24 = ssub.s32 %s16, %s23
      %p25 = scmp.eq.s32.totalorder %s24, 0
      %s27 = sadd.s32 %s26, 1
      %s28 = scalar_select %p25, %s26, %s27
      %p31 = pneg %p25
      %p32 = scmp.eq.s32.totalorder %s16, 1
      %p33 = por %p31, %p32
      %p34 = scmp.ne.s32.totalorder %s26, %s29
      %p35 = scmp.eq.s32.totalorder %s16, 0
      %p36 = por %p34, %p35
      %p37 = scmp.ne.s32.totalorder %s26, %s29
      %p38 = scmp.eq.s32.totalorder %s21, 1
      %p39 = por %p37, %p38
      %p40 = scmp.ne.s32.totalorder %s29, %s30
      %p41 = scmp.eq.s32.totalorder %s21, 0
      %p42 = por %p40, %p41
      %p43 = scmp.ne.s32.totalorder %s29, %s30
      %p44 = scmp.eq.s32.totalorder %s22, 1
      %p45 = por %p43, %p44
      %p47 = scmp.ne.s32.totalorder %s30, %s46
      %p48 = scmp.eq.s32.totalorder %s22, 0
      %p49 = por %p47, %p48
      %s50 = ssub.s32 %s16, %s23
      %p51 = scmp.eq.s32.totalorder %s50, 0
      %s53 = sadd.s32 %s52, 1
      %s54 = scalar_select %p51, %s52, %s53
      %p57 = pneg %p51
      %p58 = scmp.eq.s32.totalorder %s16, 1
      %p59 = por %p57, %p58
      %p60 = scmp.ne.s32.totalorder %s52, %s55
      %p61 = scmp.eq.s32.totalorder %s16, 0
      %p62 = por %p60, %p61
      %p63 = scmp.ne.s32.totalorder %s52, %s55
      %p64 = scmp.eq.s32.totalorder %s21, 1
      %p65 = por %p63, %p64
      %p66 = scmp.ne.s32.totalorder %s55, %s56
      %p67 = scmp.eq.s32.totalorder %s21, 0
      %p68 = por %p66, %p67
      %p69 = scmp.ne.s32.totalorder %s55, %s56
      %p70 = scmp.eq.s32.totalorder %s22, 1
      %p71 = por %p69, %p70
      %p73 = scmp.ne.s32.totalorder %s56, %s72
      %p74 = scmp.eq.s32.totalorder %s22, 0
      %p75 = por %p73, %p74
      %s76 = ssub.s32 %s16, %s23
      %p77 = scmp.eq.s32.totalorder %s76, 0
      %s79 = sadd.s32 %s78, 1
      %s80 = scalar_select %p77, %s78, %s79
      %p83 = pneg %p77
      %p84 = scmp.eq.s32.totalorder %s16, 1
      %p85 = por %p83, %p84
      %p86 = scmp.ne.s32.totalorder %s78, %s81
      %p87 = scmp.eq.s32.totalorder %s16, 0
      %p88 = por %p86, %p87
      %p89 = scmp.ne.s32.totalorder %s78, %s81
      %p90 = scmp.eq.s32.totalorder %s21, 1
      %p91 = por %p89, %p90
      %p92 = scmp.ne.s32.totalorder %s81, %s82
      %p93 = scmp.eq.s32.totalorder %s21, 0
      %p94 = por %p92, %p93
      %p95 = scmp.ne.s32.totalorder %s81, %s82
      %p96 = scmp.eq.s32.totalorder %s22, 1
      %p97 = por %p95, %p96
      %p99 = scmp.ne.s32.totalorder %s82, %s98
      %p100 = scmp.eq.s32.totalorder %s22, 0
      %p101 = por %p99, %p100
      %s103 = sadd.s32 %s102, 1
      %p106 = scmp.eq.s32.totalorder %s16, 1
      %p107 = scmp.ne.s32.totalorder %s102, %s104
      %p108 = scmp.eq.s32.totalorder %s16, 0
      %p109 = por %p107, %p108
      %p110 = scmp.ne.s32.totalorder %s102, %s104
      %p111 = scmp.eq.s32.totalorder %s21, 1
      %p112 = por %p110, %p111
      %p113 = scmp.ne.s32.totalorder %s104, %s105
      %p114 = scmp.eq.s32.totalorder %s21, 0
      %p115 = por %p113, %p114
      %p116 = scmp.ne.s32.totalorder %s104, %s105
      %p117 = scmp.eq.s32.totalorder %s22, 1
      %p118 = por %p116, %p117
      %p120 = scmp.ne.s32.totalorder %s105, %s119
      %p121 = scmp.eq.s32.totalorder %s22, 0
      %p122 = por %p120, %p121
      %s124 = sadd.s32 %s123, 1
      %p127 = scmp.eq.s32.totalorder %s16, 1
      %p128 = scmp.ne.s32.totalorder %s123, %s125
      %p129 = scmp.eq.s32.totalorder %s16, 0
      %p130 = por %p128, %p129
      %p131 = scmp.ne.s32.totalorder %s123, %s125
      %p132 = scmp.eq.s32.totalorder %s21, 1
      %p133 = por %p131, %p132
      %p134 = scmp.ne.s32.totalorder %s125, %s126
      %p135 = scmp.eq.s32.totalorder %s21, 0
      %p136 = por %p134, %p135
      %p137 = scmp.ne.s32.totalorder %s125, %s126
      %p138 = scmp.eq.s32.totalorder %s22, 1
      %p139 = por %p137, %p138
      %p141 = scmp.ne.s32.totalorder %s126, %s140
      %p142 = scmp.eq.s32.totalorder %s22, 0
      %p143 = por %p141, %p142
      %s145 = sadd.s32 %s144, 1
      %p148 = scmp.eq.s32.totalorder %s16, 1
      %p149 = scmp.ne.s32.totalorder %s144, %s146
      %p150 = scmp.eq.s32.totalorder %s16, 0
      %p151 = por %p149, %p150
      %p152 = scmp.ne.s32.totalorder %s144, %s146
      %p153 = scmp.eq.s32.totalorder %s21, 1
      %p154 = por %p152, %p153
      %p155 = scmp.ne.s32.totalorder %s146, %s147
      %p156 = scmp.eq.s32.totalorder %s21, 0
      %p157 = por %p155, %p156
      %p158 = scmp.ne.s32.totalorder %s146, %s147
      %p159 = scmp.eq.s32.totalorder %s22, 1
      %p160 = por %p158, %p159
      %p162 = scmp.ne.s32.totalorder %s147, %s161
      %p163 = scmp.eq.s32.totalorder %s22, 0
      %p164 = por %p162, %p163
      %s166 = sadd.s32 %s165, 1
      %p169 = scmp.eq.s32.totalorder %s16, 1
      %p170 = scmp.ne.s32.totalorder %s165, %s167
      %p171 = scmp.eq.s32.totalorder %s16, 0
      %p172 = por %p170, %p171
      %p173 = scmp.ne.s32.totalorder %s165, %s167
      %p174 = scmp.eq.s32.totalorder %s21, 1
      %p175 = por %p173, %p174
      %p176 = scmp.ne.s32.totalorder %s167, %s168
      %p177 = scmp.eq.s32.totalorder %s21, 0
      %p178 = por %p176, %p177
      %p179 = scmp.ne.s32.totalorder %s167, %s168
      %p180 = scmp.eq.s32.totalorder %s22, 1
      %p181 = por %p179, %p180
      %p183 = scmp.ne.s32.totalorder %s168, %s182
      %p184 = scmp.eq.s32.totalorder %s22, 0
      %p185 = por %p183, %p184
      %s186 = ssub.s32 %s16, %s23
      %p187 = scmp.eq.s32.totalorder %s186, 0
      %s189 = sadd.s32 %s188, 1
      %s190 = scalar_select %p187, %s188, %s189
      %p193 = pneg %p187
      %p194 = scmp.eq.s32.totalorder %s16, 1
      %p195 = por %p193, %p194
      %p196 = scmp.ne.s32.totalorder %s188, %s191
      %p197 = scmp.eq.s32.totalorder %s16, 0
      %p198 = por %p196, %p197
      %p199 = scmp.ne.s32.totalorder %s188, %s191
      %p200 = scmp.eq.s32.totalorder %s21, 1
      %p201 = por %p199, %p200
      %p202 = scmp.ne.s32.totalorder %s191, %s192
      %p203 = scmp.eq.s32.totalorder %s21, 0
      %p204 = por %p202, %p203
      %p205 = scmp.ne.s32.totalorder %s191, %s192
      %p206 = scmp.eq.s32.totalorder %s22, 1
      %p207 = por %p205, %p206
      %p209 = scmp.ne.s32.totalorder %s192, %s208
      %p210 = scmp.eq.s32.totalorder %s22, 0
      %p211 = por %p209, %p210
      %p212 = scmp.le.s32.totalorder 1, %s16
      %p213 = scmp.lt.s32.totalorder %s16, 3
      %p214 = pnand %p212, %p213
      %p215 = pneg %p214
      // Predicated region
      $region9: #{gnn_forward.1} parent=5 // pred_check
        _
      $region10: #{gnn_forward.1} parent=5 // pred_check_branch
        %217 = sbr.rel (%p214) target = $region12
      $region11: #{gnn_forward.1} parent=5 // pred_region
        %s218 = ssub.s32 %s16, 1
        // Predicated region
        $region13: #{gnn_forward.1} parent=11 // pred_check
          %p219 = pneg %p115
        $region14: #{gnn_forward.1} parent=11 // pred_check_branch
          %221 = sbr.rel (%p219) target = $region16
        $region15: #{gnn_forward.1} parent=11 // pred_region
          _
        $region16: #{gnn_forward.1} parent=11 // pred_fallthru
          _
        // Predicated region
        $region17: #{gnn_forward.1} parent=11 // pred_check
          %p222 = pneg %p136
        $region18: #{gnn_forward.1} parent=11 // pred_check_branch
          %224 = sbr.rel (%p222) target = $region20
        $region19: #{gnn_forward.1} parent=11 // pred_region
          _
        $region20: #{gnn_forward.1} parent=11 // pred_fallthru
          _
        // Predicated region
        $region21: #{gnn_forward.1} parent=11 // pred_check
          %p225 = pneg %p157
        $region22: #{gnn_forward.1} parent=11 // pred_check_branch
          %227 = sbr.rel (%p225) target = $region24
        $region23: #{gnn_forward.1} parent=11 // pred_region
          _
        $region24: #{gnn_forward.1} parent=11 // pred_fallthru
          _
        // Predicated region
        $region25: #{gnn_forward.1} parent=11 // pred_check
          %p228 = pneg %p178
        $region26: #{gnn_forward.1} parent=11 // pred_check_branch
          %230 = sbr.rel (%p228) target = $region28
        $region27: #{gnn_forward.1} parent=11 // pred_region
          _
        $region28: #{gnn_forward.1} parent=11 // pred_fallthru
          _
      $region12: #{gnn_forward.1} parent=5 // pred_fallthru
        _
      %p231 = scmp.lt.s32.totalorder %s16, 2
      // Predicated region
      $region29: #{gnn_forward.1} parent=5 // pred_check
        %p232 = pneg %p231
      $region30: #{gnn_forward.1} parent=5 // pred_check_branch
        %234 = sbr.rel (%p232) target = $region32
      $region31: #{gnn_forward.1} parent=5 // pred_region
        // Predicated region
        $region33: #{gnn_forward.1} parent=31 // pred_check
          %p235 = pneg %p36
        $region34: #{gnn_forward.1} parent=31 // pred_check_branch
          %237 = sbr.rel (%p235) target = $region36
        $region35: #{gnn_forward.1} parent=31 // pred_region
          %p238 = scmp.lt.s32.totalorder %s16, 1
          %s239 = scalar_select %p238, %s16, 1
          %s240 = smul.addr %s239, 16
          %s241 = smul.addr %s240, 8
          %s242 = scalar_lea.vmem %s0, %s241
        $region36: #{gnn_forward.1} parent=31 // pred_fallthru
          _
        // Predicated region
        $region37: #{gnn_forward.1} parent=31 // pred_check
          %p243 = pneg %p62
        $region38: #{gnn_forward.1} parent=31 // pred_check_branch
          %245 = sbr.rel (%p243) target = $region40
        $region39: #{gnn_forward.1} parent=31 // pred_region
          %p246 = scmp.lt.s32.totalorder %s16, 1
          %s247 = scalar_select %p246, %s16, 1
          %s248 = smul.addr %s247, 16
          %s249 = smul.addr %s248, 8
          %s250 = scalar_lea.vmem %s1, %s249
        $region40: #{gnn_forward.1} parent=31 // pred_fallthru
          _
        // Predicated region
        $region41: #{gnn_forward.1} parent=31 // pred_check
          %p251 = pneg %p88
        $region42: #{gnn_forward.1} parent=31 // pred_check_branch
          %253 = sbr.rel (%p251) target = $region44
        $region43: #{gnn_forward.1} parent=31 // pred_region
          %p254 = scmp.lt.s32.totalorder %s16, 1
          %s255 = scalar_select %p254, %s16, 1
          %s256 = smul.addr %s255, 16
          %s257 = smul.addr %s256, 8
          %s258 = scalar_lea.vmem %s2, %s257
        $region44: #{gnn_forward.1} parent=31 // pred_fallthru
          _
      $region32: #{gnn_forward.1} parent=5 // pred_fallthru
        _
      %p259 = scmp.le.s32.totalorder 1, %s16
      %p260 = scmp.lt.s32.totalorder %s16, 3
      %p261 = pnand %p259, %p260
      %p262 = pneg %p261
      // Predicated region
      $region45: #{gnn_forward.1} parent=5 // pred_check
        _
      $region46: #{gnn_forward.1} parent=5 // pred_check_branch
        %264 = sbr.rel (%p261) target = $region48
      $region47: #{gnn_forward.1} parent=5 // pred_region
        %s265 = ssub.s32 %s16, 1
        %p266 = scmp.lt.s32.totalorder %s21, 1
        %s267 = scalar_select %p266, %s21, 1
        %s268 = smul.addr %s267, 16
        %s269 = smul.addr %s268, 8
        %s270 = scalar_lea.vmem %s0, %s269
        %p271 = pneg %p42
        %p272 = pneg %p39
        %p273 = scmp.lt.s32.totalorder %s21, 1
        %s274 = scalar_select %p273, %s21, 1
        %s275 = smul.addr %s274, 16
        %s276 = smul.addr %s275, 8
        %s277 = scalar_lea.vmem %s1, %s276
        %p278 = pneg %p68
        %p279 = pneg %p65
        %p280 = scmp.lt.s32.totalorder %s21, 1
        %s281 = scalar_select %p280, %s21, 1
        %s282 = smul.addr %s281, 16
        %s283 = smul.addr %s282, 8
        %s284 = scalar_lea.vmem %s2, %s283
        %p285 = pneg %p94
        %p286 = pneg %p91
        %p287 = pneg %p115
        %p288 = pneg %p112
        %p289 = pneg %p136
        %p290 = pneg %p133
        %p291 = pneg %p157
        %p292 = pneg %p154
        %p293 = pneg %p178
        %p294 = pneg %p175
        %p295 = pneg %p204
        %p296 = pneg %p201
        %s297 = sand.u32 %s191, 1
        %s298 = scalar_lea.sflag [#allocation3], %s297
        %s299 = sand.u32 %s191, 1
        %s300 = scalar_lea.vmem [#allocation2], %s299
        %p301 = scmp.lt.s32.totalorder %s21, 1
        %s302 = scalar_select %p301, %s21, 1
        %s303 = smul.addr %s302, 16
        %s304 = smul.addr %s303, 8
        %s305 = scalar_lea.vmem %s0, %s304
        %p306 = scmp.lt.s32.totalorder %s21, 1
        %s307 = scalar_select %p306, %s21, 1
        %s308 = smul.addr %s307, 16
        %s309 = smul.addr %s308, 8
        %s310 = scalar_lea.vmem %s1, %s309
        %p311 = scmp.lt.s32.totalorder %s21, 1
        %s312 = scalar_select %p311, %s21, 1
        %s313 = smul.addr %s312, 16
        %s314 = smul.addr %s313, 8
        %s315 = scalar_lea.vmem %s2, %s314
        %v316 = vld [vmem:[%s305] sm:$0xff]
        %v317 = vld [vmem:[%s305 + $0x8] sm:$0xff]
        %v318 = vld [vmem:[%s305 + $0x10] sm:$0xff]
        %v319 = vld [vmem:[%s305 + $0x18] sm:$0xff]
        %v320 = vld [vmem:[%s305 + $0x20] sm:$0xff]
        %v321 = vld [vmem:[%s305 + $0x28] sm:$0xff]
        %v322 = vld [vmem:[%s305 + $0x30] sm:$0xff]
        %v323 = vld [vmem:[%s305 + $0x38] sm:$0xff]
        %v324 = vld [vmem:[%s305 + $0x40] sm:$0xff]
        %v325 = vld [vmem:[%s305 + $0x48] sm:$0xff]
        %v326 = vld [vmem:[%s305 + $0x50] sm:$0xff]
        %v327 = vld [vmem:[%s305 + $0x58] sm:$0xff]
        %v328 = vld [vmem:[%s305 + $0x60] sm:$0xff]
        %v329 = vld [vmem:[%s305 + $0x68] sm:$0xff]
        %v330 = vld [vmem:[%s305 + $0x70] sm:$0xff]
        %v331 = vld [vmem:[%s305 + $0x78] sm:$0xff]
        %v332 = vld [vmem:[%s310] sm:$0xff]
        %v333 = vld [vmem:[%s310 + $0x8] sm:$0xff]
        %v334 = vld [vmem:[%s310 + $0x10] sm:$0xff]
        %v335 = vld [vmem:[%s310 + $0x18] sm:$0xff]
        %v336 = vld [vmem:[%s310 + $0x20] sm:$0xff]
        %v337 = vld [vmem:[%s310 + $0x28] sm:$0xff]
        %v338 = vld [vmem:[%s310 + $0x30] sm:$0xff]
        %v339 = vld [vmem:[%s310 + $0x38] sm:$0xff]
        %v340 = vld [vmem:[%s310 + $0x40] sm:$0xff]
        %v341 = vld [vmem:[%s310 + $0x48] sm:$0xff]
        %v342 = vld [vmem:[%s310 + $0x50] sm:$0xff]
        %v343 = vld [vmem:[%s310 + $0x58] sm:$0xff]
        %v344 = vld [vmem:[%s310 + $0x60] sm:$0xff]
        %v345 = vld [vmem:[%s310 + $0x68] sm:$0xff]
        %v346 = vld [vmem:[%s310 + $0x70] sm:$0xff]
        %v347 = vld [vmem:[%s310 + $0x78] sm:$0xff]
        %v348 = vld [vmem:[%s315] sm:$0xff]
        %v349 = vld [vmem:[%s315 + $0x8] sm:$0xff]
        %v350 = vld [vmem:[%s315 + $0x10] sm:$0xff]
        %v351 = vld [vmem:[%s315 + $0x18] sm:$0xff]
        %v352 = vld [vmem:[%s315 + $0x20] sm:$0xff]
        %v353 = vld [vmem:[%s315 + $0x28] sm:$0xff]
        %v354 = vld [vmem:[%s315 + $0x30] sm:$0xff]
        %v355 = vld [vmem:[%s315 + $0x38] sm:$0xff]
        %v356 = vld [vmem:[%s315 + $0x40] sm:$0xff]
        %v357 = vld [vmem:[%s315 + $0x48] sm:$0xff]
        %v358 = vld [vmem:[%s315 + $0x50] sm:$0xff]
        %v359 = vld [vmem:[%s315 + $0x58] sm:$0xff]
        %v360 = vld [vmem:[%s315 + $0x60] sm:$0xff]
        %v361 = vld [vmem:[%s315 + $0x68] sm:$0xff]
        %v362 = vld [vmem:[%s315 + $0x70] sm:$0xff]
        %v363 = vld [vmem:[%s315 + $0x78] sm:$0xff]
        %364 = vxpose.xlu0.b32.start [1/16] %v348, 128
        %365 = vxpose.xlu0.b32.cont [2/16] %v349, 128
        %366 = vxpose.xlu0.b32.cont [3/16] %v350, 128
        %367 = vxpose.xlu0.b32.cont [4/16] %v351, 128
        %368 = vxpose.xlu0.b32.cont [5/16] %v352, 128
        %369 = vxpose.xlu0.b32.cont [6/16] %v353, 128
        %370 = vxpose.xlu0.b32.cont [7/16] %v354, 128
        %371 = vxpose.xlu0.b32.cont [8/16] %v355, 128
        %372 = vxpose.xlu0.b32.cont [9/16] %v356, 128
        %373 = vxpose.xlu0.b32.cont [10/16] %v357, 128
        %374 = vxpose.xlu0.b32.cont [11/16] %v358, 128
        %375 = vxpose.xlu0.b32.cont [12/16] %v359, 128
        %376 = vxpose.xlu0.b32.cont [13/16] %v360, 128
        %377 = vxpose.xlu0.b32.cont [14/16] %v361, 128
        %378 = vxpose.xlu0.b32.cont [15/16] %v362, 128
        %379 = vxpose.xlu0.b32.end [16/16] %v363, 128
        %v380 = vpop.trf.xlu0
        %v381 = vpop.trf.xlu0
        %v382 = vpop.trf.xlu0
        %v383 = vpop.trf.xlu0
        %v384 = vpop.trf.xlu0
        %v385 = vpop.trf.xlu0
        %v386 = vpop.trf.xlu0
        %v387 = vpop.trf.xlu0
        %v388 = vpop.trf.xlu0
        %v389 = vpop.trf.xlu0
        %v390 = vpop.trf.xlu0
        %v391 = vpop.trf.xlu0
        %v392 = vpop.trf.xlu0
        %v393 = vpop.trf.xlu0
        %v394 = vpop.trf.xlu0
        %v395 = vpop.trf.xlu0
        %396 = vmatpush.msra.mxu0 %v363
        %397 = vmatpush.msra.mxu0 %v362
        %398 = vmatpush.msra.mxu0 %v361
        %399 = vmatpush.msra.mxu0 %v360
        %400 = vmatpush.msra.mxu0 %v359
        %401 = vmatpush.msra.mxu0 %v358
        %402 = vmatpush.msra.mxu0 %v357
        %403 = vmatpush.msra.mxu0 %v356
        %404 = vmatpush.msra.mxu0 %v355
        %405 = vmatpush.msra.mxu0 %v354
        %406 = vmatpush.msra.mxu0 %v353
        %407 = vmatpush.msra.mxu0 %v352
        %408 = vmatpush.msra.mxu0 %v351
        %409 = vmatpush.msra.mxu0 %v350
        %410 = vmatpush.msra.mxu0 %v349
        %411 = vmatpush.msra.mxu0 %v348
        %412 = vmatmul.f32.gmra.mxu0 %v380
        %v413 = vpop.f32.mrf.mxu0
        %v414 = vadd.f32 0.0, %v413
        %415 = vmatmul.f32.gmra.mxu0 %v381
        %v416 = vpop.f32.mrf.mxu0
        %v417 = vadd.f32 0.0, %v416
        %418 = vmatmul.f32.gmra.mxu0 %v382
        %v419 = vpop.f32.mrf.mxu0
        %v420 = vadd.f32 0.0, %v419
        %421 = vmatmul.f32.gmra.mxu0 %v383
        %v422 = vpop.f32.mrf.mxu0
        %v423 = vadd.f32 0.0, %v422
        %424 = vmatmul.f32.gmra.mxu0 %v384
        %v425 = vpop.f32.mrf.mxu0
        %v426 = vadd.f32 0.0, %v425
        %427 = vmatmul.f32.gmra.mxu0 %v385
        %v428 = vpop.f32.mrf.mxu0
        %v429 = vadd.f32 0.0, %v428
        %430 = vmatmul.f32.gmra.mxu0 %v386
        %v431 = vpop.f32.mrf.mxu0
        %v432 = vadd.f32 0.0, %v431
        %433 = vmatmul.f32.gmra.mxu0 %v387
        %v434 = vpop.f32.mrf.mxu0
        %v435 = vadd.f32 0.0, %v434
        %436 = vmatmul.f32.gmra.mxu0 %v388
        %v437 = vpop.f32.mrf.mxu0
        %v438 = vadd.f32 0.0, %v437
        %439 = vmatmul.f32.gmra.mxu0 %v389
        %v440 = vpop.f32.mrf.mxu0
        %v441 = vadd.f32 0.0, %v440
        %442 = vmatmul.f32.gmra.mxu0 %v390
        %v443 = vpop.f32.mrf.mxu0
        %v444 = vadd.f32 0.0, %v443
        %445 = vmatmul.f32.gmra.mxu0 %v391
        %v446 = vpop.f32.mrf.mxu0
        %v447 = vadd.f32 0.0, %v446
        %448 = vmatmul.f32.gmra.mxu0 %v392
        %v449 = vpop.f32.mrf.mxu0
        %v450 = vadd.f32 0.0, %v449
        %451 = vmatmul.f32.gmra.mxu0 %v393
        %v452 = vpop.f32.mrf.mxu0
        %v453 = vadd.f32 0.0, %v452
        %454 = vmatmul.f32.gmra.mxu0 %v394
        %v455 = vpop.f32.mrf.mxu0
        %v456 = vadd.f32 0.0, %v455
        %457 = vmatmul.f32.gmra.mxu0 %v395
        %v458 = vpop.f32.mrf.mxu0
        %v459 = vadd.f32 0.0, %v458
        %460 = vdwg.mxu0
        %461 = vadd.xlane.f32.xlu0 %v380
        %v462 = vpop.xlane.xlu0 %461
        %463 = vadd.xlane.f32.xlu0 %v381
        %v464 = vpop.xlane.xlu0 %463
        %465 = vadd.xlane.f32.xlu0 %v382
        %v466 = vpop.xlane.xlu0 %465
        %467 = vadd.xlane.f32.xlu0 %v383
        %v468 = vpop.xlane.xlu0 %467
        %469 = vadd.xlane.f32.xlu0 %v384
        %v470 = vpop.xlane.xlu0 %469
        %471 = vadd.xlane.f32.xlu0 %v385
        %v472 = vpop.xlane.xlu0 %471
        %473 = vadd.xlane.f32.xlu0 %v386
        %v474 = vpop.xlane.xlu0 %473
        %475 = vadd.xlane.f32.xlu0 %v387
        %v476 = vpop.xlane.xlu0 %475
        %477 = vadd.xlane.f32.xlu0 %v388
        %v478 = vpop.xlane.xlu0 %477
        %479 = vadd.xlane.f32.xlu0 %v389
        %v480 = vpop.xlane.xlu0 %479
        %481 = vadd.xlane.f32.xlu0 %v390
        %v482 = vpop.xlane.xlu0 %481
        %483 = vadd.xlane.f32.xlu0 %v391
        %v484 = vpop.xlane.xlu0 %483
        %485 = vadd.xlane.f32.xlu0 %v392
        %v486 = vpop.xlane.xlu0 %485
        %487 = vadd.xlane.f32.xlu0 %v393
        %v488 = vpop.xlane.xlu0 %487
        %489 = vadd.xlane.f32.xlu0 %v394
        %v490 = vpop.xlane.xlu0 %489
        %491 = vadd.xlane.f32.xlu0 %v395
        %v492 = vpop.xlane.xlu0 %491
        %v493 = vlaneseq
        %v494 = vshrl.u32 %v493, 7
        %v495 = vadd.s32 %v494, 8
        %v496 = vadd.s32 %v494, 16
        %v497 = vadd.s32 %v494, 24
        %v498 = vadd.s32 %v494, 32
        %v499 = vadd.s32 %v494, 40
        %v500 = vadd.s32 %v494, 48
        %v501 = vadd.s32 %v494, 56
        %v502 = vadd.s32 %v494, 64
        %v503 = vadd.s32 %v494, 72
        %v504 = vadd.s32 %v494, 80
        %v505 = vadd.s32 %v494, 88
        %v506 = vadd.s32 %v494, 96
        %v507 = vadd.s32 %v494, 104
        %v508 = vadd.s32 %v494, 112
        %v509 = vadd.s32 %v494, 120
        %v510 = vlaneseq
        %v511 = vand.u32 %v510, 127
        %vm512 = vcmp.lt.s32.totalorder %v511, %v494
        %vm513 = vcmp.lt.s32.totalorder %v511, %v495
        %vm514 = vcmp.lt.s32.totalorder %v511, %v496
        %vm515 = vcmp.lt.s32.totalorder %v511, %v497
        %vm516 = vcmp.lt.s32.totalorder %v511, %v498
        %vm517 = vcmp.lt.s32.totalorder %v511, %v499
        %vm518 = vcmp.lt.s32.totalorder %v511, %v500
        %vm519 = vcmp.lt.s32.totalorder %v511, %v501
        %vm520 = vcmp.lt.s32.totalorder %v511, %v502
        %vm521 = vcmp.lt.s32.totalorder %v511, %v503
        %vm522 = vcmp.lt.s32.totalorder %v511, %v504
        %vm523 = vcmp.lt.s32.totalorder %v511, %v505
        %vm524 = vcmp.lt.s32.totalorder %v511, %v506
        %vm525 = vcmp.lt.s32.totalorder %v511, %v507
        %vm526 = vcmp.lt.s32.totalorder %v511, %v508
        %vm527 = vcmp.lt.s32.totalorder %v511, %v509
        %v528 = vld [vmem:[%s3] sm:$0xff]
        %v529 = vld [vmem:[%s3 + $0x8] sm:$0xff]
        %v530 = vld [vmem:[%s3 + $0x10] sm:$0xff]
        %v531 = vld [vmem:[%s3 + $0x18] sm:$0xff]
        %v532 = vld [vmem:[%s3 + $0x20] sm:$0xff]
        %v533 = vld [vmem:[%s3 + $0x28] sm:$0xff]
        %v534 = vld [vmem:[%s3 + $0x30] sm:$0xff]
        %v535 = vld [vmem:[%s3 + $0x38] sm:$0xff]
        %v536 = vld [vmem:[%s3 + $0x40] sm:$0xff]
        %v537 = vld [vmem:[%s3 + $0x48] sm:$0xff]
        %v538 = vld [vmem:[%s3 + $0x50] sm:$0xff]
        %v539 = vld [vmem:[%s3 + $0x58] sm:$0xff]
        %v540 = vld [vmem:[%s3 + $0x60] sm:$0xff]
        %v541 = vld [vmem:[%s3 + $0x68] sm:$0xff]
        %v542 = vld [vmem:[%s3 + $0x70] sm:$0xff]
        %v543 = vld [vmem:[%s3 + $0x78] sm:$0xff]
        %v544 = vld [vmem:[%s3 + $0x80] sm:$0xff]
        %v545 = vld [vmem:[%s3 + $0x88] sm:$0xff]
        %v546 = vld [vmem:[%s3 + $0x90] sm:$0xff]
        %v547 = vld [vmem:[%s3 + $0x98] sm:$0xff]
        %v548 = vld [vmem:[%s3 + $0xa0] sm:$0xff]
        %v549 = vld [vmem:[%s3 + $0xa8] sm:$0xff]
        %v550 = vld [vmem:[%s3 + $0xb0] sm:$0xff]
        %v551 = vld [vmem:[%s3 + $0xb8] sm:$0xff]
        %v552 = vld [vmem:[%s3 + $0xc0] sm:$0xff]
        %v553 = vld [vmem:[%s3 + $0xc8] sm:$0xff]
        %v554 = vld [vmem:[%s3 + $0xd0] sm:$0xff]
        %v555 = vld [vmem:[%s3 + $0xd8] sm:$0xff]
        %v556 = vld [vmem:[%s3 + $0xe0] sm:$0xff]
        %v557 = vld [vmem:[%s3 + $0xe8] sm:$0xff]
        %v558 = vld [vmem:[%s3 + $0xf0] sm:$0xff]
        %v559 = vld [vmem:[%s3 + $0xf8] sm:$0xff]
        %v560 = vld [vmem:[%s4] sm:$0x3]
        %561 = vadd.xlane.f32.xlu0 %v332
        %v562 = vpop.xlane.xlu0 %561
        %563 = vadd.xlane.f32.xlu0 %v333
        %v564 = vpop.xlane.xlu0 %563
        %565 = vadd.xlane.f32.xlu0 %v334
        %v566 = vpop.xlane.xlu0 %565
        %567 = vadd.xlane.f32.xlu0 %v335
        %v568 = vpop.xlane.xlu0 %567
        %569 = vadd.xlane.f32.xlu0 %v336
        %v570 = vpop.xlane.xlu0 %569
        %571 = vadd.xlane.f32.xlu0 %v337
        %v572 = vpop.xlane.xlu0 %571
        %573 = vadd.xlane.f32.xlu0 %v338
        %v574 = vpop.xlane.xlu0 %573
        %575 = vadd.xlane.f32.xlu0 %v339
        %v576 = vpop.xlane.xlu0 %575
        %577 = vadd.xlane.f32.xlu0 %v340
        %v578 = vpop.xlane.xlu0 %577
        %579 = vadd.xlane.f32.xlu0 %v341
        %v580 = vpop.xlane.xlu0 %579
        %581 = vadd.xlane.f32.xlu0 %v342
        %v582 = vpop.xlane.xlu0 %581
        %583 = vadd.xlane.f32.xlu0 %v343
        %v584 = vpop.xlane.xlu0 %583
        %585 = vadd.xlane.f32.xlu0 %v344
        %v586 = vpop.xlane.xlu0 %585
        %587 = vadd.xlane.f32.xlu0 %v345
        %v588 = vpop.xlane.xlu0 %587
        %589 = vadd.xlane.f32.xlu0 %v346
        %v590 = vpop.xlane.xlu0 %589
        %591 = vadd.xlane.f32.xlu0 %v347
        %v592 = vpop.xlane.xlu0 %591
        %vm593 = vcmp.gt.f32.partialorder %v562, 0.0
        %vm594 = vcmp.gt.f32.partialorder %v564, 0.0
        %vm595 = vcmp.gt.f32.partialorder %v566, 0.0
        %vm596 = vcmp.gt.f32.partialorder %v568, 0.0
        %vm597 = vcmp.gt.f32.partialorder %v570, 0.0
        %vm598 = vcmp.gt.f32.partialorder %v572, 0.0
        %vm599 = vcmp.gt.f32.partialorder %v574, 0.0
        %vm600 = vcmp.gt.f32.partialorder %v576, 0.0
        %vm601 = vcmp.gt.f32.partialorder %v578, 0.0
        %vm602 = vcmp.gt.f32.partialorder %v580, 0.0
        %vm603 = vcmp.gt.f32.partialorder %v582, 0.0
        %vm604 = vcmp.gt.f32.partialorder %v584, 0.0
        %vm605 = vcmp.gt.f32.partialorder %v586, 0.0
        %vm606 = vcmp.gt.f32.partialorder %v588, 0.0
        %vm607 = vcmp.gt.f32.partialorder %v590, 0.0
        %vm608 = vcmp.gt.f32.partialorder %v592, 0.0
        %v609 = vmax.f32 %v562, 1.0
        %v610 = vmax.f32 %v564, 1.0
        %v611 = vmax.f32 %v566, 1.0
        %v612 = vmax.f32 %v568, 1.0
        %v613 = vmax.f32 %v570, 1.0
        %v614 = vmax.f32 %v572, 1.0
        %v615 = vmax.f32 %v574, 1.0
        %v616 = vmax.f32 %v576, 1.0
        %v617 = vmax.f32 %v578, 1.0
        %v618 = vmax.f32 %v580, 1.0
        %v619 = vmax.f32 %v582, 1.0
        %v620 = vmax.f32 %v584, 1.0
        %v621 = vmax.f32 %v586, 1.0
        %v622 = vmax.f32 %v588, 1.0
        %v623 = vmax.f32 %v590, 1.0
        %v624 = vmax.f32 %v592, 1.0
        %v625 = vrcp.pop %v609
        %v626 = vmul.f32 %v609, %v625
        %v627 = vsub.f32 1.0, %v626
        %v628 = vmul.f32 %v625, %v627
        %v629 = vadd.f32 %v625, %v628
        %vm630 = vweird.f32 %v609
        %vm631 = vweird.f32 %v625
        %vm632 = vmor %vm630, %vm631
        %v633 = vsel %vm632, %v625, %v629
        %v634 = vand.u32 2147483647, %v609
        %vm635 = vcmp.eq.f32.partialorder %v634, 8.507059e+37
        %v636 = vand.u32 %v609, 2147483648
        %v637 = vor.u32 1.1754944e-38, %v636
        %v638 = vsel %vm635, %v637, %v633
        %v639 = vmul.f32 1.0, %v638
        %v640 = vrcp.pop %v610
        %v641 = vmul.f32 %v610, %v640
        %v642 = vsub.f32 1.0, %v641
        %v643 = vmul.f32 %v640, %v642
        %v644 = vadd.f32 %v640, %v643
        %vm645 = vweird.f32 %v610
        %vm646 = vweird.f32 %v640
        %vm647 = vmor %vm645, %vm646
        %v648 = vsel %vm647, %v640, %v644
        %v649 = vand.u32 2147483647, %v610
        %vm650 = vcmp.eq.f32.partialorder %v649, 8.507059e+37
        %v651 = vand.u32 %v610, 2147483648
        %v652 = vor.u32 1.1754944e-38, %v651
        %v653 = vsel %vm650, %v652, %v648
        %v654 = vmul.f32 1.0, %v653
        %v655 = vrcp.pop %v611
        %v656 = vmul.f32 %v611, %v655
        %v657 = vsub.f32 1.0, %v656
        %v658 = vmul.f32 %v655, %v657
        %v659 = vadd.f32 %v655, %v658
        %vm660 = vweird.f32 %v611
        %vm661 = vweird.f32 %v655
        %vm662 = vmor %vm660, %vm661
        %v663 = vsel %vm662, %v655, %v659
        %v664 = vand.u32 2147483647, %v611
        %vm665 = vcmp.eq.f32.partialorder %v664, 8.507059e+37
        %v666 = vand.u32 %v611, 2147483648
        %v667 = vor.u32 1.1754944e-38, %v666
        %v668 = vsel %vm665, %v667, %v663
        %v669 = vmul.f32 1.0, %v668
        %v670 = vrcp.pop %v612
        %v671 = vmul.f32 %v612, %v670
        %v672 = vsub.f32 1.0, %v671
        %v673 = vmul.f32 %v670, %v672
        %v674 = vadd.f32 %v670, %v673
        %vm675 = vweird.f32 %v612
        %vm676 = vweird.f32 %v670
        %vm677 = vmor %vm675, %vm676
        %v678 = vsel %vm677, %v670, %v674
        %v679 = vand.u32 2147483647, %v612
        %vm680 = vcmp.eq.f32.partialorder %v679, 8.507059e+37
        %v681 = vand.u32 %v612, 2147483648
        %v682 = vor.u32 1.1754944e-38, %v681
        %v683 = vsel %vm680, %v682, %v678
        %v684 = vmul.f32 1.0, %v683
        %v685 = vrcp.pop %v613
        %v686 = vmul.f32 %v613, %v685
        %v687 = vsub.f32 1.0, %v686
        %v688 = vmul.f32 %v685, %v687
        %v689 = vadd.f32 %v685, %v688
        %vm690 = vweird.f32 %v613
        %vm691 = vweird.f32 %v685
        %vm692 = vmor %vm690, %vm691
        %v693 = vsel %vm692, %v685, %v689
        %v694 = vand.u32 2147483647, %v613
        %vm695 = vcmp.eq.f32.partialorder %v694, 8.507059e+37
        %v696 = vand.u32 %v613, 2147483648
        %v697 = vor.u32 1.1754944e-38, %v696
        %v698 = vsel %vm695, %v697, %v693
        %v699 = vmul.f32 1.0, %v698
        %v700 = vrcp.pop %v614
        %v701 = vmul.f32 %v614, %v700
        %v702 = vsub.f32 1.0, %v701
        %v703 = vmul.f32 %v700, %v702
        %v704 = vadd.f32 %v700, %v703
        %vm705 = vweird.f32 %v614
        %vm706 = vweird.f32 %v700
        %vm707 = vmor %vm705, %vm706
        %v708 = vsel %vm707, %v700, %v704
        %v709 = vand.u32 2147483647, %v614
        %vm710 = vcmp.eq.f32.partialorder %v709, 8.507059e+37
        %v711 = vand.u32 %v614, 2147483648
        %v712 = vor.u32 1.1754944e-38, %v711
        %v713 = vsel %vm710, %v712, %v708
        %v714 = vmul.f32 1.0, %v713
        %v715 = vrcp.pop %v615
        %v716 = vmul.f32 %v615, %v715
        %v717 = vsub.f32 1.0, %v716
        %v718 = vmul.f32 %v715, %v717
        %v719 = vadd.f32 %v715, %v718
        %vm720 = vweird.f32 %v615
        %vm721 = vweird.f32 %v715
        %vm722 = vmor %vm720, %vm721
        %v723 = vsel %vm722, %v715, %v719
        %v724 = vand.u32 2147483647, %v615
        %vm725 = vcmp.eq.f32.partialorder %v724, 8.507059e+37
        %v726 = vand.u32 %v615, 2147483648
        %v727 = vor.u32 1.1754944e-38, %v726
        %v728 = vsel %vm725, %v727, %v723
        %v729 = vmul.f32 1.0, %v728
        %v730 = vrcp.pop %v616
        %v731 = vmul.f32 %v616, %v730
        %v732 = vsub.f32 1.0, %v731
        %v733 = vmul.f32 %v730, %v732
        %v734 = vadd.f32 %v730, %v733
        %vm735 = vweird.f32 %v616
        %vm736 = vweird.f32 %v730
        %vm737 = vmor %vm735, %vm736
        %v738 = vsel %vm737, %v730, %v734
        %v739 = vand.u32 2147483647, %v616
        %vm740 = vcmp.eq.f32.partialorder %v739, 8.507059e+37
        %v741 = vand.u32 %v616, 2147483648
        %v742 = vor.u32 1.1754944e-38, %v741
        %v743 = vsel %vm740, %v742, %v738
        %v744 = vmul.f32 1.0, %v743
        %v745 = vrcp.pop %v617
        %v746 = vmul.f32 %v617, %v745
        %v747 = vsub.f32 1.0, %v746
        %v748 = vmul.f32 %v745, %v747
        %v749 = vadd.f32 %v745, %v748
        %vm750 = vweird.f32 %v617
        %vm751 = vweird.f32 %v745
        %vm752 = vmor %vm750, %vm751
        %v753 = vsel %vm752, %v745, %v749
        %v754 = vand.u32 2147483647, %v617
        %vm755 = vcmp.eq.f32.partialorder %v754, 8.507059e+37
        %v756 = vand.u32 %v617, 2147483648
        %v757 = vor.u32 1.1754944e-38, %v756
        %v758 = vsel %vm755, %v757, %v753
        %v759 = vmul.f32 1.0, %v758
        %v760 = vrcp.pop %v618
        %v761 = vmul.f32 %v618, %v760
        %v762 = vsub.f32 1.0, %v761
        %v763 = vmul.f32 %v760, %v762
        %v764 = vadd.f32 %v760, %v763
        %vm765 = vweird.f32 %v618
        %vm766 = vweird.f32 %v760
        %vm767 = vmor %vm765, %vm766
        %v768 = vsel %vm767, %v760, %v764
        %v769 = vand.u32 2147483647, %v618
        %vm770 = vcmp.eq.f32.partialorder %v769, 8.507059e+37
        %v771 = vand.u32 %v618, 2147483648
        %v772 = vor.u32 1.1754944e-38, %v771
        %v773 = vsel %vm770, %v772, %v768
        %v774 = vmul.f32 1.0, %v773
        %v775 = vrcp.pop %v619
        %v776 = vmul.f32 %v619, %v775
        %v777 = vsub.f32 1.0, %v776
        %v778 = vmul.f32 %v775, %v777
        %v779 = vadd.f32 %v775, %v778
        %vm780 = vweird.f32 %v619
        %vm781 = vweird.f32 %v775
        %vm782 = vmor %vm780, %vm781
        %v783 = vsel %vm782, %v775, %v779
        %v784 = vand.u32 2147483647, %v619
        %vm785 = vcmp.eq.f32.partialorder %v784, 8.507059e+37
        %v786 = vand.u32 %v619, 2147483648
        %v787 = vor.u32 1.1754944e-38, %v786
        %v788 = vsel %vm785, %v787, %v783
        %v789 = vmul.f32 1.0, %v788
        %v790 = vrcp.pop %v620
        %v791 = vmul.f32 %v620, %v790
        %v792 = vsub.f32 1.0, %v791
        %v793 = vmul.f32 %v790, %v792
        %v794 = vadd.f32 %v790, %v793
        %vm795 = vweird.f32 %v620
        %vm796 = vweird.f32 %v790
        %vm797 = vmor %vm795, %vm796
        %v798 = vsel %vm797, %v790, %v794
        %v799 = vand.u32 2147483647, %v620
        %vm800 = vcmp.eq.f32.partialorder %v799, 8.507059e+37
        %v801 = vand.u32 %v620, 2147483648
        %v802 = vor.u32 1.1754944e-38, %v801
        %v803 = vsel %vm800, %v802, %v798
        %v804 = vmul.f32 1.0, %v803
        %v805 = vrcp.pop %v621
        %v806 = vmul.f32 %v621, %v805
        %v807 = vsub.f32 1.0, %v806
        %v808 = vmul.f32 %v805, %v807
        %v809 = vadd.f32 %v805, %v808
        %vm810 = vweird.f32 %v621
        %vm811 = vweird.f32 %v805
        %vm812 = vmor %vm810, %vm811
        %v813 = vsel %vm812, %v805, %v809
        %v814 = vand.u32 2147483647, %v621
        %vm815 = vcmp.eq.f32.partialorder %v814, 8.507059e+37
        %v816 = vand.u32 %v621, 2147483648
        %v817 = vor.u32 1.1754944e-38, %v816
        %v818 = vsel %vm815, %v817, %v813
        %v819 = vmul.f32 1.0, %v818
        %v820 = vrcp.pop %v622
        %v821 = vmul.f32 %v622, %v820
        %v822 = vsub.f32 1.0, %v821
        %v823 = vmul.f32 %v820, %v822
        %v824 = vadd.f32 %v820, %v823
        %vm825 = vweird.f32 %v622
        %vm826 = vweird.f32 %v820
        %vm827 = vmor %vm825, %vm826
        %v828 = vsel %vm827, %v820, %v824
        %v829 = vand.u32 2147483647, %v622
        %vm830 = vcmp.eq.f32.partialorder %v829, 8.507059e+37
        %v831 = vand.u32 %v622, 2147483648
        %v832 = vor.u32 1.1754944e-38, %v831
        %v833 = vsel %vm830, %v832, %v828
        %v834 = vmul.f32 1.0, %v833
        %v835 = vrcp.pop %v623
        %v836 = vmul.f32 %v623, %v835
        %v837 = vsub.f32 1.0, %v836
        %v838 = vmul.f32 %v835, %v837
        %v839 = vadd.f32 %v835, %v838
        %vm840 = vweird.f32 %v623
        %vm841 = vweird.f32 %v835
        %vm842 = vmor %vm840, %vm841
        %v843 = vsel %vm842, %v835, %v839
        %v844 = vand.u32 2147483647, %v623
        %vm845 = vcmp.eq.f32.partialorder %v844, 8.507059e+37
        %v846 = vand.u32 %v623, 2147483648
        %v847 = vor.u32 1.1754944e-38, %v846
        %v848 = vsel %vm845, %v847, %v843
        %v849 = vmul.f32 1.0, %v848
        %v850 = vrcp.pop %v624
        %v851 = vmul.f32 %v624, %v850
        %v852 = vsub.f32 1.0, %v851
        %v853 = vmul.f32 %v850, %v852
        %v854 = vadd.f32 %v850, %v853
        %vm855 = vweird.f32 %v624
        %vm856 = vweird.f32 %v850
        %vm857 = vmor %vm855, %vm856
        %v858 = vsel %vm857, %v850, %v854
        %v859 = vand.u32 2147483647, %v624
        %vm860 = vcmp.eq.f32.partialorder %v859, 8.507059e+37
        %v861 = vand.u32 %v624, 2147483648
        %v862 = vor.u32 1.1754944e-38, %v861
        %v863 = vsel %vm860, %v862, %v858
        %v864 = vmul.f32 1.0, %v863
        %v865 = vsel %vm593, %v639, 0.0
        %v866 = vsel %vm594, %v654, 0.0
        %v867 = vsel %vm595, %v669, 0.0
        %v868 = vsel %vm596, %v684, 0.0
        %v869 = vsel %vm597, %v699, 0.0
        %v870 = vsel %vm598, %v714, 0.0
        %v871 = vsel %vm599, %v729, 0.0
        %v872 = vsel %vm600, %v744, 0.0
        %v873 = vsel %vm601, %v759, 0.0
        %v874 = vsel %vm602, %v774, 0.0
        %v875 = vsel %vm603, %v789, 0.0
        %v876 = vsel %vm604, %v804, 0.0
        %v877 = vsel %vm605, %v819, 0.0
        %v878 = vsel %vm606, %v834, 0.0
        %v879 = vsel %vm607, %v849, 0.0
        %v880 = vsel %vm608, %v864, 0.0
        %881 = vmatpush.msra.mxu0 %v331
        %882 = vmatpush.msra.mxu0 %v330
        %883 = vmatpush.msra.mxu0 %v329
        %884 = vmatpush.msra.mxu0 %v328
        %885 = vmatpush.msra.mxu0 %v327
        %886 = vmatpush.msra.mxu0 %v326
        %887 = vmatpush.msra.mxu0 %v325
        %888 = vmatpush.msra.mxu0 %v324
        %889 = vmatpush.msra.mxu0 %v323
        %890 = vmatpush.msra.mxu0 %v322
        %891 = vmatpush.msra.mxu0 %v321
        %892 = vmatpush.msra.mxu0 %v320
        %893 = vmatpush.msra.mxu0 %v319
        %894 = vmatpush.msra.mxu0 %v318
        %895 = vmatpush.msra.mxu0 %v317
        %896 = vmatpush.msra.mxu0 %v316
        %897 = vmatmul.f32.gmra.mxu0 %v332
        %v898 = vpop.f32.mrf.mxu0
        %v899 = vadd.f32 0.0, %v898
        %900 = vmatmul.f32.gmra.mxu0 %v333
        %v901 = vpop.f32.mrf.mxu0
        %v902 = vadd.f32 0.0, %v901
        %903 = vmatmul.f32.gmra.mxu0 %v334
        %v904 = vpop.f32.mrf.mxu0
        %v905 = vadd.f32 0.0, %v904
        %906 = vmatmul.f32.gmra.mxu0 %v335
        %v907 = vpop.f32.mrf.mxu0
        %v908 = vadd.f32 0.0, %v907
        %909 = vmatmul.f32.gmra.mxu0 %v336
        %v910 = vpop.f32.mrf.mxu0
        %v911 = vadd.f32 0.0, %v910
        %912 = vmatmul.f32.gmra.mxu0 %v337
        %v913 = vpop.f32.mrf.mxu0
        %v914 = vadd.f32 0.0, %v913
        %915 = vmatmul.f32.gmra.mxu0 %v338
        %v916 = vpop.f32.mrf.mxu0
        %v917 = vadd.f32 0.0, %v916
        %918 = vmatmul.f32.gmra.mxu0 %v339
        %v919 = vpop.f32.mrf.mxu0
        %v920 = vadd.f32 0.0, %v919
        %921 = vmatmul.f32.gmra.mxu0 %v340
        %v922 = vpop.f32.mrf.mxu0
        %v923 = vadd.f32 0.0, %v922
        %924 = vmatmul.f32.gmra.mxu0 %v341
        %v925 = vpop.f32.mrf.mxu0
        %v926 = vadd.f32 0.0, %v925
        %927 = vmatmul.f32.gmra.mxu0 %v342
        %v928 = vpop.f32.mrf.mxu0
        %v929 = vadd.f32 0.0, %v928
        %930 = vmatmul.f32.gmra.mxu0 %v343
        %v931 = vpop.f32.mrf.mxu0
        %v932 = vadd.f32 0.0, %v931
        %933 = vmatmul.f32.gmra.mxu0 %v344
        %v934 = vpop.f32.mrf.mxu0
        %v935 = vadd.f32 0.0, %v934
        %936 = vmatmul.f32.gmra.mxu0 %v345
        %v937 = vpop.f32.mrf.mxu0
        %v938 = vadd.f32 0.0, %v937
        %939 = vmatmul.f32.gmra.mxu0 %v346
        %v940 = vpop.f32.mrf.mxu0
        %v941 = vadd.f32 0.0, %v940
        %942 = vmatmul.f32.gmra.mxu0 %v347
        %v943 = vpop.f32.mrf.mxu0
        %v944 = vadd.f32 0.0, %v943
        %945 = vdwg.mxu0
        %v946 = vmul.f32 %v899, %v865
        %v947 = vmul.f32 %v902, %v866
        %v948 = vmul.f32 %v905, %v867
        %v949 = vmul.f32 %v908, %v868
        %v950 = vmul.f32 %v911, %v869
        %v951 = vmul.f32 %v914, %v870
        %v952 = vmul.f32 %v917, %v871
        %v953 = vmul.f32 %v920, %v872
        %v954 = vmul.f32 %v923, %v873
        %v955 = vmul.f32 %v926, %v874
        %v956 = vmul.f32 %v929, %v875
        %v957 = vmul.f32 %v932, %v876
        %v958 = vmul.f32 %v935, %v877
        %v959 = vmul.f32 %v938, %v878
        %v960 = vmul.f32 %v941, %v879
        %v961 = vmul.f32 %v944, %v880
        %v962 = vperm.slane %v560, 0
        %963 = vmatpush.msra.mxu0 %v543
        %964 = vmatpush.msra.mxu0 %v542
        %965 = vmatpush.msra.mxu0 %v541
        %966 = vmatpush.msra.mxu0 %v540
        %967 = vmatpush.msra.mxu0 %v539
        %968 = vmatpush.msra.mxu0 %v538
        %969 = vmatpush.msra.mxu0 %v537
        %970 = vmatpush.msra.mxu0 %v536
        %971 = vmatpush.msra.mxu0 %v535
        %972 = vmatpush.msra.mxu0 %v534
        %973 = vmatpush.msra.mxu0 %v533
        %974 = vmatpush.msra.mxu0 %v532
        %975 = vmatpush.msra.mxu0 %v531
        %976 = vmatpush.msra.mxu0 %v530
        %977 = vmatpush.msra.mxu0 %v529
        %978 = vmatpush.msra.mxu0 %v528
        %979 = vmatmul.f32.gmra.mxu0 %v946
        %v980 = vpop.f32.mrf.mxu0
        %v981 = vadd.f32 %v962, %v980
        %982 = vmatmul.f32.gmra.mxu0 %v947
        %v983 = vpop.f32.mrf.mxu0
        %v984 = vadd.f32 %v962, %v983
        %985 = vmatmul.f32.gmra.mxu0 %v948
        %v986 = vpop.f32.mrf.mxu0
        %v987 = vadd.f32 %v962, %v986
        %988 = vmatmul.f32.gmra.mxu0 %v949
        %v989 = vpop.f32.mrf.mxu0
        %v990 = vadd.f32 %v962, %v989
        %991 = vmatmul.f32.gmra.mxu0 %v950
        %v992 = vpop.f32.mrf.mxu0
        %v993 = vadd.f32 %v962, %v992
        %994 = vmatmul.f32.gmra.mxu0 %v951
        %v995 = vpop.f32.mrf.mxu0
        %v996 = vadd.f32 %v962, %v995
        %997 = vmatmul.f32.gmra.mxu0 %v952
        %v998 = vpop.f32.mrf.mxu0
        %v999 = vadd.f32 %v962, %v998
        %1000 = vmatmul.f32.gmra.mxu0 %v953
        %v1001 = vpop.f32.mrf.mxu0
        %v1002 = vadd.f32 %v962, %v1001
        %1003 = vmatmul.f32.gmra.mxu0 %v954
        %v1004 = vpop.f32.mrf.mxu0
        %v1005 = vadd.f32 %v962, %v1004
        %1006 = vmatmul.f32.gmra.mxu0 %v955
        %v1007 = vpop.f32.mrf.mxu0
        %v1008 = vadd.f32 %v962, %v1007
        %1009 = vmatmul.f32.gmra.mxu0 %v956
        %v1010 = vpop.f32.mrf.mxu0
        %v1011 = vadd.f32 %v962, %v1010
        %1012 = vmatmul.f32.gmra.mxu0 %v957
        %v1013 = vpop.f32.mrf.mxu0
        %v1014 = vadd.f32 %v962, %v1013
        %1015 = vmatmul.f32.gmra.mxu0 %v958
        %v1016 = vpop.f32.mrf.mxu0
        %v1017 = vadd.f32 %v962, %v1016
        %1018 = vmatmul.f32.gmra.mxu0 %v959
        %v1019 = vpop.f32.mrf.mxu0
        %v1020 = vadd.f32 %v962, %v1019
        %1021 = vmatmul.f32.gmra.mxu0 %v960
        %v1022 = vpop.f32.mrf.mxu0
        %v1023 = vadd.f32 %v962, %v1022
        %1024 = vmatmul.f32.gmra.mxu0 %v961
        %v1025 = vpop.f32.mrf.mxu0
        %v1026 = vadd.f32 %v962, %v1025
        %1027 = vdwg.mxu0
        %1028 = vmatpush.msra.mxu0 %v559
        %1029 = vmatpush.msra.mxu0 %v558
        %1030 = vmatpush.msra.mxu0 %v557
        %1031 = vmatpush.msra.mxu0 %v556
        %1032 = vmatpush.msra.mxu0 %v555
        %1033 = vmatpush.msra.mxu0 %v554
        %1034 = vmatpush.msra.mxu0 %v553
        %1035 = vmatpush.msra.mxu0 %v552
        %1036 = vmatpush.msra.mxu0 %v551
        %1037 = vmatpush.msra.mxu0 %v550
        %1038 = vmatpush.msra.mxu0 %v549
        %1039 = vmatpush.msra.mxu0 %v548
        %1040 = vmatpush.msra.mxu0 %v547
        %1041 = vmatpush.msra.mxu0 %v546
        %1042 = vmatpush.msra.mxu0 %v545
        %1043 = vmatpush.msra.mxu0 %v544
        %1044 = vmatmul.f32.gmra.mxu0 %v316
        %v1045 = vpop.f32.mrf.mxu0
        %v1046 = vadd.f32 %v981, %v1045
        %1047 = vmatmul.f32.gmra.mxu0 %v317
        %v1048 = vpop.f32.mrf.mxu0
        %v1049 = vadd.f32 %v984, %v1048
        %1050 = vmatmul.f32.gmra.mxu0 %v318
        %v1051 = vpop.f32.mrf.mxu0
        %v1052 = vadd.f32 %v987, %v1051
        %1053 = vmatmul.f32.gmra.mxu0 %v319
        %v1054 = vpop.f32.mrf.mxu0
        %v1055 = vadd.f32 %v990, %v1054
        %1056 = vmatmul.f32.gmra.mxu0 %v320
        %v1057 = vpop.f32.mrf.mxu0
        %v1058 = vadd.f32 %v993, %v1057
        %1059 = vmatmul.f32.gmra.mxu0 %v321
        %v1060 = vpop.f32.mrf.mxu0
        %v1061 = vadd.f32 %v996, %v1060
        %1062 = vmatmul.f32.gmra.mxu0 %v322
        %v1063 = vpop.f32.mrf.mxu0
        %v1064 = vadd.f32 %v999, %v1063
        %1065 = vmatmul.f32.gmra.mxu0 %v323
        %v1066 = vpop.f32.mrf.mxu0
        %v1067 = vadd.f32 %v1002, %v1066
        %1068 = vmatmul.f32.gmra.mxu0 %v324
        %v1069 = vpop.f32.mrf.mxu0
        %v1070 = vadd.f32 %v1005, %v1069
        %1071 = vmatmul.f32.gmra.mxu0 %v325
        %v1072 = vpop.f32.mrf.mxu0
        %v1073 = vadd.f32 %v1008, %v1072
        %1074 = vmatmul.f32.gmra.mxu0 %v326
        %v1075 = vpop.f32.mrf.mxu0
        %v1076 = vadd.f32 %v1011, %v1075
        %1077 = vmatmul.f32.gmra.mxu0 %v327
        %v1078 = vpop.f32.mrf.mxu0
        %v1079 = vadd.f32 %v1014, %v1078
        %1080 = vmatmul.f32.gmra.mxu0 %v328
        %v1081 = vpop.f32.mrf.mxu0
        %v1082 = vadd.f32 %v1017, %v1081
        %1083 = vmatmul.f32.gmra.mxu0 %v329
        %v1084 = vpop.f32.mrf.mxu0
        %v1085 = vadd.f32 %v1020, %v1084
        %1086 = vmatmul.f32.gmra.mxu0 %v330
        %v1087 = vpop.f32.mrf.mxu0
        %v1088 = vadd.f32 %v1023, %v1087
        %1089 = vmatmul.f32.gmra.mxu0 %v331
        %v1090 = vpop.f32.mrf.mxu0
        %v1091 = vadd.f32 %v1026, %v1090
        %1092 = vdwg.mxu0
        %v1093 = vmax.f32 %v1046, 0.0
        %v1094 = vmax.f32 %v1049, 0.0
        %v1095 = vmax.f32 %v1052, 0.0
        %v1096 = vmax.f32 %v1055, 0.0
        %v1097 = vmax.f32 %v1058, 0.0
        %v1098 = vmax.f32 %v1061, 0.0
        %v1099 = vmax.f32 %v1064, 0.0
        %v1100 = vmax.f32 %v1067, 0.0
        %v1101 = vmax.f32 %v1070, 0.0
        %v1102 = vmax.f32 %v1073, 0.0
        %v1103 = vmax.f32 %v1076, 0.0
        %v1104 = vmax.f32 %v1079, 0.0
        %v1105 = vmax.f32 %v1082, 0.0
        %v1106 = vmax.f32 %v1085, 0.0
        %v1107 = vmax.f32 %v1088, 0.0
        %v1108 = vmax.f32 %v1091, 0.0
        %v1109 = vperm.slane %v560, 1
        %v1110 = vmul.f32 %v1093, %v1109
        %v1111 = vmul.f32 %v1094, %v1109
        %v1112 = vmul.f32 %v1095, %v1109
        %v1113 = vmul.f32 %v1096, %v1109
        %v1114 = vmul.f32 %v1097, %v1109
        %v1115 = vmul.f32 %v1098, %v1109
        %v1116 = vmul.f32 %v1099, %v1109
        %v1117 = vmul.f32 %v1100, %v1109
        %v1118 = vmul.f32 %v1101, %v1109
        %v1119 = vmul.f32 %v1102, %v1109
        %v1120 = vmul.f32 %v1103, %v1109
        %v1121 = vmul.f32 %v1104, %v1109
        %v1122 = vmul.f32 %v1105, %v1109
        %v1123 = vmul.f32 %v1106, %v1109
        %v1124 = vmul.f32 %v1107, %v1109
        %v1125 = vmul.f32 %v1108, %v1109
        %1126 = vadd.xlane.f32.xlu0 %v1110
        %v1127 = vpop.xlane.xlu0 %1126
        %1128 = vadd.xlane.f32.xlu0 %v1111
        %v1129 = vpop.xlane.xlu0 %1128
        %1130 = vadd.xlane.f32.xlu0 %v1112
        %v1131 = vpop.xlane.xlu0 %1130
        %1132 = vadd.xlane.f32.xlu0 %v1113
        %v1133 = vpop.xlane.xlu0 %1132
        %1134 = vadd.xlane.f32.xlu0 %v1114
        %v1135 = vpop.xlane.xlu0 %1134
        %1136 = vadd.xlane.f32.xlu0 %v1115
        %v1137 = vpop.xlane.xlu0 %1136
        %1138 = vadd.xlane.f32.xlu0 %v1116
        %v1139 = vpop.xlane.xlu0 %1138
        %1140 = vadd.xlane.f32.xlu0 %v1117
        %v1141 = vpop.xlane.xlu0 %1140
        %1142 = vadd.xlane.f32.xlu0 %v1118
        %v1143 = vpop.xlane.xlu0 %1142
        %1144 = vadd.xlane.f32.xlu0 %v1119
        %v1145 = vpop.xlane.xlu0 %1144
        %1146 = vadd.xlane.f32.xlu0 %v1120
        %v1147 = vpop.xlane.xlu0 %1146
        %1148 = vadd.xlane.f32.xlu0 %v1121
        %v1149 = vpop.xlane.xlu0 %1148
        %1150 = vadd.xlane.f32.xlu0 %v1122
        %v1151 = vpop.xlane.xlu0 %1150
        %1152 = vadd.xlane.f32.xlu0 %v1123
        %v1153 = vpop.xlane.xlu0 %1152
        %1154 = vadd.xlane.f32.xlu0 %v1124
        %v1155 = vpop.xlane.xlu0 %1154
        %1156 = vadd.xlane.f32.xlu0 %v1125
        %v1157 = vpop.xlane.xlu0 %1156
        %v1158 = vtanh.pop %v1127
        %v1159 = vtanh.pop %v1129
        %v1160 = vtanh.pop %v1131
        %v1161 = vtanh.pop %v1133
        %v1162 = vtanh.pop %v1135
        %v1163 = vtanh.pop %v1137
        %v1164 = vtanh.pop %v1139
        %v1165 = vtanh.pop %v1141
        %v1166 = vtanh.pop %v1143
        %v1167 = vtanh.pop %v1145
        %v1168 = vtanh.pop %v1147
        %v1169 = vtanh.pop %v1149
        %v1170 = vtanh.pop %v1151
        %v1171 = vtanh.pop %v1153
        %v1172 = vtanh.pop %v1155
        %v1173 = vtanh.pop %v1157
        %vm1174 = vcmp.gt.f32.partialorder %v462, 0.5
        %vm1175 = vcmp.gt.f32.partialorder %v464, 0.5
        %vm1176 = vcmp.gt.f32.partialorder %v466, 0.5
        %vm1177 = vcmp.gt.f32.partialorder %v468, 0.5
        %vm1178 = vcmp.gt.f32.partialorder %v470, 0.5
        %vm1179 = vcmp.gt.f32.partialorder %v472, 0.5
        %vm1180 = vcmp.gt.f32.partialorder %v474, 0.5
        %vm1181 = vcmp.gt.f32.partialorder %v476, 0.5
        %vm1182 = vcmp.gt.f32.partialorder %v478, 0.5
        %vm1183 = vcmp.gt.f32.partialorder %v480, 0.5
        %vm1184 = vcmp.gt.f32.partialorder %v482, 0.5
        %vm1185 = vcmp.gt.f32.partialorder %v484, 0.5
        %vm1186 = vcmp.gt.f32.partialorder %v486, 0.5
        %vm1187 = vcmp.gt.f32.partialorder %v488, 0.5
        %vm1188 = vcmp.gt.f32.partialorder %v490, 0.5
        %vm1189 = vcmp.gt.f32.partialorder %v492, 0.5
        %v1190 = vsel %vm1174, %v1158, -1e+30
        %v1191 = vsel %vm1175, %v1159, -1e+30
        %v1192 = vsel %vm1176, %v1160, -1e+30
        %v1193 = vsel %vm1177, %v1161, -1e+30
        %v1194 = vsel %vm1178, %v1162, -1e+30
        %v1195 = vsel %vm1179, %v1163, -1e+30
        %v1196 = vsel %vm1180, %v1164, -1e+30
        %v1197 = vsel %vm1181, %v1165, -1e+30
        %v1198 = vsel %vm1182, %v1166, -1e+30
        %v1199 = vsel %vm1183, %v1167, -1e+30
        %v1200 = vsel %vm1184, %v1168, -1e+30
        %v1201 = vsel %vm1185, %v1169, -1e+30
        %v1202 = vsel %vm1186, %v1170, -1e+30
        %v1203 = vsel %vm1187, %v1171, -1e+30
        %v1204 = vsel %vm1188, %v1172, -1e+30
        %v1205 = vsel %vm1189, %v1173, -1e+30
        %vm1206 = vcmask 7168
        %v1208 = vsel %vm1206, 1.0, 0
        %v1211 = vsel %vm1206, %v1190, 0
        %v1214 = vsel %vm1206, %v1191, 0
        %v1217 = vsel %vm1206, %v1192, 0
        %v1220 = vsel %vm1206, %v1193, 0
        %v1223 = vsel %vm1206, %v1194, 0
        %v1226 = vsel %vm1206, %v1195, 0
        %v1229 = vsel %vm1206, %v1196, 0
        %v1232 = vsel %vm1206, %v1197, 0
        %v1235 = vsel %vm1206, %v1198, 0
        %v1238 = vsel %vm1206, %v1199, 0
        %v1241 = vsel %vm1206, %v1200, 0
        %v1244 = vsel %vm1206, %v1201, 0
        %v1247 = vsel %vm1206, %v1202, 0
        %v1250 = vsel %vm1206, %v1203, 0
        %v1253 = vsel %vm1206, %v1204, 0
        %v1256 = vsel %vm1206, %v1205, 0
        %1258 = vmatpush.xpose.msra.mxu0 %v1256
        %1259 = vmatpush.xpose.msra.mxu0 %v1253
        %1260 = vmatpush.xpose.msra.mxu0 %v1250
        %1261 = vmatpush.xpose.msra.mxu0 %v1247
        %1262 = vmatpush.xpose.msra.mxu0 %v1244
        %1263 = vmatpush.xpose.msra.mxu0 %v1241
        %1264 = vmatpush.xpose.msra.mxu0 %v1238
        %1265 = vmatpush.xpose.msra.mxu0 %v1235
        %1266 = vmatpush.xpose.msra.mxu0 %v1232
        %1267 = vmatpush.xpose.msra.mxu0 %v1229
        %1268 = vmatpush.xpose.msra.mxu0 %v1226
        %1269 = vmatpush.xpose.msra.mxu0 %v1223
        %1270 = vmatpush.xpose.msra.mxu0 %v1220
        %1271 = vmatpush.xpose.msra.mxu0 %v1217
        %1272 = vmatpush.xpose.msra.mxu0 %v1214
        %1273 = vmatpush.xpose.msra.mxu0 %v1211
        %1274 = vmatmul.f32.gmra.mxu0 %v1208
        %v1275 = vpop.f32.mrf.mxu0
        %v1276 = vadd.f32 0.0, %v1275
        %1277 = vmatmul.f32.gmra.mxu0 %v1208
        %v1278 = vpop.f32.mrf.mxu0
        %v1279 = vadd.f32 0.0, %v1278
        %1280 = vmatmul.f32.gmra.mxu0 %v1208
        %v1281 = vpop.f32.mrf.mxu0
        %v1282 = vadd.f32 0.0, %v1281
        %1283 = vmatmul.f32.gmra.mxu0 %v1208
        %v1284 = vpop.f32.mrf.mxu0
        %v1285 = vadd.f32 0.0, %v1284
        %1286 = vmatmul.f32.gmra.mxu0 %v1208
        %v1287 = vpop.f32.mrf.mxu0
        %v1288 = vadd.f32 0.0, %v1287
        %1289 = vmatmul.f32.gmra.mxu0 %v1208
        %v1290 = vpop.f32.mrf.mxu0
        %v1291 = vadd.f32 0.0, %v1290
        %1292 = vmatmul.f32.gmra.mxu0 %v1208
        %v1293 = vpop.f32.mrf.mxu0
        %v1294 = vadd.f32 0.0, %v1293
        %1295 = vmatmul.f32.gmra.mxu0 %v1208
        %v1296 = vpop.f32.mrf.mxu0
        %v1297 = vadd.f32 0.0, %v1296
        %1298 = vmatmul.f32.gmra.mxu0 %v1208
        %v1299 = vpop.f32.mrf.mxu0
        %v1300 = vadd.f32 0.0, %v1299
        %1301 = vmatmul.f32.gmra.mxu0 %v1208
        %v1302 = vpop.f32.mrf.mxu0
        %v1303 = vadd.f32 0.0, %v1302
        %1304 = vmatmul.f32.gmra.mxu0 %v1208
        %v1305 = vpop.f32.mrf.mxu0
        %v1306 = vadd.f32 0.0, %v1305
        %1307 = vmatmul.f32.gmra.mxu0 %v1208
        %v1308 = vpop.f32.mrf.mxu0
        %v1309 = vadd.f32 0.0, %v1308
        %1310 = vmatmul.f32.gmra.mxu0 %v1208
        %v1311 = vpop.f32.mrf.mxu0
        %v1312 = vadd.f32 0.0, %v1311
        %1313 = vmatmul.f32.gmra.mxu0 %v1208
        %v1314 = vpop.f32.mrf.mxu0
        %v1315 = vadd.f32 0.0, %v1314
        %1316 = vmatmul.f32.gmra.mxu0 %v1208
        %v1317 = vpop.f32.mrf.mxu0
        %v1318 = vadd.f32 0.0, %v1317
        %1319 = vmatmul.f32.gmra.mxu0 %v1208
        %v1320 = vpop.f32.mrf.mxu0
        %v1321 = vadd.f32 0.0, %v1320
        %1322 = vdwg.mxu0
        %1323 = vmatpush.xpose.msra.mxu0 %v1208
        %1324 = vmatpush.xpose.msra.mxu0 %v1208
        %1325 = vmatpush.xpose.msra.mxu0 %v1208
        %1326 = vmatpush.xpose.msra.mxu0 %v1208
        %1327 = vmatpush.xpose.msra.mxu0 %v1208
        %1328 = vmatpush.xpose.msra.mxu0 %v1208
        %1329 = vmatpush.xpose.msra.mxu0 %v1208
        %1330 = vmatpush.xpose.msra.mxu0 %v1208
        %1331 = vmatpush.xpose.msra.mxu0 %v1208
        %1332 = vmatpush.xpose.msra.mxu0 %v1208
        %1333 = vmatpush.xpose.msra.mxu0 %v1208
        %1334 = vmatpush.xpose.msra.mxu0 %v1208
        %1335 = vmatpush.xpose.msra.mxu0 %v1208
        %1336 = vmatpush.xpose.msra.mxu0 %v1208
        %1337 = vmatpush.xpose.msra.mxu0 %v1208
        %1338 = vmatpush.xpose.msra.mxu0 %v1208
        %1339 = vmatmul.f32.gmra.mxu0 %v1211
        %v1340 = vpop.f32.mrf.mxu0
        %v1341 = vadd.f32 0.0, %v1340
        %1342 = vmatmul.f32.gmra.mxu0 %v1214
        %v1343 = vpop.f32.mrf.mxu0
        %v1344 = vadd.f32 0.0, %v1343
        %1345 = vmatmul.f32.gmra.mxu0 %v1217
        %v1346 = vpop.f32.mrf.mxu0
        %v1347 = vadd.f32 0.0, %v1346
        %1348 = vmatmul.f32.gmra.mxu0 %v1220
        %v1349 = vpop.f32.mrf.mxu0
        %v1350 = vadd.f32 0.0, %v1349
        %1351 = vmatmul.f32.gmra.mxu0 %v1223
        %v1352 = vpop.f32.mrf.mxu0
        %v1353 = vadd.f32 0.0, %v1352
        %1354 = vmatmul.f32.gmra.mxu0 %v1226
        %v1355 = vpop.f32.mrf.mxu0
        %v1356 = vadd.f32 0.0, %v1355
        %1357 = vmatmul.f32.gmra.mxu0 %v1229
        %v1358 = vpop.f32.mrf.mxu0
        %v1359 = vadd.f32 0.0, %v1358
        %1360 = vmatmul.f32.gmra.mxu0 %v1232
        %v1361 = vpop.f32.mrf.mxu0
        %v1362 = vadd.f32 0.0, %v1361
        %1363 = vmatmul.f32.gmra.mxu0 %v1235
        %v1364 = vpop.f32.mrf.mxu0
        %v1365 = vadd.f32 0.0, %v1364
        %1366 = vmatmul.f32.gmra.mxu0 %v1238
        %v1367 = vpop.f32.mrf.mxu0
        %v1368 = vadd.f32 0.0, %v1367
        %1369 = vmatmul.f32.gmra.mxu0 %v1241
        %v1370 = vpop.f32.mrf.mxu0
        %v1371 = vadd.f32 0.0, %v1370
        %1372 = vmatmul.f32.gmra.mxu0 %v1244
        %v1373 = vpop.f32.mrf.mxu0
        %v1374 = vadd.f32 0.0, %v1373
        %1375 = vmatmul.f32.gmra.mxu0 %v1247
        %v1376 = vpop.f32.mrf.mxu0
        %v1377 = vadd.f32 0.0, %v1376
        %1378 = vmatmul.f32.gmra.mxu0 %v1250
        %v1379 = vpop.f32.mrf.mxu0
        %v1380 = vadd.f32 0.0, %v1379
        %1381 = vmatmul.f32.gmra.mxu0 %v1253
        %v1382 = vpop.f32.mrf.mxu0
        %v1383 = vadd.f32 0.0, %v1382
        %1384 = vmatmul.f32.gmra.mxu0 %v1256
        %v1385 = vpop.f32.mrf.mxu0
        %v1386 = vadd.f32 0.0, %v1385
        %1387 = vdwg.mxu0
        %vm1388 = vcmp.gt.f32.partialorder %v1276, %v1341
        %vm1389 = vcmp.gt.f32.partialorder %v1279, %v1344
        %vm1390 = vcmp.gt.f32.partialorder %v1282, %v1347
        %vm1391 = vcmp.gt.f32.partialorder %v1285, %v1350
        %vm1392 = vcmp.gt.f32.partialorder %v1288, %v1353
        %vm1393 = vcmp.gt.f32.partialorder %v1291, %v1356
        %vm1394 = vcmp.gt.f32.partialorder %v1294, %v1359
        %vm1395 = vcmp.gt.f32.partialorder %v1297, %v1362
        %vm1396 = vcmp.gt.f32.partialorder %v1300, %v1365
        %vm1397 = vcmp.gt.f32.partialorder %v1303, %v1368
        %vm1398 = vcmp.gt.f32.partialorder %v1306, %v1371
        %vm1399 = vcmp.gt.f32.partialorder %v1309, %v1374
        %vm1400 = vcmp.gt.f32.partialorder %v1312, %v1377
        %vm1401 = vcmp.gt.f32.partialorder %v1315, %v1380
        %vm1402 = vcmp.gt.f32.partialorder %v1318, %v1383
        %vm1403 = vcmp.gt.f32.partialorder %v1321, %v1386
        %vm1404 = vcmp.eq.f32.partialorder %v1276, %v1341
        %vm1405 = vcmp.eq.f32.partialorder %v1279, %v1344
        %vm1406 = vcmp.eq.f32.partialorder %v1282, %v1347
        %vm1407 = vcmp.eq.f32.partialorder %v1285, %v1350
        %vm1408 = vcmp.eq.f32.partialorder %v1288, %v1353
        %vm1409 = vcmp.eq.f32.partialorder %v1291, %v1356
        %vm1410 = vcmp.eq.f32.partialorder %v1294, %v1359
        %vm1411 = vcmp.eq.f32.partialorder %v1297, %v1362
        %vm1412 = vcmp.eq.f32.partialorder %v1300, %v1365
        %vm1413 = vcmp.eq.f32.partialorder %v1303, %v1368
        %vm1414 = vcmp.eq.f32.partialorder %v1306, %v1371
        %vm1415 = vcmp.eq.f32.partialorder %v1309, %v1374
        %vm1416 = vcmp.eq.f32.partialorder %v1312, %v1377
        %vm1417 = vcmp.eq.f32.partialorder %v1315, %v1380
        %vm1418 = vcmp.eq.f32.partialorder %v1318, %v1383
        %vm1419 = vcmp.eq.f32.partialorder %v1321, %v1386
        %vm1420 = vmand %vm1404, %vm512
        %vm1421 = vmand %vm1405, %vm513
        %vm1422 = vmand %vm1406, %vm514
        %vm1423 = vmand %vm1407, %vm515
        %vm1424 = vmand %vm1408, %vm516
        %vm1425 = vmand %vm1409, %vm517
        %vm1426 = vmand %vm1410, %vm518
        %vm1427 = vmand %vm1411, %vm519
        %vm1428 = vmand %vm1412, %vm520
        %vm1429 = vmand %vm1413, %vm521
        %vm1430 = vmand %vm1414, %vm522
        %vm1431 = vmand %vm1415, %vm523
        %vm1432 = vmand %vm1416, %vm524
        %vm1433 = vmand %vm1417, %vm525
        %vm1434 = vmand %vm1418, %vm526
        %vm1435 = vmand %vm1419, %vm527
        %vm1436 = vmor %vm1388, %vm1420
        %vm1437 = vmor %vm1389, %vm1421
        %vm1438 = vmor %vm1390, %vm1422
        %vm1439 = vmor %vm1391, %vm1423
        %vm1440 = vmor %vm1392, %vm1424
        %vm1441 = vmor %vm1393, %vm1425
        %vm1442 = vmor %vm1394, %vm1426
        %vm1443 = vmor %vm1395, %vm1427
        %vm1444 = vmor %vm1396, %vm1428
        %vm1445 = vmor %vm1397, %vm1429
        %vm1446 = vmor %vm1398, %vm1430
        %vm1447 = vmor %vm1399, %vm1431
        %vm1448 = vmor %vm1400, %vm1432
        %vm1449 = vmor %vm1401, %vm1433
        %vm1450 = vmor %vm1402, %vm1434
        %vm1451 = vmor %vm1403, %vm1435
        %v1452 = vsel %vm1436, 1.0, 0.0
        %v1453 = vsel %vm1437, 1.0, 0.0
        %v1454 = vsel %vm1438, 1.0, 0.0
        %v1455 = vsel %vm1439, 1.0, 0.0
        %v1456 = vsel %vm1440, 1.0, 0.0
        %v1457 = vsel %vm1441, 1.0, 0.0
        %v1458 = vsel %vm1442, 1.0, 0.0
        %v1459 = vsel %vm1443, 1.0, 0.0
        %v1460 = vsel %vm1444, 1.0, 0.0
        %v1461 = vsel %vm1445, 1.0, 0.0
        %v1462 = vsel %vm1446, 1.0, 0.0
        %v1463 = vsel %vm1447, 1.0, 0.0
        %v1464 = vsel %vm1448, 1.0, 0.0
        %v1465 = vsel %vm1449, 1.0, 0.0
        %v1466 = vsel %vm1450, 1.0, 0.0
        %v1467 = vsel %vm1451, 1.0, 0.0
        %v1468 = vmul.f32 %v414, %v1452
        %v1469 = vmul.f32 %v417, %v1453
        %v1470 = vmul.f32 %v420, %v1454
        %v1471 = vmul.f32 %v423, %v1455
        %v1472 = vmul.f32 %v426, %v1456
        %v1473 = vmul.f32 %v429, %v1457
        %v1474 = vmul.f32 %v432, %v1458
        %v1475 = vmul.f32 %v435, %v1459
        %v1476 = vmul.f32 %v438, %v1460
        %v1477 = vmul.f32 %v441, %v1461
        %v1478 = vmul.f32 %v444, %v1462
        %v1479 = vmul.f32 %v447, %v1463
        %v1480 = vmul.f32 %v450, %v1464
        %v1481 = vmul.f32 %v453, %v1465
        %v1482 = vmul.f32 %v456, %v1466
        %v1483 = vmul.f32 %v459, %v1467
        %1484 = vadd.xlane.f32.xlu0 %v1468
        %v1485 = vpop.xlane.xlu0 %1484
        %1486 = vadd.xlane.f32.xlu0 %v1469
        %v1487 = vpop.xlane.xlu0 %1486
        %1488 = vadd.xlane.f32.xlu0 %v1470
        %v1489 = vpop.xlane.xlu0 %1488
        %1490 = vadd.xlane.f32.xlu0 %v1471
        %v1491 = vpop.xlane.xlu0 %1490
        %1492 = vadd.xlane.f32.xlu0 %v1472
        %v1493 = vpop.xlane.xlu0 %1492
        %1494 = vadd.xlane.f32.xlu0 %v1473
        %v1495 = vpop.xlane.xlu0 %1494
        %1496 = vadd.xlane.f32.xlu0 %v1474
        %v1497 = vpop.xlane.xlu0 %1496
        %1498 = vadd.xlane.f32.xlu0 %v1475
        %v1499 = vpop.xlane.xlu0 %1498
        %1500 = vadd.xlane.f32.xlu0 %v1476
        %v1501 = vpop.xlane.xlu0 %1500
        %1502 = vadd.xlane.f32.xlu0 %v1477
        %v1503 = vpop.xlane.xlu0 %1502
        %1504 = vadd.xlane.f32.xlu0 %v1478
        %v1505 = vpop.xlane.xlu0 %1504
        %1506 = vadd.xlane.f32.xlu0 %v1479
        %v1507 = vpop.xlane.xlu0 %1506
        %1508 = vadd.xlane.f32.xlu0 %v1480
        %v1509 = vpop.xlane.xlu0 %1508
        %1510 = vadd.xlane.f32.xlu0 %v1481
        %v1511 = vpop.xlane.xlu0 %1510
        %1512 = vadd.xlane.f32.xlu0 %v1482
        %v1513 = vpop.xlane.xlu0 %1512
        %1514 = vadd.xlane.f32.xlu0 %v1483
        %v1515 = vpop.xlane.xlu0 %1514
        %1516 = vadd.xlane.f32.xlu0 %v414
        %v1517 = vpop.xlane.xlu0 %1516
        %1518 = vadd.xlane.f32.xlu0 %v417
        %v1519 = vpop.xlane.xlu0 %1518
        %1520 = vadd.xlane.f32.xlu0 %v420
        %v1521 = vpop.xlane.xlu0 %1520
        %1522 = vadd.xlane.f32.xlu0 %v423
        %v1523 = vpop.xlane.xlu0 %1522
        %1524 = vadd.xlane.f32.xlu0 %v426
        %v1525 = vpop.xlane.xlu0 %1524
        %1526 = vadd.xlane.f32.xlu0 %v429
        %v1527 = vpop.xlane.xlu0 %1526
        %1528 = vadd.xlane.f32.xlu0 %v432
        %v1529 = vpop.xlane.xlu0 %1528
        %1530 = vadd.xlane.f32.xlu0 %v435
        %v1531 = vpop.xlane.xlu0 %1530
        %1532 = vadd.xlane.f32.xlu0 %v438
        %v1533 = vpop.xlane.xlu0 %1532
        %1534 = vadd.xlane.f32.xlu0 %v441
        %v1535 = vpop.xlane.xlu0 %1534
        %1536 = vadd.xlane.f32.xlu0 %v444
        %v1537 = vpop.xlane.xlu0 %1536
        %1538 = vadd.xlane.f32.xlu0 %v447
        %v1539 = vpop.xlane.xlu0 %1538
        %1540 = vadd.xlane.f32.xlu0 %v450
        %v1541 = vpop.xlane.xlu0 %1540
        %1542 = vadd.xlane.f32.xlu0 %v453
        %v1543 = vpop.xlane.xlu0 %1542
        %1544 = vadd.xlane.f32.xlu0 %v456
        %v1545 = vpop.xlane.xlu0 %1544
        %1546 = vadd.xlane.f32.xlu0 %v459
        %v1547 = vpop.xlane.xlu0 %1546
        %v1548 = vmul.f32 %v1517, 0.8
        %v1549 = vmul.f32 %v1519, 0.8
        %v1550 = vmul.f32 %v1521, 0.8
        %v1551 = vmul.f32 %v1523, 0.8
        %v1552 = vmul.f32 %v1525, 0.8
        %v1553 = vmul.f32 %v1527, 0.8
        %v1554 = vmul.f32 %v1529, 0.8
        %v1555 = vmul.f32 %v1531, 0.8
        %v1556 = vmul.f32 %v1533, 0.8
        %v1557 = vmul.f32 %v1535, 0.8
        %v1558 = vmul.f32 %v1537, 0.8
        %v1559 = vmul.f32 %v1539, 0.8
        %v1560 = vmul.f32 %v1541, 0.8
        %v1561 = vmul.f32 %v1543, 0.8
        %v1562 = vmul.f32 %v1545, 0.8
        %v1563 = vmul.f32 %v1547, 0.8
        %v1564 = vceil.f32 %v1548
        %v1565 = vceil.f32 %v1549
        %v1566 = vceil.f32 %v1550
        %v1567 = vceil.f32 %v1551
        %v1568 = vceil.f32 %v1552
        %v1569 = vceil.f32 %v1553
        %v1570 = vceil.f32 %v1554
        %v1571 = vceil.f32 %v1555
        %v1572 = vceil.f32 %v1556
        %v1573 = vceil.f32 %v1557
        %v1574 = vceil.f32 %v1558
        %v1575 = vceil.f32 %v1559
        %v1576 = vceil.f32 %v1560
        %v1577 = vceil.f32 %v1561
        %v1578 = vceil.f32 %v1562
        %v1579 = vceil.f32 %v1563
        %vm1580 = vcmp.lt.f32.partialorder %v1485, %v1564
        %vm1581 = vcmp.lt.f32.partialorder %v1487, %v1565
        %vm1582 = vcmp.lt.f32.partialorder %v1489, %v1566
        %vm1583 = vcmp.lt.f32.partialorder %v1491, %v1567
        %vm1584 = vcmp.lt.f32.partialorder %v1493, %v1568
        %vm1585 = vcmp.lt.f32.partialorder %v1495, %v1569
        %vm1586 = vcmp.lt.f32.partialorder %v1497, %v1570
        %vm1587 = vcmp.lt.f32.partialorder %v1499, %v1571
        %vm1588 = vcmp.lt.f32.partialorder %v1501, %v1572
        %vm1589 = vcmp.lt.f32.partialorder %v1503, %v1573
        %vm1590 = vcmp.lt.f32.partialorder %v1505, %v1574
        %vm1591 = vcmp.lt.f32.partialorder %v1507, %v1575
        %vm1592 = vcmp.lt.f32.partialorder %v1509, %v1576
        %vm1593 = vcmp.lt.f32.partialorder %v1511, %v1577
        %vm1594 = vcmp.lt.f32.partialorder %v1513, %v1578
        %vm1595 = vcmp.lt.f32.partialorder %v1515, %v1579
        %vm1596 = vmand %vm1174, %vm1580
        %vm1597 = vmand %vm1175, %vm1581
        %vm1598 = vmand %vm1176, %vm1582
        %vm1599 = vmand %vm1177, %vm1583
        %vm1600 = vmand %vm1178, %vm1584
        %vm1601 = vmand %vm1179, %vm1585
        %vm1602 = vmand %vm1180, %vm1586
        %vm1603 = vmand %vm1181, %vm1587
        %vm1604 = vmand %vm1182, %vm1588
        %vm1605 = vmand %vm1183, %vm1589
        %vm1606 = vmand %vm1184, %vm1590
        %vm1607 = vmand %vm1185, %vm1591
        %vm1608 = vmand %vm1186, %vm1592
        %vm1609 = vmand %vm1187, %vm1593
        %vm1610 = vmand %vm1188, %vm1594
        %vm1611 = vmand %vm1189, %vm1595
        %v1612 = vsel %vm1596, 1, 0
        %v1613 = vsel %vm1597, 1, 0
        %v1614 = vsel %vm1598, 1, 0
        %v1615 = vsel %vm1599, 1, 0
        %v1616 = vsel %vm1600, 1, 0
        %v1617 = vsel %vm1601, 1, 0
        %v1618 = vsel %vm1602, 1, 0
        %v1619 = vsel %vm1603, 1, 0
        %v1620 = vsel %vm1604, 1, 0
        %v1621 = vsel %vm1605, 1, 0
        %v1622 = vsel %vm1606, 1, 0
        %v1623 = vsel %vm1607, 1, 0
        %v1624 = vsel %vm1608, 1, 0
        %v1625 = vsel %vm1609, 1, 0
        %v1626 = vsel %vm1610, 1, 0
        %v1627 = vsel %vm1611, 1, 0
        %v1628 = vcvt.s32.f32 %v1612
        %v1629 = vcvt.s32.f32 %v1613
        %v1630 = vcvt.s32.f32 %v1614
        %v1631 = vcvt.s32.f32 %v1615
        %v1632 = vcvt.s32.f32 %v1616
        %v1633 = vcvt.s32.f32 %v1617
        %v1634 = vcvt.s32.f32 %v1618
        %v1635 = vcvt.s32.f32 %v1619
        %v1636 = vcvt.s32.f32 %v1620
        %v1637 = vcvt.s32.f32 %v1621
        %v1638 = vcvt.s32.f32 %v1622
        %v1639 = vcvt.s32.f32 %v1623
        %v1640 = vcvt.s32.f32 %v1624
        %v1641 = vcvt.s32.f32 %v1625
        %v1642 = vcvt.s32.f32 %v1626
        %v1643 = vcvt.s32.f32 %v1627
        %v1644 = vmul.f32 %v1158, %v1628
        %v1645 = vmul.f32 %v1159, %v1629
        %v1646 = vmul.f32 %v1160, %v1630
        %v1647 = vmul.f32 %v1161, %v1631
        %v1648 = vmul.f32 %v1162, %v1632
        %v1649 = vmul.f32 %v1163, %v1633
        %v1650 = vmul.f32 %v1164, %v1634
        %v1651 = vmul.f32 %v1165, %v1635
        %v1652 = vmul.f32 %v1166, %v1636
        %v1653 = vmul.f32 %v1167, %v1637
        %v1654 = vmul.f32 %v1168, %v1638
        %v1655 = vmul.f32 %v1169, %v1639
        %v1656 = vmul.f32 %v1170, %v1640
        %v1657 = vmul.f32 %v1171, %v1641
        %v1658 = vmul.f32 %v1172, %v1642
        %v1659 = vmul.f32 %v1173, %v1643
        %v1660 = vmul.f32 %v1093, %v1644
        %v1661 = vmul.f32 %v1094, %v1645
        %v1662 = vmul.f32 %v1095, %v1646
        %v1663 = vmul.f32 %v1096, %v1647
        %v1664 = vmul.f32 %v1097, %v1648
        %v1665 = vmul.f32 %v1098, %v1649
        %v1666 = vmul.f32 %v1099, %v1650
        %v1667 = vmul.f32 %v1100, %v1651
        %v1668 = vmul.f32 %v1101, %v1652
        %v1669 = vmul.f32 %v1102, %v1653
        %v1670 = vmul.f32 %v1103, %v1654
        %v1671 = vmul.f32 %v1104, %v1655
        %v1672 = vmul.f32 %v1105, %v1656
        %v1673 = vmul.f32 %v1106, %v1657
        %v1674 = vmul.f32 %v1107, %v1658
        %v1675 = vmul.f32 %v1108, %v1659
        %v1677 = vsel %vm1206, %v1628, 0
        %v1680 = vsel %vm1206, %v1629, 0
        %v1683 = vsel %vm1206, %v1630, 0
        %v1686 = vsel %vm1206, %v1631, 0
        %v1689 = vsel %vm1206, %v1632, 0
        %v1692 = vsel %vm1206, %v1633, 0
        %v1695 = vsel %vm1206, %v1634, 0
        %v1698 = vsel %vm1206, %v1635, 0
        %v1701 = vsel %vm1206, %v1636, 0
        %v1704 = vsel %vm1206, %v1637, 0
        %v1707 = vsel %vm1206, %v1638, 0
        %v1710 = vsel %vm1206, %v1639, 0
        %v1713 = vsel %vm1206, %v1640, 0
        %v1716 = vsel %vm1206, %v1641, 0
        %v1719 = vsel %vm1206, %v1642, 0
        %v1722 = vsel %vm1206, %v1643, 0
        %1724 = vmatpush.xpose.msra.mxu0 %v1722
        %1725 = vmatpush.xpose.msra.mxu0 %v1719
        %1726 = vmatpush.xpose.msra.mxu0 %v1716
        %1727 = vmatpush.xpose.msra.mxu0 %v1713
        %1728 = vmatpush.xpose.msra.mxu0 %v1710
        %1729 = vmatpush.xpose.msra.mxu0 %v1707
        %1730 = vmatpush.xpose.msra.mxu0 %v1704
        %1731 = vmatpush.xpose.msra.mxu0 %v1701
        %1732 = vmatpush.xpose.msra.mxu0 %v1698
        %1733 = vmatpush.xpose.msra.mxu0 %v1695
        %1734 = vmatpush.xpose.msra.mxu0 %v1692
        %1735 = vmatpush.xpose.msra.mxu0 %v1689
        %1736 = vmatpush.xpose.msra.mxu0 %v1686
        %1737 = vmatpush.xpose.msra.mxu0 %v1683
        %1738 = vmatpush.xpose.msra.mxu0 %v1680
        %1739 = vmatpush.xpose.msra.mxu0 %v1677
        %1740 = vmatmul.f32.gmra.mxu0 %v1677
        %v1741 = vpop.f32.mrf.mxu0
        %v1742 = vadd.f32 0.0, %v1741
        %1743 = vmatmul.f32.gmra.mxu0 %v1680
        %v1744 = vpop.f32.mrf.mxu0
        %v1745 = vadd.f32 0.0, %v1744
        %1746 = vmatmul.f32.gmra.mxu0 %v1683
        %v1747 = vpop.f32.mrf.mxu0
        %v1748 = vadd.f32 0.0, %v1747
        %1749 = vmatmul.f32.gmra.mxu0 %v1686
        %v1750 = vpop.f32.mrf.mxu0
        %v1751 = vadd.f32 0.0, %v1750
        %1752 = vmatmul.f32.gmra.mxu0 %v1689
        %v1753 = vpop.f32.mrf.mxu0
        %v1754 = vadd.f32 0.0, %v1753
        %1755 = vmatmul.f32.gmra.mxu0 %v1692
        %v1756 = vpop.f32.mrf.mxu0
        %v1757 = vadd.f32 0.0, %v1756
        %1758 = vmatmul.f32.gmra.mxu0 %v1695
        %v1759 = vpop.f32.mrf.mxu0
        %v1760 = vadd.f32 0.0, %v1759
        %1761 = vmatmul.f32.gmra.mxu0 %v1698
        %v1762 = vpop.f32.mrf.mxu0
        %v1763 = vadd.f32 0.0, %v1762
        %1764 = vmatmul.f32.gmra.mxu0 %v1701
        %v1765 = vpop.f32.mrf.mxu0
        %v1766 = vadd.f32 0.0, %v1765
        %1767 = vmatmul.f32.gmra.mxu0 %v1704
        %v1768 = vpop.f32.mrf.mxu0
        %v1769 = vadd.f32 0.0, %v1768
        %1770 = vmatmul.f32.gmra.mxu0 %v1707
        %v1771 = vpop.f32.mrf.mxu0
        %v1772 = vadd.f32 0.0, %v1771
        %1773 = vmatmul.f32.gmra.mxu0 %v1710
        %v1774 = vpop.f32.mrf.mxu0
        %v1775 = vadd.f32 0.0, %v1774
        %1776 = vmatmul.f32.gmra.mxu0 %v1713
        %v1777 = vpop.f32.mrf.mxu0
        %v1778 = vadd.f32 0.0, %v1777
        %1779 = vmatmul.f32.gmra.mxu0 %v1716
        %v1780 = vpop.f32.mrf.mxu0
        %v1781 = vadd.f32 0.0, %v1780
        %1782 = vmatmul.f32.gmra.mxu0 %v1719
        %v1783 = vpop.f32.mrf.mxu0
        %v1784 = vadd.f32 0.0, %v1783
        %1785 = vmatmul.f32.gmra.mxu0 %v1722
        %v1786 = vpop.f32.mrf.mxu0
        %v1787 = vadd.f32 0.0, %v1786
        %1788 = vdwg.mxu0
        %v1789 = vmul.f32 %v332, %v1742
        %v1790 = vmul.f32 %v333, %v1745
        %v1791 = vmul.f32 %v334, %v1748
        %v1792 = vmul.f32 %v335, %v1751
        %v1793 = vmul.f32 %v336, %v1754
        %v1794 = vmul.f32 %v337, %v1757
        %v1795 = vmul.f32 %v338, %v1760
        %v1796 = vmul.f32 %v339, %v1763
        %v1797 = vmul.f32 %v340, %v1766
        %v1798 = vmul.f32 %v341, %v1769
        %v1799 = vmul.f32 %v342, %v1772
        %v1800 = vmul.f32 %v343, %v1775
        %v1801 = vmul.f32 %v344, %v1778
        %v1802 = vmul.f32 %v345, %v1781
        %v1803 = vmul.f32 %v346, %v1784
        %v1804 = vmul.f32 %v347, %v1787
        %v1805 = vmul.f32 %v414, %v1742
        %v1806 = vmul.f32 %v417, %v1745
        %v1807 = vmul.f32 %v420, %v1748
        %v1808 = vmul.f32 %v423, %v1751
        %v1809 = vmul.f32 %v426, %v1754
        %v1810 = vmul.f32 %v429, %v1757
        %v1811 = vmul.f32 %v432, %v1760
        %v1812 = vmul.f32 %v435, %v1763
        %v1813 = vmul.f32 %v438, %v1766
        %v1814 = vmul.f32 %v441, %v1769
        %v1815 = vmul.f32 %v444, %v1772
        %v1816 = vmul.f32 %v447, %v1775
        %v1817 = vmul.f32 %v450, %v1778
        %v1818 = vmul.f32 %v453, %v1781
        %v1819 = vmul.f32 %v456, %v1784
        %v1820 = vmul.f32 %v459, %v1787
        %1821 = vmatpush.msra.mxu0 %v1643
        %1822 = vmatpush.msra.mxu0 %v1642
        %1823 = vmatpush.msra.mxu0 %v1641
        %1824 = vmatpush.msra.mxu0 %v1640
        %1825 = vmatpush.msra.mxu0 %v1639
        %1826 = vmatpush.msra.mxu0 %v1638
        %1827 = vmatpush.msra.mxu0 %v1637
        %1828 = vmatpush.msra.mxu0 %v1636
        %1829 = vmatpush.msra.mxu0 %v1635
        %1830 = vmatpush.msra.mxu0 %v1634
        %1831 = vmatpush.msra.mxu0 %v1633
        %1832 = vmatpush.msra.mxu0 %v1632
        %1833 = vmatpush.msra.mxu0 %v1631
        %1834 = vmatpush.msra.mxu0 %v1630
        %1835 = vmatpush.msra.mxu0 %v1629
        %1836 = vmatpush.msra.mxu0 %v1628
        %1837 = vmatmul.f32.gmra.mxu0 %v348
        %v1838 = vpop.f32.mrf.mxu0
        %v1839 = vadd.f32 0.0, %v1838
        %1840 = vmatmul.f32.gmra.mxu0 %v349
        %v1841 = vpop.f32.mrf.mxu0
        %v1842 = vadd.f32 0.0, %v1841
        %1843 = vmatmul.f32.gmra.mxu0 %v350
        %v1844 = vpop.f32.mrf.mxu0
        %v1845 = vadd.f32 0.0, %v1844
        %1846 = vmatmul.f32.gmra.mxu0 %v351
        %v1847 = vpop.f32.mrf.mxu0
        %v1848 = vadd.f32 0.0, %v1847
        %1849 = vmatmul.f32.gmra.mxu0 %v352
        %v1850 = vpop.f32.mrf.mxu0
        %v1851 = vadd.f32 0.0, %v1850
        %1852 = vmatmul.f32.gmra.mxu0 %v353
        %v1853 = vpop.f32.mrf.mxu0
        %v1854 = vadd.f32 0.0, %v1853
        %1855 = vmatmul.f32.gmra.mxu0 %v354
        %v1856 = vpop.f32.mrf.mxu0
        %v1857 = vadd.f32 0.0, %v1856
        %1858 = vmatmul.f32.gmra.mxu0 %v355
        %v1859 = vpop.f32.mrf.mxu0
        %v1860 = vadd.f32 0.0, %v1859
        %1861 = vmatmul.f32.gmra.mxu0 %v356
        %v1862 = vpop.f32.mrf.mxu0
        %v1863 = vadd.f32 0.0, %v1862
        %1864 = vmatmul.f32.gmra.mxu0 %v357
        %v1865 = vpop.f32.mrf.mxu0
        %v1866 = vadd.f32 0.0, %v1865
        %1867 = vmatmul.f32.gmra.mxu0 %v358
        %v1868 = vpop.f32.mrf.mxu0
        %v1869 = vadd.f32 0.0, %v1868
        %1870 = vmatmul.f32.gmra.mxu0 %v359
        %v1871 = vpop.f32.mrf.mxu0
        %v1872 = vadd.f32 0.0, %v1871
        %1873 = vmatmul.f32.gmra.mxu0 %v360
        %v1874 = vpop.f32.mrf.mxu0
        %v1875 = vadd.f32 0.0, %v1874
        %1876 = vmatmul.f32.gmra.mxu0 %v361
        %v1877 = vpop.f32.mrf.mxu0
        %v1878 = vadd.f32 0.0, %v1877
        %1879 = vmatmul.f32.gmra.mxu0 %v362
        %v1880 = vpop.f32.mrf.mxu0
        %v1881 = vadd.f32 0.0, %v1880
        %1882 = vmatmul.f32.gmra.mxu0 %v363
        %v1883 = vpop.f32.mrf.mxu0
        %v1884 = vadd.f32 0.0, %v1883
        %1885 = vdwg.mxu0
        %vm1886 = vcmp.gt.f32.partialorder %v1839, 0.0
        %vm1887 = vcmp.gt.f32.partialorder %v1842, 0.0
        %vm1888 = vcmp.gt.f32.partialorder %v1845, 0.0
        %vm1889 = vcmp.gt.f32.partialorder %v1848, 0.0
        %vm1890 = vcmp.gt.f32.partialorder %v1851, 0.0
        %vm1891 = vcmp.gt.f32.partialorder %v1854, 0.0
        %vm1892 = vcmp.gt.f32.partialorder %v1857, 0.0
        %vm1893 = vcmp.gt.f32.partialorder %v1860, 0.0
        %vm1894 = vcmp.gt.f32.partialorder %v1863, 0.0
        %vm1895 = vcmp.gt.f32.partialorder %v1866, 0.0
        %vm1896 = vcmp.gt.f32.partialorder %v1869, 0.0
        %vm1897 = vcmp.gt.f32.partialorder %v1872, 0.0
        %vm1898 = vcmp.gt.f32.partialorder %v1875, 0.0
        %vm1899 = vcmp.gt.f32.partialorder %v1878, 0.0
        %vm1900 = vcmp.gt.f32.partialorder %v1881, 0.0
        %vm1901 = vcmp.gt.f32.partialorder %v1884, 0.0
        %v1902 = vmax.f32 %v1839, 1.0
        %v1903 = vmax.f32 %v1842, 1.0
        %v1904 = vmax.f32 %v1845, 1.0
        %v1905 = vmax.f32 %v1848, 1.0
        %v1906 = vmax.f32 %v1851, 1.0
        %v1907 = vmax.f32 %v1854, 1.0
        %v1908 = vmax.f32 %v1857, 1.0
        %v1909 = vmax.f32 %v1860, 1.0
        %v1910 = vmax.f32 %v1863, 1.0
        %v1911 = vmax.f32 %v1866, 1.0
        %v1912 = vmax.f32 %v1869, 1.0
        %v1913 = vmax.f32 %v1872, 1.0
        %v1914 = vmax.f32 %v1875, 1.0
        %v1915 = vmax.f32 %v1878, 1.0
        %v1916 = vmax.f32 %v1881, 1.0
        %v1917 = vmax.f32 %v1884, 1.0
        %v1918 = vrcp.pop %v1902
        %v1919 = vmul.f32 %v1902, %v1918
        %v1920 = vsub.f32 1.0, %v1919
        %v1921 = vmul.f32 %v1918, %v1920
        %v1922 = vadd.f32 %v1918, %v1921
        %vm1923 = vweird.f32 %v1902
        %vm1924 = vweird.f32 %v1918
        %vm1925 = vmor %vm1923, %vm1924
        %v1926 = vsel %vm1925, %v1918, %v1922
        %v1927 = vand.u32 2147483647, %v1902
        %vm1928 = vcmp.eq.f32.partialorder %v1927, 8.507059e+37
        %v1929 = vand.u32 %v1902, 2147483648
        %v1930 = vor.u32 1.1754944e-38, %v1929
        %v1931 = vsel %vm1928, %v1930, %v1926
        %v1932 = vmul.f32 1.0, %v1931
        %v1933 = vrcp.pop %v1903
        %v1934 = vmul.f32 %v1903, %v1933
        %v1935 = vsub.f32 1.0, %v1934
        %v1936 = vmul.f32 %v1933, %v1935
        %v1937 = vadd.f32 %v1933, %v1936
        %vm1938 = vweird.f32 %v1903
        %vm1939 = vweird.f32 %v1933
        %vm1940 = vmor %vm1938, %vm1939
        %v1941 = vsel %vm1940, %v1933, %v1937
        %v1942 = vand.u32 2147483647, %v1903
        %vm1943 = vcmp.eq.f32.partialorder %v1942, 8.507059e+37
        %v1944 = vand.u32 %v1903, 2147483648
        %v1945 = vor.u32 1.1754944e-38, %v1944
        %v1946 = vsel %vm1943, %v1945, %v1941
        %v1947 = vmul.f32 1.0, %v1946
        %v1948 = vrcp.pop %v1904
        %v1949 = vmul.f32 %v1904, %v1948
        %v1950 = vsub.f32 1.0, %v1949
        %v1951 = vmul.f32 %v1948, %v1950
        %v1952 = vadd.f32 %v1948, %v1951
        %vm1953 = vweird.f32 %v1904
        %vm1954 = vweird.f32 %v1948
        %vm1955 = vmor %vm1953, %vm1954
        %v1956 = vsel %vm1955, %v1948, %v1952
        %v1957 = vand.u32 2147483647, %v1904
        %vm1958 = vcmp.eq.f32.partialorder %v1957, 8.507059e+37
        %v1959 = vand.u32 %v1904, 2147483648
        %v1960 = vor.u32 1.1754944e-38, %v1959
        %v1961 = vsel %vm1958, %v1960, %v1956
        %v1962 = vmul.f32 1.0, %v1961
        %v1963 = vrcp.pop %v1905
        %v1964 = vmul.f32 %v1905, %v1963
        %v1965 = vsub.f32 1.0, %v1964
        %v1966 = vmul.f32 %v1963, %v1965
        %v1967 = vadd.f32 %v1963, %v1966
        %vm1968 = vweird.f32 %v1905
        %vm1969 = vweird.f32 %v1963
        %vm1970 = vmor %vm1968, %vm1969
        %v1971 = vsel %vm1970, %v1963, %v1967
        %v1972 = vand.u32 2147483647, %v1905
        %vm1973 = vcmp.eq.f32.partialorder %v1972, 8.507059e+37
        %v1974 = vand.u32 %v1905, 2147483648
        %v1975 = vor.u32 1.1754944e-38, %v1974
        %v1976 = vsel %vm1973, %v1975, %v1971
        %v1977 = vmul.f32 1.0, %v1976
        %v1978 = vrcp.pop %v1906
        %v1979 = vmul.f32 %v1906, %v1978
        %v1980 = vsub.f32 1.0, %v1979
        %v1981 = vmul.f32 %v1978, %v1980
        %v1982 = vadd.f32 %v1978, %v1981
        %vm1983 = vweird.f32 %v1906
        %vm1984 = vweird.f32 %v1978
        %vm1985 = vmor %vm1983, %vm1984
        %v1986 = vsel %vm1985, %v1978, %v1982
        %v1987 = vand.u32 2147483647, %v1906
        %vm1988 = vcmp.eq.f32.partialorder %v1987, 8.507059e+37
        %v1989 = vand.u32 %v1906, 2147483648
        %v1990 = vor.u32 1.1754944e-38, %v1989
        %v1991 = vsel %vm1988, %v1990, %v1986
        %v1992 = vmul.f32 1.0, %v1991
        %v1993 = vrcp.pop %v1907
        %v1994 = vmul.f32 %v1907, %v1993
        %v1995 = vsub.f32 1.0, %v1994
        %v1996 = vmul.f32 %v1993, %v1995
        %v1997 = vadd.f32 %v1993, %v1996
        %vm1998 = vweird.f32 %v1907
        %vm1999 = vweird.f32 %v1993
        %vm2000 = vmor %vm1998, %vm1999
        %v2001 = vsel %vm2000, %v1993, %v1997
        %v2002 = vand.u32 2147483647, %v1907
        %vm2003 = vcmp.eq.f32.partialorder %v2002, 8.507059e+37
        %v2004 = vand.u32 %v1907, 2147483648
        %v2005 = vor.u32 1.1754944e-38, %v2004
        %v2006 = vsel %vm2003, %v2005, %v2001
        %v2007 = vmul.f32 1.0, %v2006
        %v2008 = vrcp.pop %v1908
        %v2009 = vmul.f32 %v1908, %v2008
        %v2010 = vsub.f32 1.0, %v2009
        %v2011 = vmul.f32 %v2008, %v2010
        %v2012 = vadd.f32 %v2008, %v2011
        %vm2013 = vweird.f32 %v1908
        %vm2014 = vweird.f32 %v2008
        %vm2015 = vmor %vm2013, %vm2014
        %v2016 = vsel %vm2015, %v2008, %v2012
        %v2017 = vand.u32 2147483647, %v1908
        %vm2018 = vcmp.eq.f32.partialorder %v2017, 8.507059e+37
        %v2019 = vand.u32 %v1908, 2147483648
        %v2020 = vor.u32 1.1754944e-38, %v2019
        %v2021 = vsel %vm2018, %v2020, %v2016
        %v2022 = vmul.f32 1.0, %v2021
        %v2023 = vrcp.pop %v1909
        %v2024 = vmul.f32 %v1909, %v2023
        %v2025 = vsub.f32 1.0, %v2024
        %v2026 = vmul.f32 %v2023, %v2025
        %v2027 = vadd.f32 %v2023, %v2026
        %vm2028 = vweird.f32 %v1909
        %vm2029 = vweird.f32 %v2023
        %vm2030 = vmor %vm2028, %vm2029
        %v2031 = vsel %vm2030, %v2023, %v2027
        %v2032 = vand.u32 2147483647, %v1909
        %vm2033 = vcmp.eq.f32.partialorder %v2032, 8.507059e+37
        %v2034 = vand.u32 %v1909, 2147483648
        %v2035 = vor.u32 1.1754944e-38, %v2034
        %v2036 = vsel %vm2033, %v2035, %v2031
        %v2037 = vmul.f32 1.0, %v2036
        %v2038 = vrcp.pop %v1910
        %v2039 = vmul.f32 %v1910, %v2038
        %v2040 = vsub.f32 1.0, %v2039
        %v2041 = vmul.f32 %v2038, %v2040
        %v2042 = vadd.f32 %v2038, %v2041
        %vm2043 = vweird.f32 %v1910
        %vm2044 = vweird.f32 %v2038
        %vm2045 = vmor %vm2043, %vm2044
        %v2046 = vsel %vm2045, %v2038, %v2042
        %v2047 = vand.u32 2147483647, %v1910
        %vm2048 = vcmp.eq.f32.partialorder %v2047, 8.507059e+37
        %v2049 = vand.u32 %v1910, 2147483648
        %v2050 = vor.u32 1.1754944e-38, %v2049
        %v2051 = vsel %vm2048, %v2050, %v2046
        %v2052 = vmul.f32 1.0, %v2051
        %v2053 = vrcp.pop %v1911
        %v2054 = vmul.f32 %v1911, %v2053
        %v2055 = vsub.f32 1.0, %v2054
        %v2056 = vmul.f32 %v2053, %v2055
        %v2057 = vadd.f32 %v2053, %v2056
        %vm2058 = vweird.f32 %v1911
        %vm2059 = vweird.f32 %v2053
        %vm2060 = vmor %vm2058, %vm2059
        %v2061 = vsel %vm2060, %v2053, %v2057
        %v2062 = vand.u32 2147483647, %v1911
        %vm2063 = vcmp.eq.f32.partialorder %v2062, 8.507059e+37
        %v2064 = vand.u32 %v1911, 2147483648
        %v2065 = vor.u32 1.1754944e-38, %v2064
        %v2066 = vsel %vm2063, %v2065, %v2061
        %v2067 = vmul.f32 1.0, %v2066
        %v2068 = vrcp.pop %v1912
        %v2069 = vmul.f32 %v1912, %v2068
        %v2070 = vsub.f32 1.0, %v2069
        %v2071 = vmul.f32 %v2068, %v2070
        %v2072 = vadd.f32 %v2068, %v2071
        %vm2073 = vweird.f32 %v1912
        %vm2074 = vweird.f32 %v2068
        %vm2075 = vmor %vm2073, %vm2074
        %v2076 = vsel %vm2075, %v2068, %v2072
        %v2077 = vand.u32 2147483647, %v1912
        %vm2078 = vcmp.eq.f32.partialorder %v2077, 8.507059e+37
        %v2079 = vand.u32 %v1912, 2147483648
        %v2080 = vor.u32 1.1754944e-38, %v2079
        %v2081 = vsel %vm2078, %v2080, %v2076
        %v2082 = vmul.f32 1.0, %v2081
        %v2083 = vrcp.pop %v1913
        %v2084 = vmul.f32 %v1913, %v2083
        %v2085 = vsub.f32 1.0, %v2084
        %v2086 = vmul.f32 %v2083, %v2085
        %v2087 = vadd.f32 %v2083, %v2086
        %vm2088 = vweird.f32 %v1913
        %vm2089 = vweird.f32 %v2083
        %vm2090 = vmor %vm2088, %vm2089
        %v2091 = vsel %vm2090, %v2083, %v2087
        %v2092 = vand.u32 2147483647, %v1913
        %vm2093 = vcmp.eq.f32.partialorder %v2092, 8.507059e+37
        %v2094 = vand.u32 %v1913, 2147483648
        %v2095 = vor.u32 1.1754944e-38, %v2094
        %v2096 = vsel %vm2093, %v2095, %v2091
        %v2097 = vmul.f32 1.0, %v2096
        %v2098 = vrcp.pop %v1914
        %v2099 = vmul.f32 %v1914, %v2098
        %v2100 = vsub.f32 1.0, %v2099
        %v2101 = vmul.f32 %v2098, %v2100
        %v2102 = vadd.f32 %v2098, %v2101
        %vm2103 = vweird.f32 %v1914
        %vm2104 = vweird.f32 %v2098
        %vm2105 = vmor %vm2103, %vm2104
        %v2106 = vsel %vm2105, %v2098, %v2102
        %v2107 = vand.u32 2147483647, %v1914
        %vm2108 = vcmp.eq.f32.partialorder %v2107, 8.507059e+37
        %v2109 = vand.u32 %v1914, 2147483648
        %v2110 = vor.u32 1.1754944e-38, %v2109
        %v2111 = vsel %vm2108, %v2110, %v2106
        %v2112 = vmul.f32 1.0, %v2111
        %v2113 = vrcp.pop %v1915
        %v2114 = vmul.f32 %v1915, %v2113
        %v2115 = vsub.f32 1.0, %v2114
        %v2116 = vmul.f32 %v2113, %v2115
        %v2117 = vadd.f32 %v2113, %v2116
        %vm2118 = vweird.f32 %v1915
        %vm2119 = vweird.f32 %v2113
        %vm2120 = vmor %vm2118, %vm2119
        %v2121 = vsel %vm2120, %v2113, %v2117
        %v2122 = vand.u32 2147483647, %v1915
        %vm2123 = vcmp.eq.f32.partialorder %v2122, 8.507059e+37
        %v2124 = vand.u32 %v1915, 2147483648
        %v2125 = vor.u32 1.1754944e-38, %v2124
        %v2126 = vsel %vm2123, %v2125, %v2121
        %v2127 = vmul.f32 1.0, %v2126
        %v2128 = vrcp.pop %v1916
        %v2129 = vmul.f32 %v1916, %v2128
        %v2130 = vsub.f32 1.0, %v2129
        %v2131 = vmul.f32 %v2128, %v2130
        %v2132 = vadd.f32 %v2128, %v2131
        %vm2133 = vweird.f32 %v1916
        %vm2134 = vweird.f32 %v2128
        %vm2135 = vmor %vm2133, %vm2134
        %v2136 = vsel %vm2135, %v2128, %v2132
        %v2137 = vand.u32 2147483647, %v1916
        %vm2138 = vcmp.eq.f32.partialorder %v2137, 8.507059e+37
        %v2139 = vand.u32 %v1916, 2147483648
        %v2140 = vor.u32 1.1754944e-38, %v2139
        %v2141 = vsel %vm2138, %v2140, %v2136
        %v2142 = vmul.f32 1.0, %v2141
        %v2143 = vrcp.pop %v1917
        %v2144 = vmul.f32 %v1917, %v2143
        %v2145 = vsub.f32 1.0, %v2144
        %v2146 = vmul.f32 %v2143, %v2145
        %v2147 = vadd.f32 %v2143, %v2146
        %vm2148 = vweird.f32 %v1917
        %vm2149 = vweird.f32 %v2143
        %vm2150 = vmor %vm2148, %vm2149
        %v2151 = vsel %vm2150, %v2143, %v2147
        %v2152 = vand.u32 2147483647, %v1917
        %vm2153 = vcmp.eq.f32.partialorder %v2152, 8.507059e+37
        %v2154 = vand.u32 %v1917, 2147483648
        %v2155 = vor.u32 1.1754944e-38, %v2154
        %v2156 = vsel %vm2153, %v2155, %v2151
        %v2157 = vmul.f32 1.0, %v2156
        %v2158 = vsel %vm1886, %v1932, 0.0
        %v2159 = vsel %vm1887, %v1947, 0.0
        %v2160 = vsel %vm1888, %v1962, 0.0
        %v2161 = vsel %vm1889, %v1977, 0.0
        %v2162 = vsel %vm1890, %v1992, 0.0
        %v2163 = vsel %vm1891, %v2007, 0.0
        %v2164 = vsel %vm1892, %v2022, 0.0
        %v2165 = vsel %vm1893, %v2037, 0.0
        %v2166 = vsel %vm1894, %v2052, 0.0
        %v2167 = vsel %vm1895, %v2067, 0.0
        %v2168 = vsel %vm1896, %v2082, 0.0
        %v2169 = vsel %vm1897, %v2097, 0.0
        %v2170 = vsel %vm1898, %v2112, 0.0
        %v2171 = vsel %vm1899, %v2127, 0.0
        %v2172 = vsel %vm1900, %v2142, 0.0
        %v2173 = vsel %vm1901, %v2157, 0.0
        %2174 = vmatpush.msra.mxu0 %v1675
        %2175 = vmatpush.msra.mxu0 %v1674
        %2176 = vmatpush.msra.mxu0 %v1673
        %2177 = vmatpush.msra.mxu0 %v1672
        %2178 = vmatpush.msra.mxu0 %v1671
        %2179 = vmatpush.msra.mxu0 %v1670
        %2180 = vmatpush.msra.mxu0 %v1669
        %2181 = vmatpush.msra.mxu0 %v1668
        %2182 = vmatpush.msra.mxu0 %v1667
        %2183 = vmatpush.msra.mxu0 %v1666
        %2184 = vmatpush.msra.mxu0 %v1665
        %2185 = vmatpush.msra.mxu0 %v1664
        %2186 = vmatpush.msra.mxu0 %v1663
        %2187 = vmatpush.msra.mxu0 %v1662
        %2188 = vmatpush.msra.mxu0 %v1661
        %2189 = vmatpush.msra.mxu0 %v1660
        %2190 = vmatmul.f32.gmra.mxu0 %v348
        %v2191 = vpop.f32.mrf.mxu0
        %v2192 = vadd.f32 0.0, %v2191
        %2193 = vmatmul.f32.gmra.mxu0 %v349
        %v2194 = vpop.f32.mrf.mxu0
        %v2195 = vadd.f32 0.0, %v2194
        %2196 = vmatmul.f32.gmra.mxu0 %v350
        %v2197 = vpop.f32.mrf.mxu0
        %v2198 = vadd.f32 0.0, %v2197
        %2199 = vmatmul.f32.gmra.mxu0 %v351
        %v2200 = vpop.f32.mrf.mxu0
        %v2201 = vadd.f32 0.0, %v2200
        %2202 = vmatmul.f32.gmra.mxu0 %v352
        %v2203 = vpop.f32.mrf.mxu0
        %v2204 = vadd.f32 0.0, %v2203
        %2205 = vmatmul.f32.gmra.mxu0 %v353
        %v2206 = vpop.f32.mrf.mxu0
        %v2207 = vadd.f32 0.0, %v2206
        %2208 = vmatmul.f32.gmra.mxu0 %v354
        %v2209 = vpop.f32.mrf.mxu0
        %v2210 = vadd.f32 0.0, %v2209
        %2211 = vmatmul.f32.gmra.mxu0 %v355
        %v2212 = vpop.f32.mrf.mxu0
        %v2213 = vadd.f32 0.0, %v2212
        %2214 = vmatmul.f32.gmra.mxu0 %v356
        %v2215 = vpop.f32.mrf.mxu0
        %v2216 = vadd.f32 0.0, %v2215
        %2217 = vmatmul.f32.gmra.mxu0 %v357
        %v2218 = vpop.f32.mrf.mxu0
        %v2219 = vadd.f32 0.0, %v2218
        %2220 = vmatmul.f32.gmra.mxu0 %v358
        %v2221 = vpop.f32.mrf.mxu0
        %v2222 = vadd.f32 0.0, %v2221
        %2223 = vmatmul.f32.gmra.mxu0 %v359
        %v2224 = vpop.f32.mrf.mxu0
        %v2225 = vadd.f32 0.0, %v2224
        %2226 = vmatmul.f32.gmra.mxu0 %v360
        %v2227 = vpop.f32.mrf.mxu0
        %v2228 = vadd.f32 0.0, %v2227
        %2229 = vmatmul.f32.gmra.mxu0 %v361
        %v2230 = vpop.f32.mrf.mxu0
        %v2231 = vadd.f32 0.0, %v2230
        %2232 = vmatmul.f32.gmra.mxu0 %v362
        %v2233 = vpop.f32.mrf.mxu0
        %v2234 = vadd.f32 0.0, %v2233
        %2235 = vmatmul.f32.gmra.mxu0 %v363
        %v2236 = vpop.f32.mrf.mxu0
        %v2237 = vadd.f32 0.0, %v2236
        %2238 = vdwg.mxu0
        %2240 = vset.pattern.permute.xlu0 0
        %2241 = vperm.xlu0 %2240, %v2158
        %v2242 = vpop.permute.xlu0 %2241
        %2245 = vset.pattern.permute.xlu0 0
        %2246 = vperm.xlu0 %2245, %v2159
        %v2247 = vpop.permute.xlu0 %2246
        %2250 = vset.pattern.permute.xlu0 0
        %2251 = vperm.xlu0 %2250, %v2160
        %v2252 = vpop.permute.xlu0 %2251
        %2255 = vset.pattern.permute.xlu0 0
        %2256 = vperm.xlu0 %2255, %v2161
        %v2257 = vpop.permute.xlu0 %2256
        %2260 = vset.pattern.permute.xlu0 0
        %2261 = vperm.xlu0 %2260, %v2162
        %v2262 = vpop.permute.xlu0 %2261
        %2265 = vset.pattern.permute.xlu0 0
        %2266 = vperm.xlu0 %2265, %v2163
        %v2267 = vpop.permute.xlu0 %2266
        %2270 = vset.pattern.permute.xlu0 0
        %2271 = vperm.xlu0 %2270, %v2164
        %v2272 = vpop.permute.xlu0 %2271
        %2275 = vset.pattern.permute.xlu0 0
        %2276 = vperm.xlu0 %2275, %v2165
        %v2277 = vpop.permute.xlu0 %2276
        %2280 = vset.pattern.permute.xlu0 0
        %2281 = vperm.xlu0 %2280, %v2166
        %v2282 = vpop.permute.xlu0 %2281
        %2285 = vset.pattern.permute.xlu0 0
        %2286 = vperm.xlu0 %2285, %v2167
        %v2287 = vpop.permute.xlu0 %2286
        %2290 = vset.pattern.permute.xlu0 0
        %2291 = vperm.xlu0 %2290, %v2168
        %v2292 = vpop.permute.xlu0 %2291
        %2295 = vset.pattern.permute.xlu0 0
        %2296 = vperm.xlu0 %2295, %v2169
        %v2297 = vpop.permute.xlu0 %2296
        %2300 = vset.pattern.permute.xlu0 0
        %2301 = vperm.xlu0 %2300, %v2170
        %v2302 = vpop.permute.xlu0 %2301
        %2305 = vset.pattern.permute.xlu0 0
        %2306 = vperm.xlu0 %2305, %v2171
        %v2307 = vpop.permute.xlu0 %2306
        %2310 = vset.pattern.permute.xlu0 0
        %2311 = vperm.xlu0 %2310, %v2172
        %v2312 = vpop.permute.xlu0 %2311
        %2315 = vset.pattern.permute.xlu0 0
        %2316 = vperm.xlu0 %2315, %v2173
        %v2317 = vpop.permute.xlu0 %2316
        %v2319 = vmul.f32 %v2192, %v2242
        %v2320 = vmul.f32 %v2195, %v2247
        %v2321 = vmul.f32 %v2198, %v2252
        %v2322 = vmul.f32 %v2201, %v2257
        %v2323 = vmul.f32 %v2204, %v2262
        %v2324 = vmul.f32 %v2207, %v2267
        %v2325 = vmul.f32 %v2210, %v2272
        %v2326 = vmul.f32 %v2213, %v2277
        %v2327 = vmul.f32 %v2216, %v2282
        %v2328 = vmul.f32 %v2219, %v2287
        %v2329 = vmul.f32 %v2222, %v2292
        %v2330 = vmul.f32 %v2225, %v2297
        %v2331 = vmul.f32 %v2228, %v2302
        %v2332 = vmul.f32 %v2231, %v2307
        %v2333 = vmul.f32 %v2234, %v2312
        %v2334 = vmul.f32 %v2237, %v2317
        %v2335 = vadd.f32 %v2319, 0.0
        %v2336 = vadd.f32 %v2320, 0.0
        %v2337 = vadd.f32 %v2321, 0.0
        %v2338 = vadd.f32 %v2322, 0.0
        %v2339 = vadd.f32 %v2323, 0.0
        %v2340 = vadd.f32 %v2324, 0.0
        %v2341 = vadd.f32 %v2325, 0.0
        %v2342 = vadd.f32 %v2326, 0.0
        %v2343 = vadd.f32 %v2327, 0.0
        %v2344 = vadd.f32 %v2328, 0.0
        %v2345 = vadd.f32 %v2329, 0.0
        %v2346 = vadd.f32 %v2330, 0.0
        %v2347 = vadd.f32 %v2331, 0.0
        %v2348 = vadd.f32 %v2332, 0.0
        %v2349 = vadd.f32 %v2333, 0.0
        %v2350 = vadd.f32 %v2334, 0.0
        %s2351 = scalar_lea.vmem %s3, 256
        %v2352 = vld [vmem:[%s2351] sm:$0xff]
        %v2353 = vld [vmem:[%s2351 + $0x8] sm:$0xff]
        %v2354 = vld [vmem:[%s2351 + $0x10] sm:$0xff]
        %v2355 = vld [vmem:[%s2351 + $0x18] sm:$0xff]
        %v2356 = vld [vmem:[%s2351 + $0x20] sm:$0xff]
        %v2357 = vld [vmem:[%s2351 + $0x28] sm:$0xff]
        %v2358 = vld [vmem:[%s2351 + $0x30] sm:$0xff]
        %v2359 = vld [vmem:[%s2351 + $0x38] sm:$0xff]
        %v2360 = vld [vmem:[%s2351 + $0x40] sm:$0xff]
        %v2361 = vld [vmem:[%s2351 + $0x48] sm:$0xff]
        %v2362 = vld [vmem:[%s2351 + $0x50] sm:$0xff]
        %v2363 = vld [vmem:[%s2351 + $0x58] sm:$0xff]
        %v2364 = vld [vmem:[%s2351 + $0x60] sm:$0xff]
        %v2365 = vld [vmem:[%s2351 + $0x68] sm:$0xff]
        %v2366 = vld [vmem:[%s2351 + $0x70] sm:$0xff]
        %v2367 = vld [vmem:[%s2351 + $0x78] sm:$0xff]
        %v2368 = vld [vmem:[%s2351 + $0x80] sm:$0xff]
        %v2369 = vld [vmem:[%s2351 + $0x88] sm:$0xff]
        %v2370 = vld [vmem:[%s2351 + $0x90] sm:$0xff]
        %v2371 = vld [vmem:[%s2351 + $0x98] sm:$0xff]
        %v2372 = vld [vmem:[%s2351 + $0xa0] sm:$0xff]
        %v2373 = vld [vmem:[%s2351 + $0xa8] sm:$0xff]
        %v2374 = vld [vmem:[%s2351 + $0xb0] sm:$0xff]
        %v2375 = vld [vmem:[%s2351 + $0xb8] sm:$0xff]
        %v2376 = vld [vmem:[%s2351 + $0xc0] sm:$0xff]
        %v2377 = vld [vmem:[%s2351 + $0xc8] sm:$0xff]
        %v2378 = vld [vmem:[%s2351 + $0xd0] sm:$0xff]
        %v2379 = vld [vmem:[%s2351 + $0xd8] sm:$0xff]
        %v2380 = vld [vmem:[%s2351 + $0xe0] sm:$0xff]
        %v2381 = vld [vmem:[%s2351 + $0xe8] sm:$0xff]
        %v2382 = vld [vmem:[%s2351 + $0xf0] sm:$0xff]
        %v2383 = vld [vmem:[%s2351 + $0xf8] sm:$0xff]
        %s2384 = scalar_lea.vmem %s4, 2
        %v2385 = vld [vmem:[%s2384] sm:$0x3]
        %2386 = vadd.xlane.f32.xlu0 %v1789
        %v2387 = vpop.xlane.xlu0 %2386
        %2388 = vadd.xlane.f32.xlu0 %v1790
        %v2389 = vpop.xlane.xlu0 %2388
        %2390 = vadd.xlane.f32.xlu0 %v1791
        %v2391 = vpop.xlane.xlu0 %2390
        %2392 = vadd.xlane.f32.xlu0 %v1792
        %v2393 = vpop.xlane.xlu0 %2392
        %2394 = vadd.xlane.f32.xlu0 %v1793
        %v2395 = vpop.xlane.xlu0 %2394
        %2396 = vadd.xlane.f32.xlu0 %v1794
        %v2397 = vpop.xlane.xlu0 %2396
        %2398 = vadd.xlane.f32.xlu0 %v1795
        %v2399 = vpop.xlane.xlu0 %2398
        %2400 = vadd.xlane.f32.xlu0 %v1796
        %v2401 = vpop.xlane.xlu0 %2400
        %2402 = vadd.xlane.f32.xlu0 %v1797
        %v2403 = vpop.xlane.xlu0 %2402
        %2404 = vadd.xlane.f32.xlu0 %v1798
        %v2405 = vpop.xlane.xlu0 %2404
        %2406 = vadd.xlane.f32.xlu0 %v1799
        %v2407 = vpop.xlane.xlu0 %2406
        %2408 = vadd.xlane.f32.xlu0 %v1800
        %v2409 = vpop.xlane.xlu0 %2408
        %2410 = vadd.xlane.f32.xlu0 %v1801
        %v2411 = vpop.xlane.xlu0 %2410
        %2412 = vadd.xlane.f32.xlu0 %v1802
        %v2413 = vpop.xlane.xlu0 %2412
        %2414 = vadd.xlane.f32.xlu0 %v1803
        %v2415 = vpop.xlane.xlu0 %2414
        %2416 = vadd.xlane.f32.xlu0 %v1804
        %v2417 = vpop.xlane.xlu0 %2416
        %vm2418 = vcmp.gt.f32.partialorder %v2387, 0.0
        %vm2419 = vcmp.gt.f32.partialorder %v2389, 0.0
        %vm2420 = vcmp.gt.f32.partialorder %v2391, 0.0
        %vm2421 = vcmp.gt.f32.partialorder %v2393, 0.0
        %vm2422 = vcmp.gt.f32.partialorder %v2395, 0.0
        %vm2423 = vcmp.gt.f32.partialorder %v2397, 0.0
        %vm2424 = vcmp.gt.f32.partialorder %v2399, 0.0
        %vm2425 = vcmp.gt.f32.partialorder %v2401, 0.0
        %vm2426 = vcmp.gt.f32.partialorder %v2403, 0.0
        %vm2427 = vcmp.gt.f32.partialorder %v2405, 0.0
        %vm2428 = vcmp.gt.f32.partialorder %v2407, 0.0
        %vm2429 = vcmp.gt.f32.partialorder %v2409, 0.0
        %vm2430 = vcmp.gt.f32.partialorder %v2411, 0.0
        %vm2431 = vcmp.gt.f32.partialorder %v2413, 0.0
        %vm2432 = vcmp.gt.f32.partialorder %v2415, 0.0
        %vm2433 = vcmp.gt.f32.partialorder %v2417, 0.0
        %v2434 = vmax.f32 %v2387, 1.0
        %v2435 = vmax.f32 %v2389, 1.0
        %v2436 = vmax.f32 %v2391, 1.0
        %v2437 = vmax.f32 %v2393, 1.0
        %v2438 = vmax.f32 %v2395, 1.0
        %v2439 = vmax.f32 %v2397, 1.0
        %v2440 = vmax.f32 %v2399, 1.0
        %v2441 = vmax.f32 %v2401, 1.0
        %v2442 = vmax.f32 %v2403, 1.0
        %v2443 = vmax.f32 %v2405, 1.0
        %v2444 = vmax.f32 %v2407, 1.0
        %v2445 = vmax.f32 %v2409, 1.0
        %v2446 = vmax.f32 %v2411, 1.0
        %v2447 = vmax.f32 %v2413, 1.0
        %v2448 = vmax.f32 %v2415, 1.0
        %v2449 = vmax.f32 %v2417, 1.0
        %v2450 = vrcp.pop %v2434
        %v2451 = vmul.f32 %v2434, %v2450
        %v2452 = vsub.f32 1.0, %v2451
        %v2453 = vmul.f32 %v2450, %v2452
        %v2454 = vadd.f32 %v2450, %v2453
        %vm2455 = vweird.f32 %v2434
        %vm2456 = vweird.f32 %v2450
        %vm2457 = vmor %vm2455, %vm2456
        %v2458 = vsel %vm2457, %v2450, %v2454
        %v2459 = vand.u32 2147483647, %v2434
        %vm2460 = vcmp.eq.f32.partialorder %v2459, 8.507059e+37
        %v2461 = vand.u32 %v2434, 2147483648
        %v2462 = vor.u32 1.1754944e-38, %v2461
        %v2463 = vsel %vm2460, %v2462, %v2458
        %v2464 = vmul.f32 1.0, %v2463
        %v2465 = vrcp.pop %v2435
        %v2466 = vmul.f32 %v2435, %v2465
        %v2467 = vsub.f32 1.0, %v2466
        %v2468 = vmul.f32 %v2465, %v2467
        %v2469 = vadd.f32 %v2465, %v2468
        %vm2470 = vweird.f32 %v2435
        %vm2471 = vweird.f32 %v2465
        %vm2472 = vmor %vm2470, %vm2471
        %v2473 = vsel %vm2472, %v2465, %v2469
        %v2474 = vand.u32 2147483647, %v2435
        %vm2475 = vcmp.eq.f32.partialorder %v2474, 8.507059e+37
        %v2476 = vand.u32 %v2435, 2147483648
        %v2477 = vor.u32 1.1754944e-38, %v2476
        %v2478 = vsel %vm2475, %v2477, %v2473
        %v2479 = vmul.f32 1.0, %v2478
        %v2480 = vrcp.pop %v2436
        %v2481 = vmul.f32 %v2436, %v2480
        %v2482 = vsub.f32 1.0, %v2481
        %v2483 = vmul.f32 %v2480, %v2482
        %v2484 = vadd.f32 %v2480, %v2483
        %vm2485 = vweird.f32 %v2436
        %vm2486 = vweird.f32 %v2480
        %vm2487 = vmor %vm2485, %vm2486
        %v2488 = vsel %vm2487, %v2480, %v2484
        %v2489 = vand.u32 2147483647, %v2436
        %vm2490 = vcmp.eq.f32.partialorder %v2489, 8.507059e+37
        %v2491 = vand.u32 %v2436, 2147483648
        %v2492 = vor.u32 1.1754944e-38, %v2491
        %v2493 = vsel %vm2490, %v2492, %v2488
        %v2494 = vmul.f32 1.0, %v2493
        %v2495 = vrcp.pop %v2437
        %v2496 = vmul.f32 %v2437, %v2495
        %v2497 = vsub.f32 1.0, %v2496
        %v2498 = vmul.f32 %v2495, %v2497
        %v2499 = vadd.f32 %v2495, %v2498
        %vm2500 = vweird.f32 %v2437
        %vm2501 = vweird.f32 %v2495
        %vm2502 = vmor %vm2500, %vm2501
        %v2503 = vsel %vm2502, %v2495, %v2499
        %v2504 = vand.u32 2147483647, %v2437
        %vm2505 = vcmp.eq.f32.partialorder %v2504, 8.507059e+37
        %v2506 = vand.u32 %v2437, 2147483648
        %v2507 = vor.u32 1.1754944e-38, %v2506
        %v2508 = vsel %vm2505, %v2507, %v2503
        %v2509 = vmul.f32 1.0, %v2508
        %v2510 = vrcp.pop %v2438
        %v2511 = vmul.f32 %v2438, %v2510
        %v2512 = vsub.f32 1.0, %v2511
        %v2513 = vmul.f32 %v2510, %v2512
        %v2514 = vadd.f32 %v2510, %v2513
        %vm2515 = vweird.f32 %v2438
        %vm2516 = vweird.f32 %v2510
        %vm2517 = vmor %vm2515, %vm2516
        %v2518 = vsel %vm2517, %v2510, %v2514
        %v2519 = vand.u32 2147483647, %v2438
        %vm2520 = vcmp.eq.f32.partialorder %v2519, 8.507059e+37
        %v2521 = vand.u32 %v2438, 2147483648
        %v2522 = vor.u32 1.1754944e-38, %v2521
        %v2523 = vsel %vm2520, %v2522, %v2518
        %v2524 = vmul.f32 1.0, %v2523
        %v2525 = vrcp.pop %v2439
        %v2526 = vmul.f32 %v2439, %v2525
        %v2527 = vsub.f32 1.0, %v2526
        %v2528 = vmul.f32 %v2525, %v2527
        %v2529 = vadd.f32 %v2525, %v2528
        %vm2530 = vweird.f32 %v2439
        %vm2531 = vweird.f32 %v2525
        %vm2532 = vmor %vm2530, %vm2531
        %v2533 = vsel %vm2532, %v2525, %v2529
        %v2534 = vand.u32 2147483647, %v2439
        %vm2535 = vcmp.eq.f32.partialorder %v2534, 8.507059e+37
        %v2536 = vand.u32 %v2439, 2147483648
        %v2537 = vor.u32 1.1754944e-38, %v2536
        %v2538 = vsel %vm2535, %v2537, %v2533
        %v2539 = vmul.f32 1.0, %v2538
        %v2540 = vrcp.pop %v2440
        %v2541 = vmul.f32 %v2440, %v2540
        %v2542 = vsub.f32 1.0, %v2541
        %v2543 = vmul.f32 %v2540, %v2542
        %v2544 = vadd.f32 %v2540, %v2543
        %vm2545 = vweird.f32 %v2440
        %vm2546 = vweird.f32 %v2540
        %vm2547 = vmor %vm2545, %vm2546
        %v2548 = vsel %vm2547, %v2540, %v2544
        %v2549 = vand.u32 2147483647, %v2440
        %vm2550 = vcmp.eq.f32.partialorder %v2549, 8.507059e+37
        %v2551 = vand.u32 %v2440, 2147483648
        %v2552 = vor.u32 1.1754944e-38, %v2551
        %v2553 = vsel %vm2550, %v2552, %v2548
        %v2554 = vmul.f32 1.0, %v2553
        %v2555 = vrcp.pop %v2441
        %v2556 = vmul.f32 %v2441, %v2555
        %v2557 = vsub.f32 1.0, %v2556
        %v2558 = vmul.f32 %v2555, %v2557
        %v2559 = vadd.f32 %v2555, %v2558
        %vm2560 = vweird.f32 %v2441
        %vm2561 = vweird.f32 %v2555
        %vm2562 = vmor %vm2560, %vm2561
        %v2563 = vsel %vm2562, %v2555, %v2559
        %v2564 = vand.u32 2147483647, %v2441
        %vm2565 = vcmp.eq.f32.partialorder %v2564, 8.507059e+37
        %v2566 = vand.u32 %v2441, 2147483648
        %v2567 = vor.u32 1.1754944e-38, %v2566
        %v2568 = vsel %vm2565, %v2567, %v2563
        %v2569 = vmul.f32 1.0, %v2568
        %v2570 = vrcp.pop %v2442
        %v2571 = vmul.f32 %v2442, %v2570
        %v2572 = vsub.f32 1.0, %v2571
        %v2573 = vmul.f32 %v2570, %v2572
        %v2574 = vadd.f32 %v2570, %v2573
        %vm2575 = vweird.f32 %v2442
        %vm2576 = vweird.f32 %v2570
        %vm2577 = vmor %vm2575, %vm2576
        %v2578 = vsel %vm2577, %v2570, %v2574
        %v2579 = vand.u32 2147483647, %v2442
        %vm2580 = vcmp.eq.f32.partialorder %v2579, 8.507059e+37
        %v2581 = vand.u32 %v2442, 2147483648
        %v2582 = vor.u32 1.1754944e-38, %v2581
        %v2583 = vsel %vm2580, %v2582, %v2578
        %v2584 = vmul.f32 1.0, %v2583
        %v2585 = vrcp.pop %v2443
        %v2586 = vmul.f32 %v2443, %v2585
        %v2587 = vsub.f32 1.0, %v2586
        %v2588 = vmul.f32 %v2585, %v2587
        %v2589 = vadd.f32 %v2585, %v2588
        %vm2590 = vweird.f32 %v2443
        %vm2591 = vweird.f32 %v2585
        %vm2592 = vmor %vm2590, %vm2591
        %v2593 = vsel %vm2592, %v2585, %v2589
        %v2594 = vand.u32 2147483647, %v2443
        %vm2595 = vcmp.eq.f32.partialorder %v2594, 8.507059e+37
        %v2596 = vand.u32 %v2443, 2147483648
        %v2597 = vor.u32 1.1754944e-38, %v2596
        %v2598 = vsel %vm2595, %v2597, %v2593
        %v2599 = vmul.f32 1.0, %v2598
        %v2600 = vrcp.pop %v2444
        %v2601 = vmul.f32 %v2444, %v2600
        %v2602 = vsub.f32 1.0, %v2601
        %v2603 = vmul.f32 %v2600, %v2602
        %v2604 = vadd.f32 %v2600, %v2603
        %vm2605 = vweird.f32 %v2444
        %vm2606 = vweird.f32 %v2600
        %vm2607 = vmor %vm2605, %vm2606
        %v2608 = vsel %vm2607, %v2600, %v2604
        %v2609 = vand.u32 2147483647, %v2444
        %vm2610 = vcmp.eq.f32.partialorder %v2609, 8.507059e+37
        %v2611 = vand.u32 %v2444, 2147483648
        %v2612 = vor.u32 1.1754944e-38, %v2611
        %v2613 = vsel %vm2610, %v2612, %v2608
        %v2614 = vmul.f32 1.0, %v2613
        %v2615 = vrcp.pop %v2445
        %v2616 = vmul.f32 %v2445, %v2615
        %v2617 = vsub.f32 1.0, %v2616
        %v2618 = vmul.f32 %v2615, %v2617
        %v2619 = vadd.f32 %v2615, %v2618
        %vm2620 = vweird.f32 %v2445
        %vm2621 = vweird.f32 %v2615
        %vm2622 = vmor %vm2620, %vm2621
        %v2623 = vsel %vm2622, %v2615, %v2619
        %v2624 = vand.u32 2147483647, %v2445
        %vm2625 = vcmp.eq.f32.partialorder %v2624, 8.507059e+37
        %v2626 = vand.u32 %v2445, 2147483648
        %v2627 = vor.u32 1.1754944e-38, %v2626
        %v2628 = vsel %vm2625, %v2627, %v2623
        %v2629 = vmul.f32 1.0, %v2628
        %v2630 = vrcp.pop %v2446
        %v2631 = vmul.f32 %v2446, %v2630
        %v2632 = vsub.f32 1.0, %v2631
        %v2633 = vmul.f32 %v2630, %v2632
        %v2634 = vadd.f32 %v2630, %v2633
        %vm2635 = vweird.f32 %v2446
        %vm2636 = vweird.f32 %v2630
        %vm2637 = vmor %vm2635, %vm2636
        %v2638 = vsel %vm2637, %v2630, %v2634
        %v2639 = vand.u32 2147483647, %v2446
        %vm2640 = vcmp.eq.f32.partialorder %v2639, 8.507059e+37
        %v2641 = vand.u32 %v2446, 2147483648
        %v2642 = vor.u32 1.1754944e-38, %v2641
        %v2643 = vsel %vm2640, %v2642, %v2638
        %v2644 = vmul.f32 1.0, %v2643
        %v2645 = vrcp.pop %v2447
        %v2646 = vmul.f32 %v2447, %v2645
        %v2647 = vsub.f32 1.0, %v2646
        %v2648 = vmul.f32 %v2645, %v2647
        %v2649 = vadd.f32 %v2645, %v2648
        %vm2650 = vweird.f32 %v2447
        %vm2651 = vweird.f32 %v2645
        %vm2652 = vmor %vm2650, %vm2651
        %v2653 = vsel %vm2652, %v2645, %v2649
        %v2654 = vand.u32 2147483647, %v2447
        %vm2655 = vcmp.eq.f32.partialorder %v2654, 8.507059e+37
        %v2656 = vand.u32 %v2447, 2147483648
        %v2657 = vor.u32 1.1754944e-38, %v2656
        %v2658 = vsel %vm2655, %v2657, %v2653
        %v2659 = vmul.f32 1.0, %v2658
        %v2660 = vrcp.pop %v2448
        %v2661 = vmul.f32 %v2448, %v2660
        %v2662 = vsub.f32 1.0, %v2661
        %v2663 = vmul.f32 %v2660, %v2662
        %v2664 = vadd.f32 %v2660, %v2663
        %vm2665 = vweird.f32 %v2448
        %vm2666 = vweird.f32 %v2660
        %vm2667 = vmor %vm2665, %vm2666
        %v2668 = vsel %vm2667, %v2660, %v2664
        %v2669 = vand.u32 2147483647, %v2448
        %vm2670 = vcmp.eq.f32.partialorder %v2669, 8.507059e+37
        %v2671 = vand.u32 %v2448, 2147483648
        %v2672 = vor.u32 1.1754944e-38, %v2671
        %v2673 = vsel %vm2670, %v2672, %v2668
        %v2674 = vmul.f32 1.0, %v2673
        %v2675 = vrcp.pop %v2449
        %v2676 = vmul.f32 %v2449, %v2675
        %v2677 = vsub.f32 1.0, %v2676
        %v2678 = vmul.f32 %v2675, %v2677
        %v2679 = vadd.f32 %v2675, %v2678
        %vm2680 = vweird.f32 %v2449
        %vm2681 = vweird.f32 %v2675
        %vm2682 = vmor %vm2680, %vm2681
        %v2683 = vsel %vm2682, %v2675, %v2679
        %v2684 = vand.u32 2147483647, %v2449
        %vm2685 = vcmp.eq.f32.partialorder %v2684, 8.507059e+37
        %v2686 = vand.u32 %v2449, 2147483648
        %v2687 = vor.u32 1.1754944e-38, %v2686
        %v2688 = vsel %vm2685, %v2687, %v2683
        %v2689 = vmul.f32 1.0, %v2688
        %v2690 = vsel %vm2418, %v2464, 0.0
        %v2691 = vsel %vm2419, %v2479, 0.0
        %v2692 = vsel %vm2420, %v2494, 0.0
        %v2693 = vsel %vm2421, %v2509, 0.0
        %v2694 = vsel %vm2422, %v2524, 0.0
        %v2695 = vsel %vm2423, %v2539, 0.0
        %v2696 = vsel %vm2424, %v2554, 0.0
        %v2697 = vsel %vm2425, %v2569, 0.0
        %v2698 = vsel %vm2426, %v2584, 0.0
        %v2699 = vsel %vm2427, %v2599, 0.0
        %v2700 = vsel %vm2428, %v2614, 0.0
        %v2701 = vsel %vm2429, %v2629, 0.0
        %v2702 = vsel %vm2430, %v2644, 0.0
        %v2703 = vsel %vm2431, %v2659, 0.0
        %v2704 = vsel %vm2432, %v2674, 0.0
        %v2705 = vsel %vm2433, %v2689, 0.0
        %2706 = vmatpush.msra.mxu0 %v1675
        %2707 = vmatpush.msra.mxu0 %v1674
        %2708 = vmatpush.msra.mxu0 %v1673
        %2709 = vmatpush.msra.mxu0 %v1672
        %2710 = vmatpush.msra.mxu0 %v1671
        %2711 = vmatpush.msra.mxu0 %v1670
        %2712 = vmatpush.msra.mxu0 %v1669
        %2713 = vmatpush.msra.mxu0 %v1668
        %2714 = vmatpush.msra.mxu0 %v1667
        %2715 = vmatpush.msra.mxu0 %v1666
        %2716 = vmatpush.msra.mxu0 %v1665
        %2717 = vmatpush.msra.mxu0 %v1664
        %2718 = vmatpush.msra.mxu0 %v1663
        %2719 = vmatpush.msra.mxu0 %v1662
        %2720 = vmatpush.msra.mxu0 %v1661
        %2721 = vmatpush.msra.mxu0 %v1660
        %2722 = vmatmul.f32.gmra.mxu0 %v1789
        %v2723 = vpop.f32.mrf.mxu0
        %v2724 = vadd.f32 0.0, %v2723
        %2725 = vmatmul.f32.gmra.mxu0 %v1790
        %v2726 = vpop.f32.mrf.mxu0
        %v2727 = vadd.f32 0.0, %v2726
        %2728 = vmatmul.f32.gmra.mxu0 %v1791
        %v2729 = vpop.f32.mrf.mxu0
        %v2730 = vadd.f32 0.0, %v2729
        %2731 = vmatmul.f32.gmra.mxu0 %v1792
        %v2732 = vpop.f32.mrf.mxu0
        %v2733 = vadd.f32 0.0, %v2732
        %2734 = vmatmul.f32.gmra.mxu0 %v1793
        %v2735 = vpop.f32.mrf.mxu0
        %v2736 = vadd.f32 0.0, %v2735
        %2737 = vmatmul.f32.gmra.mxu0 %v1794
        %v2738 = vpop.f32.mrf.mxu0
        %v2739 = vadd.f32 0.0, %v2738
        %2740 = vmatmul.f32.gmra.mxu0 %v1795
        %v2741 = vpop.f32.mrf.mxu0
        %v2742 = vadd.f32 0.0, %v2741
        %2743 = vmatmul.f32.gmra.mxu0 %v1796
        %v2744 = vpop.f32.mrf.mxu0
        %v2745 = vadd.f32 0.0, %v2744
        %2746 = vmatmul.f32.gmra.mxu0 %v1797
        %v2747 = vpop.f32.mrf.mxu0
        %v2748 = vadd.f32 0.0, %v2747
        %2749 = vmatmul.f32.gmra.mxu0 %v1798
        %v2750 = vpop.f32.mrf.mxu0
        %v2751 = vadd.f32 0.0, %v2750
        %2752 = vmatmul.f32.gmra.mxu0 %v1799
        %v2753 = vpop.f32.mrf.mxu0
        %v2754 = vadd.f32 0.0, %v2753
        %2755 = vmatmul.f32.gmra.mxu0 %v1800
        %v2756 = vpop.f32.mrf.mxu0
        %v2757 = vadd.f32 0.0, %v2756
        %2758 = vmatmul.f32.gmra.mxu0 %v1801
        %v2759 = vpop.f32.mrf.mxu0
        %v2760 = vadd.f32 0.0, %v2759
        %2761 = vmatmul.f32.gmra.mxu0 %v1802
        %v2762 = vpop.f32.mrf.mxu0
        %v2763 = vadd.f32 0.0, %v2762
        %2764 = vmatmul.f32.gmra.mxu0 %v1803
        %v2765 = vpop.f32.mrf.mxu0
        %v2766 = vadd.f32 0.0, %v2765
        %2767 = vmatmul.f32.gmra.mxu0 %v1804
        %v2768 = vpop.f32.mrf.mxu0
        %v2769 = vadd.f32 0.0, %v2768
        %2770 = vdwg.mxu0
        %v2771 = vmul.f32 %v2724, %v2690
        %v2772 = vmul.f32 %v2727, %v2691
        %v2773 = vmul.f32 %v2730, %v2692
        %v2774 = vmul.f32 %v2733, %v2693
        %v2775 = vmul.f32 %v2736, %v2694
        %v2776 = vmul.f32 %v2739, %v2695
        %v2777 = vmul.f32 %v2742, %v2696
        %v2778 = vmul.f32 %v2745, %v2697
        %v2779 = vmul.f32 %v2748, %v2698
        %v2780 = vmul.f32 %v2751, %v2699
        %v2781 = vmul.f32 %v2754, %v2700
        %v2782 = vmul.f32 %v2757, %v2701
        %v2783 = vmul.f32 %v2760, %v2702
        %v2784 = vmul.f32 %v2763, %v2703
        %v2785 = vmul.f32 %v2766, %v2704
        %v2786 = vmul.f32 %v2769, %v2705
        %v2787 = vperm.slane %v2385, 0
        %2788 = vmatpush.msra.mxu0 %v2367
        %2789 = vmatpush.msra.mxu0 %v2366
        %2790 = vmatpush.msra.mxu0 %v2365
        %2791 = vmatpush.msra.mxu0 %v2364
        %2792 = vmatpush.msra.mxu0 %v2363
        %2793 = vmatpush.msra.mxu0 %v2362
        %2794 = vmatpush.msra.mxu0 %v2361
        %2795 = vmatpush.msra.mxu0 %v2360
        %2796 = vmatpush.msra.mxu0 %v2359
        %2797 = vmatpush.msra.mxu0 %v2358
        %2798 = vmatpush.msra.mxu0 %v2357
        %2799 = vmatpush.msra.mxu0 %v2356
        %2800 = vmatpush.msra.mxu0 %v2355
        %2801 = vmatpush.msra.mxu0 %v2354
        %2802 = vmatpush.msra.mxu0 %v2353
        %2803 = vmatpush.msra.mxu0 %v2352
        %2804 = vmatmul.f32.gmra.mxu0 %v2771
        %v2805 = vpop.f32.mrf.mxu0
        %v2806 = vadd.f32 %v2787, %v2805
        %2807 = vmatmul.f32.gmra.mxu0 %v2772
        %v2808 = vpop.f32.mrf.mxu0
        %v2809 = vadd.f32 %v2787, %v2808
        %2810 = vmatmul.f32.gmra.mxu0 %v2773
        %v2811 = vpop.f32.mrf.mxu0
        %v2812 = vadd.f32 %v2787, %v2811
        %2813 = vmatmul.f32.gmra.mxu0 %v2774
        %v2814 = vpop.f32.mrf.mxu0
        %v2815 = vadd.f32 %v2787, %v2814
        %2816 = vmatmul.f32.gmra.mxu0 %v2775
        %v2817 = vpop.f32.mrf.mxu0
        %v2818 = vadd.f32 %v2787, %v2817
        %2819 = vmatmul.f32.gmra.mxu0 %v2776
        %v2820 = vpop.f32.mrf.mxu0
        %v2821 = vadd.f32 %v2787, %v2820
        %2822 = vmatmul.f32.gmra.mxu0 %v2777
        %v2823 = vpop.f32.mrf.mxu0
        %v2824 = vadd.f32 %v2787, %v2823
        %2825 = vmatmul.f32.gmra.mxu0 %v2778
        %v2826 = vpop.f32.mrf.mxu0
        %v2827 = vadd.f32 %v2787, %v2826
        %2828 = vmatmul.f32.gmra.mxu0 %v2779
        %v2829 = vpop.f32.mrf.mxu0
        %v2830 = vadd.f32 %v2787, %v2829
        %2831 = vmatmul.f32.gmra.mxu0 %v2780
        %v2832 = vpop.f32.mrf.mxu0
        %v2833 = vadd.f32 %v2787, %v2832
        %2834 = vmatmul.f32.gmra.mxu0 %v2781
        %v2835 = vpop.f32.mrf.mxu0
        %v2836 = vadd.f32 %v2787, %v2835
        %2837 = vmatmul.f32.gmra.mxu0 %v2782
        %v2838 = vpop.f32.mrf.mxu0
        %v2839 = vadd.f32 %v2787, %v2838
        %2840 = vmatmul.f32.gmra.mxu0 %v2783
        %v2841 = vpop.f32.mrf.mxu0
        %v2842 = vadd.f32 %v2787, %v2841
        %2843 = vmatmul.f32.gmra.mxu0 %v2784
        %v2844 = vpop.f32.mrf.mxu0
        %v2845 = vadd.f32 %v2787, %v2844
        %2846 = vmatmul.f32.gmra.mxu0 %v2785
        %v2847 = vpop.f32.mrf.mxu0
        %v2848 = vadd.f32 %v2787, %v2847
        %2849 = vmatmul.f32.gmra.mxu0 %v2786
        %v2850 = vpop.f32.mrf.mxu0
        %v2851 = vadd.f32 %v2787, %v2850
        %2852 = vdwg.mxu0
        %2853 = vmatpush.msra.mxu0 %v2383
        %2854 = vmatpush.msra.mxu0 %v2382
        %2855 = vmatpush.msra.mxu0 %v2381
        %2856 = vmatpush.msra.mxu0 %v2380
        %2857 = vmatpush.msra.mxu0 %v2379
        %2858 = vmatpush.msra.mxu0 %v2378
        %2859 = vmatpush.msra.mxu0 %v2377
        %2860 = vmatpush.msra.mxu0 %v2376
        %2861 = vmatpush.msra.mxu0 %v2375
        %2862 = vmatpush.msra.mxu0 %v2374
        %2863 = vmatpush.msra.mxu0 %v2373
        %2864 = vmatpush.msra.mxu0 %v2372
        %2865 = vmatpush.msra.mxu0 %v2371
        %2866 = vmatpush.msra.mxu0 %v2370
        %2867 = vmatpush.msra.mxu0 %v2369
        %2868 = vmatpush.msra.mxu0 %v2368
        %2869 = vmatmul.f32.gmra.mxu0 %v1660
        %v2870 = vpop.f32.mrf.mxu0
        %v2871 = vadd.f32 %v2806, %v2870
        %2872 = vmatmul.f32.gmra.mxu0 %v1661
        %v2873 = vpop.f32.mrf.mxu0
        %v2874 = vadd.f32 %v2809, %v2873
        %2875 = vmatmul.f32.gmra.mxu0 %v1662
        %v2876 = vpop.f32.mrf.mxu0
        %v2877 = vadd.f32 %v2812, %v2876
        %2878 = vmatmul.f32.gmra.mxu0 %v1663
        %v2879 = vpop.f32.mrf.mxu0
        %v2880 = vadd.f32 %v2815, %v2879
        %2881 = vmatmul.f32.gmra.mxu0 %v1664
        %v2882 = vpop.f32.mrf.mxu0
        %v2883 = vadd.f32 %v2818, %v2882
        %2884 = vmatmul.f32.gmra.mxu0 %v1665
        %v2885 = vpop.f32.mrf.mxu0
        %v2886 = vadd.f32 %v2821, %v2885
        %2887 = vmatmul.f32.gmra.mxu0 %v1666
        %v2888 = vpop.f32.mrf.mxu0
        %v2889 = vadd.f32 %v2824, %v2888
        %2890 = vmatmul.f32.gmra.mxu0 %v1667
        %v2891 = vpop.f32.mrf.mxu0
        %v2892 = vadd.f32 %v2827, %v2891
        %2893 = vmatmul.f32.gmra.mxu0 %v1668
        %v2894 = vpop.f32.mrf.mxu0
        %v2895 = vadd.f32 %v2830, %v2894
        %2896 = vmatmul.f32.gmra.mxu0 %v1669
        %v2897 = vpop.f32.mrf.mxu0
        %v2898 = vadd.f32 %v2833, %v2897
        %2899 = vmatmul.f32.gmra.mxu0 %v1670
        %v2900 = vpop.f32.mrf.mxu0
        %v2901 = vadd.f32 %v2836, %v2900
        %2902 = vmatmul.f32.gmra.mxu0 %v1671
        %v2903 = vpop.f32.mrf.mxu0
        %v2904 = vadd.f32 %v2839, %v2903
        %2905 = vmatmul.f32.gmra.mxu0 %v1672
        %v2906 = vpop.f32.mrf.mxu0
        %v2907 = vadd.f32 %v2842, %v2906
        %2908 = vmatmul.f32.gmra.mxu0 %v1673
        %v2909 = vpop.f32.mrf.mxu0
        %v2910 = vadd.f32 %v2845, %v2909
        %2911 = vmatmul.f32.gmra.mxu0 %v1674
        %v2912 = vpop.f32.mrf.mxu0
        %v2913 = vadd.f32 %v2848, %v2912
        %2914 = vmatmul.f32.gmra.mxu0 %v1675
        %v2915 = vpop.f32.mrf.mxu0
        %v2916 = vadd.f32 %v2851, %v2915
        %2917 = vdwg.mxu0
        %v2918 = vmax.f32 %v2871, 0.0
        %v2919 = vmax.f32 %v2874, 0.0
        %v2920 = vmax.f32 %v2877, 0.0
        %v2921 = vmax.f32 %v2880, 0.0
        %v2922 = vmax.f32 %v2883, 0.0
        %v2923 = vmax.f32 %v2886, 0.0
        %v2924 = vmax.f32 %v2889, 0.0
        %v2925 = vmax.f32 %v2892, 0.0
        %v2926 = vmax.f32 %v2895, 0.0
        %v2927 = vmax.f32 %v2898, 0.0
        %v2928 = vmax.f32 %v2901, 0.0
        %v2929 = vmax.f32 %v2904, 0.0
        %v2930 = vmax.f32 %v2907, 0.0
        %v2931 = vmax.f32 %v2910, 0.0
        %v2932 = vmax.f32 %v2913, 0.0
        %v2933 = vmax.f32 %v2916, 0.0
        %v2934 = vperm.slane %v2385, 1
        %v2935 = vmul.f32 %v2918, %v2934
        %v2936 = vmul.f32 %v2919, %v2934
        %v2937 = vmul.f32 %v2920, %v2934
        %v2938 = vmul.f32 %v2921, %v2934
        %v2939 = vmul.f32 %v2922, %v2934
        %v2940 = vmul.f32 %v2923, %v2934
        %v2941 = vmul.f32 %v2924, %v2934
        %v2942 = vmul.f32 %v2925, %v2934
        %v2943 = vmul.f32 %v2926, %v2934
        %v2944 = vmul.f32 %v2927, %v2934
        %v2945 = vmul.f32 %v2928, %v2934
        %v2946 = vmul.f32 %v2929, %v2934
        %v2947 = vmul.f32 %v2930, %v2934
        %v2948 = vmul.f32 %v2931, %v2934
        %v2949 = vmul.f32 %v2932, %v2934
        %v2950 = vmul.f32 %v2933, %v2934
        %2951 = vadd.xlane.f32.xlu0 %v2935
        %v2952 = vpop.xlane.xlu0 %2951
        %2953 = vadd.xlane.f32.xlu0 %v2936
        %v2954 = vpop.xlane.xlu0 %2953
        %2955 = vadd.xlane.f32.xlu0 %v2937
        %v2956 = vpop.xlane.xlu0 %2955
        %2957 = vadd.xlane.f32.xlu0 %v2938
        %v2958 = vpop.xlane.xlu0 %2957
        %2959 = vadd.xlane.f32.xlu0 %v2939
        %v2960 = vpop.xlane.xlu0 %2959
        %2961 = vadd.xlane.f32.xlu0 %v2940
        %v2962 = vpop.xlane.xlu0 %2961
        %2963 = vadd.xlane.f32.xlu0 %v2941
        %v2964 = vpop.xlane.xlu0 %2963
        %2965 = vadd.xlane.f32.xlu0 %v2942
        %v2966 = vpop.xlane.xlu0 %2965
        %2967 = vadd.xlane.f32.xlu0 %v2943
        %v2968 = vpop.xlane.xlu0 %2967
        %2969 = vadd.xlane.f32.xlu0 %v2944
        %v2970 = vpop.xlane.xlu0 %2969
        %2971 = vadd.xlane.f32.xlu0 %v2945
        %v2972 = vpop.xlane.xlu0 %2971
        %2973 = vadd.xlane.f32.xlu0 %v2946
        %v2974 = vpop.xlane.xlu0 %2973
        %2975 = vadd.xlane.f32.xlu0 %v2947
        %v2976 = vpop.xlane.xlu0 %2975
        %2977 = vadd.xlane.f32.xlu0 %v2948
        %v2978 = vpop.xlane.xlu0 %2977
        %2979 = vadd.xlane.f32.xlu0 %v2949
        %v2980 = vpop.xlane.xlu0 %2979
        %2981 = vadd.xlane.f32.xlu0 %v2950
        %v2982 = vpop.xlane.xlu0 %2981
        %v2983 = vtanh.pop %v2952
        %v2984 = vtanh.pop %v2954
        %v2985 = vtanh.pop %v2956
        %v2986 = vtanh.pop %v2958
        %v2987 = vtanh.pop %v2960
        %v2988 = vtanh.pop %v2962
        %v2989 = vtanh.pop %v2964
        %v2990 = vtanh.pop %v2966
        %v2991 = vtanh.pop %v2968
        %v2992 = vtanh.pop %v2970
        %v2993 = vtanh.pop %v2972
        %v2994 = vtanh.pop %v2974
        %v2995 = vtanh.pop %v2976
        %v2996 = vtanh.pop %v2978
        %v2997 = vtanh.pop %v2980
        %v2998 = vtanh.pop %v2982
        %vm2999 = vcmp.gt.f32.partialorder %v1628, 0.5
        %vm3000 = vcmp.gt.f32.partialorder %v1629, 0.5
        %vm3001 = vcmp.gt.f32.partialorder %v1630, 0.5
        %vm3002 = vcmp.gt.f32.partialorder %v1631, 0.5
        %vm3003 = vcmp.gt.f32.partialorder %v1632, 0.5
        %vm3004 = vcmp.gt.f32.partialorder %v1633, 0.5
        %vm3005 = vcmp.gt.f32.partialorder %v1634, 0.5
        %vm3006 = vcmp.gt.f32.partialorder %v1635, 0.5
        %vm3007 = vcmp.gt.f32.partialorder %v1636, 0.5
        %vm3008 = vcmp.gt.f32.partialorder %v1637, 0.5
        %vm3009 = vcmp.gt.f32.partialorder %v1638, 0.5
        %vm3010 = vcmp.gt.f32.partialorder %v1639, 0.5
        %vm3011 = vcmp.gt.f32.partialorder %v1640, 0.5
        %vm3012 = vcmp.gt.f32.partialorder %v1641, 0.5
        %vm3013 = vcmp.gt.f32.partialorder %v1642, 0.5
        %vm3014 = vcmp.gt.f32.partialorder %v1643, 0.5
        %v3015 = vsel %vm2999, %v2983, -1e+30
        %v3016 = vsel %vm3000, %v2984, -1e+30
        %v3017 = vsel %vm3001, %v2985, -1e+30
        %v3018 = vsel %vm3002, %v2986, -1e+30
        %v3019 = vsel %vm3003, %v2987, -1e+30
        %v3020 = vsel %vm3004, %v2988, -1e+30
        %v3021 = vsel %vm3005, %v2989, -1e+30
        %v3022 = vsel %vm3006, %v2990, -1e+30
        %v3023 = vsel %vm3007, %v2991, -1e+30
        %v3024 = vsel %vm3008, %v2992, -1e+30
        %v3025 = vsel %vm3009, %v2993, -1e+30
        %v3026 = vsel %vm3010, %v2994, -1e+30
        %v3027 = vsel %vm3011, %v2995, -1e+30
        %v3028 = vsel %vm3012, %v2996, -1e+30
        %v3029 = vsel %vm3013, %v2997, -1e+30
        %v3030 = vsel %vm3014, %v2998, -1e+30
        %v3032 = vsel %vm1206, %v3015, 0
        %v3035 = vsel %vm1206, %v3016, 0
        %v3038 = vsel %vm1206, %v3017, 0
        %v3041 = vsel %vm1206, %v3018, 0
        %v3044 = vsel %vm1206, %v3019, 0
        %v3047 = vsel %vm1206, %v3020, 0
        %v3050 = vsel %vm1206, %v3021, 0
        %v3053 = vsel %vm1206, %v3022, 0
        %v3056 = vsel %vm1206, %v3023, 0
        %v3059 = vsel %vm1206, %v3024, 0
        %v3062 = vsel %vm1206, %v3025, 0
        %v3065 = vsel %vm1206, %v3026, 0
        %v3068 = vsel %vm1206, %v3027, 0
        %v3071 = vsel %vm1206, %v3028, 0
        %v3074 = vsel %vm1206, %v3029, 0
        %v3077 = vsel %vm1206, %v3030, 0
        %3079 = vmatpush.xpose.msra.mxu0 %v3077
        %3080 = vmatpush.xpose.msra.mxu0 %v3074
        %3081 = vmatpush.xpose.msra.mxu0 %v3071
        %3082 = vmatpush.xpose.msra.mxu0 %v3068
        %3083 = vmatpush.xpose.msra.mxu0 %v3065
        %3084 = vmatpush.xpose.msra.mxu0 %v3062
        %3085 = vmatpush.xpose.msra.mxu0 %v3059
        %3086 = vmatpush.xpose.msra.mxu0 %v3056
        %3087 = vmatpush.xpose.msra.mxu0 %v3053
        %3088 = vmatpush.xpose.msra.mxu0 %v3050
        %3089 = vmatpush.xpose.msra.mxu0 %v3047
        %3090 = vmatpush.xpose.msra.mxu0 %v3044
        %3091 = vmatpush.xpose.msra.mxu0 %v3041
        %3092 = vmatpush.xpose.msra.mxu0 %v3038
        %3093 = vmatpush.xpose.msra.mxu0 %v3035
        %3094 = vmatpush.xpose.msra.mxu0 %v3032
        %3095 = vmatmul.f32.gmra.mxu0 %v1208
        %v3096 = vpop.f32.mrf.mxu0
        %v3097 = vadd.f32 0.0, %v3096
        %3098 = vmatmul.f32.gmra.mxu0 %v1208
        %v3099 = vpop.f32.mrf.mxu0
        %v3100 = vadd.f32 0.0, %v3099
        %3101 = vmatmul.f32.gmra.mxu0 %v1208
        %v3102 = vpop.f32.mrf.mxu0
        %v3103 = vadd.f32 0.0, %v3102
        %3104 = vmatmul.f32.gmra.mxu0 %v1208
        %v3105 = vpop.f32.mrf.mxu0
        %v3106 = vadd.f32 0.0, %v3105
        %3107 = vmatmul.f32.gmra.mxu0 %v1208
        %v3108 = vpop.f32.mrf.mxu0
        %v3109 = vadd.f32 0.0, %v3108
        %3110 = vmatmul.f32.gmra.mxu0 %v1208
        %v3111 = vpop.f32.mrf.mxu0
        %v3112 = vadd.f32 0.0, %v3111
        %3113 = vmatmul.f32.gmra.mxu0 %v1208
        %v3114 = vpop.f32.mrf.mxu0
        %v3115 = vadd.f32 0.0, %v3114
        %3116 = vmatmul.f32.gmra.mxu0 %v1208
        %v3117 = vpop.f32.mrf.mxu0
        %v3118 = vadd.f32 0.0, %v3117
        %3119 = vmatmul.f32.gmra.mxu0 %v1208
        %v3120 = vpop.f32.mrf.mxu0
        %v3121 = vadd.f32 0.0, %v3120
        %3122 = vmatmul.f32.gmra.mxu0 %v1208
        %v3123 = vpop.f32.mrf.mxu0
        %v3124 = vadd.f32 0.0, %v3123
        %3125 = vmatmul.f32.gmra.mxu0 %v1208
        %v3126 = vpop.f32.mrf.mxu0
        %v3127 = vadd.f32 0.0, %v3126
        %3128 = vmatmul.f32.gmra.mxu0 %v1208
        %v3129 = vpop.f32.mrf.mxu0
        %v3130 = vadd.f32 0.0, %v3129
        %3131 = vmatmul.f32.gmra.mxu0 %v1208
        %v3132 = vpop.f32.mrf.mxu0
        %v3133 = vadd.f32 0.0, %v3132
        %3134 = vmatmul.f32.gmra.mxu0 %v1208
        %v3135 = vpop.f32.mrf.mxu0
        %v3136 = vadd.f32 0.0, %v3135
        %3137 = vmatmul.f32.gmra.mxu0 %v1208
        %v3138 = vpop.f32.mrf.mxu0
        %v3139 = vadd.f32 0.0, %v3138
        %3140 = vmatmul.f32.gmra.mxu0 %v1208
        %v3141 = vpop.f32.mrf.mxu0
        %v3142 = vadd.f32 0.0, %v3141
        %3143 = vdwg.mxu0
        %3144 = vmatpush.xpose.msra.mxu0 %v1208
        %3145 = vmatpush.xpose.msra.mxu0 %v1208
        %3146 = vmatpush.xpose.msra.mxu0 %v1208
        %3147 = vmatpush.xpose.msra.mxu0 %v1208
        %3148 = vmatpush.xpose.msra.mxu0 %v1208
        %3149 = vmatpush.xpose.msra.mxu0 %v1208
        %3150 = vmatpush.xpose.msra.mxu0 %v1208
        %3151 = vmatpush.xpose.msra.mxu0 %v1208
        %3152 = vmatpush.xpose.msra.mxu0 %v1208
        %3153 = vmatpush.xpose.msra.mxu0 %v1208
        %3154 = vmatpush.xpose.msra.mxu0 %v1208
        %3155 = vmatpush.xpose.msra.mxu0 %v1208
        %3156 = vmatpush.xpose.msra.mxu0 %v1208
        %3157 = vmatpush.xpose.msra.mxu0 %v1208
        %3158 = vmatpush.xpose.msra.mxu0 %v1208
        %3159 = vmatpush.xpose.msra.mxu0 %v1208
        %3160 = vmatmul.f32.gmra.mxu0 %v3032
        %v3161 = vpop.f32.mrf.mxu0
        %v3162 = vadd.f32 0.0, %v3161
        %3163 = vmatmul.f32.gmra.mxu0 %v3035
        %v3164 = vpop.f32.mrf.mxu0
        %v3165 = vadd.f32 0.0, %v3164
        %3166 = vmatmul.f32.gmra.mxu0 %v3038
        %v3167 = vpop.f32.mrf.mxu0
        %v3168 = vadd.f32 0.0, %v3167
        %3169 = vmatmul.f32.gmra.mxu0 %v3041
        %v3170 = vpop.f32.mrf.mxu0
        %v3171 = vadd.f32 0.0, %v3170
        %3172 = vmatmul.f32.gmra.mxu0 %v3044
        %v3173 = vpop.f32.mrf.mxu0
        %v3174 = vadd.f32 0.0, %v3173
        %3175 = vmatmul.f32.gmra.mxu0 %v3047
        %v3176 = vpop.f32.mrf.mxu0
        %v3177 = vadd.f32 0.0, %v3176
        %3178 = vmatmul.f32.gmra.mxu0 %v3050
        %v3179 = vpop.f32.mrf.mxu0
        %v3180 = vadd.f32 0.0, %v3179
        %3181 = vmatmul.f32.gmra.mxu0 %v3053
        %v3182 = vpop.f32.mrf.mxu0
        %v3183 = vadd.f32 0.0, %v3182
        %3184 = vmatmul.f32.gmra.mxu0 %v3056
        %v3185 = vpop.f32.mrf.mxu0
        %v3186 = vadd.f32 0.0, %v3185
        %3187 = vmatmul.f32.gmra.mxu0 %v3059
        %v3188 = vpop.f32.mrf.mxu0
        %v3189 = vadd.f32 0.0, %v3188
        %3190 = vmatmul.f32.gmra.mxu0 %v3062
        %v3191 = vpop.f32.mrf.mxu0
        %v3192 = vadd.f32 0.0, %v3191
        %3193 = vmatmul.f32.gmra.mxu0 %v3065
        %v3194 = vpop.f32.mrf.mxu0
        %v3195 = vadd.f32 0.0, %v3194
        %3196 = vmatmul.f32.gmra.mxu0 %v3068
        %v3197 = vpop.f32.mrf.mxu0
        %v3198 = vadd.f32 0.0, %v3197
        %3199 = vmatmul.f32.gmra.mxu0 %v3071
        %v3200 = vpop.f32.mrf.mxu0
        %v3201 = vadd.f32 0.0, %v3200
        %3202 = vmatmul.f32.gmra.mxu0 %v3074
        %v3203 = vpop.f32.mrf.mxu0
        %v3204 = vadd.f32 0.0, %v3203
        %3205 = vmatmul.f32.gmra.mxu0 %v3077
        %v3206 = vpop.f32.mrf.mxu0
        %v3207 = vadd.f32 0.0, %v3206
        %3208 = vdwg.mxu0
        %vm3209 = vcmp.gt.f32.partialorder %v3097, %v3162
        %vm3210 = vcmp.gt.f32.partialorder %v3100, %v3165
        %vm3211 = vcmp.gt.f32.partialorder %v3103, %v3168
        %vm3212 = vcmp.gt.f32.partialorder %v3106, %v3171
        %vm3213 = vcmp.gt.f32.partialorder %v3109, %v3174
        %vm3214 = vcmp.gt.f32.partialorder %v3112, %v3177
        %vm3215 = vcmp.gt.f32.partialorder %v3115, %v3180
        %vm3216 = vcmp.gt.f32.partialorder %v3118, %v3183
        %vm3217 = vcmp.gt.f32.partialorder %v3121, %v3186
        %vm3218 = vcmp.gt.f32.partialorder %v3124, %v3189
        %vm3219 = vcmp.gt.f32.partialorder %v3127, %v3192
        %vm3220 = vcmp.gt.f32.partialorder %v3130, %v3195
        %vm3221 = vcmp.gt.f32.partialorder %v3133, %v3198
        %vm3222 = vcmp.gt.f32.partialorder %v3136, %v3201
        %vm3223 = vcmp.gt.f32.partialorder %v3139, %v3204
        %vm3224 = vcmp.gt.f32.partialorder %v3142, %v3207
        %vm3225 = vcmp.eq.f32.partialorder %v3097, %v3162
        %vm3226 = vcmp.eq.f32.partialorder %v3100, %v3165
        %vm3227 = vcmp.eq.f32.partialorder %v3103, %v3168
        %vm3228 = vcmp.eq.f32.partialorder %v3106, %v3171
        %vm3229 = vcmp.eq.f32.partialorder %v3109, %v3174
        %vm3230 = vcmp.eq.f32.partialorder %v3112, %v3177
        %vm3231 = vcmp.eq.f32.partialorder %v3115, %v3180
        %vm3232 = vcmp.eq.f32.partialorder %v3118, %v3183
        %vm3233 = vcmp.eq.f32.partialorder %v3121, %v3186
        %vm3234 = vcmp.eq.f32.partialorder %v3124, %v3189
        %vm3235 = vcmp.eq.f32.partialorder %v3127, %v3192
        %vm3236 = vcmp.eq.f32.partialorder %v3130, %v3195
        %vm3237 = vcmp.eq.f32.partialorder %v3133, %v3198
        %vm3238 = vcmp.eq.f32.partialorder %v3136, %v3201
        %vm3239 = vcmp.eq.f32.partialorder %v3139, %v3204
        %vm3240 = vcmp.eq.f32.partialorder %v3142, %v3207
        %vm3241 = vmand %vm3225, %vm512
        %vm3242 = vmand %vm3226, %vm513
        %vm3243 = vmand %vm3227, %vm514
        %vm3244 = vmand %vm3228, %vm515
        %vm3245 = vmand %vm3229, %vm516
        %vm3246 = vmand %vm3230, %vm517
        %vm3247 = vmand %vm3231, %vm518
        %vm3248 = vmand %vm3232, %vm519
        %vm3249 = vmand %vm3233, %vm520
        %vm3250 = vmand %vm3234, %vm521
        %vm3251 = vmand %vm3235, %vm522
        %vm3252 = vmand %vm3236, %vm523
        %vm3253 = vmand %vm3237, %vm524
        %vm3254 = vmand %vm3238, %vm525
        %vm3255 = vmand %vm3239, %vm526
        %vm3256 = vmand %vm3240, %vm527
        %vm3257 = vmor %vm3209, %vm3241
        %vm3258 = vmor %vm3210, %vm3242
        %vm3259 = vmor %vm3211, %vm3243
        %vm3260 = vmor %vm3212, %vm3244
        %vm3261 = vmor %vm3213, %vm3245
        %vm3262 = vmor %vm3214, %vm3246
        %vm3263 = vmor %vm3215, %vm3247
        %vm3264 = vmor %vm3216, %vm3248
        %vm3265 = vmor %vm3217, %vm3249
        %vm3266 = vmor %vm3218, %vm3250
        %vm3267 = vmor %vm3219, %vm3251
        %vm3268 = vmor %vm3220, %vm3252
        %vm3269 = vmor %vm3221, %vm3253
        %vm3270 = vmor %vm3222, %vm3254
        %vm3271 = vmor %vm3223, %vm3255
        %vm3272 = vmor %vm3224, %vm3256
        %v3273 = vsel %vm3257, 1.0, 0.0
        %v3274 = vsel %vm3258, 1.0, 0.0
        %v3275 = vsel %vm3259, 1.0, 0.0
        %v3276 = vsel %vm3260, 1.0, 0.0
        %v3277 = vsel %vm3261, 1.0, 0.0
        %v3278 = vsel %vm3262, 1.0, 0.0
        %v3279 = vsel %vm3263, 1.0, 0.0
        %v3280 = vsel %vm3264, 1.0, 0.0
        %v3281 = vsel %vm3265, 1.0, 0.0
        %v3282 = vsel %vm3266, 1.0, 0.0
        %v3283 = vsel %vm3267, 1.0, 0.0
        %v3284 = vsel %vm3268, 1.0, 0.0
        %v3285 = vsel %vm3269, 1.0, 0.0
        %v3286 = vsel %vm3270, 1.0, 0.0
        %v3287 = vsel %vm3271, 1.0, 0.0
        %v3288 = vsel %vm3272, 1.0, 0.0
        %v3289 = vmul.f32 %v1805, %v3273
        %v3290 = vmul.f32 %v1806, %v3274
        %v3291 = vmul.f32 %v1807, %v3275
        %v3292 = vmul.f32 %v1808, %v3276
        %v3293 = vmul.f32 %v1809, %v3277
        %v3294 = vmul.f32 %v1810, %v3278
        %v3295 = vmul.f32 %v1811, %v3279
        %v3296 = vmul.f32 %v1812, %v3280
        %v3297 = vmul.f32 %v1813, %v3281
        %v3298 = vmul.f32 %v1814, %v3282
        %v3299 = vmul.f32 %v1815, %v3283
        %v3300 = vmul.f32 %v1816, %v3284
        %v3301 = vmul.f32 %v1817, %v3285
        %v3302 = vmul.f32 %v1818, %v3286
        %v3303 = vmul.f32 %v1819, %v3287
        %v3304 = vmul.f32 %v1820, %v3288
        %3305 = vadd.xlane.f32.xlu0 %v3289
        %v3306 = vpop.xlane.xlu0 %3305
        %3307 = vadd.xlane.f32.xlu0 %v3290
        %v3308 = vpop.xlane.xlu0 %3307
        %3309 = vadd.xlane.f32.xlu0 %v3291
        %v3310 = vpop.xlane.xlu0 %3309
        %3311 = vadd.xlane.f32.xlu0 %v3292
        %v3312 = vpop.xlane.xlu0 %3311
        %3313 = vadd.xlane.f32.xlu0 %v3293
        %v3314 = vpop.xlane.xlu0 %3313
        %3315 = vadd.xlane.f32.xlu0 %v3294
        %v3316 = vpop.xlane.xlu0 %3315
        %3317 = vadd.xlane.f32.xlu0 %v3295
        %v3318 = vpop.xlane.xlu0 %3317
        %3319 = vadd.xlane.f32.xlu0 %v3296
        %v3320 = vpop.xlane.xlu0 %3319
        %3321 = vadd.xlane.f32.xlu0 %v3297
        %v3322 = vpop.xlane.xlu0 %3321
        %3323 = vadd.xlane.f32.xlu0 %v3298
        %v3324 = vpop.xlane.xlu0 %3323
        %3325 = vadd.xlane.f32.xlu0 %v3299
        %v3326 = vpop.xlane.xlu0 %3325
        %3327 = vadd.xlane.f32.xlu0 %v3300
        %v3328 = vpop.xlane.xlu0 %3327
        %3329 = vadd.xlane.f32.xlu0 %v3301
        %v3330 = vpop.xlane.xlu0 %3329
        %3331 = vadd.xlane.f32.xlu0 %v3302
        %v3332 = vpop.xlane.xlu0 %3331
        %3333 = vadd.xlane.f32.xlu0 %v3303
        %v3334 = vpop.xlane.xlu0 %3333
        %3335 = vadd.xlane.f32.xlu0 %v3304
        %v3336 = vpop.xlane.xlu0 %3335
        %3337 = vadd.xlane.f32.xlu0 %v1805
        %v3338 = vpop.xlane.xlu0 %3337
        %3339 = vadd.xlane.f32.xlu0 %v1806
        %v3340 = vpop.xlane.xlu0 %3339
        %3341 = vadd.xlane.f32.xlu0 %v1807
        %v3342 = vpop.xlane.xlu0 %3341
        %3343 = vadd.xlane.f32.xlu0 %v1808
        %v3344 = vpop.xlane.xlu0 %3343
        %3345 = vadd.xlane.f32.xlu0 %v1809
        %v3346 = vpop.xlane.xlu0 %3345
        %3347 = vadd.xlane.f32.xlu0 %v1810
        %v3348 = vpop.xlane.xlu0 %3347
        %3349 = vadd.xlane.f32.xlu0 %v1811
        %v3350 = vpop.xlane.xlu0 %3349
        %3351 = vadd.xlane.f32.xlu0 %v1812
        %v3352 = vpop.xlane.xlu0 %3351
        %3353 = vadd.xlane.f32.xlu0 %v1813
        %v3354 = vpop.xlane.xlu0 %3353
        %3355 = vadd.xlane.f32.xlu0 %v1814
        %v3356 = vpop.xlane.xlu0 %3355
        %3357 = vadd.xlane.f32.xlu0 %v1815
        %v3358 = vpop.xlane.xlu0 %3357
        %3359 = vadd.xlane.f32.xlu0 %v1816
        %v3360 = vpop.xlane.xlu0 %3359
        %3361 = vadd.xlane.f32.xlu0 %v1817
        %v3362 = vpop.xlane.xlu0 %3361
        %3363 = vadd.xlane.f32.xlu0 %v1818
        %v3364 = vpop.xlane.xlu0 %3363
        %3365 = vadd.xlane.f32.xlu0 %v1819
        %v3366 = vpop.xlane.xlu0 %3365
        %3367 = vadd.xlane.f32.xlu0 %v1820
        %v3368 = vpop.xlane.xlu0 %3367
        %v3369 = vmul.f32 %v3338, 0.8
        %v3370 = vmul.f32 %v3340, 0.8
        %v3371 = vmul.f32 %v3342, 0.8
        %v3372 = vmul.f32 %v3344, 0.8
        %v3373 = vmul.f32 %v3346, 0.8
        %v3374 = vmul.f32 %v3348, 0.8
        %v3375 = vmul.f32 %v3350, 0.8
        %v3376 = vmul.f32 %v3352, 0.8
        %v3377 = vmul.f32 %v3354, 0.8
        %v3378 = vmul.f32 %v3356, 0.8
        %v3379 = vmul.f32 %v3358, 0.8
        %v3380 = vmul.f32 %v3360, 0.8
        %v3381 = vmul.f32 %v3362, 0.8
        %v3382 = vmul.f32 %v3364, 0.8
        %v3383 = vmul.f32 %v3366, 0.8
        %v3384 = vmul.f32 %v3368, 0.8
        %v3385 = vceil.f32 %v3369
        %v3386 = vceil.f32 %v3370
        %v3387 = vceil.f32 %v3371
        %v3388 = vceil.f32 %v3372
        %v3389 = vceil.f32 %v3373
        %v3390 = vceil.f32 %v3374
        %v3391 = vceil.f32 %v3375
        %v3392 = vceil.f32 %v3376
        %v3393 = vceil.f32 %v3377
        %v3394 = vceil.f32 %v3378
        %v3395 = vceil.f32 %v3379
        %v3396 = vceil.f32 %v3380
        %v3397 = vceil.f32 %v3381
        %v3398 = vceil.f32 %v3382
        %v3399 = vceil.f32 %v3383
        %v3400 = vceil.f32 %v3384
        %vm3401 = vcmp.lt.f32.partialorder %v3306, %v3385
        %vm3402 = vcmp.lt.f32.partialorder %v3308, %v3386
        %vm3403 = vcmp.lt.f32.partialorder %v3310, %v3387
        %vm3404 = vcmp.lt.f32.partialorder %v3312, %v3388
        %vm3405 = vcmp.lt.f32.partialorder %v3314, %v3389
        %vm3406 = vcmp.lt.f32.partialorder %v3316, %v3390
        %vm3407 = vcmp.lt.f32.partialorder %v3318, %v3391
        %vm3408 = vcmp.lt.f32.partialorder %v3320, %v3392
        %vm3409 = vcmp.lt.f32.partialorder %v3322, %v3393
        %vm3410 = vcmp.lt.f32.partialorder %v3324, %v3394
        %vm3411 = vcmp.lt.f32.partialorder %v3326, %v3395
        %vm3412 = vcmp.lt.f32.partialorder %v3328, %v3396
        %vm3413 = vcmp.lt.f32.partialorder %v3330, %v3397
        %vm3414 = vcmp.lt.f32.partialorder %v3332, %v3398
        %vm3415 = vcmp.lt.f32.partialorder %v3334, %v3399
        %vm3416 = vcmp.lt.f32.partialorder %v3336, %v3400
        %vm3417 = vmand %vm2999, %vm3401
        %vm3418 = vmand %vm3000, %vm3402
        %vm3419 = vmand %vm3001, %vm3403
        %vm3420 = vmand %vm3002, %vm3404
        %vm3421 = vmand %vm3003, %vm3405
        %vm3422 = vmand %vm3004, %vm3406
        %vm3423 = vmand %vm3005, %vm3407
        %vm3424 = vmand %vm3006, %vm3408
        %vm3425 = vmand %vm3007, %vm3409
        %vm3426 = vmand %vm3008, %vm3410
        %vm3427 = vmand %vm3009, %vm3411
        %vm3428 = vmand %vm3010, %vm3412
        %vm3429 = vmand %vm3011, %vm3413
        %vm3430 = vmand %vm3012, %vm3414
        %vm3431 = vmand %vm3013, %vm3415
        %vm3432 = vmand %vm3014, %vm3416
        %v3433 = vsel %vm3417, 1, 0
        %v3434 = vsel %vm3418, 1, 0
        %v3435 = vsel %vm3419, 1, 0
        %v3436 = vsel %vm3420, 1, 0
        %v3437 = vsel %vm3421, 1, 0
        %v3438 = vsel %vm3422, 1, 0
        %v3439 = vsel %vm3423, 1, 0
        %v3440 = vsel %vm3424, 1, 0
        %v3441 = vsel %vm3425, 1, 0
        %v3442 = vsel %vm3426, 1, 0
        %v3443 = vsel %vm3427, 1, 0
        %v3444 = vsel %vm3428, 1, 0
        %v3445 = vsel %vm3429, 1, 0
        %v3446 = vsel %vm3430, 1, 0
        %v3447 = vsel %vm3431, 1, 0
        %v3448 = vsel %vm3432, 1, 0
        %v3449 = vcvt.s32.f32 %v3433
        %v3450 = vcvt.s32.f32 %v3434
        %v3451 = vcvt.s32.f32 %v3435
        %v3452 = vcvt.s32.f32 %v3436
        %v3453 = vcvt.s32.f32 %v3437
        %v3454 = vcvt.s32.f32 %v3438
        %v3455 = vcvt.s32.f32 %v3439
        %v3456 = vcvt.s32.f32 %v3440
        %v3457 = vcvt.s32.f32 %v3441
        %v3458 = vcvt.s32.f32 %v3442
        %v3459 = vcvt.s32.f32 %v3443
        %v3460 = vcvt.s32.f32 %v3444
        %v3461 = vcvt.s32.f32 %v3445
        %v3462 = vcvt.s32.f32 %v3446
        %v3463 = vcvt.s32.f32 %v3447
        %v3464 = vcvt.s32.f32 %v3448
        %v3465 = vmul.f32 %v2983, %v3449
        %v3466 = vmul.f32 %v2984, %v3450
        %v3467 = vmul.f32 %v2985, %v3451
        %v3468 = vmul.f32 %v2986, %v3452
        %v3469 = vmul.f32 %v2987, %v3453
        %v3470 = vmul.f32 %v2988, %v3454
        %v3471 = vmul.f32 %v2989, %v3455
        %v3472 = vmul.f32 %v2990, %v3456
        %v3473 = vmul.f32 %v2991, %v3457
        %v3474 = vmul.f32 %v2992, %v3458
        %v3475 = vmul.f32 %v2993, %v3459
        %v3476 = vmul.f32 %v2994, %v3460
        %v3477 = vmul.f32 %v2995, %v3461
        %v3478 = vmul.f32 %v2996, %v3462
        %v3479 = vmul.f32 %v2997, %v3463
        %v3480 = vmul.f32 %v2998, %v3464
        %v3481 = vmul.f32 %v2918, %v3465
        %v3482 = vmul.f32 %v2919, %v3466
        %v3483 = vmul.f32 %v2920, %v3467
        %v3484 = vmul.f32 %v2921, %v3468
        %v3485 = vmul.f32 %v2922, %v3469
        %v3486 = vmul.f32 %v2923, %v3470
        %v3487 = vmul.f32 %v2924, %v3471
        %v3488 = vmul.f32 %v2925, %v3472
        %v3489 = vmul.f32 %v2926, %v3473
        %v3490 = vmul.f32 %v2927, %v3474
        %v3491 = vmul.f32 %v2928, %v3475
        %v3492 = vmul.f32 %v2929, %v3476
        %v3493 = vmul.f32 %v2930, %v3477
        %v3494 = vmul.f32 %v2931, %v3478
        %v3495 = vmul.f32 %v2932, %v3479
        %v3496 = vmul.f32 %v2933, %v3480
        %v3498 = vsel %vm1206, %v3449, 0
        %v3501 = vsel %vm1206, %v3450, 0
        %v3504 = vsel %vm1206, %v3451, 0
        %v3507 = vsel %vm1206, %v3452, 0
        %v3510 = vsel %vm1206, %v3453, 0
        %v3513 = vsel %vm1206, %v3454, 0
        %v3516 = vsel %vm1206, %v3455, 0
        %v3519 = vsel %vm1206, %v3456, 0
        %v3522 = vsel %vm1206, %v3457, 0
        %v3525 = vsel %vm1206, %v3458, 0
        %v3528 = vsel %vm1206, %v3459, 0
        %v3531 = vsel %vm1206, %v3460, 0
        %v3534 = vsel %vm1206, %v3461, 0
        %v3537 = vsel %vm1206, %v3462, 0
        %v3540 = vsel %vm1206, %v3463, 0
        %v3543 = vsel %vm1206, %v3464, 0
        %3545 = vmatpush.xpose.msra.mxu0 %v3543
        %3546 = vmatpush.xpose.msra.mxu0 %v3540
        %3547 = vmatpush.xpose.msra.mxu0 %v3537
        %3548 = vmatpush.xpose.msra.mxu0 %v3534
        %3549 = vmatpush.xpose.msra.mxu0 %v3531
        %3550 = vmatpush.xpose.msra.mxu0 %v3528
        %3551 = vmatpush.xpose.msra.mxu0 %v3525
        %3552 = vmatpush.xpose.msra.mxu0 %v3522
        %3553 = vmatpush.xpose.msra.mxu0 %v3519
        %3554 = vmatpush.xpose.msra.mxu0 %v3516
        %3555 = vmatpush.xpose.msra.mxu0 %v3513
        %3556 = vmatpush.xpose.msra.mxu0 %v3510
        %3557 = vmatpush.xpose.msra.mxu0 %v3507
        %3558 = vmatpush.xpose.msra.mxu0 %v3504
        %3559 = vmatpush.xpose.msra.mxu0 %v3501
        %3560 = vmatpush.xpose.msra.mxu0 %v3498
        %3561 = vmatmul.f32.gmra.mxu0 %v3498
        %v3562 = vpop.f32.mrf.mxu0
        %v3563 = vadd.f32 0.0, %v3562
        %3564 = vmatmul.f32.gmra.mxu0 %v3501
        %v3565 = vpop.f32.mrf.mxu0
        %v3566 = vadd.f32 0.0, %v3565
        %3567 = vmatmul.f32.gmra.mxu0 %v3504
        %v3568 = vpop.f32.mrf.mxu0
        %v3569 = vadd.f32 0.0, %v3568
        %3570 = vmatmul.f32.gmra.mxu0 %v3507
        %v3571 = vpop.f32.mrf.mxu0
        %v3572 = vadd.f32 0.0, %v3571
        %3573 = vmatmul.f32.gmra.mxu0 %v3510
        %v3574 = vpop.f32.mrf.mxu0
        %v3575 = vadd.f32 0.0, %v3574
        %3576 = vmatmul.f32.gmra.mxu0 %v3513
        %v3577 = vpop.f32.mrf.mxu0
        %v3578 = vadd.f32 0.0, %v3577
        %3579 = vmatmul.f32.gmra.mxu0 %v3516
        %v3580 = vpop.f32.mrf.mxu0
        %v3581 = vadd.f32 0.0, %v3580
        %3582 = vmatmul.f32.gmra.mxu0 %v3519
        %v3583 = vpop.f32.mrf.mxu0
        %v3584 = vadd.f32 0.0, %v3583
        %3585 = vmatmul.f32.gmra.mxu0 %v3522
        %v3586 = vpop.f32.mrf.mxu0
        %v3587 = vadd.f32 0.0, %v3586
        %3588 = vmatmul.f32.gmra.mxu0 %v3525
        %v3589 = vpop.f32.mrf.mxu0
        %v3590 = vadd.f32 0.0, %v3589
        %3591 = vmatmul.f32.gmra.mxu0 %v3528
        %v3592 = vpop.f32.mrf.mxu0
        %v3593 = vadd.f32 0.0, %v3592
        %3594 = vmatmul.f32.gmra.mxu0 %v3531
        %v3595 = vpop.f32.mrf.mxu0
        %v3596 = vadd.f32 0.0, %v3595
        %3597 = vmatmul.f32.gmra.mxu0 %v3534
        %v3598 = vpop.f32.mrf.mxu0
        %v3599 = vadd.f32 0.0, %v3598
        %3600 = vmatmul.f32.gmra.mxu0 %v3537
        %v3601 = vpop.f32.mrf.mxu0
        %v3602 = vadd.f32 0.0, %v3601
        %3603 = vmatmul.f32.gmra.mxu0 %v3540
        %v3604 = vpop.f32.mrf.mxu0
        %v3605 = vadd.f32 0.0, %v3604
        %3606 = vmatmul.f32.gmra.mxu0 %v3543
        %v3607 = vpop.f32.mrf.mxu0
        %v3608 = vadd.f32 0.0, %v3607
        %3609 = vdwg.mxu0
        %v3610 = vmul.f32 %v1789, %v3563
        %v3611 = vmul.f32 %v1790, %v3566
        %v3612 = vmul.f32 %v1791, %v3569
        %v3613 = vmul.f32 %v1792, %v3572
        %v3614 = vmul.f32 %v1793, %v3575
        %v3615 = vmul.f32 %v1794, %v3578
        %v3616 = vmul.f32 %v1795, %v3581
        %v3617 = vmul.f32 %v1796, %v3584
        %v3618 = vmul.f32 %v1797, %v3587
        %v3619 = vmul.f32 %v1798, %v3590
        %v3620 = vmul.f32 %v1799, %v3593
        %v3621 = vmul.f32 %v1800, %v3596
        %v3622 = vmul.f32 %v1801, %v3599
        %v3623 = vmul.f32 %v1802, %v3602
        %v3624 = vmul.f32 %v1803, %v3605
        %v3625 = vmul.f32 %v1804, %v3608
        %v3626 = vmul.f32 %v1805, %v3563
        %v3627 = vmul.f32 %v1806, %v3566
        %v3628 = vmul.f32 %v1807, %v3569
        %v3629 = vmul.f32 %v1808, %v3572
        %v3630 = vmul.f32 %v1809, %v3575
        %v3631 = vmul.f32 %v1810, %v3578
        %v3632 = vmul.f32 %v1811, %v3581
        %v3633 = vmul.f32 %v1812, %v3584
        %v3634 = vmul.f32 %v1813, %v3587
        %v3635 = vmul.f32 %v1814, %v3590
        %v3636 = vmul.f32 %v1815, %v3593
        %v3637 = vmul.f32 %v1816, %v3596
        %v3638 = vmul.f32 %v1817, %v3599
        %v3639 = vmul.f32 %v1818, %v3602
        %v3640 = vmul.f32 %v1819, %v3605
        %v3641 = vmul.f32 %v1820, %v3608
        %3642 = vmatpush.msra.mxu0 %v3464
        %3643 = vmatpush.msra.mxu0 %v3463
        %3644 = vmatpush.msra.mxu0 %v3462
        %3645 = vmatpush.msra.mxu0 %v3461
        %3646 = vmatpush.msra.mxu0 %v3460
        %3647 = vmatpush.msra.mxu0 %v3459
        %3648 = vmatpush.msra.mxu0 %v3458
        %3649 = vmatpush.msra.mxu0 %v3457
        %3650 = vmatpush.msra.mxu0 %v3456
        %3651 = vmatpush.msra.mxu0 %v3455
        %3652 = vmatpush.msra.mxu0 %v3454
        %3653 = vmatpush.msra.mxu0 %v3453
        %3654 = vmatpush.msra.mxu0 %v3452
        %3655 = vmatpush.msra.mxu0 %v3451
        %3656 = vmatpush.msra.mxu0 %v3450
        %3657 = vmatpush.msra.mxu0 %v3449
        %3658 = vmatmul.f32.gmra.mxu0 %v348
        %v3659 = vpop.f32.mrf.mxu0
        %v3660 = vadd.f32 0.0, %v3659
        %3661 = vmatmul.f32.gmra.mxu0 %v349
        %v3662 = vpop.f32.mrf.mxu0
        %v3663 = vadd.f32 0.0, %v3662
        %3664 = vmatmul.f32.gmra.mxu0 %v350
        %v3665 = vpop.f32.mrf.mxu0
        %v3666 = vadd.f32 0.0, %v3665
        %3667 = vmatmul.f32.gmra.mxu0 %v351
        %v3668 = vpop.f32.mrf.mxu0
        %v3669 = vadd.f32 0.0, %v3668
        %3670 = vmatmul.f32.gmra.mxu0 %v352
        %v3671 = vpop.f32.mrf.mxu0
        %v3672 = vadd.f32 0.0, %v3671
        %3673 = vmatmul.f32.gmra.mxu0 %v353
        %v3674 = vpop.f32.mrf.mxu0
        %v3675 = vadd.f32 0.0, %v3674
        %3676 = vmatmul.f32.gmra.mxu0 %v354
        %v3677 = vpop.f32.mrf.mxu0
        %v3678 = vadd.f32 0.0, %v3677
        %3679 = vmatmul.f32.gmra.mxu0 %v355
        %v3680 = vpop.f32.mrf.mxu0
        %v3681 = vadd.f32 0.0, %v3680
        %3682 = vmatmul.f32.gmra.mxu0 %v356
        %v3683 = vpop.f32.mrf.mxu0
        %v3684 = vadd.f32 0.0, %v3683
        %3685 = vmatmul.f32.gmra.mxu0 %v357
        %v3686 = vpop.f32.mrf.mxu0
        %v3687 = vadd.f32 0.0, %v3686
        %3688 = vmatmul.f32.gmra.mxu0 %v358
        %v3689 = vpop.f32.mrf.mxu0
        %v3690 = vadd.f32 0.0, %v3689
        %3691 = vmatmul.f32.gmra.mxu0 %v359
        %v3692 = vpop.f32.mrf.mxu0
        %v3693 = vadd.f32 0.0, %v3692
        %3694 = vmatmul.f32.gmra.mxu0 %v360
        %v3695 = vpop.f32.mrf.mxu0
        %v3696 = vadd.f32 0.0, %v3695
        %3697 = vmatmul.f32.gmra.mxu0 %v361
        %v3698 = vpop.f32.mrf.mxu0
        %v3699 = vadd.f32 0.0, %v3698
        %3700 = vmatmul.f32.gmra.mxu0 %v362
        %v3701 = vpop.f32.mrf.mxu0
        %v3702 = vadd.f32 0.0, %v3701
        %3703 = vmatmul.f32.gmra.mxu0 %v363
        %v3704 = vpop.f32.mrf.mxu0
        %v3705 = vadd.f32 0.0, %v3704
        %3706 = vdwg.mxu0
        %vm3707 = vcmp.gt.f32.partialorder %v3660, 0.0
        %vm3708 = vcmp.gt.f32.partialorder %v3663, 0.0
        %vm3709 = vcmp.gt.f32.partialorder %v3666, 0.0
        %vm3710 = vcmp.gt.f32.partialorder %v3669, 0.0
        %vm3711 = vcmp.gt.f32.partialorder %v3672, 0.0
        %vm3712 = vcmp.gt.f32.partialorder %v3675, 0.0
        %vm3713 = vcmp.gt.f32.partialorder %v3678, 0.0
        %vm3714 = vcmp.gt.f32.partialorder %v3681, 0.0
        %vm3715 = vcmp.gt.f32.partialorder %v3684, 0.0
        %vm3716 = vcmp.gt.f32.partialorder %v3687, 0.0
        %vm3717 = vcmp.gt.f32.partialorder %v3690, 0.0
        %vm3718 = vcmp.gt.f32.partialorder %v3693, 0.0
        %vm3719 = vcmp.gt.f32.partialorder %v3696, 0.0
        %vm3720 = vcmp.gt.f32.partialorder %v3699, 0.0
        %vm3721 = vcmp.gt.f32.partialorder %v3702, 0.0
        %vm3722 = vcmp.gt.f32.partialorder %v3705, 0.0
        %v3723 = vmax.f32 %v3660, 1.0
        %v3724 = vmax.f32 %v3663, 1.0
        %v3725 = vmax.f32 %v3666, 1.0
        %v3726 = vmax.f32 %v3669, 1.0
        %v3727 = vmax.f32 %v3672, 1.0
        %v3728 = vmax.f32 %v3675, 1.0
        %v3729 = vmax.f32 %v3678, 1.0
        %v3730 = vmax.f32 %v3681, 1.0
        %v3731 = vmax.f32 %v3684, 1.0
        %v3732 = vmax.f32 %v3687, 1.0
        %v3733 = vmax.f32 %v3690, 1.0
        %v3734 = vmax.f32 %v3693, 1.0
        %v3735 = vmax.f32 %v3696, 1.0
        %v3736 = vmax.f32 %v3699, 1.0
        %v3737 = vmax.f32 %v3702, 1.0
        %v3738 = vmax.f32 %v3705, 1.0
        %v3739 = vrcp.pop %v3723
        %v3740 = vmul.f32 %v3723, %v3739
        %v3741 = vsub.f32 1.0, %v3740
        %v3742 = vmul.f32 %v3739, %v3741
        %v3743 = vadd.f32 %v3739, %v3742
        %vm3744 = vweird.f32 %v3723
        %vm3745 = vweird.f32 %v3739
        %vm3746 = vmor %vm3744, %vm3745
        %v3747 = vsel %vm3746, %v3739, %v3743
        %v3748 = vand.u32 2147483647, %v3723
        %vm3749 = vcmp.eq.f32.partialorder %v3748, 8.507059e+37
        %v3750 = vand.u32 %v3723, 2147483648
        %v3751 = vor.u32 1.1754944e-38, %v3750
        %v3752 = vsel %vm3749, %v3751, %v3747
        %v3753 = vmul.f32 1.0, %v3752
        %v3754 = vrcp.pop %v3724
        %v3755 = vmul.f32 %v3724, %v3754
        %v3756 = vsub.f32 1.0, %v3755
        %v3757 = vmul.f32 %v3754, %v3756
        %v3758 = vadd.f32 %v3754, %v3757
        %vm3759 = vweird.f32 %v3724
        %vm3760 = vweird.f32 %v3754
        %vm3761 = vmor %vm3759, %vm3760
        %v3762 = vsel %vm3761, %v3754, %v3758
        %v3763 = vand.u32 2147483647, %v3724
        %vm3764 = vcmp.eq.f32.partialorder %v3763, 8.507059e+37
        %v3765 = vand.u32 %v3724, 2147483648
        %v3766 = vor.u32 1.1754944e-38, %v3765
        %v3767 = vsel %vm3764, %v3766, %v3762
        %v3768 = vmul.f32 1.0, %v3767
        %v3769 = vrcp.pop %v3725
        %v3770 = vmul.f32 %v3725, %v3769
        %v3771 = vsub.f32 1.0, %v3770
        %v3772 = vmul.f32 %v3769, %v3771
        %v3773 = vadd.f32 %v3769, %v3772
        %vm3774 = vweird.f32 %v3725
        %vm3775 = vweird.f32 %v3769
        %vm3776 = vmor %vm3774, %vm3775
        %v3777 = vsel %vm3776, %v3769, %v3773
        %v3778 = vand.u32 2147483647, %v3725
        %vm3779 = vcmp.eq.f32.partialorder %v3778, 8.507059e+37
        %v3780 = vand.u32 %v3725, 2147483648
        %v3781 = vor.u32 1.1754944e-38, %v3780
        %v3782 = vsel %vm3779, %v3781, %v3777
        %v3783 = vmul.f32 1.0, %v3782
        %v3784 = vrcp.pop %v3726
        %v3785 = vmul.f32 %v3726, %v3784
        %v3786 = vsub.f32 1.0, %v3785
        %v3787 = vmul.f32 %v3784, %v3786
        %v3788 = vadd.f32 %v3784, %v3787
        %vm3789 = vweird.f32 %v3726
        %vm3790 = vweird.f32 %v3784
        %vm3791 = vmor %vm3789, %vm3790
        %v3792 = vsel %vm3791, %v3784, %v3788
        %v3793 = vand.u32 2147483647, %v3726
        %vm3794 = vcmp.eq.f32.partialorder %v3793, 8.507059e+37
        %v3795 = vand.u32 %v3726, 2147483648
        %v3796 = vor.u32 1.1754944e-38, %v3795
        %v3797 = vsel %vm3794, %v3796, %v3792
        %v3798 = vmul.f32 1.0, %v3797
        %v3799 = vrcp.pop %v3727
        %v3800 = vmul.f32 %v3727, %v3799
        %v3801 = vsub.f32 1.0, %v3800
        %v3802 = vmul.f32 %v3799, %v3801
        %v3803 = vadd.f32 %v3799, %v3802
        %vm3804 = vweird.f32 %v3727
        %vm3805 = vweird.f32 %v3799
        %vm3806 = vmor %vm3804, %vm3805
        %v3807 = vsel %vm3806, %v3799, %v3803
        %v3808 = vand.u32 2147483647, %v3727
        %vm3809 = vcmp.eq.f32.partialorder %v3808, 8.507059e+37
        %v3810 = vand.u32 %v3727, 2147483648
        %v3811 = vor.u32 1.1754944e-38, %v3810
        %v3812 = vsel %vm3809, %v3811, %v3807
        %v3813 = vmul.f32 1.0, %v3812
        %v3814 = vrcp.pop %v3728
        %v3815 = vmul.f32 %v3728, %v3814
        %v3816 = vsub.f32 1.0, %v3815
        %v3817 = vmul.f32 %v3814, %v3816
        %v3818 = vadd.f32 %v3814, %v3817
        %vm3819 = vweird.f32 %v3728
        %vm3820 = vweird.f32 %v3814
        %vm3821 = vmor %vm3819, %vm3820
        %v3822 = vsel %vm3821, %v3814, %v3818
        %v3823 = vand.u32 2147483647, %v3728
        %vm3824 = vcmp.eq.f32.partialorder %v3823, 8.507059e+37
        %v3825 = vand.u32 %v3728, 2147483648
        %v3826 = vor.u32 1.1754944e-38, %v3825
        %v3827 = vsel %vm3824, %v3826, %v3822
        %v3828 = vmul.f32 1.0, %v3827
        %v3829 = vrcp.pop %v3729
        %v3830 = vmul.f32 %v3729, %v3829
        %v3831 = vsub.f32 1.0, %v3830
        %v3832 = vmul.f32 %v3829, %v3831
        %v3833 = vadd.f32 %v3829, %v3832
        %vm3834 = vweird.f32 %v3729
        %vm3835 = vweird.f32 %v3829
        %vm3836 = vmor %vm3834, %vm3835
        %v3837 = vsel %vm3836, %v3829, %v3833
        %v3838 = vand.u32 2147483647, %v3729
        %vm3839 = vcmp.eq.f32.partialorder %v3838, 8.507059e+37
        %v3840 = vand.u32 %v3729, 2147483648
        %v3841 = vor.u32 1.1754944e-38, %v3840
        %v3842 = vsel %vm3839, %v3841, %v3837
        %v3843 = vmul.f32 1.0, %v3842
        %v3844 = vrcp.pop %v3730
        %v3845 = vmul.f32 %v3730, %v3844
        %v3846 = vsub.f32 1.0, %v3845
        %v3847 = vmul.f32 %v3844, %v3846
        %v3848 = vadd.f32 %v3844, %v3847
        %vm3849 = vweird.f32 %v3730
        %vm3850 = vweird.f32 %v3844
        %vm3851 = vmor %vm3849, %vm3850
        %v3852 = vsel %vm3851, %v3844, %v3848
        %v3853 = vand.u32 2147483647, %v3730
        %vm3854 = vcmp.eq.f32.partialorder %v3853, 8.507059e+37
        %v3855 = vand.u32 %v3730, 2147483648
        %v3856 = vor.u32 1.1754944e-38, %v3855
        %v3857 = vsel %vm3854, %v3856, %v3852
        %v3858 = vmul.f32 1.0, %v3857
        %v3859 = vrcp.pop %v3731
        %v3860 = vmul.f32 %v3731, %v3859
        %v3861 = vsub.f32 1.0, %v3860
        %v3862 = vmul.f32 %v3859, %v3861
        %v3863 = vadd.f32 %v3859, %v3862
        %vm3864 = vweird.f32 %v3731
        %vm3865 = vweird.f32 %v3859
        %vm3866 = vmor %vm3864, %vm3865
        %v3867 = vsel %vm3866, %v3859, %v3863
        %v3868 = vand.u32 2147483647, %v3731
        %vm3869 = vcmp.eq.f32.partialorder %v3868, 8.507059e+37
        %v3870 = vand.u32 %v3731, 2147483648
        %v3871 = vor.u32 1.1754944e-38, %v3870
        %v3872 = vsel %vm3869, %v3871, %v3867
        %v3873 = vmul.f32 1.0, %v3872
        %v3874 = vrcp.pop %v3732
        %v3875 = vmul.f32 %v3732, %v3874
        %v3876 = vsub.f32 1.0, %v3875
        %v3877 = vmul.f32 %v3874, %v3876
        %v3878 = vadd.f32 %v3874, %v3877
        %vm3879 = vweird.f32 %v3732
        %vm3880 = vweird.f32 %v3874
        %vm3881 = vmor %vm3879, %vm3880
        %v3882 = vsel %vm3881, %v3874, %v3878
        %v3883 = vand.u32 2147483647, %v3732
        %vm3884 = vcmp.eq.f32.partialorder %v3883, 8.507059e+37
        %v3885 = vand.u32 %v3732, 2147483648
        %v3886 = vor.u32 1.1754944e-38, %v3885
        %v3887 = vsel %vm3884, %v3886, %v3882
        %v3888 = vmul.f32 1.0, %v3887
        %v3889 = vrcp.pop %v3733
        %v3890 = vmul.f32 %v3733, %v3889
        %v3891 = vsub.f32 1.0, %v3890
        %v3892 = vmul.f32 %v3889, %v3891
        %v3893 = vadd.f32 %v3889, %v3892
        %vm3894 = vweird.f32 %v3733
        %vm3895 = vweird.f32 %v3889
        %vm3896 = vmor %vm3894, %vm3895
        %v3897 = vsel %vm3896, %v3889, %v3893
        %v3898 = vand.u32 2147483647, %v3733
        %vm3899 = vcmp.eq.f32.partialorder %v3898, 8.507059e+37
        %v3900 = vand.u32 %v3733, 2147483648
        %v3901 = vor.u32 1.1754944e-38, %v3900
        %v3902 = vsel %vm3899, %v3901, %v3897
        %v3903 = vmul.f32 1.0, %v3902
        %v3904 = vrcp.pop %v3734
        %v3905 = vmul.f32 %v3734, %v3904
        %v3906 = vsub.f32 1.0, %v3905
        %v3907 = vmul.f32 %v3904, %v3906
        %v3908 = vadd.f32 %v3904, %v3907
        %vm3909 = vweird.f32 %v3734
        %vm3910 = vweird.f32 %v3904
        %vm3911 = vmor %vm3909, %vm3910
        %v3912 = vsel %vm3911, %v3904, %v3908
        %v3913 = vand.u32 2147483647, %v3734
        %vm3914 = vcmp.eq.f32.partialorder %v3913, 8.507059e+37
        %v3915 = vand.u32 %v3734, 2147483648
        %v3916 = vor.u32 1.1754944e-38, %v3915
        %v3917 = vsel %vm3914, %v3916, %v3912
        %v3918 = vmul.f32 1.0, %v3917
        %v3919 = vrcp.pop %v3735
        %v3920 = vmul.f32 %v3735, %v3919
        %v3921 = vsub.f32 1.0, %v3920
        %v3922 = vmul.f32 %v3919, %v3921
        %v3923 = vadd.f32 %v3919, %v3922
        %vm3924 = vweird.f32 %v3735
        %vm3925 = vweird.f32 %v3919
        %vm3926 = vmor %vm3924, %vm3925
        %v3927 = vsel %vm3926, %v3919, %v3923
        %v3928 = vand.u32 2147483647, %v3735
        %vm3929 = vcmp.eq.f32.partialorder %v3928, 8.507059e+37
        %v3930 = vand.u32 %v3735, 2147483648
        %v3931 = vor.u32 1.1754944e-38, %v3930
        %v3932 = vsel %vm3929, %v3931, %v3927
        %v3933 = vmul.f32 1.0, %v3932
        %v3934 = vrcp.pop %v3736
        %v3935 = vmul.f32 %v3736, %v3934
        %v3936 = vsub.f32 1.0, %v3935
        %v3937 = vmul.f32 %v3934, %v3936
        %v3938 = vadd.f32 %v3934, %v3937
        %vm3939 = vweird.f32 %v3736
        %vm3940 = vweird.f32 %v3934
        %vm3941 = vmor %vm3939, %vm3940
        %v3942 = vsel %vm3941, %v3934, %v3938
        %v3943 = vand.u32 2147483647, %v3736
        %vm3944 = vcmp.eq.f32.partialorder %v3943, 8.507059e+37
        %v3945 = vand.u32 %v3736, 2147483648
        %v3946 = vor.u32 1.1754944e-38, %v3945
        %v3947 = vsel %vm3944, %v3946, %v3942
        %v3948 = vmul.f32 1.0, %v3947
        %v3949 = vrcp.pop %v3737
        %v3950 = vmul.f32 %v3737, %v3949
        %v3951 = vsub.f32 1.0, %v3950
        %v3952 = vmul.f32 %v3949, %v3951
        %v3953 = vadd.f32 %v3949, %v3952
        %vm3954 = vweird.f32 %v3737
        %vm3955 = vweird.f32 %v3949
        %vm3956 = vmor %vm3954, %vm3955
        %v3957 = vsel %vm3956, %v3949, %v3953
        %v3958 = vand.u32 2147483647, %v3737
        %vm3959 = vcmp.eq.f32.partialorder %v3958, 8.507059e+37
        %v3960 = vand.u32 %v3737, 2147483648
        %v3961 = vor.u32 1.1754944e-38, %v3960
        %v3962 = vsel %vm3959, %v3961, %v3957
        %v3963 = vmul.f32 1.0, %v3962
        %v3964 = vrcp.pop %v3738
        %v3965 = vmul.f32 %v3738, %v3964
        %v3966 = vsub.f32 1.0, %v3965
        %v3967 = vmul.f32 %v3964, %v3966
        %v3968 = vadd.f32 %v3964, %v3967
        %vm3969 = vweird.f32 %v3738
        %vm3970 = vweird.f32 %v3964
        %vm3971 = vmor %vm3969, %vm3970
        %v3972 = vsel %vm3971, %v3964, %v3968
        %v3973 = vand.u32 2147483647, %v3738
        %vm3974 = vcmp.eq.f32.partialorder %v3973, 8.507059e+37
        %v3975 = vand.u32 %v3738, 2147483648
        %v3976 = vor.u32 1.1754944e-38, %v3975
        %v3977 = vsel %vm3974, %v3976, %v3972
        %v3978 = vmul.f32 1.0, %v3977
        %v3979 = vsel %vm3707, %v3753, 0.0
        %v3980 = vsel %vm3708, %v3768, 0.0
        %v3981 = vsel %vm3709, %v3783, 0.0
        %v3982 = vsel %vm3710, %v3798, 0.0
        %v3983 = vsel %vm3711, %v3813, 0.0
        %v3984 = vsel %vm3712, %v3828, 0.0
        %v3985 = vsel %vm3713, %v3843, 0.0
        %v3986 = vsel %vm3714, %v3858, 0.0
        %v3987 = vsel %vm3715, %v3873, 0.0
        %v3988 = vsel %vm3716, %v3888, 0.0
        %v3989 = vsel %vm3717, %v3903, 0.0
        %v3990 = vsel %vm3718, %v3918, 0.0
        %v3991 = vsel %vm3719, %v3933, 0.0
        %v3992 = vsel %vm3720, %v3948, 0.0
        %v3993 = vsel %vm3721, %v3963, 0.0
        %v3994 = vsel %vm3722, %v3978, 0.0
        %3995 = vmatpush.msra.mxu0 %v3496
        %3996 = vmatpush.msra.mxu0 %v3495
        %3997 = vmatpush.msra.mxu0 %v3494
        %3998 = vmatpush.msra.mxu0 %v3493
        %3999 = vmatpush.msra.mxu0 %v3492
        %4000 = vmatpush.msra.mxu0 %v3491
        %4001 = vmatpush.msra.mxu0 %v3490
        %4002 = vmatpush.msra.mxu0 %v3489
        %4003 = vmatpush.msra.mxu0 %v3488
        %4004 = vmatpush.msra.mxu0 %v3487
        %4005 = vmatpush.msra.mxu0 %v3486
        %4006 = vmatpush.msra.mxu0 %v3485
        %4007 = vmatpush.msra.mxu0 %v3484
        %4008 = vmatpush.msra.mxu0 %v3483
        %4009 = vmatpush.msra.mxu0 %v3482
        %4010 = vmatpush.msra.mxu0 %v3481
        %4011 = vmatmul.f32.gmra.mxu0 %v348
        %v4012 = vpop.f32.mrf.mxu0
        %v4013 = vadd.f32 0.0, %v4012
        %4014 = vmatmul.f32.gmra.mxu0 %v349
        %v4015 = vpop.f32.mrf.mxu0
        %v4016 = vadd.f32 0.0, %v4015
        %4017 = vmatmul.f32.gmra.mxu0 %v350
        %v4018 = vpop.f32.mrf.mxu0
        %v4019 = vadd.f32 0.0, %v4018
        %4020 = vmatmul.f32.gmra.mxu0 %v351
        %v4021 = vpop.f32.mrf.mxu0
        %v4022 = vadd.f32 0.0, %v4021
        %4023 = vmatmul.f32.gmra.mxu0 %v352
        %v4024 = vpop.f32.mrf.mxu0
        %v4025 = vadd.f32 0.0, %v4024
        %4026 = vmatmul.f32.gmra.mxu0 %v353
        %v4027 = vpop.f32.mrf.mxu0
        %v4028 = vadd.f32 0.0, %v4027
        %4029 = vmatmul.f32.gmra.mxu0 %v354
        %v4030 = vpop.f32.mrf.mxu0
        %v4031 = vadd.f32 0.0, %v4030
        %4032 = vmatmul.f32.gmra.mxu0 %v355
        %v4033 = vpop.f32.mrf.mxu0
        %v4034 = vadd.f32 0.0, %v4033
        %4035 = vmatmul.f32.gmra.mxu0 %v356
        %v4036 = vpop.f32.mrf.mxu0
        %v4037 = vadd.f32 0.0, %v4036
        %4038 = vmatmul.f32.gmra.mxu0 %v357
        %v4039 = vpop.f32.mrf.mxu0
        %v4040 = vadd.f32 0.0, %v4039
        %4041 = vmatmul.f32.gmra.mxu0 %v358
        %v4042 = vpop.f32.mrf.mxu0
        %v4043 = vadd.f32 0.0, %v4042
        %4044 = vmatmul.f32.gmra.mxu0 %v359
        %v4045 = vpop.f32.mrf.mxu0
        %v4046 = vadd.f32 0.0, %v4045
        %4047 = vmatmul.f32.gmra.mxu0 %v360
        %v4048 = vpop.f32.mrf.mxu0
        %v4049 = vadd.f32 0.0, %v4048
        %4050 = vmatmul.f32.gmra.mxu0 %v361
        %v4051 = vpop.f32.mrf.mxu0
        %v4052 = vadd.f32 0.0, %v4051
        %4053 = vmatmul.f32.gmra.mxu0 %v362
        %v4054 = vpop.f32.mrf.mxu0
        %v4055 = vadd.f32 0.0, %v4054
        %4056 = vmatmul.f32.gmra.mxu0 %v363
        %v4057 = vpop.f32.mrf.mxu0
        %v4058 = vadd.f32 0.0, %v4057
        %4059 = vdwg.mxu0
        %4061 = vset.pattern.permute.xlu0 0
        %4062 = vperm.xlu0 %4061, %v3979
        %v4063 = vpop.permute.xlu0 %4062
        %4066 = vset.pattern.permute.xlu0 0
        %4067 = vperm.xlu0 %4066, %v3980
        %v4068 = vpop.permute.xlu0 %4067
        %4071 = vset.pattern.permute.xlu0 0
        %4072 = vperm.xlu0 %4071, %v3981
        %v4073 = vpop.permute.xlu0 %4072
        %4076 = vset.pattern.permute.xlu0 0
        %4077 = vperm.xlu0 %4076, %v3982
        %v4078 = vpop.permute.xlu0 %4077
        %4081 = vset.pattern.permute.xlu0 0
        %4082 = vperm.xlu0 %4081, %v3983
        %v4083 = vpop.permute.xlu0 %4082
        %4086 = vset.pattern.permute.xlu0 0
        %4087 = vperm.xlu0 %4086, %v3984
        %v4088 = vpop.permute.xlu0 %4087
        %4091 = vset.pattern.permute.xlu0 0
        %4092 = vperm.xlu0 %4091, %v3985
        %v4093 = vpop.permute.xlu0 %4092
        %4096 = vset.pattern.permute.xlu0 0
        %4097 = vperm.xlu0 %4096, %v3986
        %v4098 = vpop.permute.xlu0 %4097
        %4101 = vset.pattern.permute.xlu0 0
        %4102 = vperm.xlu0 %4101, %v3987
        %v4103 = vpop.permute.xlu0 %4102
        %4106 = vset.pattern.permute.xlu0 0
        %4107 = vperm.xlu0 %4106, %v3988
        %v4108 = vpop.permute.xlu0 %4107
        %4111 = vset.pattern.permute.xlu0 0
        %4112 = vperm.xlu0 %4111, %v3989
        %v4113 = vpop.permute.xlu0 %4112
        %4116 = vset.pattern.permute.xlu0 0
        %4117 = vperm.xlu0 %4116, %v3990
        %v4118 = vpop.permute.xlu0 %4117
        %4121 = vset.pattern.permute.xlu0 0
        %4122 = vperm.xlu0 %4121, %v3991
        %v4123 = vpop.permute.xlu0 %4122
        %4126 = vset.pattern.permute.xlu0 0
        %4127 = vperm.xlu0 %4126, %v3992
        %v4128 = vpop.permute.xlu0 %4127
        %4131 = vset.pattern.permute.xlu0 0
        %4132 = vperm.xlu0 %4131, %v3993
        %v4133 = vpop.permute.xlu0 %4132
        %4136 = vset.pattern.permute.xlu0 0
        %4137 = vperm.xlu0 %4136, %v3994
        %v4138 = vpop.permute.xlu0 %4137
        %v4140 = vmul.f32 %v4013, %v4063
        %v4141 = vmul.f32 %v4016, %v4068
        %v4142 = vmul.f32 %v4019, %v4073
        %v4143 = vmul.f32 %v4022, %v4078
        %v4144 = vmul.f32 %v4025, %v4083
        %v4145 = vmul.f32 %v4028, %v4088
        %v4146 = vmul.f32 %v4031, %v4093
        %v4147 = vmul.f32 %v4034, %v4098
        %v4148 = vmul.f32 %v4037, %v4103
        %v4149 = vmul.f32 %v4040, %v4108
        %v4150 = vmul.f32 %v4043, %v4113
        %v4151 = vmul.f32 %v4046, %v4118
        %v4152 = vmul.f32 %v4049, %v4123
        %v4153 = vmul.f32 %v4052, %v4128
        %v4154 = vmul.f32 %v4055, %v4133
        %v4155 = vmul.f32 %v4058, %v4138
        %v4156 = vadd.f32 %v2335, %v4140
        %v4157 = vadd.f32 %v2336, %v4141
        %v4158 = vadd.f32 %v2337, %v4142
        %v4159 = vadd.f32 %v2338, %v4143
        %v4160 = vadd.f32 %v2339, %v4144
        %v4161 = vadd.f32 %v2340, %v4145
        %v4162 = vadd.f32 %v2341, %v4146
        %v4163 = vadd.f32 %v2342, %v4147
        %v4164 = vadd.f32 %v2343, %v4148
        %v4165 = vadd.f32 %v2344, %v4149
        %v4166 = vadd.f32 %v2345, %v4150
        %v4167 = vadd.f32 %v2346, %v4151
        %v4168 = vadd.f32 %v2347, %v4152
        %v4169 = vadd.f32 %v2348, %v4153
        %v4170 = vadd.f32 %v2349, %v4154
        %v4171 = vadd.f32 %v2350, %v4155
        %s4172 = scalar_lea.vmem %s3, 512
        %v4173 = vld [vmem:[%s4172] sm:$0xff]
        %v4174 = vld [vmem:[%s4172 + $0x8] sm:$0xff]
        %v4175 = vld [vmem:[%s4172 + $0x10] sm:$0xff]
        %v4176 = vld [vmem:[%s4172 + $0x18] sm:$0xff]
        %v4177 = vld [vmem:[%s4172 + $0x20] sm:$0xff]
        %v4178 = vld [vmem:[%s4172 + $0x28] sm:$0xff]
        %v4179 = vld [vmem:[%s4172 + $0x30] sm:$0xff]
        %v4180 = vld [vmem:[%s4172 + $0x38] sm:$0xff]
        %v4181 = vld [vmem:[%s4172 + $0x40] sm:$0xff]
        %v4182 = vld [vmem:[%s4172 + $0x48] sm:$0xff]
        %v4183 = vld [vmem:[%s4172 + $0x50] sm:$0xff]
        %v4184 = vld [vmem:[%s4172 + $0x58] sm:$0xff]
        %v4185 = vld [vmem:[%s4172 + $0x60] sm:$0xff]
        %v4186 = vld [vmem:[%s4172 + $0x68] sm:$0xff]
        %v4187 = vld [vmem:[%s4172 + $0x70] sm:$0xff]
        %v4188 = vld [vmem:[%s4172 + $0x78] sm:$0xff]
        %v4189 = vld [vmem:[%s4172 + $0x80] sm:$0xff]
        %v4190 = vld [vmem:[%s4172 + $0x88] sm:$0xff]
        %v4191 = vld [vmem:[%s4172 + $0x90] sm:$0xff]
        %v4192 = vld [vmem:[%s4172 + $0x98] sm:$0xff]
        %v4193 = vld [vmem:[%s4172 + $0xa0] sm:$0xff]
        %v4194 = vld [vmem:[%s4172 + $0xa8] sm:$0xff]
        %v4195 = vld [vmem:[%s4172 + $0xb0] sm:$0xff]
        %v4196 = vld [vmem:[%s4172 + $0xb8] sm:$0xff]
        %v4197 = vld [vmem:[%s4172 + $0xc0] sm:$0xff]
        %v4198 = vld [vmem:[%s4172 + $0xc8] sm:$0xff]
        %v4199 = vld [vmem:[%s4172 + $0xd0] sm:$0xff]
        %v4200 = vld [vmem:[%s4172 + $0xd8] sm:$0xff]
        %v4201 = vld [vmem:[%s4172 + $0xe0] sm:$0xff]
        %v4202 = vld [vmem:[%s4172 + $0xe8] sm:$0xff]
        %v4203 = vld [vmem:[%s4172 + $0xf0] sm:$0xff]
        %v4204 = vld [vmem:[%s4172 + $0xf8] sm:$0xff]
        %s4205 = scalar_lea.vmem %s4, 4
        %v4206 = vld [vmem:[%s4205] sm:$0x3]
        %4207 = vadd.xlane.f32.xlu0 %v3610
        %v4208 = vpop.xlane.xlu0 %4207
        %4209 = vadd.xlane.f32.xlu0 %v3611
        %v4210 = vpop.xlane.xlu0 %4209
        %4211 = vadd.xlane.f32.xlu0 %v3612
        %v4212 = vpop.xlane.xlu0 %4211
        %4213 = vadd.xlane.f32.xlu0 %v3613
        %v4214 = vpop.xlane.xlu0 %4213
        %4215 = vadd.xlane.f32.xlu0 %v3614
        %v4216 = vpop.xlane.xlu0 %4215
        %4217 = vadd.xlane.f32.xlu0 %v3615
        %v4218 = vpop.xlane.xlu0 %4217
        %4219 = vadd.xlane.f32.xlu0 %v3616
        %v4220 = vpop.xlane.xlu0 %4219
        %4221 = vadd.xlane.f32.xlu0 %v3617
        %v4222 = vpop.xlane.xlu0 %4221
        %4223 = vadd.xlane.f32.xlu0 %v3618
        %v4224 = vpop.xlane.xlu0 %4223
        %4225 = vadd.xlane.f32.xlu0 %v3619
        %v4226 = vpop.xlane.xlu0 %4225
        %4227 = vadd.xlane.f32.xlu0 %v3620
        %v4228 = vpop.xlane.xlu0 %4227
        %4229 = vadd.xlane.f32.xlu0 %v3621
        %v4230 = vpop.xlane.xlu0 %4229
        %4231 = vadd.xlane.f32.xlu0 %v3622
        %v4232 = vpop.xlane.xlu0 %4231
        %4233 = vadd.xlane.f32.xlu0 %v3623
        %v4234 = vpop.xlane.xlu0 %4233
        %4235 = vadd.xlane.f32.xlu0 %v3624
        %v4236 = vpop.xlane.xlu0 %4235
        %4237 = vadd.xlane.f32.xlu0 %v3625
        %v4238 = vpop.xlane.xlu0 %4237
        %vm4239 = vcmp.gt.f32.partialorder %v4208, 0.0
        %vm4240 = vcmp.gt.f32.partialorder %v4210, 0.0
        %vm4241 = vcmp.gt.f32.partialorder %v4212, 0.0
        %vm4242 = vcmp.gt.f32.partialorder %v4214, 0.0
        %vm4243 = vcmp.gt.f32.partialorder %v4216, 0.0
        %vm4244 = vcmp.gt.f32.partialorder %v4218, 0.0
        %vm4245 = vcmp.gt.f32.partialorder %v4220, 0.0
        %vm4246 = vcmp.gt.f32.partialorder %v4222, 0.0
        %vm4247 = vcmp.gt.f32.partialorder %v4224, 0.0
        %vm4248 = vcmp.gt.f32.partialorder %v4226, 0.0
        %vm4249 = vcmp.gt.f32.partialorder %v4228, 0.0
        %vm4250 = vcmp.gt.f32.partialorder %v4230, 0.0
        %vm4251 = vcmp.gt.f32.partialorder %v4232, 0.0
        %vm4252 = vcmp.gt.f32.partialorder %v4234, 0.0
        %vm4253 = vcmp.gt.f32.partialorder %v4236, 0.0
        %vm4254 = vcmp.gt.f32.partialorder %v4238, 0.0
        %v4255 = vmax.f32 %v4208, 1.0
        %v4256 = vmax.f32 %v4210, 1.0
        %v4257 = vmax.f32 %v4212, 1.0
        %v4258 = vmax.f32 %v4214, 1.0
        %v4259 = vmax.f32 %v4216, 1.0
        %v4260 = vmax.f32 %v4218, 1.0
        %v4261 = vmax.f32 %v4220, 1.0
        %v4262 = vmax.f32 %v4222, 1.0
        %v4263 = vmax.f32 %v4224, 1.0
        %v4264 = vmax.f32 %v4226, 1.0
        %v4265 = vmax.f32 %v4228, 1.0
        %v4266 = vmax.f32 %v4230, 1.0
        %v4267 = vmax.f32 %v4232, 1.0
        %v4268 = vmax.f32 %v4234, 1.0
        %v4269 = vmax.f32 %v4236, 1.0
        %v4270 = vmax.f32 %v4238, 1.0
        %v4271 = vrcp.pop %v4255
        %v4272 = vmul.f32 %v4255, %v4271
        %v4273 = vsub.f32 1.0, %v4272
        %v4274 = vmul.f32 %v4271, %v4273
        %v4275 = vadd.f32 %v4271, %v4274
        %vm4276 = vweird.f32 %v4255
        %vm4277 = vweird.f32 %v4271
        %vm4278 = vmor %vm4276, %vm4277
        %v4279 = vsel %vm4278, %v4271, %v4275
        %v4280 = vand.u32 2147483647, %v4255
        %vm4281 = vcmp.eq.f32.partialorder %v4280, 8.507059e+37
        %v4282 = vand.u32 %v4255, 2147483648
        %v4283 = vor.u32 1.1754944e-38, %v4282
        %v4284 = vsel %vm4281, %v4283, %v4279
        %v4285 = vmul.f32 1.0, %v4284
        %v4286 = vrcp.pop %v4256
        %v4287 = vmul.f32 %v4256, %v4286
        %v4288 = vsub.f32 1.0, %v4287
        %v4289 = vmul.f32 %v4286, %v4288
        %v4290 = vadd.f32 %v4286, %v4289
        %vm4291 = vweird.f32 %v4256
        %vm4292 = vweird.f32 %v4286
        %vm4293 = vmor %vm4291, %vm4292
        %v4294 = vsel %vm4293, %v4286, %v4290
        %v4295 = vand.u32 2147483647, %v4256
        %vm4296 = vcmp.eq.f32.partialorder %v4295, 8.507059e+37
        %v4297 = vand.u32 %v4256, 2147483648
        %v4298 = vor.u32 1.1754944e-38, %v4297
        %v4299 = vsel %vm4296, %v4298, %v4294
        %v4300 = vmul.f32 1.0, %v4299
        %v4301 = vrcp.pop %v4257
        %v4302 = vmul.f32 %v4257, %v4301
        %v4303 = vsub.f32 1.0, %v4302
        %v4304 = vmul.f32 %v4301, %v4303
        %v4305 = vadd.f32 %v4301, %v4304
        %vm4306 = vweird.f32 %v4257
        %vm4307 = vweird.f32 %v4301
        %vm4308 = vmor %vm4306, %vm4307
        %v4309 = vsel %vm4308, %v4301, %v4305
        %v4310 = vand.u32 2147483647, %v4257
        %vm4311 = vcmp.eq.f32.partialorder %v4310, 8.507059e+37
        %v4312 = vand.u32 %v4257, 2147483648
        %v4313 = vor.u32 1.1754944e-38, %v4312
        %v4314 = vsel %vm4311, %v4313, %v4309
        %v4315 = vmul.f32 1.0, %v4314
        %v4316 = vrcp.pop %v4258
        %v4317 = vmul.f32 %v4258, %v4316
        %v4318 = vsub.f32 1.0, %v4317
        %v4319 = vmul.f32 %v4316, %v4318
        %v4320 = vadd.f32 %v4316, %v4319
        %vm4321 = vweird.f32 %v4258
        %vm4322 = vweird.f32 %v4316
        %vm4323 = vmor %vm4321, %vm4322
        %v4324 = vsel %vm4323, %v4316, %v4320
        %v4325 = vand.u32 2147483647, %v4258
        %vm4326 = vcmp.eq.f32.partialorder %v4325, 8.507059e+37
        %v4327 = vand.u32 %v4258, 2147483648
        %v4328 = vor.u32 1.1754944e-38, %v4327
        %v4329 = vsel %vm4326, %v4328, %v4324
        %v4330 = vmul.f32 1.0, %v4329
        %v4331 = vrcp.pop %v4259
        %v4332 = vmul.f32 %v4259, %v4331
        %v4333 = vsub.f32 1.0, %v4332
        %v4334 = vmul.f32 %v4331, %v4333
        %v4335 = vadd.f32 %v4331, %v4334
        %vm4336 = vweird.f32 %v4259
        %vm4337 = vweird.f32 %v4331
        %vm4338 = vmor %vm4336, %vm4337
        %v4339 = vsel %vm4338, %v4331, %v4335
        %v4340 = vand.u32 2147483647, %v4259
        %vm4341 = vcmp.eq.f32.partialorder %v4340, 8.507059e+37
        %v4342 = vand.u32 %v4259, 2147483648
        %v4343 = vor.u32 1.1754944e-38, %v4342
        %v4344 = vsel %vm4341, %v4343, %v4339
        %v4345 = vmul.f32 1.0, %v4344
        %v4346 = vrcp.pop %v4260
        %v4347 = vmul.f32 %v4260, %v4346
        %v4348 = vsub.f32 1.0, %v4347
        %v4349 = vmul.f32 %v4346, %v4348
        %v4350 = vadd.f32 %v4346, %v4349
        %vm4351 = vweird.f32 %v4260
        %vm4352 = vweird.f32 %v4346
        %vm4353 = vmor %vm4351, %vm4352
        %v4354 = vsel %vm4353, %v4346, %v4350
        %v4355 = vand.u32 2147483647, %v4260
        %vm4356 = vcmp.eq.f32.partialorder %v4355, 8.507059e+37
        %v4357 = vand.u32 %v4260, 2147483648
        %v4358 = vor.u32 1.1754944e-38, %v4357
        %v4359 = vsel %vm4356, %v4358, %v4354
        %v4360 = vmul.f32 1.0, %v4359
        %v4361 = vrcp.pop %v4261
        %v4362 = vmul.f32 %v4261, %v4361
        %v4363 = vsub.f32 1.0, %v4362
        %v4364 = vmul.f32 %v4361, %v4363
        %v4365 = vadd.f32 %v4361, %v4364
        %vm4366 = vweird.f32 %v4261
        %vm4367 = vweird.f32 %v4361
        %vm4368 = vmor %vm4366, %vm4367
        %v4369 = vsel %vm4368, %v4361, %v4365
        %v4370 = vand.u32 2147483647, %v4261
        %vm4371 = vcmp.eq.f32.partialorder %v4370, 8.507059e+37
        %v4372 = vand.u32 %v4261, 2147483648
        %v4373 = vor.u32 1.1754944e-38, %v4372
        %v4374 = vsel %vm4371, %v4373, %v4369
        %v4375 = vmul.f32 1.0, %v4374
        %v4376 = vrcp.pop %v4262
        %v4377 = vmul.f32 %v4262, %v4376
        %v4378 = vsub.f32 1.0, %v4377
        %v4379 = vmul.f32 %v4376, %v4378
        %v4380 = vadd.f32 %v4376, %v4379
        %vm4381 = vweird.f32 %v4262
        %vm4382 = vweird.f32 %v4376
        %vm4383 = vmor %vm4381, %vm4382
        %v4384 = vsel %vm4383, %v4376, %v4380
        %v4385 = vand.u32 2147483647, %v4262
        %vm4386 = vcmp.eq.f32.partialorder %v4385, 8.507059e+37
        %v4387 = vand.u32 %v4262, 2147483648
        %v4388 = vor.u32 1.1754944e-38, %v4387
        %v4389 = vsel %vm4386, %v4388, %v4384
        %v4390 = vmul.f32 1.0, %v4389
        %v4391 = vrcp.pop %v4263
        %v4392 = vmul.f32 %v4263, %v4391
        %v4393 = vsub.f32 1.0, %v4392
        %v4394 = vmul.f32 %v4391, %v4393
        %v4395 = vadd.f32 %v4391, %v4394
        %vm4396 = vweird.f32 %v4263
        %vm4397 = vweird.f32 %v4391
        %vm4398 = vmor %vm4396, %vm4397
        %v4399 = vsel %vm4398, %v4391, %v4395
        %v4400 = vand.u32 2147483647, %v4263
        %vm4401 = vcmp.eq.f32.partialorder %v4400, 8.507059e+37
        %v4402 = vand.u32 %v4263, 2147483648
        %v4403 = vor.u32 1.1754944e-38, %v4402
        %v4404 = vsel %vm4401, %v4403, %v4399
        %v4405 = vmul.f32 1.0, %v4404
        %v4406 = vrcp.pop %v4264
        %v4407 = vmul.f32 %v4264, %v4406
        %v4408 = vsub.f32 1.0, %v4407
        %v4409 = vmul.f32 %v4406, %v4408
        %v4410 = vadd.f32 %v4406, %v4409
        %vm4411 = vweird.f32 %v4264
        %vm4412 = vweird.f32 %v4406
        %vm4413 = vmor %vm4411, %vm4412
        %v4414 = vsel %vm4413, %v4406, %v4410
        %v4415 = vand.u32 2147483647, %v4264
        %vm4416 = vcmp.eq.f32.partialorder %v4415, 8.507059e+37
        %v4417 = vand.u32 %v4264, 2147483648
        %v4418 = vor.u32 1.1754944e-38, %v4417
        %v4419 = vsel %vm4416, %v4418, %v4414
        %v4420 = vmul.f32 1.0, %v4419
        %v4421 = vrcp.pop %v4265
        %v4422 = vmul.f32 %v4265, %v4421
        %v4423 = vsub.f32 1.0, %v4422
        %v4424 = vmul.f32 %v4421, %v4423
        %v4425 = vadd.f32 %v4421, %v4424
        %vm4426 = vweird.f32 %v4265
        %vm4427 = vweird.f32 %v4421
        %vm4428 = vmor %vm4426, %vm4427
        %v4429 = vsel %vm4428, %v4421, %v4425
        %v4430 = vand.u32 2147483647, %v4265
        %vm4431 = vcmp.eq.f32.partialorder %v4430, 8.507059e+37
        %v4432 = vand.u32 %v4265, 2147483648
        %v4433 = vor.u32 1.1754944e-38, %v4432
        %v4434 = vsel %vm4431, %v4433, %v4429
        %v4435 = vmul.f32 1.0, %v4434
        %v4436 = vrcp.pop %v4266
        %v4437 = vmul.f32 %v4266, %v4436
        %v4438 = vsub.f32 1.0, %v4437
        %v4439 = vmul.f32 %v4436, %v4438
        %v4440 = vadd.f32 %v4436, %v4439
        %vm4441 = vweird.f32 %v4266
        %vm4442 = vweird.f32 %v4436
        %vm4443 = vmor %vm4441, %vm4442
        %v4444 = vsel %vm4443, %v4436, %v4440
        %v4445 = vand.u32 2147483647, %v4266
        %vm4446 = vcmp.eq.f32.partialorder %v4445, 8.507059e+37
        %v4447 = vand.u32 %v4266, 2147483648
        %v4448 = vor.u32 1.1754944e-38, %v4447
        %v4449 = vsel %vm4446, %v4448, %v4444
        %v4450 = vmul.f32 1.0, %v4449
        %v4451 = vrcp.pop %v4267
        %v4452 = vmul.f32 %v4267, %v4451
        %v4453 = vsub.f32 1.0, %v4452
        %v4454 = vmul.f32 %v4451, %v4453
        %v4455 = vadd.f32 %v4451, %v4454
        %vm4456 = vweird.f32 %v4267
        %vm4457 = vweird.f32 %v4451
        %vm4458 = vmor %vm4456, %vm4457
        %v4459 = vsel %vm4458, %v4451, %v4455
        %v4460 = vand.u32 2147483647, %v4267
        %vm4461 = vcmp.eq.f32.partialorder %v4460, 8.507059e+37
        %v4462 = vand.u32 %v4267, 2147483648
        %v4463 = vor.u32 1.1754944e-38, %v4462
        %v4464 = vsel %vm4461, %v4463, %v4459
        %v4465 = vmul.f32 1.0, %v4464
        %v4466 = vrcp.pop %v4268
        %v4467 = vmul.f32 %v4268, %v4466
        %v4468 = vsub.f32 1.0, %v4467
        %v4469 = vmul.f32 %v4466, %v4468
        %v4470 = vadd.f32 %v4466, %v4469
        %vm4471 = vweird.f32 %v4268
        %vm4472 = vweird.f32 %v4466
        %vm4473 = vmor %vm4471, %vm4472
        %v4474 = vsel %vm4473, %v4466, %v4470
        %v4475 = vand.u32 2147483647, %v4268
        %vm4476 = vcmp.eq.f32.partialorder %v4475, 8.507059e+37
        %v4477 = vand.u32 %v4268, 2147483648
        %v4478 = vor.u32 1.1754944e-38, %v4477
        %v4479 = vsel %vm4476, %v4478, %v4474
        %v4480 = vmul.f32 1.0, %v4479
        %v4481 = vrcp.pop %v4269
        %v4482 = vmul.f32 %v4269, %v4481
        %v4483 = vsub.f32 1.0, %v4482
        %v4484 = vmul.f32 %v4481, %v4483
        %v4485 = vadd.f32 %v4481, %v4484
        %vm4486 = vweird.f32 %v4269
        %vm4487 = vweird.f32 %v4481
        %vm4488 = vmor %vm4486, %vm4487
        %v4489 = vsel %vm4488, %v4481, %v4485
        %v4490 = vand.u32 2147483647, %v4269
        %vm4491 = vcmp.eq.f32.partialorder %v4490, 8.507059e+37
        %v4492 = vand.u32 %v4269, 2147483648
        %v4493 = vor.u32 1.1754944e-38, %v4492
        %v4494 = vsel %vm4491, %v4493, %v4489
        %v4495 = vmul.f32 1.0, %v4494
        %v4496 = vrcp.pop %v4270
        %v4497 = vmul.f32 %v4270, %v4496
        %v4498 = vsub.f32 1.0, %v4497
        %v4499 = vmul.f32 %v4496, %v4498
        %v4500 = vadd.f32 %v4496, %v4499
        %vm4501 = vweird.f32 %v4270
        %vm4502 = vweird.f32 %v4496
        %vm4503 = vmor %vm4501, %vm4502
        %v4504 = vsel %vm4503, %v4496, %v4500
        %v4505 = vand.u32 2147483647, %v4270
        %vm4506 = vcmp.eq.f32.partialorder %v4505, 8.507059e+37
        %v4507 = vand.u32 %v4270, 2147483648
        %v4508 = vor.u32 1.1754944e-38, %v4507
        %v4509 = vsel %vm4506, %v4508, %v4504
        %v4510 = vmul.f32 1.0, %v4509
        %v4511 = vsel %vm4239, %v4285, 0.0
        %v4512 = vsel %vm4240, %v4300, 0.0
        %v4513 = vsel %vm4241, %v4315, 0.0
        %v4514 = vsel %vm4242, %v4330, 0.0
        %v4515 = vsel %vm4243, %v4345, 0.0
        %v4516 = vsel %vm4244, %v4360, 0.0
        %v4517 = vsel %vm4245, %v4375, 0.0
        %v4518 = vsel %vm4246, %v4390, 0.0
        %v4519 = vsel %vm4247, %v4405, 0.0
        %v4520 = vsel %vm4248, %v4420, 0.0
        %v4521 = vsel %vm4249, %v4435, 0.0
        %v4522 = vsel %vm4250, %v4450, 0.0
        %v4523 = vsel %vm4251, %v4465, 0.0
        %v4524 = vsel %vm4252, %v4480, 0.0
        %v4525 = vsel %vm4253, %v4495, 0.0
        %v4526 = vsel %vm4254, %v4510, 0.0
        %4527 = vmatpush.msra.mxu0 %v3496
        %4528 = vmatpush.msra.mxu0 %v3495
        %4529 = vmatpush.msra.mxu0 %v3494
        %4530 = vmatpush.msra.mxu0 %v3493
        %4531 = vmatpush.msra.mxu0 %v3492
        %4532 = vmatpush.msra.mxu0 %v3491
        %4533 = vmatpush.msra.mxu0 %v3490
        %4534 = vmatpush.msra.mxu0 %v3489
        %4535 = vmatpush.msra.mxu0 %v3488
        %4536 = vmatpush.msra.mxu0 %v3487
        %4537 = vmatpush.msra.mxu0 %v3486
        %4538 = vmatpush.msra.mxu0 %v3485
        %4539 = vmatpush.msra.mxu0 %v3484
        %4540 = vmatpush.msra.mxu0 %v3483
        %4541 = vmatpush.msra.mxu0 %v3482
        %4542 = vmatpush.msra.mxu0 %v3481
        %4543 = vmatmul.f32.gmra.mxu0 %v3610
        %v4544 = vpop.f32.mrf.mxu0
        %v4545 = vadd.f32 0.0, %v4544
        %4546 = vmatmul.f32.gmra.mxu0 %v3611
        %v4547 = vpop.f32.mrf.mxu0
        %v4548 = vadd.f32 0.0, %v4547
        %4549 = vmatmul.f32.gmra.mxu0 %v3612
        %v4550 = vpop.f32.mrf.mxu0
        %v4551 = vadd.f32 0.0, %v4550
        %4552 = vmatmul.f32.gmra.mxu0 %v3613
        %v4553 = vpop.f32.mrf.mxu0
        %v4554 = vadd.f32 0.0, %v4553
        %4555 = vmatmul.f32.gmra.mxu0 %v3614
        %v4556 = vpop.f32.mrf.mxu0
        %v4557 = vadd.f32 0.0, %v4556
        %4558 = vmatmul.f32.gmra.mxu0 %v3615
        %v4559 = vpop.f32.mrf.mxu0
        %v4560 = vadd.f32 0.0, %v4559
        %4561 = vmatmul.f32.gmra.mxu0 %v3616
        %v4562 = vpop.f32.mrf.mxu0
        %v4563 = vadd.f32 0.0, %v4562
        %4564 = vmatmul.f32.gmra.mxu0 %v3617
        %v4565 = vpop.f32.mrf.mxu0
        %v4566 = vadd.f32 0.0, %v4565
        %4567 = vmatmul.f32.gmra.mxu0 %v3618
        %v4568 = vpop.f32.mrf.mxu0
        %v4569 = vadd.f32 0.0, %v4568
        %4570 = vmatmul.f32.gmra.mxu0 %v3619
        %v4571 = vpop.f32.mrf.mxu0
        %v4572 = vadd.f32 0.0, %v4571
        %4573 = vmatmul.f32.gmra.mxu0 %v3620
        %v4574 = vpop.f32.mrf.mxu0
        %v4575 = vadd.f32 0.0, %v4574
        %4576 = vmatmul.f32.gmra.mxu0 %v3621
        %v4577 = vpop.f32.mrf.mxu0
        %v4578 = vadd.f32 0.0, %v4577
        %4579 = vmatmul.f32.gmra.mxu0 %v3622
        %v4580 = vpop.f32.mrf.mxu0
        %v4581 = vadd.f32 0.0, %v4580
        %4582 = vmatmul.f32.gmra.mxu0 %v3623
        %v4583 = vpop.f32.mrf.mxu0
        %v4584 = vadd.f32 0.0, %v4583
        %4585 = vmatmul.f32.gmra.mxu0 %v3624
        %v4586 = vpop.f32.mrf.mxu0
        %v4587 = vadd.f32 0.0, %v4586
        %4588 = vmatmul.f32.gmra.mxu0 %v3625
        %v4589 = vpop.f32.mrf.mxu0
        %v4590 = vadd.f32 0.0, %v4589
        %4591 = vdwg.mxu0
        %v4592 = vmul.f32 %v4545, %v4511
        %v4593 = vmul.f32 %v4548, %v4512
        %v4594 = vmul.f32 %v4551, %v4513
        %v4595 = vmul.f32 %v4554, %v4514
        %v4596 = vmul.f32 %v4557, %v4515
        %v4597 = vmul.f32 %v4560, %v4516
        %v4598 = vmul.f32 %v4563, %v4517
        %v4599 = vmul.f32 %v4566, %v4518
        %v4600 = vmul.f32 %v4569, %v4519
        %v4601 = vmul.f32 %v4572, %v4520
        %v4602 = vmul.f32 %v4575, %v4521
        %v4603 = vmul.f32 %v4578, %v4522
        %v4604 = vmul.f32 %v4581, %v4523
        %v4605 = vmul.f32 %v4584, %v4524
        %v4606 = vmul.f32 %v4587, %v4525
        %v4607 = vmul.f32 %v4590, %v4526
        %v4608 = vperm.slane %v4206, 0
        %4609 = vmatpush.msra.mxu0 %v4188
        %4610 = vmatpush.msra.mxu0 %v4187
        %4611 = vmatpush.msra.mxu0 %v4186
        %4612 = vmatpush.msra.mxu0 %v4185
        %4613 = vmatpush.msra.mxu0 %v4184
        %4614 = vmatpush.msra.mxu0 %v4183
        %4615 = vmatpush.msra.mxu0 %v4182
        %4616 = vmatpush.msra.mxu0 %v4181
        %4617 = vmatpush.msra.mxu0 %v4180
        %4618 = vmatpush.msra.mxu0 %v4179
        %4619 = vmatpush.msra.mxu0 %v4178
        %4620 = vmatpush.msra.mxu0 %v4177
        %4621 = vmatpush.msra.mxu0 %v4176
        %4622 = vmatpush.msra.mxu0 %v4175
        %4623 = vmatpush.msra.mxu0 %v4174
        %4624 = vmatpush.msra.mxu0 %v4173
        %4625 = vmatmul.f32.gmra.mxu0 %v4592
        %v4626 = vpop.f32.mrf.mxu0
        %v4627 = vadd.f32 %v4608, %v4626
        %4628 = vmatmul.f32.gmra.mxu0 %v4593
        %v4629 = vpop.f32.mrf.mxu0
        %v4630 = vadd.f32 %v4608, %v4629
        %4631 = vmatmul.f32.gmra.mxu0 %v4594
        %v4632 = vpop.f32.mrf.mxu0
        %v4633 = vadd.f32 %v4608, %v4632
        %4634 = vmatmul.f32.gmra.mxu0 %v4595
        %v4635 = vpop.f32.mrf.mxu0
        %v4636 = vadd.f32 %v4608, %v4635
        %4637 = vmatmul.f32.gmra.mxu0 %v4596
        %v4638 = vpop.f32.mrf.mxu0
        %v4639 = vadd.f32 %v4608, %v4638
        %4640 = vmatmul.f32.gmra.mxu0 %v4597
        %v4641 = vpop.f32.mrf.mxu0
        %v4642 = vadd.f32 %v4608, %v4641
        %4643 = vmatmul.f32.gmra.mxu0 %v4598
        %v4644 = vpop.f32.mrf.mxu0
        %v4645 = vadd.f32 %v4608, %v4644
        %4646 = vmatmul.f32.gmra.mxu0 %v4599
        %v4647 = vpop.f32.mrf.mxu0
        %v4648 = vadd.f32 %v4608, %v4647
        %4649 = vmatmul.f32.gmra.mxu0 %v4600
        %v4650 = vpop.f32.mrf.mxu0
        %v4651 = vadd.f32 %v4608, %v4650
        %4652 = vmatmul.f32.gmra.mxu0 %v4601
        %v4653 = vpop.f32.mrf.mxu0
        %v4654 = vadd.f32 %v4608, %v4653
        %4655 = vmatmul.f32.gmra.mxu0 %v4602
        %v4656 = vpop.f32.mrf.mxu0
        %v4657 = vadd.f32 %v4608, %v4656
        %4658 = vmatmul.f32.gmra.mxu0 %v4603
        %v4659 = vpop.f32.mrf.mxu0
        %v4660 = vadd.f32 %v4608, %v4659
        %4661 = vmatmul.f32.gmra.mxu0 %v4604
        %v4662 = vpop.f32.mrf.mxu0
        %v4663 = vadd.f32 %v4608, %v4662
        %4664 = vmatmul.f32.gmra.mxu0 %v4605
        %v4665 = vpop.f32.mrf.mxu0
        %v4666 = vadd.f32 %v4608, %v4665
        %4667 = vmatmul.f32.gmra.mxu0 %v4606
        %v4668 = vpop.f32.mrf.mxu0
        %v4669 = vadd.f32 %v4608, %v4668
        %4670 = vmatmul.f32.gmra.mxu0 %v4607
        %v4671 = vpop.f32.mrf.mxu0
        %v4672 = vadd.f32 %v4608, %v4671
        %4673 = vdwg.mxu0
        %4674 = vmatpush.msra.mxu0 %v4204
        %4675 = vmatpush.msra.mxu0 %v4203
        %4676 = vmatpush.msra.mxu0 %v4202
        %4677 = vmatpush.msra.mxu0 %v4201
        %4678 = vmatpush.msra.mxu0 %v4200
        %4679 = vmatpush.msra.mxu0 %v4199
        %4680 = vmatpush.msra.mxu0 %v4198
        %4681 = vmatpush.msra.mxu0 %v4197
        %4682 = vmatpush.msra.mxu0 %v4196
        %4683 = vmatpush.msra.mxu0 %v4195
        %4684 = vmatpush.msra.mxu0 %v4194
        %4685 = vmatpush.msra.mxu0 %v4193
        %4686 = vmatpush.msra.mxu0 %v4192
        %4687 = vmatpush.msra.mxu0 %v4191
        %4688 = vmatpush.msra.mxu0 %v4190
        %4689 = vmatpush.msra.mxu0 %v4189
        %4690 = vmatmul.f32.gmra.mxu0 %v3481
        %v4691 = vpop.f32.mrf.mxu0
        %v4692 = vadd.f32 %v4627, %v4691
        %4693 = vmatmul.f32.gmra.mxu0 %v3482
        %v4694 = vpop.f32.mrf.mxu0
        %v4695 = vadd.f32 %v4630, %v4694
        %4696 = vmatmul.f32.gmra.mxu0 %v3483
        %v4697 = vpop.f32.mrf.mxu0
        %v4698 = vadd.f32 %v4633, %v4697
        %4699 = vmatmul.f32.gmra.mxu0 %v3484
        %v4700 = vpop.f32.mrf.mxu0
        %v4701 = vadd.f32 %v4636, %v4700
        %4702 = vmatmul.f32.gmra.mxu0 %v3485
        %v4703 = vpop.f32.mrf.mxu0
        %v4704 = vadd.f32 %v4639, %v4703
        %4705 = vmatmul.f32.gmra.mxu0 %v3486
        %v4706 = vpop.f32.mrf.mxu0
        %v4707 = vadd.f32 %v4642, %v4706
        %4708 = vmatmul.f32.gmra.mxu0 %v3487
        %v4709 = vpop.f32.mrf.mxu0
        %v4710 = vadd.f32 %v4645, %v4709
        %4711 = vmatmul.f32.gmra.mxu0 %v3488
        %v4712 = vpop.f32.mrf.mxu0
        %v4713 = vadd.f32 %v4648, %v4712
        %4714 = vmatmul.f32.gmra.mxu0 %v3489
        %v4715 = vpop.f32.mrf.mxu0
        %v4716 = vadd.f32 %v4651, %v4715
        %4717 = vmatmul.f32.gmra.mxu0 %v3490
        %v4718 = vpop.f32.mrf.mxu0
        %v4719 = vadd.f32 %v4654, %v4718
        %4720 = vmatmul.f32.gmra.mxu0 %v3491
        %v4721 = vpop.f32.mrf.mxu0
        %v4722 = vadd.f32 %v4657, %v4721
        %4723 = vmatmul.f32.gmra.mxu0 %v3492
        %v4724 = vpop.f32.mrf.mxu0
        %v4725 = vadd.f32 %v4660, %v4724
        %4726 = vmatmul.f32.gmra.mxu0 %v3493
        %v4727 = vpop.f32.mrf.mxu0
        %v4728 = vadd.f32 %v4663, %v4727
        %4729 = vmatmul.f32.gmra.mxu0 %v3494
        %v4730 = vpop.f32.mrf.mxu0
        %v4731 = vadd.f32 %v4666, %v4730
        %4732 = vmatmul.f32.gmra.mxu0 %v3495
        %v4733 = vpop.f32.mrf.mxu0
        %v4734 = vadd.f32 %v4669, %v4733
        %4735 = vmatmul.f32.gmra.mxu0 %v3496
        %v4736 = vpop.f32.mrf.mxu0
        %v4737 = vadd.f32 %v4672, %v4736
        %4738 = vdwg.mxu0
        %v4739 = vmax.f32 %v4692, 0.0
        %v4740 = vmax.f32 %v4695, 0.0
        %v4741 = vmax.f32 %v4698, 0.0
        %v4742 = vmax.f32 %v4701, 0.0
        %v4743 = vmax.f32 %v4704, 0.0
        %v4744 = vmax.f32 %v4707, 0.0
        %v4745 = vmax.f32 %v4710, 0.0
        %v4746 = vmax.f32 %v4713, 0.0
        %v4747 = vmax.f32 %v4716, 0.0
        %v4748 = vmax.f32 %v4719, 0.0
        %v4749 = vmax.f32 %v4722, 0.0
        %v4750 = vmax.f32 %v4725, 0.0
        %v4751 = vmax.f32 %v4728, 0.0
        %v4752 = vmax.f32 %v4731, 0.0
        %v4753 = vmax.f32 %v4734, 0.0
        %v4754 = vmax.f32 %v4737, 0.0
        %v4755 = vperm.slane %v4206, 1
        %v4756 = vmul.f32 %v4739, %v4755
        %v4757 = vmul.f32 %v4740, %v4755
        %v4758 = vmul.f32 %v4741, %v4755
        %v4759 = vmul.f32 %v4742, %v4755
        %v4760 = vmul.f32 %v4743, %v4755
        %v4761 = vmul.f32 %v4744, %v4755
        %v4762 = vmul.f32 %v4745, %v4755
        %v4763 = vmul.f32 %v4746, %v4755
        %v4764 = vmul.f32 %v4747, %v4755
        %v4765 = vmul.f32 %v4748, %v4755
        %v4766 = vmul.f32 %v4749, %v4755
        %v4767 = vmul.f32 %v4750, %v4755
        %v4768 = vmul.f32 %v4751, %v4755
        %v4769 = vmul.f32 %v4752, %v4755
        %v4770 = vmul.f32 %v4753, %v4755
        %v4771 = vmul.f32 %v4754, %v4755
        %4772 = vadd.xlane.f32.xlu0 %v4756
        %v4773 = vpop.xlane.xlu0 %4772
        %4774 = vadd.xlane.f32.xlu0 %v4757
        %v4775 = vpop.xlane.xlu0 %4774
        %4776 = vadd.xlane.f32.xlu0 %v4758
        %v4777 = vpop.xlane.xlu0 %4776
        %4778 = vadd.xlane.f32.xlu0 %v4759
        %v4779 = vpop.xlane.xlu0 %4778
        %4780 = vadd.xlane.f32.xlu0 %v4760
        %v4781 = vpop.xlane.xlu0 %4780
        %4782 = vadd.xlane.f32.xlu0 %v4761
        %v4783 = vpop.xlane.xlu0 %4782
        %4784 = vadd.xlane.f32.xlu0 %v4762
        %v4785 = vpop.xlane.xlu0 %4784
        %4786 = vadd.xlane.f32.xlu0 %v4763
        %v4787 = vpop.xlane.xlu0 %4786
        %4788 = vadd.xlane.f32.xlu0 %v4764
        %v4789 = vpop.xlane.xlu0 %4788
        %4790 = vadd.xlane.f32.xlu0 %v4765
        %v4791 = vpop.xlane.xlu0 %4790
        %4792 = vadd.xlane.f32.xlu0 %v4766
        %v4793 = vpop.xlane.xlu0 %4792
        %4794 = vadd.xlane.f32.xlu0 %v4767
        %v4795 = vpop.xlane.xlu0 %4794
        %4796 = vadd.xlane.f32.xlu0 %v4768
        %v4797 = vpop.xlane.xlu0 %4796
        %4798 = vadd.xlane.f32.xlu0 %v4769
        %v4799 = vpop.xlane.xlu0 %4798
        %4800 = vadd.xlane.f32.xlu0 %v4770
        %v4801 = vpop.xlane.xlu0 %4800
        %4802 = vadd.xlane.f32.xlu0 %v4771
        %v4803 = vpop.xlane.xlu0 %4802
        %v4804 = vtanh.pop %v4773
        %v4805 = vtanh.pop %v4775
        %v4806 = vtanh.pop %v4777
        %v4807 = vtanh.pop %v4779
        %v4808 = vtanh.pop %v4781
        %v4809 = vtanh.pop %v4783
        %v4810 = vtanh.pop %v4785
        %v4811 = vtanh.pop %v4787
        %v4812 = vtanh.pop %v4789
        %v4813 = vtanh.pop %v4791
        %v4814 = vtanh.pop %v4793
        %v4815 = vtanh.pop %v4795
        %v4816 = vtanh.pop %v4797
        %v4817 = vtanh.pop %v4799
        %v4818 = vtanh.pop %v4801
        %v4819 = vtanh.pop %v4803
        %vm4820 = vcmp.gt.f32.partialorder %v3449, 0.5
        %vm4821 = vcmp.gt.f32.partialorder %v3450, 0.5
        %vm4822 = vcmp.gt.f32.partialorder %v3451, 0.5
        %vm4823 = vcmp.gt.f32.partialorder %v3452, 0.5
        %vm4824 = vcmp.gt.f32.partialorder %v3453, 0.5
        %vm4825 = vcmp.gt.f32.partialorder %v3454, 0.5
        %vm4826 = vcmp.gt.f32.partialorder %v3455, 0.5
        %vm4827 = vcmp.gt.f32.partialorder %v3456, 0.5
        %vm4828 = vcmp.gt.f32.partialorder %v3457, 0.5
        %vm4829 = vcmp.gt.f32.partialorder %v3458, 0.5
        %vm4830 = vcmp.gt.f32.partialorder %v3459, 0.5
        %vm4831 = vcmp.gt.f32.partialorder %v3460, 0.5
        %vm4832 = vcmp.gt.f32.partialorder %v3461, 0.5
        %vm4833 = vcmp.gt.f32.partialorder %v3462, 0.5
        %vm4834 = vcmp.gt.f32.partialorder %v3463, 0.5
        %vm4835 = vcmp.gt.f32.partialorder %v3464, 0.5
        %v4836 = vsel %vm4820, %v4804, -1e+30
        %v4837 = vsel %vm4821, %v4805, -1e+30
        %v4838 = vsel %vm4822, %v4806, -1e+30
        %v4839 = vsel %vm4823, %v4807, -1e+30
        %v4840 = vsel %vm4824, %v4808, -1e+30
        %v4841 = vsel %vm4825, %v4809, -1e+30
        %v4842 = vsel %vm4826, %v4810, -1e+30
        %v4843 = vsel %vm4827, %v4811, -1e+30
        %v4844 = vsel %vm4828, %v4812, -1e+30
        %v4845 = vsel %vm4829, %v4813, -1e+30
        %v4846 = vsel %vm4830, %v4814, -1e+30
        %v4847 = vsel %vm4831, %v4815, -1e+30
        %v4848 = vsel %vm4832, %v4816, -1e+30
        %v4849 = vsel %vm4833, %v4817, -1e+30
        %v4850 = vsel %vm4834, %v4818, -1e+30
        %v4851 = vsel %vm4835, %v4819, -1e+30
        %v4853 = vsel %vm1206, %v4836, 0
        %v4856 = vsel %vm1206, %v4837, 0
        %v4859 = vsel %vm1206, %v4838, 0
        %v4862 = vsel %vm1206, %v4839, 0
        %v4865 = vsel %vm1206, %v4840, 0
        %v4868 = vsel %vm1206, %v4841, 0
        %v4871 = vsel %vm1206, %v4842, 0
        %v4874 = vsel %vm1206, %v4843, 0
        %v4877 = vsel %vm1206, %v4844, 0
        %v4880 = vsel %vm1206, %v4845, 0
        %v4883 = vsel %vm1206, %v4846, 0
        %v4886 = vsel %vm1206, %v4847, 0
        %v4889 = vsel %vm1206, %v4848, 0
        %v4892 = vsel %vm1206, %v4849, 0
        %v4895 = vsel %vm1206, %v4850, 0
        %v4898 = vsel %vm1206, %v4851, 0
        %4900 = vmatpush.xpose.msra.mxu0 %v4898
        %4901 = vmatpush.xpose.msra.mxu0 %v4895
        %4902 = vmatpush.xpose.msra.mxu0 %v4892
        %4903 = vmatpush.xpose.msra.mxu0 %v4889
        %4904 = vmatpush.xpose.msra.mxu0 %v4886
        %4905 = vmatpush.xpose.msra.mxu0 %v4883
        %4906 = vmatpush.xpose.msra.mxu0 %v4880
        %4907 = vmatpush.xpose.msra.mxu0 %v4877
        %4908 = vmatpush.xpose.msra.mxu0 %v4874
        %4909 = vmatpush.xpose.msra.mxu0 %v4871
        %4910 = vmatpush.xpose.msra.mxu0 %v4868
        %4911 = vmatpush.xpose.msra.mxu0 %v4865
        %4912 = vmatpush.xpose.msra.mxu0 %v4862
        %4913 = vmatpush.xpose.msra.mxu0 %v4859
        %4914 = vmatpush.xpose.msra.mxu0 %v4856
        %4915 = vmatpush.xpose.msra.mxu0 %v4853
        %4916 = vmatmul.f32.gmra.mxu0 %v1208
        %v4917 = vpop.f32.mrf.mxu0
        %v4918 = vadd.f32 0.0, %v4917
        %4919 = vmatmul.f32.gmra.mxu0 %v1208
        %v4920 = vpop.f32.mrf.mxu0
        %v4921 = vadd.f32 0.0, %v4920
        %4922 = vmatmul.f32.gmra.mxu0 %v1208
        %v4923 = vpop.f32.mrf.mxu0
        %v4924 = vadd.f32 0.0, %v4923
        %4925 = vmatmul.f32.gmra.mxu0 %v1208
        %v4926 = vpop.f32.mrf.mxu0
        %v4927 = vadd.f32 0.0, %v4926
        %4928 = vmatmul.f32.gmra.mxu0 %v1208
        %v4929 = vpop.f32.mrf.mxu0
        %v4930 = vadd.f32 0.0, %v4929
        %4931 = vmatmul.f32.gmra.mxu0 %v1208
        %v4932 = vpop.f32.mrf.mxu0
        %v4933 = vadd.f32 0.0, %v4932
        %4934 = vmatmul.f32.gmra.mxu0 %v1208
        %v4935 = vpop.f32.mrf.mxu0
        %v4936 = vadd.f32 0.0, %v4935
        %4937 = vmatmul.f32.gmra.mxu0 %v1208
        %v4938 = vpop.f32.mrf.mxu0
        %v4939 = vadd.f32 0.0, %v4938
        %4940 = vmatmul.f32.gmra.mxu0 %v1208
        %v4941 = vpop.f32.mrf.mxu0
        %v4942 = vadd.f32 0.0, %v4941
        %4943 = vmatmul.f32.gmra.mxu0 %v1208
        %v4944 = vpop.f32.mrf.mxu0
        %v4945 = vadd.f32 0.0, %v4944
        %4946 = vmatmul.f32.gmra.mxu0 %v1208
        %v4947 = vpop.f32.mrf.mxu0
        %v4948 = vadd.f32 0.0, %v4947
        %4949 = vmatmul.f32.gmra.mxu0 %v1208
        %v4950 = vpop.f32.mrf.mxu0
        %v4951 = vadd.f32 0.0, %v4950
        %4952 = vmatmul.f32.gmra.mxu0 %v1208
        %v4953 = vpop.f32.mrf.mxu0
        %v4954 = vadd.f32 0.0, %v4953
        %4955 = vmatmul.f32.gmra.mxu0 %v1208
        %v4956 = vpop.f32.mrf.mxu0
        %v4957 = vadd.f32 0.0, %v4956
        %4958 = vmatmul.f32.gmra.mxu0 %v1208
        %v4959 = vpop.f32.mrf.mxu0
        %v4960 = vadd.f32 0.0, %v4959
        %4961 = vmatmul.f32.gmra.mxu0 %v1208
        %v4962 = vpop.f32.mrf.mxu0
        %v4963 = vadd.f32 0.0, %v4962
        %4964 = vdwg.mxu0
        %4965 = vmatpush.xpose.msra.mxu0 %v1208
        %4966 = vmatpush.xpose.msra.mxu0 %v1208
        %4967 = vmatpush.xpose.msra.mxu0 %v1208
        %4968 = vmatpush.xpose.msra.mxu0 %v1208
        %4969 = vmatpush.xpose.msra.mxu0 %v1208
        %4970 = vmatpush.xpose.msra.mxu0 %v1208
        %4971 = vmatpush.xpose.msra.mxu0 %v1208
        %4972 = vmatpush.xpose.msra.mxu0 %v1208
        %4973 = vmatpush.xpose.msra.mxu0 %v1208
        %4974 = vmatpush.xpose.msra.mxu0 %v1208
        %4975 = vmatpush.xpose.msra.mxu0 %v1208
        %4976 = vmatpush.xpose.msra.mxu0 %v1208
        %4977 = vmatpush.xpose.msra.mxu0 %v1208
        %4978 = vmatpush.xpose.msra.mxu0 %v1208
        %4979 = vmatpush.xpose.msra.mxu0 %v1208
        %4980 = vmatpush.xpose.msra.mxu0 %v1208
        %4981 = vmatmul.f32.gmra.mxu0 %v4853
        %v4982 = vpop.f32.mrf.mxu0
        %v4983 = vadd.f32 0.0, %v4982
        %4984 = vmatmul.f32.gmra.mxu0 %v4856
        %v4985 = vpop.f32.mrf.mxu0
        %v4986 = vadd.f32 0.0, %v4985
        %4987 = vmatmul.f32.gmra.mxu0 %v4859
        %v4988 = vpop.f32.mrf.mxu0
        %v4989 = vadd.f32 0.0, %v4988
        %4990 = vmatmul.f32.gmra.mxu0 %v4862
        %v4991 = vpop.f32.mrf.mxu0
        %v4992 = vadd.f32 0.0, %v4991
        %4993 = vmatmul.f32.gmra.mxu0 %v4865
        %v4994 = vpop.f32.mrf.mxu0
        %v4995 = vadd.f32 0.0, %v4994
        %4996 = vmatmul.f32.gmra.mxu0 %v4868
        %v4997 = vpop.f32.mrf.mxu0
        %v4998 = vadd.f32 0.0, %v4997
        %4999 = vmatmul.f32.gmra.mxu0 %v4871
        %v5000 = vpop.f32.mrf.mxu0
        %v5001 = vadd.f32 0.0, %v5000
        %5002 = vmatmul.f32.gmra.mxu0 %v4874
        %v5003 = vpop.f32.mrf.mxu0
        %v5004 = vadd.f32 0.0, %v5003
        %5005 = vmatmul.f32.gmra.mxu0 %v4877
        %v5006 = vpop.f32.mrf.mxu0
        %v5007 = vadd.f32 0.0, %v5006
        %5008 = vmatmul.f32.gmra.mxu0 %v4880
        %v5009 = vpop.f32.mrf.mxu0
        %v5010 = vadd.f32 0.0, %v5009
        %5011 = vmatmul.f32.gmra.mxu0 %v4883
        %v5012 = vpop.f32.mrf.mxu0
        %v5013 = vadd.f32 0.0, %v5012
        %5014 = vmatmul.f32.gmra.mxu0 %v4886
        %v5015 = vpop.f32.mrf.mxu0
        %v5016 = vadd.f32 0.0, %v5015
        %5017 = vmatmul.f32.gmra.mxu0 %v4889
        %v5018 = vpop.f32.mrf.mxu0
        %v5019 = vadd.f32 0.0, %v5018
        %5020 = vmatmul.f32.gmra.mxu0 %v4892
        %v5021 = vpop.f32.mrf.mxu0
        %v5022 = vadd.f32 0.0, %v5021
        %5023 = vmatmul.f32.gmra.mxu0 %v4895
        %v5024 = vpop.f32.mrf.mxu0
        %v5025 = vadd.f32 0.0, %v5024
        %5026 = vmatmul.f32.gmra.mxu0 %v4898
        %v5027 = vpop.f32.mrf.mxu0
        %v5028 = vadd.f32 0.0, %v5027
        %5029 = vdwg.mxu0
        %vm5030 = vcmp.gt.f32.partialorder %v4918, %v4983
        %vm5031 = vcmp.gt.f32.partialorder %v4921, %v4986
        %vm5032 = vcmp.gt.f32.partialorder %v4924, %v4989
        %vm5033 = vcmp.gt.f32.partialorder %v4927, %v4992
        %vm5034 = vcmp.gt.f32.partialorder %v4930, %v4995
        %vm5035 = vcmp.gt.f32.partialorder %v4933, %v4998
        %vm5036 = vcmp.gt.f32.partialorder %v4936, %v5001
        %vm5037 = vcmp.gt.f32.partialorder %v4939, %v5004
        %vm5038 = vcmp.gt.f32.partialorder %v4942, %v5007
        %vm5039 = vcmp.gt.f32.partialorder %v4945, %v5010
        %vm5040 = vcmp.gt.f32.partialorder %v4948, %v5013
        %vm5041 = vcmp.gt.f32.partialorder %v4951, %v5016
        %vm5042 = vcmp.gt.f32.partialorder %v4954, %v5019
        %vm5043 = vcmp.gt.f32.partialorder %v4957, %v5022
        %vm5044 = vcmp.gt.f32.partialorder %v4960, %v5025
        %vm5045 = vcmp.gt.f32.partialorder %v4963, %v5028
        %vm5046 = vcmp.eq.f32.partialorder %v4918, %v4983
        %vm5047 = vcmp.eq.f32.partialorder %v4921, %v4986
        %vm5048 = vcmp.eq.f32.partialorder %v4924, %v4989
        %vm5049 = vcmp.eq.f32.partialorder %v4927, %v4992
        %vm5050 = vcmp.eq.f32.partialorder %v4930, %v4995
        %vm5051 = vcmp.eq.f32.partialorder %v4933, %v4998
        %vm5052 = vcmp.eq.f32.partialorder %v4936, %v5001
        %vm5053 = vcmp.eq.f32.partialorder %v4939, %v5004
        %vm5054 = vcmp.eq.f32.partialorder %v4942, %v5007
        %vm5055 = vcmp.eq.f32.partialorder %v4945, %v5010
        %vm5056 = vcmp.eq.f32.partialorder %v4948, %v5013
        %vm5057 = vcmp.eq.f32.partialorder %v4951, %v5016
        %vm5058 = vcmp.eq.f32.partialorder %v4954, %v5019
        %vm5059 = vcmp.eq.f32.partialorder %v4957, %v5022
        %vm5060 = vcmp.eq.f32.partialorder %v4960, %v5025
        %vm5061 = vcmp.eq.f32.partialorder %v4963, %v5028
        %vm5062 = vmand %vm5046, %vm512
        %vm5063 = vmand %vm5047, %vm513
        %vm5064 = vmand %vm5048, %vm514
        %vm5065 = vmand %vm5049, %vm515
        %vm5066 = vmand %vm5050, %vm516
        %vm5067 = vmand %vm5051, %vm517
        %vm5068 = vmand %vm5052, %vm518
        %vm5069 = vmand %vm5053, %vm519
        %vm5070 = vmand %vm5054, %vm520
        %vm5071 = vmand %vm5055, %vm521
        %vm5072 = vmand %vm5056, %vm522
        %vm5073 = vmand %vm5057, %vm523
        %vm5074 = vmand %vm5058, %vm524
        %vm5075 = vmand %vm5059, %vm525
        %vm5076 = vmand %vm5060, %vm526
        %vm5077 = vmand %vm5061, %vm527
        %vm5078 = vmor %vm5030, %vm5062
        %vm5079 = vmor %vm5031, %vm5063
        %vm5080 = vmor %vm5032, %vm5064
        %vm5081 = vmor %vm5033, %vm5065
        %vm5082 = vmor %vm5034, %vm5066
        %vm5083 = vmor %vm5035, %vm5067
        %vm5084 = vmor %vm5036, %vm5068
        %vm5085 = vmor %vm5037, %vm5069
        %vm5086 = vmor %vm5038, %vm5070
        %vm5087 = vmor %vm5039, %vm5071
        %vm5088 = vmor %vm5040, %vm5072
        %vm5089 = vmor %vm5041, %vm5073
        %vm5090 = vmor %vm5042, %vm5074
        %vm5091 = vmor %vm5043, %vm5075
        %vm5092 = vmor %vm5044, %vm5076
        %vm5093 = vmor %vm5045, %vm5077
        %v5094 = vsel %vm5078, 1.0, 0.0
        %v5095 = vsel %vm5079, 1.0, 0.0
        %v5096 = vsel %vm5080, 1.0, 0.0
        %v5097 = vsel %vm5081, 1.0, 0.0
        %v5098 = vsel %vm5082, 1.0, 0.0
        %v5099 = vsel %vm5083, 1.0, 0.0
        %v5100 = vsel %vm5084, 1.0, 0.0
        %v5101 = vsel %vm5085, 1.0, 0.0
        %v5102 = vsel %vm5086, 1.0, 0.0
        %v5103 = vsel %vm5087, 1.0, 0.0
        %v5104 = vsel %vm5088, 1.0, 0.0
        %v5105 = vsel %vm5089, 1.0, 0.0
        %v5106 = vsel %vm5090, 1.0, 0.0
        %v5107 = vsel %vm5091, 1.0, 0.0
        %v5108 = vsel %vm5092, 1.0, 0.0
        %v5109 = vsel %vm5093, 1.0, 0.0
        %v5110 = vmul.f32 %v3626, %v5094
        %v5111 = vmul.f32 %v3627, %v5095
        %v5112 = vmul.f32 %v3628, %v5096
        %v5113 = vmul.f32 %v3629, %v5097
        %v5114 = vmul.f32 %v3630, %v5098
        %v5115 = vmul.f32 %v3631, %v5099
        %v5116 = vmul.f32 %v3632, %v5100
        %v5117 = vmul.f32 %v3633, %v5101
        %v5118 = vmul.f32 %v3634, %v5102
        %v5119 = vmul.f32 %v3635, %v5103
        %v5120 = vmul.f32 %v3636, %v5104
        %v5121 = vmul.f32 %v3637, %v5105
        %v5122 = vmul.f32 %v3638, %v5106
        %v5123 = vmul.f32 %v3639, %v5107
        %v5124 = vmul.f32 %v3640, %v5108
        %v5125 = vmul.f32 %v3641, %v5109
        %5126 = vadd.xlane.f32.xlu0 %v5110
        %v5127 = vpop.xlane.xlu0 %5126
        %5128 = vadd.xlane.f32.xlu0 %v5111
        %v5129 = vpop.xlane.xlu0 %5128
        %5130 = vadd.xlane.f32.xlu0 %v5112
        %v5131 = vpop.xlane.xlu0 %5130
        %5132 = vadd.xlane.f32.xlu0 %v5113
        %v5133 = vpop.xlane.xlu0 %5132
        %5134 = vadd.xlane.f32.xlu0 %v5114
        %v5135 = vpop.xlane.xlu0 %5134
        %5136 = vadd.xlane.f32.xlu0 %v5115
        %v5137 = vpop.xlane.xlu0 %5136
        %5138 = vadd.xlane.f32.xlu0 %v5116
        %v5139 = vpop.xlane.xlu0 %5138
        %5140 = vadd.xlane.f32.xlu0 %v5117
        %v5141 = vpop.xlane.xlu0 %5140
        %5142 = vadd.xlane.f32.xlu0 %v5118
        %v5143 = vpop.xlane.xlu0 %5142
        %5144 = vadd.xlane.f32.xlu0 %v5119
        %v5145 = vpop.xlane.xlu0 %5144
        %5146 = vadd.xlane.f32.xlu0 %v5120
        %v5147 = vpop.xlane.xlu0 %5146
        %5148 = vadd.xlane.f32.xlu0 %v5121
        %v5149 = vpop.xlane.xlu0 %5148
        %5150 = vadd.xlane.f32.xlu0 %v5122
        %v5151 = vpop.xlane.xlu0 %5150
        %5152 = vadd.xlane.f32.xlu0 %v5123
        %v5153 = vpop.xlane.xlu0 %5152
        %5154 = vadd.xlane.f32.xlu0 %v5124
        %v5155 = vpop.xlane.xlu0 %5154
        %5156 = vadd.xlane.f32.xlu0 %v5125
        %v5157 = vpop.xlane.xlu0 %5156
        %5158 = vadd.xlane.f32.xlu0 %v3626
        %v5159 = vpop.xlane.xlu0 %5158
        %5160 = vadd.xlane.f32.xlu0 %v3627
        %v5161 = vpop.xlane.xlu0 %5160
        %5162 = vadd.xlane.f32.xlu0 %v3628
        %v5163 = vpop.xlane.xlu0 %5162
        %5164 = vadd.xlane.f32.xlu0 %v3629
        %v5165 = vpop.xlane.xlu0 %5164
        %5166 = vadd.xlane.f32.xlu0 %v3630
        %v5167 = vpop.xlane.xlu0 %5166
        %5168 = vadd.xlane.f32.xlu0 %v3631
        %v5169 = vpop.xlane.xlu0 %5168
        %5170 = vadd.xlane.f32.xlu0 %v3632
        %v5171 = vpop.xlane.xlu0 %5170
        %5172 = vadd.xlane.f32.xlu0 %v3633
        %v5173 = vpop.xlane.xlu0 %5172
        %5174 = vadd.xlane.f32.xlu0 %v3634
        %v5175 = vpop.xlane.xlu0 %5174
        %5176 = vadd.xlane.f32.xlu0 %v3635
        %v5177 = vpop.xlane.xlu0 %5176
        %5178 = vadd.xlane.f32.xlu0 %v3636
        %v5179 = vpop.xlane.xlu0 %5178
        %5180 = vadd.xlane.f32.xlu0 %v3637
        %v5181 = vpop.xlane.xlu0 %5180
        %5182 = vadd.xlane.f32.xlu0 %v3638
        %v5183 = vpop.xlane.xlu0 %5182
        %5184 = vadd.xlane.f32.xlu0 %v3639
        %v5185 = vpop.xlane.xlu0 %5184
        %5186 = vadd.xlane.f32.xlu0 %v3640
        %v5187 = vpop.xlane.xlu0 %5186
        %5188 = vadd.xlane.f32.xlu0 %v3641
        %v5189 = vpop.xlane.xlu0 %5188
        %v5190 = vmul.f32 %v5159, 0.8
        %v5191 = vmul.f32 %v5161, 0.8
        %v5192 = vmul.f32 %v5163, 0.8
        %v5193 = vmul.f32 %v5165, 0.8
        %v5194 = vmul.f32 %v5167, 0.8
        %v5195 = vmul.f32 %v5169, 0.8
        %v5196 = vmul.f32 %v5171, 0.8
        %v5197 = vmul.f32 %v5173, 0.8
        %v5198 = vmul.f32 %v5175, 0.8
        %v5199 = vmul.f32 %v5177, 0.8
        %v5200 = vmul.f32 %v5179, 0.8
        %v5201 = vmul.f32 %v5181, 0.8
        %v5202 = vmul.f32 %v5183, 0.8
        %v5203 = vmul.f32 %v5185, 0.8
        %v5204 = vmul.f32 %v5187, 0.8
        %v5205 = vmul.f32 %v5189, 0.8
        %v5206 = vceil.f32 %v5190
        %v5207 = vceil.f32 %v5191
        %v5208 = vceil.f32 %v5192
        %v5209 = vceil.f32 %v5193
        %v5210 = vceil.f32 %v5194
        %v5211 = vceil.f32 %v5195
        %v5212 = vceil.f32 %v5196
        %v5213 = vceil.f32 %v5197
        %v5214 = vceil.f32 %v5198
        %v5215 = vceil.f32 %v5199
        %v5216 = vceil.f32 %v5200
        %v5217 = vceil.f32 %v5201
        %v5218 = vceil.f32 %v5202
        %v5219 = vceil.f32 %v5203
        %v5220 = vceil.f32 %v5204
        %v5221 = vceil.f32 %v5205
        %vm5222 = vcmp.lt.f32.partialorder %v5127, %v5206
        %vm5223 = vcmp.lt.f32.partialorder %v5129, %v5207
        %vm5224 = vcmp.lt.f32.partialorder %v5131, %v5208
        %vm5225 = vcmp.lt.f32.partialorder %v5133, %v5209
        %vm5226 = vcmp.lt.f32.partialorder %v5135, %v5210
        %vm5227 = vcmp.lt.f32.partialorder %v5137, %v5211
        %vm5228 = vcmp.lt.f32.partialorder %v5139, %v5212
        %vm5229 = vcmp.lt.f32.partialorder %v5141, %v5213
        %vm5230 = vcmp.lt.f32.partialorder %v5143, %v5214
        %vm5231 = vcmp.lt.f32.partialorder %v5145, %v5215
        %vm5232 = vcmp.lt.f32.partialorder %v5147, %v5216
        %vm5233 = vcmp.lt.f32.partialorder %v5149, %v5217
        %vm5234 = vcmp.lt.f32.partialorder %v5151, %v5218
        %vm5235 = vcmp.lt.f32.partialorder %v5153, %v5219
        %vm5236 = vcmp.lt.f32.partialorder %v5155, %v5220
        %vm5237 = vcmp.lt.f32.partialorder %v5157, %v5221
        %vm5238 = vmand %vm4820, %vm5222
        %vm5239 = vmand %vm4821, %vm5223
        %vm5240 = vmand %vm4822, %vm5224
        %vm5241 = vmand %vm4823, %vm5225
        %vm5242 = vmand %vm4824, %vm5226
        %vm5243 = vmand %vm4825, %vm5227
        %vm5244 = vmand %vm4826, %vm5228
        %vm5245 = vmand %vm4827, %vm5229
        %vm5246 = vmand %vm4828, %vm5230
        %vm5247 = vmand %vm4829, %vm5231
        %vm5248 = vmand %vm4830, %vm5232
        %vm5249 = vmand %vm4831, %vm5233
        %vm5250 = vmand %vm4832, %vm5234
        %vm5251 = vmand %vm4833, %vm5235
        %vm5252 = vmand %vm4834, %vm5236
        %vm5253 = vmand %vm4835, %vm5237
        %v5254 = vsel %vm5238, 1, 0
        %v5255 = vsel %vm5239, 1, 0
        %v5256 = vsel %vm5240, 1, 0
        %v5257 = vsel %vm5241, 1, 0
        %v5258 = vsel %vm5242, 1, 0
        %v5259 = vsel %vm5243, 1, 0
        %v5260 = vsel %vm5244, 1, 0
        %v5261 = vsel %vm5245, 1, 0
        %v5262 = vsel %vm5246, 1, 0
        %v5263 = vsel %vm5247, 1, 0
        %v5264 = vsel %vm5248, 1, 0
        %v5265 = vsel %vm5249, 1, 0
        %v5266 = vsel %vm5250, 1, 0
        %v5267 = vsel %vm5251, 1, 0
        %v5268 = vsel %vm5252, 1, 0
        %v5269 = vsel %vm5253, 1, 0
        %v5270 = vcvt.s32.f32 %v5254
        %v5271 = vcvt.s32.f32 %v5255
        %v5272 = vcvt.s32.f32 %v5256
        %v5273 = vcvt.s32.f32 %v5257
        %v5274 = vcvt.s32.f32 %v5258
        %v5275 = vcvt.s32.f32 %v5259
        %v5276 = vcvt.s32.f32 %v5260
        %v5277 = vcvt.s32.f32 %v5261
        %v5278 = vcvt.s32.f32 %v5262
        %v5279 = vcvt.s32.f32 %v5263
        %v5280 = vcvt.s32.f32 %v5264
        %v5281 = vcvt.s32.f32 %v5265
        %v5282 = vcvt.s32.f32 %v5266
        %v5283 = vcvt.s32.f32 %v5267
        %v5284 = vcvt.s32.f32 %v5268
        %v5285 = vcvt.s32.f32 %v5269
        %v5286 = vmul.f32 %v4804, %v5270
        %v5287 = vmul.f32 %v4805, %v5271
        %v5288 = vmul.f32 %v4806, %v5272
        %v5289 = vmul.f32 %v4807, %v5273
        %v5290 = vmul.f32 %v4808, %v5274
        %v5291 = vmul.f32 %v4809, %v5275
        %v5292 = vmul.f32 %v4810, %v5276
        %v5293 = vmul.f32 %v4811, %v5277
        %v5294 = vmul.f32 %v4812, %v5278
        %v5295 = vmul.f32 %v4813, %v5279
        %v5296 = vmul.f32 %v4814, %v5280
        %v5297 = vmul.f32 %v4815, %v5281
        %v5298 = vmul.f32 %v4816, %v5282
        %v5299 = vmul.f32 %v4817, %v5283
        %v5300 = vmul.f32 %v4818, %v5284
        %v5301 = vmul.f32 %v4819, %v5285
        %v5302 = vmul.f32 %v4739, %v5286
        %v5303 = vmul.f32 %v4740, %v5287
        %v5304 = vmul.f32 %v4741, %v5288
        %v5305 = vmul.f32 %v4742, %v5289
        %v5306 = vmul.f32 %v4743, %v5290
        %v5307 = vmul.f32 %v4744, %v5291
        %v5308 = vmul.f32 %v4745, %v5292
        %v5309 = vmul.f32 %v4746, %v5293
        %v5310 = vmul.f32 %v4747, %v5294
        %v5311 = vmul.f32 %v4748, %v5295
        %v5312 = vmul.f32 %v4749, %v5296
        %v5313 = vmul.f32 %v4750, %v5297
        %v5314 = vmul.f32 %v4751, %v5298
        %v5315 = vmul.f32 %v4752, %v5299
        %v5316 = vmul.f32 %v4753, %v5300
        %v5317 = vmul.f32 %v4754, %v5301
        %5318 = vmatpush.msra.mxu0 %v5285
        %5319 = vmatpush.msra.mxu0 %v5284
        %5320 = vmatpush.msra.mxu0 %v5283
        %5321 = vmatpush.msra.mxu0 %v5282
        %5322 = vmatpush.msra.mxu0 %v5281
        %5323 = vmatpush.msra.mxu0 %v5280
        %5324 = vmatpush.msra.mxu0 %v5279
        %5325 = vmatpush.msra.mxu0 %v5278
        %5326 = vmatpush.msra.mxu0 %v5277
        %5327 = vmatpush.msra.mxu0 %v5276
        %5328 = vmatpush.msra.mxu0 %v5275
        %5329 = vmatpush.msra.mxu0 %v5274
        %5330 = vmatpush.msra.mxu0 %v5273
        %5331 = vmatpush.msra.mxu0 %v5272
        %5332 = vmatpush.msra.mxu0 %v5271
        %5333 = vmatpush.msra.mxu0 %v5270
        %5334 = vmatmul.f32.gmra.mxu0 %v348
        %v5335 = vpop.f32.mrf.mxu0
        %v5336 = vadd.f32 0.0, %v5335
        %5337 = vmatmul.f32.gmra.mxu0 %v349
        %v5338 = vpop.f32.mrf.mxu0
        %v5339 = vadd.f32 0.0, %v5338
        %5340 = vmatmul.f32.gmra.mxu0 %v350
        %v5341 = vpop.f32.mrf.mxu0
        %v5342 = vadd.f32 0.0, %v5341
        %5343 = vmatmul.f32.gmra.mxu0 %v351
        %v5344 = vpop.f32.mrf.mxu0
        %v5345 = vadd.f32 0.0, %v5344
        %5346 = vmatmul.f32.gmra.mxu0 %v352
        %v5347 = vpop.f32.mrf.mxu0
        %v5348 = vadd.f32 0.0, %v5347
        %5349 = vmatmul.f32.gmra.mxu0 %v353
        %v5350 = vpop.f32.mrf.mxu0
        %v5351 = vadd.f32 0.0, %v5350
        %5352 = vmatmul.f32.gmra.mxu0 %v354
        %v5353 = vpop.f32.mrf.mxu0
        %v5354 = vadd.f32 0.0, %v5353
        %5355 = vmatmul.f32.gmra.mxu0 %v355
        %v5356 = vpop.f32.mrf.mxu0
        %v5357 = vadd.f32 0.0, %v5356
        %5358 = vmatmul.f32.gmra.mxu0 %v356
        %v5359 = vpop.f32.mrf.mxu0
        %v5360 = vadd.f32 0.0, %v5359
        %5361 = vmatmul.f32.gmra.mxu0 %v357
        %v5362 = vpop.f32.mrf.mxu0
        %v5363 = vadd.f32 0.0, %v5362
        %5364 = vmatmul.f32.gmra.mxu0 %v358
        %v5365 = vpop.f32.mrf.mxu0
        %v5366 = vadd.f32 0.0, %v5365
        %5367 = vmatmul.f32.gmra.mxu0 %v359
        %v5368 = vpop.f32.mrf.mxu0
        %v5369 = vadd.f32 0.0, %v5368
        %5370 = vmatmul.f32.gmra.mxu0 %v360
        %v5371 = vpop.f32.mrf.mxu0
        %v5372 = vadd.f32 0.0, %v5371
        %5373 = vmatmul.f32.gmra.mxu0 %v361
        %v5374 = vpop.f32.mrf.mxu0
        %v5375 = vadd.f32 0.0, %v5374
        %5376 = vmatmul.f32.gmra.mxu0 %v362
        %v5377 = vpop.f32.mrf.mxu0
        %v5378 = vadd.f32 0.0, %v5377
        %5379 = vmatmul.f32.gmra.mxu0 %v363
        %v5380 = vpop.f32.mrf.mxu0
        %v5381 = vadd.f32 0.0, %v5380
        %5382 = vdwg.mxu0
        %vm5383 = vcmp.gt.f32.partialorder %v5336, 0.0
        %vm5384 = vcmp.gt.f32.partialorder %v5339, 0.0
        %vm5385 = vcmp.gt.f32.partialorder %v5342, 0.0
        %vm5386 = vcmp.gt.f32.partialorder %v5345, 0.0
        %vm5387 = vcmp.gt.f32.partialorder %v5348, 0.0
        %vm5388 = vcmp.gt.f32.partialorder %v5351, 0.0
        %vm5389 = vcmp.gt.f32.partialorder %v5354, 0.0
        %vm5390 = vcmp.gt.f32.partialorder %v5357, 0.0
        %vm5391 = vcmp.gt.f32.partialorder %v5360, 0.0
        %vm5392 = vcmp.gt.f32.partialorder %v5363, 0.0
        %vm5393 = vcmp.gt.f32.partialorder %v5366, 0.0
        %vm5394 = vcmp.gt.f32.partialorder %v5369, 0.0
        %vm5395 = vcmp.gt.f32.partialorder %v5372, 0.0
        %vm5396 = vcmp.gt.f32.partialorder %v5375, 0.0
        %vm5397 = vcmp.gt.f32.partialorder %v5378, 0.0
        %vm5398 = vcmp.gt.f32.partialorder %v5381, 0.0
        %v5399 = vmax.f32 %v5336, 1.0
        %v5400 = vmax.f32 %v5339, 1.0
        %v5401 = vmax.f32 %v5342, 1.0
        %v5402 = vmax.f32 %v5345, 1.0
        %v5403 = vmax.f32 %v5348, 1.0
        %v5404 = vmax.f32 %v5351, 1.0
        %v5405 = vmax.f32 %v5354, 1.0
        %v5406 = vmax.f32 %v5357, 1.0
        %v5407 = vmax.f32 %v5360, 1.0
        %v5408 = vmax.f32 %v5363, 1.0
        %v5409 = vmax.f32 %v5366, 1.0
        %v5410 = vmax.f32 %v5369, 1.0
        %v5411 = vmax.f32 %v5372, 1.0
        %v5412 = vmax.f32 %v5375, 1.0
        %v5413 = vmax.f32 %v5378, 1.0
        %v5414 = vmax.f32 %v5381, 1.0
        %v5415 = vrcp.pop %v5399
        %v5416 = vmul.f32 %v5399, %v5415
        %v5417 = vsub.f32 1.0, %v5416
        %v5418 = vmul.f32 %v5415, %v5417
        %v5419 = vadd.f32 %v5415, %v5418
        %vm5420 = vweird.f32 %v5399
        %vm5421 = vweird.f32 %v5415
        %vm5422 = vmor %vm5420, %vm5421
        %v5423 = vsel %vm5422, %v5415, %v5419
        %v5424 = vand.u32 2147483647, %v5399
        %vm5425 = vcmp.eq.f32.partialorder %v5424, 8.507059e+37
        %v5426 = vand.u32 %v5399, 2147483648
        %v5427 = vor.u32 1.1754944e-38, %v5426
        %v5428 = vsel %vm5425, %v5427, %v5423
        %v5429 = vmul.f32 1.0, %v5428
        %v5430 = vrcp.pop %v5400
        %v5431 = vmul.f32 %v5400, %v5430
        %v5432 = vsub.f32 1.0, %v5431
        %v5433 = vmul.f32 %v5430, %v5432
        %v5434 = vadd.f32 %v5430, %v5433
        %vm5435 = vweird.f32 %v5400
        %vm5436 = vweird.f32 %v5430
        %vm5437 = vmor %vm5435, %vm5436
        %v5438 = vsel %vm5437, %v5430, %v5434
        %v5439 = vand.u32 2147483647, %v5400
        %vm5440 = vcmp.eq.f32.partialorder %v5439, 8.507059e+37
        %v5441 = vand.u32 %v5400, 2147483648
        %v5442 = vor.u32 1.1754944e-38, %v5441
        %v5443 = vsel %vm5440, %v5442, %v5438
        %v5444 = vmul.f32 1.0, %v5443
        %v5445 = vrcp.pop %v5401
        %v5446 = vmul.f32 %v5401, %v5445
        %v5447 = vsub.f32 1.0, %v5446
        %v5448 = vmul.f32 %v5445, %v5447
        %v5449 = vadd.f32 %v5445, %v5448
        %vm5450 = vweird.f32 %v5401
        %vm5451 = vweird.f32 %v5445
        %vm5452 = vmor %vm5450, %vm5451
        %v5453 = vsel %vm5452, %v5445, %v5449
        %v5454 = vand.u32 2147483647, %v5401
        %vm5455 = vcmp.eq.f32.partialorder %v5454, 8.507059e+37
        %v5456 = vand.u32 %v5401, 2147483648
        %v5457 = vor.u32 1.1754944e-38, %v5456
        %v5458 = vsel %vm5455, %v5457, %v5453
        %v5459 = vmul.f32 1.0, %v5458
        %v5460 = vrcp.pop %v5402
        %v5461 = vmul.f32 %v5402, %v5460
        %v5462 = vsub.f32 1.0, %v5461
        %v5463 = vmul.f32 %v5460, %v5462
        %v5464 = vadd.f32 %v5460, %v5463
        %vm5465 = vweird.f32 %v5402
        %vm5466 = vweird.f32 %v5460
        %vm5467 = vmor %vm5465, %vm5466
        %v5468 = vsel %vm5467, %v5460, %v5464
        %v5469 = vand.u32 2147483647, %v5402
        %vm5470 = vcmp.eq.f32.partialorder %v5469, 8.507059e+37
        %v5471 = vand.u32 %v5402, 2147483648
        %v5472 = vor.u32 1.1754944e-38, %v5471
        %v5473 = vsel %vm5470, %v5472, %v5468
        %v5474 = vmul.f32 1.0, %v5473
        %v5475 = vrcp.pop %v5403
        %v5476 = vmul.f32 %v5403, %v5475
        %v5477 = vsub.f32 1.0, %v5476
        %v5478 = vmul.f32 %v5475, %v5477
        %v5479 = vadd.f32 %v5475, %v5478
        %vm5480 = vweird.f32 %v5403
        %vm5481 = vweird.f32 %v5475
        %vm5482 = vmor %vm5480, %vm5481
        %v5483 = vsel %vm5482, %v5475, %v5479
        %v5484 = vand.u32 2147483647, %v5403
        %vm5485 = vcmp.eq.f32.partialorder %v5484, 8.507059e+37
        %v5486 = vand.u32 %v5403, 2147483648
        %v5487 = vor.u32 1.1754944e-38, %v5486
        %v5488 = vsel %vm5485, %v5487, %v5483
        %v5489 = vmul.f32 1.0, %v5488
        %v5490 = vrcp.pop %v5404
        %v5491 = vmul.f32 %v5404, %v5490
        %v5492 = vsub.f32 1.0, %v5491
        %v5493 = vmul.f32 %v5490, %v5492
        %v5494 = vadd.f32 %v5490, %v5493
        %vm5495 = vweird.f32 %v5404
        %vm5496 = vweird.f32 %v5490
        %vm5497 = vmor %vm5495, %vm5496
        %v5498 = vsel %vm5497, %v5490, %v5494
        %v5499 = vand.u32 2147483647, %v5404
        %vm5500 = vcmp.eq.f32.partialorder %v5499, 8.507059e+37
        %v5501 = vand.u32 %v5404, 2147483648
        %v5502 = vor.u32 1.1754944e-38, %v5501
        %v5503 = vsel %vm5500, %v5502, %v5498
        %v5504 = vmul.f32 1.0, %v5503
        %v5505 = vrcp.pop %v5405
        %v5506 = vmul.f32 %v5405, %v5505
        %v5507 = vsub.f32 1.0, %v5506
        %v5508 = vmul.f32 %v5505, %v5507
        %v5509 = vadd.f32 %v5505, %v5508
        %vm5510 = vweird.f32 %v5405
        %vm5511 = vweird.f32 %v5505
        %vm5512 = vmor %vm5510, %vm5511
        %v5513 = vsel %vm5512, %v5505, %v5509
        %v5514 = vand.u32 2147483647, %v5405
        %vm5515 = vcmp.eq.f32.partialorder %v5514, 8.507059e+37
        %v5516 = vand.u32 %v5405, 2147483648
        %v5517 = vor.u32 1.1754944e-38, %v5516
        %v5518 = vsel %vm5515, %v5517, %v5513
        %v5519 = vmul.f32 1.0, %v5518
        %v5520 = vrcp.pop %v5406
        %v5521 = vmul.f32 %v5406, %v5520
        %v5522 = vsub.f32 1.0, %v5521
        %v5523 = vmul.f32 %v5520, %v5522
        %v5524 = vadd.f32 %v5520, %v5523
        %vm5525 = vweird.f32 %v5406
        %vm5526 = vweird.f32 %v5520
        %vm5527 = vmor %vm5525, %vm5526
        %v5528 = vsel %vm5527, %v5520, %v5524
        %v5529 = vand.u32 2147483647, %v5406
        %vm5530 = vcmp.eq.f32.partialorder %v5529, 8.507059e+37
        %v5531 = vand.u32 %v5406, 2147483648
        %v5532 = vor.u32 1.1754944e-38, %v5531
        %v5533 = vsel %vm5530, %v5532, %v5528
        %v5534 = vmul.f32 1.0, %v5533
        %v5535 = vrcp.pop %v5407
        %v5536 = vmul.f32 %v5407, %v5535
        %v5537 = vsub.f32 1.0, %v5536
        %v5538 = vmul.f32 %v5535, %v5537
        %v5539 = vadd.f32 %v5535, %v5538
        %vm5540 = vweird.f32 %v5407
        %vm5541 = vweird.f32 %v5535
        %vm5542 = vmor %vm5540, %vm5541
        %v5543 = vsel %vm5542, %v5535, %v5539
        %v5544 = vand.u32 2147483647, %v5407
        %vm5545 = vcmp.eq.f32.partialorder %v5544, 8.507059e+37
        %v5546 = vand.u32 %v5407, 2147483648
        %v5547 = vor.u32 1.1754944e-38, %v5546
        %v5548 = vsel %vm5545, %v5547, %v5543
        %v5549 = vmul.f32 1.0, %v5548
        %v5550 = vrcp.pop %v5408
        %v5551 = vmul.f32 %v5408, %v5550
        %v5552 = vsub.f32 1.0, %v5551
        %v5553 = vmul.f32 %v5550, %v5552
        %v5554 = vadd.f32 %v5550, %v5553
        %vm5555 = vweird.f32 %v5408
        %vm5556 = vweird.f32 %v5550
        %vm5557 = vmor %vm5555, %vm5556
        %v5558 = vsel %vm5557, %v5550, %v5554
        %v5559 = vand.u32 2147483647, %v5408
        %vm5560 = vcmp.eq.f32.partialorder %v5559, 8.507059e+37
        %v5561 = vand.u32 %v5408, 2147483648
        %v5562 = vor.u32 1.1754944e-38, %v5561
        %v5563 = vsel %vm5560, %v5562, %v5558
        %v5564 = vmul.f32 1.0, %v5563
        %v5565 = vrcp.pop %v5409
        %v5566 = vmul.f32 %v5409, %v5565
        %v5567 = vsub.f32 1.0, %v5566
        %v5568 = vmul.f32 %v5565, %v5567
        %v5569 = vadd.f32 %v5565, %v5568
        %vm5570 = vweird.f32 %v5409
        %vm5571 = vweird.f32 %v5565
        %vm5572 = vmor %vm5570, %vm5571
        %v5573 = vsel %vm5572, %v5565, %v5569
        %v5574 = vand.u32 2147483647, %v5409
        %vm5575 = vcmp.eq.f32.partialorder %v5574, 8.507059e+37
        %v5576 = vand.u32 %v5409, 2147483648
        %v5577 = vor.u32 1.1754944e-38, %v5576
        %v5578 = vsel %vm5575, %v5577, %v5573
        %v5579 = vmul.f32 1.0, %v5578
        %v5580 = vrcp.pop %v5410
        %v5581 = vmul.f32 %v5410, %v5580
        %v5582 = vsub.f32 1.0, %v5581
        %v5583 = vmul.f32 %v5580, %v5582
        %v5584 = vadd.f32 %v5580, %v5583
        %vm5585 = vweird.f32 %v5410
        %vm5586 = vweird.f32 %v5580
        %vm5587 = vmor %vm5585, %vm5586
        %v5588 = vsel %vm5587, %v5580, %v5584
        %v5589 = vand.u32 2147483647, %v5410
        %vm5590 = vcmp.eq.f32.partialorder %v5589, 8.507059e+37
        %v5591 = vand.u32 %v5410, 2147483648
        %v5592 = vor.u32 1.1754944e-38, %v5591
        %v5593 = vsel %vm5590, %v5592, %v5588
        %v5594 = vmul.f32 1.0, %v5593
        %v5595 = vrcp.pop %v5411
        %v5596 = vmul.f32 %v5411, %v5595
        %v5597 = vsub.f32 1.0, %v5596
        %v5598 = vmul.f32 %v5595, %v5597
        %v5599 = vadd.f32 %v5595, %v5598
        %vm5600 = vweird.f32 %v5411
        %vm5601 = vweird.f32 %v5595
        %vm5602 = vmor %vm5600, %vm5601
        %v5603 = vsel %vm5602, %v5595, %v5599
        %v5604 = vand.u32 2147483647, %v5411
        %vm5605 = vcmp.eq.f32.partialorder %v5604, 8.507059e+37
        %v5606 = vand.u32 %v5411, 2147483648
        %v5607 = vor.u32 1.1754944e-38, %v5606
        %v5608 = vsel %vm5605, %v5607, %v5603
        %v5609 = vmul.f32 1.0, %v5608
        %v5610 = vrcp.pop %v5412
        %v5611 = vmul.f32 %v5412, %v5610
        %v5612 = vsub.f32 1.0, %v5611
        %v5613 = vmul.f32 %v5610, %v5612
        %v5614 = vadd.f32 %v5610, %v5613
        %vm5615 = vweird.f32 %v5412
        %vm5616 = vweird.f32 %v5610
        %vm5617 = vmor %vm5615, %vm5616
        %v5618 = vsel %vm5617, %v5610, %v5614
        %v5619 = vand.u32 2147483647, %v5412
        %vm5620 = vcmp.eq.f32.partialorder %v5619, 8.507059e+37
        %v5621 = vand.u32 %v5412, 2147483648
        %v5622 = vor.u32 1.1754944e-38, %v5621
        %v5623 = vsel %vm5620, %v5622, %v5618
        %v5624 = vmul.f32 1.0, %v5623
        %v5625 = vrcp.pop %v5413
        %v5626 = vmul.f32 %v5413, %v5625
        %v5627 = vsub.f32 1.0, %v5626
        %v5628 = vmul.f32 %v5625, %v5627
        %v5629 = vadd.f32 %v5625, %v5628
        %vm5630 = vweird.f32 %v5413
        %vm5631 = vweird.f32 %v5625
        %vm5632 = vmor %vm5630, %vm5631
        %v5633 = vsel %vm5632, %v5625, %v5629
        %v5634 = vand.u32 2147483647, %v5413
        %vm5635 = vcmp.eq.f32.partialorder %v5634, 8.507059e+37
        %v5636 = vand.u32 %v5413, 2147483648
        %v5637 = vor.u32 1.1754944e-38, %v5636
        %v5638 = vsel %vm5635, %v5637, %v5633
        %v5639 = vmul.f32 1.0, %v5638
        %v5640 = vrcp.pop %v5414
        %v5641 = vmul.f32 %v5414, %v5640
        %v5642 = vsub.f32 1.0, %v5641
        %v5643 = vmul.f32 %v5640, %v5642
        %v5644 = vadd.f32 %v5640, %v5643
        %vm5645 = vweird.f32 %v5414
        %vm5646 = vweird.f32 %v5640
        %vm5647 = vmor %vm5645, %vm5646
        %v5648 = vsel %vm5647, %v5640, %v5644
        %v5649 = vand.u32 2147483647, %v5414
        %vm5650 = vcmp.eq.f32.partialorder %v5649, 8.507059e+37
        %v5651 = vand.u32 %v5414, 2147483648
        %v5652 = vor.u32 1.1754944e-38, %v5651
        %v5653 = vsel %vm5650, %v5652, %v5648
        %v5654 = vmul.f32 1.0, %v5653
        %v5655 = vsel %vm5383, %v5429, 0.0
        %v5656 = vsel %vm5384, %v5444, 0.0
        %v5657 = vsel %vm5385, %v5459, 0.0
        %v5658 = vsel %vm5386, %v5474, 0.0
        %v5659 = vsel %vm5387, %v5489, 0.0
        %v5660 = vsel %vm5388, %v5504, 0.0
        %v5661 = vsel %vm5389, %v5519, 0.0
        %v5662 = vsel %vm5390, %v5534, 0.0
        %v5663 = vsel %vm5391, %v5549, 0.0
        %v5664 = vsel %vm5392, %v5564, 0.0
        %v5665 = vsel %vm5393, %v5579, 0.0
        %v5666 = vsel %vm5394, %v5594, 0.0
        %v5667 = vsel %vm5395, %v5609, 0.0
        %v5668 = vsel %vm5396, %v5624, 0.0
        %v5669 = vsel %vm5397, %v5639, 0.0
        %v5670 = vsel %vm5398, %v5654, 0.0
        %5671 = vmatpush.msra.mxu0 %v5317
        %5672 = vmatpush.msra.mxu0 %v5316
        %5673 = vmatpush.msra.mxu0 %v5315
        %5674 = vmatpush.msra.mxu0 %v5314
        %5675 = vmatpush.msra.mxu0 %v5313
        %5676 = vmatpush.msra.mxu0 %v5312
        %5677 = vmatpush.msra.mxu0 %v5311
        %5678 = vmatpush.msra.mxu0 %v5310
        %5679 = vmatpush.msra.mxu0 %v5309
        %5680 = vmatpush.msra.mxu0 %v5308
        %5681 = vmatpush.msra.mxu0 %v5307
        %5682 = vmatpush.msra.mxu0 %v5306
        %5683 = vmatpush.msra.mxu0 %v5305
        %5684 = vmatpush.msra.mxu0 %v5304
        %5685 = vmatpush.msra.mxu0 %v5303
        %5686 = vmatpush.msra.mxu0 %v5302
        %5687 = vmatmul.f32.gmra.mxu0 %v348
        %v5688 = vpop.f32.mrf.mxu0
        %v5689 = vadd.f32 0.0, %v5688
        %5690 = vmatmul.f32.gmra.mxu0 %v349
        %v5691 = vpop.f32.mrf.mxu0
        %v5692 = vadd.f32 0.0, %v5691
        %5693 = vmatmul.f32.gmra.mxu0 %v350
        %v5694 = vpop.f32.mrf.mxu0
        %v5695 = vadd.f32 0.0, %v5694
        %5696 = vmatmul.f32.gmra.mxu0 %v351
        %v5697 = vpop.f32.mrf.mxu0
        %v5698 = vadd.f32 0.0, %v5697
        %5699 = vmatmul.f32.gmra.mxu0 %v352
        %v5700 = vpop.f32.mrf.mxu0
        %v5701 = vadd.f32 0.0, %v5700
        %5702 = vmatmul.f32.gmra.mxu0 %v353
        %v5703 = vpop.f32.mrf.mxu0
        %v5704 = vadd.f32 0.0, %v5703
        %5705 = vmatmul.f32.gmra.mxu0 %v354
        %v5706 = vpop.f32.mrf.mxu0
        %v5707 = vadd.f32 0.0, %v5706
        %5708 = vmatmul.f32.gmra.mxu0 %v355
        %v5709 = vpop.f32.mrf.mxu0
        %v5710 = vadd.f32 0.0, %v5709
        %5711 = vmatmul.f32.gmra.mxu0 %v356
        %v5712 = vpop.f32.mrf.mxu0
        %v5713 = vadd.f32 0.0, %v5712
        %5714 = vmatmul.f32.gmra.mxu0 %v357
        %v5715 = vpop.f32.mrf.mxu0
        %v5716 = vadd.f32 0.0, %v5715
        %5717 = vmatmul.f32.gmra.mxu0 %v358
        %v5718 = vpop.f32.mrf.mxu0
        %v5719 = vadd.f32 0.0, %v5718
        %5720 = vmatmul.f32.gmra.mxu0 %v359
        %v5721 = vpop.f32.mrf.mxu0
        %v5722 = vadd.f32 0.0, %v5721
        %5723 = vmatmul.f32.gmra.mxu0 %v360
        %v5724 = vpop.f32.mrf.mxu0
        %v5725 = vadd.f32 0.0, %v5724
        %5726 = vmatmul.f32.gmra.mxu0 %v361
        %v5727 = vpop.f32.mrf.mxu0
        %v5728 = vadd.f32 0.0, %v5727
        %5729 = vmatmul.f32.gmra.mxu0 %v362
        %v5730 = vpop.f32.mrf.mxu0
        %v5731 = vadd.f32 0.0, %v5730
        %5732 = vmatmul.f32.gmra.mxu0 %v363
        %v5733 = vpop.f32.mrf.mxu0
        %v5734 = vadd.f32 0.0, %v5733
        %5735 = vdwg.mxu0
        %5737 = vset.pattern.permute.xlu0 0
        %5738 = vperm.xlu0 %5737, %v5655
        %v5739 = vpop.permute.xlu0 %5738
        %5742 = vset.pattern.permute.xlu0 0
        %5743 = vperm.xlu0 %5742, %v5656
        %v5744 = vpop.permute.xlu0 %5743
        %5747 = vset.pattern.permute.xlu0 0
        %5748 = vperm.xlu0 %5747, %v5657
        %v5749 = vpop.permute.xlu0 %5748
        %5752 = vset.pattern.permute.xlu0 0
        %5753 = vperm.xlu0 %5752, %v5658
        %v5754 = vpop.permute.xlu0 %5753
        %5757 = vset.pattern.permute.xlu0 0
        %5758 = vperm.xlu0 %5757, %v5659
        %v5759 = vpop.permute.xlu0 %5758
        %5762 = vset.pattern.permute.xlu0 0
        %5763 = vperm.xlu0 %5762, %v5660
        %v5764 = vpop.permute.xlu0 %5763
        %5767 = vset.pattern.permute.xlu0 0
        %5768 = vperm.xlu0 %5767, %v5661
        %v5769 = vpop.permute.xlu0 %5768
        %5772 = vset.pattern.permute.xlu0 0
        %5773 = vperm.xlu0 %5772, %v5662
        %v5774 = vpop.permute.xlu0 %5773
        %5777 = vset.pattern.permute.xlu0 0
        %5778 = vperm.xlu0 %5777, %v5663
        %v5779 = vpop.permute.xlu0 %5778
        %5782 = vset.pattern.permute.xlu0 0
        %5783 = vperm.xlu0 %5782, %v5664
        %v5784 = vpop.permute.xlu0 %5783
        %5787 = vset.pattern.permute.xlu0 0
        %5788 = vperm.xlu0 %5787, %v5665
        %v5789 = vpop.permute.xlu0 %5788
        %5792 = vset.pattern.permute.xlu0 0
        %5793 = vperm.xlu0 %5792, %v5666
        %v5794 = vpop.permute.xlu0 %5793
        %5797 = vset.pattern.permute.xlu0 0
        %5798 = vperm.xlu0 %5797, %v5667
        %v5799 = vpop.permute.xlu0 %5798
        %5802 = vset.pattern.permute.xlu0 0
        %5803 = vperm.xlu0 %5802, %v5668
        %v5804 = vpop.permute.xlu0 %5803
        %5807 = vset.pattern.permute.xlu0 0
        %5808 = vperm.xlu0 %5807, %v5669
        %v5809 = vpop.permute.xlu0 %5808
        %5812 = vset.pattern.permute.xlu0 0
        %5813 = vperm.xlu0 %5812, %v5670
        %v5814 = vpop.permute.xlu0 %5813
        %v5816 = vmul.f32 %v5689, %v5739
        %v5817 = vmul.f32 %v5692, %v5744
        %v5818 = vmul.f32 %v5695, %v5749
        %v5819 = vmul.f32 %v5698, %v5754
        %v5820 = vmul.f32 %v5701, %v5759
        %v5821 = vmul.f32 %v5704, %v5764
        %v5822 = vmul.f32 %v5707, %v5769
        %v5823 = vmul.f32 %v5710, %v5774
        %v5824 = vmul.f32 %v5713, %v5779
        %v5825 = vmul.f32 %v5716, %v5784
        %v5826 = vmul.f32 %v5719, %v5789
        %v5827 = vmul.f32 %v5722, %v5794
        %v5828 = vmul.f32 %v5725, %v5799
        %v5829 = vmul.f32 %v5728, %v5804
        %v5830 = vmul.f32 %v5731, %v5809
        %v5831 = vmul.f32 %v5734, %v5814
        %v5832 = vadd.f32 %v4156, %v5816
        %v5833 = vadd.f32 %v4157, %v5817
        %v5834 = vadd.f32 %v4158, %v5818
        %v5835 = vadd.f32 %v4159, %v5819
        %v5836 = vadd.f32 %v4160, %v5820
        %v5837 = vadd.f32 %v4161, %v5821
        %v5838 = vadd.f32 %v4162, %v5822
        %v5839 = vadd.f32 %v4163, %v5823
        %v5840 = vadd.f32 %v4164, %v5824
        %v5841 = vadd.f32 %v4165, %v5825
        %v5842 = vadd.f32 %v4166, %v5826
        %v5843 = vadd.f32 %v4167, %v5827
        %v5844 = vadd.f32 %v4168, %v5828
        %v5845 = vadd.f32 %v4169, %v5829
        %v5846 = vadd.f32 %v4170, %v5830
        %v5847 = vadd.f32 %v4171, %v5831
        %v5848 = vld [vmem:[%s5] sm:$0xff]
        %v5849 = vld [vmem:[%s5 + $0x10] sm:$0xff]
        %v5850 = vld [vmem:[%s5 + $0x20] sm:$0xff]
        %v5851 = vld [vmem:[%s5 + $0x30] sm:$0xff]
        %v5852 = vld [vmem:[%s5 + $0x40] sm:$0xff]
        %v5853 = vld [vmem:[%s5 + $0x50] sm:$0xff]
        %v5854 = vld [vmem:[%s5 + $0x60] sm:$0xff]
        %v5855 = vld [vmem:[%s5 + $0x70] sm:$0xff]
        %v5856 = vld [vmem:[%s5 + $0x80] sm:$0xff]
        %v5857 = vld [vmem:[%s5 + $0x90] sm:$0xff]
        %v5858 = vld [vmem:[%s5 + $0xa0] sm:$0xff]
        %v5859 = vld [vmem:[%s5 + $0xb0] sm:$0xff]
        %v5860 = vld [vmem:[%s5 + $0xc0] sm:$0xff]
        %v5861 = vld [vmem:[%s5 + $0xd0] sm:$0xff]
        %v5862 = vld [vmem:[%s5 + $0xe0] sm:$0xff]
        %v5863 = vld [vmem:[%s5 + $0xf0] sm:$0xff]
        %v5864 = vld [vmem:[%s5 + $0x8] sm:$0xff]
        %v5865 = vld [vmem:[%s5 + $0x18] sm:$0xff]
        %v5866 = vld [vmem:[%s5 + $0x28] sm:$0xff]
        %v5867 = vld [vmem:[%s5 + $0x38] sm:$0xff]
        %v5868 = vld [vmem:[%s5 + $0x48] sm:$0xff]
        %v5869 = vld [vmem:[%s5 + $0x58] sm:$0xff]
        %v5870 = vld [vmem:[%s5 + $0x68] sm:$0xff]
        %v5871 = vld [vmem:[%s5 + $0x78] sm:$0xff]
        %v5872 = vld [vmem:[%s5 + $0x88] sm:$0xff]
        %v5873 = vld [vmem:[%s5 + $0x98] sm:$0xff]
        %v5874 = vld [vmem:[%s5 + $0xa8] sm:$0xff]
        %v5875 = vld [vmem:[%s5 + $0xb8] sm:$0xff]
        %v5876 = vld [vmem:[%s5 + $0xc8] sm:$0xff]
        %v5877 = vld [vmem:[%s5 + $0xd8] sm:$0xff]
        %v5878 = vld [vmem:[%s5 + $0xe8] sm:$0xff]
        %v5879 = vld [vmem:[%s5 + $0xf8] sm:$0xff]
        %v5880 = vld [vmem:[%s6] ss:$0 sm:$0xff]
        %v5881 = vld [vmem:[%s6 + $0x8] ss:$0 sm:$0xff]
        %v5882 = vld [vmem:[%s6 + $0x1] ss:$0 sm:$0xff]
        %v5883 = vld [vmem:[%s6 + $0x2] ss:$0 sm:$0xff]
        %5884 = vmatpush.msra.mxu0 %v5863
        %5885 = vmatpush.msra.mxu0 %v5862
        %5886 = vmatpush.msra.mxu0 %v5861
        %5887 = vmatpush.msra.mxu0 %v5860
        %5888 = vmatpush.msra.mxu0 %v5859
        %5889 = vmatpush.msra.mxu0 %v5858
        %5890 = vmatpush.msra.mxu0 %v5857
        %5891 = vmatpush.msra.mxu0 %v5856
        %5892 = vmatpush.msra.mxu0 %v5855
        %5893 = vmatpush.msra.mxu0 %v5854
        %5894 = vmatpush.msra.mxu0 %v5853
        %5895 = vmatpush.msra.mxu0 %v5852
        %5896 = vmatpush.msra.mxu0 %v5851
        %5897 = vmatpush.msra.mxu0 %v5850
        %5898 = vmatpush.msra.mxu0 %v5849
        %5899 = vmatpush.msra.mxu0 %v5848
        %5900 = vmatmul.f32.gmra.mxu0 %v5832
        %v5901 = vpop.f32.mrf.mxu0
        %v5902 = vadd.f32 %v5880, %v5901
        %5903 = vmatmul.f32.gmra.mxu0 %v5833
        %v5904 = vpop.f32.mrf.mxu0
        %v5905 = vadd.f32 %v5880, %v5904
        %5906 = vmatmul.f32.gmra.mxu0 %v5834
        %v5907 = vpop.f32.mrf.mxu0
        %v5908 = vadd.f32 %v5880, %v5907
        %5909 = vmatmul.f32.gmra.mxu0 %v5835
        %v5910 = vpop.f32.mrf.mxu0
        %v5911 = vadd.f32 %v5880, %v5910
        %5912 = vmatmul.f32.gmra.mxu0 %v5836
        %v5913 = vpop.f32.mrf.mxu0
        %v5914 = vadd.f32 %v5880, %v5913
        %5915 = vmatmul.f32.gmra.mxu0 %v5837
        %v5916 = vpop.f32.mrf.mxu0
        %v5917 = vadd.f32 %v5880, %v5916
        %5918 = vmatmul.f32.gmra.mxu0 %v5838
        %v5919 = vpop.f32.mrf.mxu0
        %v5920 = vadd.f32 %v5880, %v5919
        %5921 = vmatmul.f32.gmra.mxu0 %v5839
        %v5922 = vpop.f32.mrf.mxu0
        %v5923 = vadd.f32 %v5880, %v5922
        %5924 = vmatmul.f32.gmra.mxu0 %v5840
        %v5925 = vpop.f32.mrf.mxu0
        %v5926 = vadd.f32 %v5880, %v5925
        %5927 = vmatmul.f32.gmra.mxu0 %v5841
        %v5928 = vpop.f32.mrf.mxu0
        %v5929 = vadd.f32 %v5880, %v5928
        %5930 = vmatmul.f32.gmra.mxu0 %v5842
        %v5931 = vpop.f32.mrf.mxu0
        %v5932 = vadd.f32 %v5880, %v5931
        %5933 = vmatmul.f32.gmra.mxu0 %v5843
        %v5934 = vpop.f32.mrf.mxu0
        %v5935 = vadd.f32 %v5880, %v5934
        %5936 = vmatmul.f32.gmra.mxu0 %v5844
        %v5937 = vpop.f32.mrf.mxu0
        %v5938 = vadd.f32 %v5880, %v5937
        %5939 = vmatmul.f32.gmra.mxu0 %v5845
        %v5940 = vpop.f32.mrf.mxu0
        %v5941 = vadd.f32 %v5880, %v5940
        %5942 = vmatmul.f32.gmra.mxu0 %v5846
        %v5943 = vpop.f32.mrf.mxu0
        %v5944 = vadd.f32 %v5880, %v5943
        %5945 = vmatmul.f32.gmra.mxu0 %v5847
        %v5946 = vpop.f32.mrf.mxu0
        %v5947 = vadd.f32 %v5880, %v5946
        %5948 = vdwg.mxu0
        %v5949 = vmax.f32 %v5902, 0.0
        %v5950 = vmax.f32 %v5905, 0.0
        %v5951 = vmax.f32 %v5908, 0.0
        %v5952 = vmax.f32 %v5911, 0.0
        %v5953 = vmax.f32 %v5914, 0.0
        %v5954 = vmax.f32 %v5917, 0.0
        %v5955 = vmax.f32 %v5920, 0.0
        %v5956 = vmax.f32 %v5923, 0.0
        %v5957 = vmax.f32 %v5926, 0.0
        %v5958 = vmax.f32 %v5929, 0.0
        %v5959 = vmax.f32 %v5932, 0.0
        %v5960 = vmax.f32 %v5935, 0.0
        %v5961 = vmax.f32 %v5938, 0.0
        %v5962 = vmax.f32 %v5941, 0.0
        %v5963 = vmax.f32 %v5944, 0.0
        %v5964 = vmax.f32 %v5947, 0.0
        %5965 = vmatpush.msra.mxu0 %v5879
        %5966 = vmatpush.msra.mxu0 %v5878
        %5967 = vmatpush.msra.mxu0 %v5877
        %5968 = vmatpush.msra.mxu0 %v5876
        %5969 = vmatpush.msra.mxu0 %v5875
        %5970 = vmatpush.msra.mxu0 %v5874
        %5971 = vmatpush.msra.mxu0 %v5873
        %5972 = vmatpush.msra.mxu0 %v5872
        %5973 = vmatpush.msra.mxu0 %v5871
        %5974 = vmatpush.msra.mxu0 %v5870
        %5975 = vmatpush.msra.mxu0 %v5869
        %5976 = vmatpush.msra.mxu0 %v5868
        %5977 = vmatpush.msra.mxu0 %v5867
        %5978 = vmatpush.msra.mxu0 %v5866
        %5979 = vmatpush.msra.mxu0 %v5865
        %5980 = vmatpush.msra.mxu0 %v5864
        %5981 = vmatmul.f32.gmra.mxu0 %v5949
        %v5982 = vpop.f32.mrf.mxu0
        %v5983 = vadd.f32 %v5881, %v5982
        %5984 = vmatmul.f32.gmra.mxu0 %v5950
        %v5985 = vpop.f32.mrf.mxu0
        %v5986 = vadd.f32 %v5881, %v5985
        %5987 = vmatmul.f32.gmra.mxu0 %v5951
        %v5988 = vpop.f32.mrf.mxu0
        %v5989 = vadd.f32 %v5881, %v5988
        %5990 = vmatmul.f32.gmra.mxu0 %v5952
        %v5991 = vpop.f32.mrf.mxu0
        %v5992 = vadd.f32 %v5881, %v5991
        %5993 = vmatmul.f32.gmra.mxu0 %v5953
        %v5994 = vpop.f32.mrf.mxu0
        %v5995 = vadd.f32 %v5881, %v5994
        %5996 = vmatmul.f32.gmra.mxu0 %v5954
        %v5997 = vpop.f32.mrf.mxu0
        %v5998 = vadd.f32 %v5881, %v5997
        %5999 = vmatmul.f32.gmra.mxu0 %v5955
        %v6000 = vpop.f32.mrf.mxu0
        %v6001 = vadd.f32 %v5881, %v6000
        %6002 = vmatmul.f32.gmra.mxu0 %v5956
        %v6003 = vpop.f32.mrf.mxu0
        %v6004 = vadd.f32 %v5881, %v6003
        %6005 = vmatmul.f32.gmra.mxu0 %v5957
        %v6006 = vpop.f32.mrf.mxu0
        %v6007 = vadd.f32 %v5881, %v6006
        %6008 = vmatmul.f32.gmra.mxu0 %v5958
        %v6009 = vpop.f32.mrf.mxu0
        %v6010 = vadd.f32 %v5881, %v6009
        %6011 = vmatmul.f32.gmra.mxu0 %v5959
        %v6012 = vpop.f32.mrf.mxu0
        %v6013 = vadd.f32 %v5881, %v6012
        %6014 = vmatmul.f32.gmra.mxu0 %v5960
        %v6015 = vpop.f32.mrf.mxu0
        %v6016 = vadd.f32 %v5881, %v6015
        %6017 = vmatmul.f32.gmra.mxu0 %v5961
        %v6018 = vpop.f32.mrf.mxu0
        %v6019 = vadd.f32 %v5881, %v6018
        %6020 = vmatmul.f32.gmra.mxu0 %v5962
        %v6021 = vpop.f32.mrf.mxu0
        %v6022 = vadd.f32 %v5881, %v6021
        %6023 = vmatmul.f32.gmra.mxu0 %v5963
        %v6024 = vpop.f32.mrf.mxu0
        %v6025 = vadd.f32 %v5881, %v6024
        %6026 = vmatmul.f32.gmra.mxu0 %v5964
        %v6027 = vpop.f32.mrf.mxu0
        %v6028 = vadd.f32 %v5881, %v6027
        %6029 = vdwg.mxu0
        %v6030 = vmax.f32 %v5983, 0.0
        %v6031 = vmax.f32 %v5986, 0.0
        %v6032 = vmax.f32 %v5989, 0.0
        %v6033 = vmax.f32 %v5992, 0.0
        %v6034 = vmax.f32 %v5995, 0.0
        %v6035 = vmax.f32 %v5998, 0.0
        %v6036 = vmax.f32 %v6001, 0.0
        %v6037 = vmax.f32 %v6004, 0.0
        %v6038 = vmax.f32 %v6007, 0.0
        %v6039 = vmax.f32 %v6010, 0.0
        %v6040 = vmax.f32 %v6013, 0.0
        %v6041 = vmax.f32 %v6016, 0.0
        %v6042 = vmax.f32 %v6019, 0.0
        %v6043 = vmax.f32 %v6022, 0.0
        %v6044 = vmax.f32 %v6025, 0.0
        %v6045 = vmax.f32 %v6028, 0.0
        %6047 = vset.pattern.permute.xlu0 0
        %6048 = vperm.xlu0 %6047, %v5883
        %v6049 = vpop.permute.xlu0 %6048
        %6051 = vmatpush.xpose.msra.mxu0 %v6045
        %6052 = vmatpush.xpose.msra.mxu0 %v6044
        %6053 = vmatpush.xpose.msra.mxu0 %v6043
        %6054 = vmatpush.xpose.msra.mxu0 %v6042
        %6055 = vmatpush.xpose.msra.mxu0 %v6041
        %6056 = vmatpush.xpose.msra.mxu0 %v6040
        %6057 = vmatpush.xpose.msra.mxu0 %v6039
        %6058 = vmatpush.xpose.msra.mxu0 %v6038
        %6059 = vmatpush.xpose.msra.mxu0 %v6037
        %6060 = vmatpush.xpose.msra.mxu0 %v6036
        %6061 = vmatpush.xpose.msra.mxu0 %v6035
        %6062 = vmatpush.xpose.msra.mxu0 %v6034
        %6063 = vmatpush.xpose.msra.mxu0 %v6033
        %6064 = vmatpush.xpose.msra.mxu0 %v6032
        %6065 = vmatpush.xpose.msra.mxu0 %v6031
        %6066 = vmatpush.xpose.msra.mxu0 %v6030
        %6067 = vmatmul.f32.gmra.mxu0 %v5882
        %v6068 = vpop.f32.mrf.mxu0
        %v6069 = vadd.f32 %v6049, %v6068
        %6070 = vdwg.mxu0
        %v6071 = vxor.u32 %v6069, 2147483648
        %v6072 = vmul.f32 %v6071, 1.442695
        %v6073 = vpow.pop %v6072
        %v6074 = vadd.f32 %v6073, 1.0
        %v6075 = vrcp.pop %v6074
        %v6076 = vmul.f32 %v6074, %v6075
        %v6077 = vsub.f32 1.0, %v6076
        %v6078 = vmul.f32 %v6075, %v6077
        %v6079 = vadd.f32 %v6075, %v6078
        %vm6080 = vweird.f32 %v6074
        %vm6081 = vweird.f32 %v6075
        %vm6082 = vmor %vm6080, %vm6081
        %v6083 = vsel %vm6082, %v6075, %v6079
        %v6084 = vand.u32 2147483647, %v6074
        %vm6085 = vcmp.eq.f32.partialorder %v6084, 8.507059e+37
        %v6086 = vand.u32 %v6074, 2147483648
        %v6087 = vor.u32 1.1754944e-38, %v6086
        %v6088 = vsel %vm6085, %v6087, %v6083
        %v6089 = vmul.f32 1.0, %v6088
        %6090 = vst [vmem:[%s300] sm:$0x1] %v6089
        %s6091 = sand.u32 %s191, 1
        %s6092 = scalar_lea.sflag [#allocation3], %s6091
        %s6093 = sand.u32 %s191, 1
        %s6094 = scalar_lea.vmem [#allocation2], %s6093
        // Predicated region
        $region49: #{gnn_forward.1} parent=47 // pred_check
          %p6095 = pneg %p201
        $region50: #{gnn_forward.1} parent=47 // pred_check_branch
          %6097 = sbr.rel (%p6095) target = $region52
        $region51: #{gnn_forward.1} parent=47 // pred_region
          %6099 = vsyncadd %s6092, 0
          %s6100 = scalar_lea.hbm %s7, %s21
          %s6102 = sshll.u32 %s6094, 4
          %s6103 = int_to_ptr.vmem [resolvable:$true] %s6102
          %s6104 = sshll.u32 %s6100, 4
          %s6105 = int_to_ptr.hbm [resolvable:$true] %s6104
          %6107 = dma.vmem_to_hbm [thread:$0]  %s6103, 16, %s6105, %s6092
        $region52: #{gnn_forward.1} parent=47 // pred_fallthru
          _
      $region48: #{gnn_forward.1} parent=5 // pred_fallthru
        _
      %p6108 = scmp.le.s32.totalorder 2, %s16
      // Predicated region
      $region53: #{gnn_forward.1} parent=5 // pred_check
        %p6109 = pneg %p6108
      $region54: #{gnn_forward.1} parent=5 // pred_check_branch
        %6111 = sbr.rel (%p6109) target = $region56
      $region55: #{gnn_forward.1} parent=5 // pred_region
        %s6112 = ssub.s32 %s16, 2
        // Predicated region
        $region57: #{gnn_forward.1} parent=55 // pred_check
          %p6113 = pneg %p207
        $region58: #{gnn_forward.1} parent=55 // pred_check_branch
          %6115 = sbr.rel (%p6113) target = $region60
        $region59: #{gnn_forward.1} parent=55 // pred_region
          %s6116 = sand.u32 %s192, 1
          %s6117 = scalar_lea.sflag [#allocation3], %s6116
          %s6118 = sand.u32 %s192, 1
          %s6119 = scalar_lea.vmem [#allocation2], %s6118
          %6121 = dma.done %s6117, 16
        $region60: #{gnn_forward.1} parent=55 // pred_fallthru
          _
      $region56: #{gnn_forward.1} parent=5 // pred_fallthru
        _
    $region6: #{gnn_forward.1} parent=1 // loop_footer
      %s20 = sadd.s32 1, %s16
    $region7: #{gnn_forward.1} parent=1 // loop_footer_branch
      %15 = sbr.rel target = $region3
    $region8: #{gnn_forward.1} parent=1 // loop_exit
      _
    %6122 = vsyncpa [#allocation3], 1
    %s6123 = scalar_lea.sflag [#allocation3], 1
    %6124 = vsyncpa %s6123, 1

</llo_original>
